<compile_context>
chip_gen: v7x
topology: tpu7x:2x2x1
jax: 0.10.0
libtpu: 0.0.40
codegen_flags: <defaults>
</compile_context>

<pallas_src>
import functools
import math

import jax
import jax.numpy as jnp
from jax.experimental import pallas as pl
from jax.experimental.pallas import tpu as pltpu

BN_EPS = 1e-5
_BN_SCALE = 1.0 / math.sqrt(1.0 + BN_EPS)  # BN fold at init (gamma=1, beta=0, mean=0, var=1)
LANE = 128
_VMEM_LIMIT = 32 * 1024 * 1024


# ------------------------------ small helpers ------------------------------

def _ru(x, m):
    return ((x + m - 1) // m) * m


def _cp(c):
    """Channel count padded to a lane-dense multiple of 128."""
    return _ru(c, LANE)


def _pad_to(a, shape):
    pads = tuple((0, t - s) for s, t in zip(a.shape, shape))
    if any(p[1] for p in pads):
        return jnp.pad(a, pads)
    return a


def _tile(dim, cap, align):
    """Pick a tile size (<= cap, multiple of align) and the padded extent."""
    t = max(align, min(cap, _ru(dim, align)))
    return t, _ru(dim, t)


def _channel_tile(c):
    for t in (512, 256, 128):
        if c % t == 0:
            return t
    return c


def _cparams(sem):
    return pltpu.CompilerParams(dimension_semantics=sem,
                                vmem_limit_bytes=_VMEM_LIMIT)


def _apply_act(y, act):
    if act == "silu":
        return y * jax.nn.sigmoid(y)
    if act == "sigmoid":
        return jax.nn.sigmoid(y)
    return y


# ----------------------------- Pallas kernels ------------------------------

def _gemm_kernel(x_ref, w_ref, b_ref, o_ref, acc_ref, *, act):
    """Tiled GEMM: act((x @ w) + bias).  BN scale is pre-folded into w."""
    k = pl.program_id(2)

    @pl.when(k == 0)
    def _():
        acc_ref[...] = jnp.zeros_like(acc_ref)

    acc_ref[...] += jnp.dot(x_ref[...], w_ref[...],
                            preferred_element_type=jnp.float32)

    @pl.when(k == pl.num_programs(2) - 1)
    def _():
        y = acc_ref[...] + b_ref[...]
        o_ref[...] = _apply_act(y, act).astype(o_ref.dtype)


def _proj_kernel(*refs, has_res):
    """MBConv projection GEMM with fused SE rescale (prologue) and residual
    add (epilogue):  out = (x * s) @ w + bias [+ residual]."""
    if has_res:
        x_ref, s_ref, w_ref, b_ref, r_ref, o_ref, acc_ref = refs
    else:
        x_ref, s_ref, w_ref, b_ref, o_ref, acc_ref = refs
        r_ref = None
    k = pl.program_id(3)

    @pl.when(k == 0)
    def _():
        acc_ref[...] = jnp.zeros_like(acc_ref)

    xs = x_ref[0].astype(jnp.float32) * s_ref[0].astype(jnp.float32)
    acc_ref[...] += jnp.dot(xs.astype(jnp.bfloat16), w_ref[...],
                            preferred_element_type=jnp.float32)

    @pl.when(k == pl.num_programs(3) - 1)
    def _():
        y = acc_ref[...] + b_ref[...]
        if has_res:
            y = y + r_ref[0].astype(jnp.float32)
        o_ref[0] = y.astype(o_ref.dtype)


def _dw_s1_kernel(x_ref, w_ref, b_ref, o_ref, *, k):
    """Stride-1 depthwise conv + BN + SiLU.  The padded activation block is
    loaded once and the k*k taps are formed by in-kernel shifted slices."""
    x = x_ref[0].astype(jnp.float32)          # (Hp, Wp, C)
    hp, wp, c = x.shape
    ho, wo = hp - (k - 1), wp - (k - 1)
    w = w_ref[...].astype(jnp.float32)        # (k*k, C)
    acc = jnp.zeros((ho, wo, c), jnp.float32)
    for di in range(k):
        for dj in range(k):
            tap = x[di:di + ho, dj:dj + wo, :]
            acc = acc + tap * w[di * k + dj]
    y = acc + b_ref[0]
    o_ref[0] = (y * jax.nn.sigmoid(y)).astype(o_ref.dtype)


def _dw_taps_kernel(p_ref, w_ref, b_ref, o_ref):
    """Generic depthwise conv from pre-extracted taps (used for stride > 1)."""
    p = p_ref[...].astype(jnp.float32)        # (KK, tm, tc)
    w = w_ref[...].astype(jnp.float32)        # (KK, 1, tc)
    acc = jnp.sum(p * w, axis=0)              # (tm, tc)
    y = acc + b_ref[...]
    o_ref[...] = (y * jax.nn.sigmoid(y)).astype(o_ref.dtype)


def _se_kernel(x_ref, w1_ref, b1_ref, w2_ref, b2_ref, o_ref):
    """Fused SqueezeExcitation: GAP -> FC1 -> FC2 -> SiLU -> Sigmoid.
    (Activation order matches the reference module.)"""
    x = x_ref[0].astype(jnp.float32)                         # (L, C)
    pooled = jnp.mean(x, axis=0, keepdims=True)              # (1, C)
    h = jnp.dot(pooled.astype(jnp.bfloat16), w1_ref[...],
                preferred_element_type=jnp.float32) + b1_ref[...]
    z = jnp.dot(h.astype(jnp.bfloat16), w2_ref[...],
                preferred_element_type=jnp.float32) + b2_ref[...]
    z = z * jax.nn.sigmoid(z)                                # SiLU
    o_ref[0] = jax.nn.sigmoid(z).astype(o_ref.dtype)         # Sigmoid


def _head_kernel(x_ref, w_ref, b_ref, o_ref):
    """Fused global average pool + final Linear layer."""
    x = x_ref[0].astype(jnp.float32)                         # (L, 1280)
    pooled = jnp.mean(x, axis=0, keepdims=True)              # (1, 1280)
    y = jnp.dot(pooled.astype(jnp.bfloat16), w_ref[...],
                preferred_element_type=jnp.float32) + b_ref[...]
    o_ref[0] = y


# --------------------------- pallas_call wrappers ---------------------------

def pallas_gemm(x, w, shift, act=None):
    """act((x @ w) + shift), tiled over (M, N, K), bf16 in / bf16 out."""
    M, K = x.shape
    N = w.shape[1]
    tm, Mp = _tile(M, 256, 8)
    tk, Kp = _tile(K, 512, 128)
    tn, Np = _tile(N, 256, 128)
    xp = _pad_to(x.astype(jnp.bfloat16), (Mp, Kp))
    wp = _pad_to(w.astype(jnp.bfloat16), (Kp, Np))
    bp = _pad_to(shift.reshape(1, N).astype(jnp.float32), (1, Np))
    grid = (Mp // tm, Np // tn, Kp // tk)
    out = pl.pallas_call(
        functools.partial(_gemm_kernel, act=act),
        grid=grid,
        in_specs=[pl.BlockSpec((tm, tk), lambda i, j, k: (i, k)),
                  pl.BlockSpec((tk, tn), lambda i, j, k: (k, j)),
                  pl.BlockSpec((1, tn), lambda i, j, k: (0, j))],
        out_specs=pl.BlockSpec((tm, tn), lambda i, j, k: (i, j)),
        out_shape=jax.ShapeDtypeStruct((Mp, Np), jnp.bfloat16),
        scratch_shapes=[pltpu.VMEM((tm, tn), jnp.float32)],
        compiler_params=_cparams(("parallel", "parallel", "arbitrary")),
    )(xp, wp, bp)
    return out[:M, :N]


def pallas_proj_se_res(x_nlc, s_n1c, w, shift, residual=None):
    """Projection 1x1 conv with fused SE rescale and optional residual."""
    N, L, K = x_nlc.shape
    Co = w.shape[1]
    tl, Lp = _tile(L, 256, 8)
    tk, Kp = _tile(K, 512, 128)
    tn, Cop = _tile(Co, 256, 128)
    xp = _pad_to(x_nlc.astype(jnp.bfloat16), (N, Lp, Kp))
    sp = _pad_to(s_n1c.astype(jnp.bfloat16), (N, 1, Kp))
    wp = _pad_to(w.astype(jnp.bfloat16), (Kp, Cop))
    bp = _pad_to(shift.reshape(1, Co).astype(jnp.float32), (1, Cop))
    has_res = residual is not None
    inputs = [xp, sp, wp, bp]
    in_specs = [pl.BlockSpec((1, tl, tk), lambda b, l, j, k: (b, l, k)),
                pl.BlockSpec((1, 1, tk), lambda b, l, j, k: (b, 0, k)),
                pl.BlockSpec((tk, tn), lambda b, l, j, k: (k, j)),
                pl.BlockSpec((1, tn), lambda b, l, j, k: (0, j))]
    if has_res:
        rp = _pad_to(residual.astype(jnp.bfloat16), (N, Lp, Cop))
        inputs.append(rp)
        in_specs.append(pl.BlockSpec((1, tl, tn), lambda b, l, j, k: (b, l, j)))
    grid = (N, Lp // tl, Cop // tn, Kp // tk)
    out = pl.pallas_call(
        functools.partial(_proj_kernel, has_res=has_res),
        grid=grid,
        in_specs=in_specs,
        out_specs=pl.BlockSpec((1, tl, tn), lambda b, l, j, k: (b, l, j)),
        out_shape=jax.ShapeDtypeStruct((N, Lp, Cop), jnp.bfloat16),
        scratch_shapes=[pltpu.VMEM((tl, tn), jnp.float32)],
        compiler_params=_cparams(("parallel", "parallel", "parallel",
                                  "arbitrary")),
    )(*inputs)
    return out[:, :L, :Co]


def pallas_dw_stride1(x_nhwc, w_kkc, shift, k, padding):
    """Stride-1 depthwise conv + BN + SiLU, taps formed in-kernel."""
    N, H, W, C = x_nhwc.shape
    xp = jnp.pad(x_nhwc.astype(jnp.bfloat16),
                 ((0, 0), (padding, padding), (padding, padding), (0, 0)))
    Hp, Wp = H + 2 * padding, W + 2 * padding
    Ho, Wo = Hp - (k - 1), Wp - (k - 1)
    tc = _channel_tile(C)
    grid = (N, C // tc)
    # TODO(synk): at large resolutions the per-image block should be row-tiled
    # with an explicit halo instead of loading (Hp, Wp, tc) whole.
    out = pl.pallas_call(
        functools.partial(_dw_s1_kernel, k=k),
        grid=grid,
        in_specs=[pl.BlockSpec((1, Hp, Wp, tc), lambda n, c: (n, 0, 0, c)),
                  pl.BlockSpec((k * k, tc), lambda n, c: (0, c)),
                  pl.BlockSpec((1, tc), lambda n, c: (0, c))],
        out_specs=pl.BlockSpec((1, Ho, Wo, tc), lambda n, c: (n, 0, 0, c)),
        out_shape=jax.ShapeDtypeStruct((N, Ho, Wo, C), jnp.bfloat16),
        compiler_params=_cparams(("parallel", "parallel")),
    )(xp, w_kkc.astype(jnp.bfloat16),
      shift.reshape(1, C).astype(jnp.float32))
    return out


def pallas_dw_taps(x_nhwc, w_kkc, shift, k, stride, padding):
    """Depthwise conv + BN + SiLU for stride > 1 via pre-extracted taps."""
    N, H, W, C = x_nhwc.shape
    xp = jnp.pad(x_nhwc.astype(jnp.bfloat16),
                 ((0, 0), (padding, padding), (padding, padding), (0, 0)))
    Ho = (H + 2 * padding - k) // stride + 1
    Wo = (W + 2 * padding - k) // stride + 1
    taps = [xp[:, di:di + stride * Ho:stride, dj:dj + stride * Wo:stride, :]
            for di in range(k) for dj in range(k)]
    p = jnp.stack(taps, axis=0).reshape(k * k, N * Ho * Wo, C)
    M = N * Ho * Wo
    tm, Mp = _tile(M, 256, 8)
    tc = _channel_tile(C)
    pp = _pad_to(p, (k * k, Mp, C))
    grid = (Mp // tm, C // tc)
    out = pl.pallas_call(
        _dw_taps_kernel,
        grid=grid,
        in_specs=[pl.BlockSpec((k * k, tm, tc), lambda m, c: (0, m, c)),
                  pl.BlockSpec((k * k, 1, tc), lambda m, c: (0, 0, c)),
                  pl.BlockSpec((1, tc), lambda m, c: (0, c))],
        out_specs=pl.BlockSpec((tm, tc), lambda m, c: (m, c)),
        out_shape=jax.ShapeDtypeStruct((Mp, C), jnp.bfloat16),
        compiler_params=_cparams(("parallel", "parallel")),
    )(pp, w_kkc.reshape(k * k, 1, C).astype(jnp.bfloat16),
      shift.reshape(1, C).astype(jnp.float32))
    return out[:M].reshape(N, Ho, Wo, C)


def pallas_se(x_nhwc, w1, b1, w2, b2):
    """Fused GAP + FC1 + FC2 + SiLU + Sigmoid.  Returns scale (N, 1, C)."""
    N, H, W, C = x_nhwc.shape
    L = H * W
    x3 = x_nhwc.reshape(N, L, C).astype(jnp.bfloat16)
    Rp = w1.shape[1]
    out = pl.pallas_call(
        _se_kernel,
        grid=(N,),
        in_specs=[pl.BlockSpec((1, L, C), lambda n: (n, 0, 0)),
                  pl.BlockSpec((C, Rp), lambda n: (0, 0)),
                  pl.BlockSpec((1, Rp), lambda n: (0, 0)),
                  pl.BlockSpec((Rp, C), lambda n: (0, 0)),
                  pl.BlockSpec((1, C), lambda n: (0, 0))],
        out_specs=pl.BlockSpec((1, 1, C), lambda n: (n, 0, 0)),
        out_shape=jax.ShapeDtypeStruct((N, 1, C), jnp.bfloat16),
        compiler_params=_cparams(("parallel",)),
    )(x3, w1.astype(jnp.bfloat16), b1.reshape(1, Rp).astype(jnp.float32),
      w2.astype(jnp.bfloat16), b2.reshape(1, C).astype(jnp.float32))
    return out


def pallas_head(x_nhwc, w, b, num_classes):
    """Fused AdaptiveAvgPool + Flatten + Linear."""
    N, H, W, C = x_nhwc.shape
    L = H * W
    x3 = x_nhwc.reshape(N, L, C).astype(jnp.bfloat16)
    Co = w.shape[1]
    out = pl.pallas_call(
        _head_kernel,
        grid=(N,),
        in_specs=[pl.BlockSpec((1, L, C), lambda n: (n, 0, 0)),
                  pl.BlockSpec((C, Co), lambda n: (0, 0)),
                  pl.BlockSpec((1, Co), lambda n: (0, 0))],
        out_specs=pl.BlockSpec((1, 1, Co), lambda n: (n, 0, 0)),
        out_shape=jax.ShapeDtypeStruct((N, 1, Co), jnp.float32),
        compiler_params=_cparams(("parallel",)),
    )(x3, w.astype(jnp.bfloat16), b.reshape(1, Co).astype(jnp.float32))
    return out.reshape(N, Co)[:, :num_classes]


# ------------------------------- glue (JAX) --------------------------------

def _im2col(x, k, stride, padding):
    """x: (N, H, W, C) -> patches (N, Ho, Wo, k*k, C).  Used for standard conv."""
    N, H, W, C = x.shape
    xp = jnp.pad(x, ((0, 0), (padding, padding), (padding, padding), (0, 0)))
    Ho = (H + 2 * padding - k) // stride + 1
    Wo = (W + 2 * padding - k) // stride + 1
    taps = []
    for di in range(k):
        for dj in range(k):
            taps.append(xp[:, di:di + stride * Ho:stride,
                           dj:dj + stride * Wo:stride, :])
    patches = jnp.stack(taps, axis=3)
    return patches, Ho, Wo


def conv_bn_act(x, p, act):
    """Standard conv (groups=1) via im2col + tiled Pallas GEMM (BN folded)."""
    k, s, pad = p["k"], p["s"], p["pad"]
    N, H, W, C = x.shape
    Cout = p["w"].shape[1]
    if k == 1 and s == 1:
        y = pallas_gemm(x.reshape(N * H * W, C), p["w"], p["shift"], act)
        return y.reshape(N, H, W, Cout)
    patches, Ho, Wo = _im2col(x, k, s, pad)
    cols = patches.reshape(N * Ho * Wo, k * k * C)
    y = pallas_gemm(cols, p["w"], p["shift"], act)
    return y.reshape(N, Ho, Wo, Cout)


def _apply_mbconv(x, p):
    out = x
    if p["expand"] is not None:
        e = p["expand"]
        N, H, W, C = out.shape
        out = pallas_gemm(out.reshape(N * H * W, C), e["w"], e["shift"],
                          act="silu").reshape(N, H, W, e["w"].shape[1])
    d = p["dw"]
    if p["s"] == 1:
        out = pallas_dw_stride1(out, d["w"], d["shift"], p["k"], p["pad"])
    else:
        out = pallas_dw_taps(out, d["w"], d["shift"], p["k"], p["s"], p["pad"])
    se = p["se"]
    s_nc = pallas_se(out, se["w1"], se["b1"], se["w2"], se["b2"])   # (N,1,Ce)
    N, Ho, Wo, Ce = out.shape
    pr = p["proj"]
    res = x.reshape(N, Ho * Wo, x.shape[-1]) if p["use_residual"] else None
    y = pallas_proj_se_res(out.reshape(N, Ho * Wo, Ce), s_nc,
                           pr["w"], pr["shift"], res)
    # StochasticDepthBlock: identity in eval mode.
    return y.reshape(N, Ho, Wo, pr["w"].shape[1])


def efficientnet_forward(params, x_nchw):
    x = jnp.transpose(x_nchw, (0, 2, 3, 1)).astype(jnp.bfloat16)  # NCHW->NHWC
    for kind, p in params:
        if kind == "conv":
            x = conv_bn_act(x, p, "silu")
        elif kind == "mbconv":
            x = _apply_mbconv(x, p)
        elif kind == "fc":
            x = pallas_head(x, p["w"], p["b"], p["num_classes"])
    return x


# ----------------------------- parameter setup -----------------------------

class KeyGen:
    def __init__(self, seed):
        self.key = jax.random.PRNGKey(seed)

    def __call__(self):
        self.key, sub = jax.random.split(self.key)
        return sub


def _kaiming_conv(kg, k, cin, cout, depthwise=False):
    # PyTorch kaiming_normal_(mode='fan_out'): fan_out = out_channels * k * k
    std = math.sqrt(2.0 / (cout * k * k))
    shape = (k, k, cout) if depthwise else (k, k, cin, cout)
    return std * jax.random.normal(kg(), shape, jnp.float32)


def _make_conv_block(kg, cin, cin_p, cout, k, s, pad):
    w = _kaiming_conv(kg, k, cin, cout) * _BN_SCALE       # BN scale folded
    cout_p = _cp(cout)
    wp = jnp.zeros((k, k, cin_p, cout_p), jnp.float32)
    wp = wp.at[:, :, :cin, :cout].set(w)
    wp = wp.reshape(k * k * cin_p, cout_p).astype(jnp.bfloat16)
    return {"w": wp, "shift": jnp.zeros((cout_p,), jnp.float32),
            "k": k, "s": s, "pad": pad}


def _make_mbconv(kg, cin, cin_p, cout, k, s, pad, exp_ratio, red_ratio):
    cout_p = _cp(cout)
    exp_ch = cin * exp_ratio
    exp_p = _cp(exp_ch)

    expand = None
    if exp_ratio > 1:
        w = _kaiming_conv(kg, 1, cin, exp_ch).reshape(cin, exp_ch) * _BN_SCALE
        wp = jnp.zeros((cin_p, exp_p), jnp.float32).at[:cin, :exp_ch].set(w)
        expand = {"w": wp.astype(jnp.bfloat16),
                  "shift": jnp.zeros((exp_p,), jnp.float32)}

    dw_w = _kaiming_conv(kg, k, exp_ch, exp_ch, depthwise=True) * _BN_SCALE
    dw_wp = jnp.zeros((k, k, exp_p), jnp.float32).at[:, :, :exp_ch].set(dw_w)
    dw = {"w": dw_wp.reshape(k * k, exp_p).astype(jnp.bfloat16),
          "shift": jnp.zeros((exp_p,), jnp.float32)}

    hidden = exp_ch // red_ratio
    hid_p = _cp(hidden)
    w1 = _kaiming_conv(kg, 1, exp_ch, hidden).reshape(exp_ch, hidden)
    w1p = jnp.zeros((exp_p, hid_p), jnp.float32).at[:exp_ch, :hidden].set(w1)
    w2 = _kaiming_conv(kg, 1, hidden, exp_ch).reshape(hidden, exp_ch)
    w2p = jnp.zeros((hid_p, exp_p), jnp.float32).at[:hidden, :exp_ch].set(w2)
    se = {"w1": w1p.astype(jnp.bfloat16), "b1": jnp.zeros((hid_p,), jnp.float32),
          "w2": w2p.astype(jnp.bfloat16), "b2": jnp.zeros((exp_p,), jnp.float32)}

    pr_w = _kaiming_conv(kg, 1, exp_ch, cout).reshape(exp_ch, cout) * _BN_SCALE
    pr_wp = jnp.zeros((exp_p, cout_p), jnp.float32).at[:exp_ch, :cout].set(pr_w)
    proj = {"w": pr_wp.astype(jnp.bfloat16),
            "shift": jnp.zeros((cout_p,), jnp.float32)}

    return {"expand": expand, "dw": dw, "se": se, "proj": proj,
            "k": k, "s": s, "pad": pad,
            "use_residual": (cin == cout and s == 1)}


def _make_fc(kg, in_features, num_classes):
    init_range = 1.0 / math.sqrt(num_classes)
    w = jax.random.uniform(kg(), (in_features, num_classes),
                           minval=-init_range, maxval=init_range,
                           dtype=jnp.float32)
    cls_p = _cp(num_classes)
    wp = jnp.zeros((in_features, cls_p), jnp.float32).at[:, :num_classes].set(w)
    return {"w": wp.astype(jnp.bfloat16),
            "b": jnp.zeros((cls_p,), jnp.float32),
            "num_classes": num_classes}


def build_params(cfg, total_classes, kg):
    layers = []
    in_ch, in_p = 3, 3
    for layer in cfg:
        t = layer[0]
        if t == "ConvBlock":
            for _ in range(layer[-1]):
                layers.append(("conv", _make_conv_block(
                    kg, in_ch, in_p, layer[5], layer[2], layer[3], layer[4])))
                in_ch, in_p = layer[5], _cp(layer[5])
        elif t == "MBConvBlock":
            reps = layer[-1]
            strides = [layer[3]] + [1] * (reps - 1)
            for s in strides:
                layers.append(("mbconv", _make_mbconv(
                    kg, in_ch, in_p, layer[5], layer[2], s, layer[4],
                    layer[1], layer[6])))
                in_ch, in_p = layer[5], _cp(layer[5])
        elif t == "FCLayer":
            layers.append(("fc", _make_fc(kg, 1280, total_classes)))
        elif t == "PoolingBlock":
            # TODO(synk): nn.MaxPool2d (PoolingBlock) not exercised by this cfg.
            raise NotImplementedError("PoolingBlock not implemented")
        else:
            raise ValueError(f"Unknown layer type {t}")
    return layers


# --------------------------------- main -------------------------------------

if __name__ == "__main__":
    # Small EfficientNet-style config:
    #   (type, expansion, kernel, stride, padding, out_ch, reduction, repeats)
    cfg = [
        ("ConvBlock",   None, 3, 2, 1, 32,   None, 1),
        ("MBConvBlock", 1,    3, 1, 1, 16,   4,    1),
        ("MBConvBlock", 6,    3, 2, 1, 24,   4,    2),
        ("ConvBlock",   None, 1, 1, 0, 1280, None, 1),
        ("FCLayer",),
    ]
    total_classes = 10

    kg = KeyGen(0)
    params = build_params(cfg, total_classes, kg)

    x = jax.random.normal(jax.random.PRNGKey(0), (2, 3, 16, 16), jnp.float32)

    fwd = jax.jit(lambda inp: efficientnet_forward(params, inp))
    out = fwd(x)
    jax.block_until_ready(out)
    assert out.shape == (2, total_classes), out.shape
    assert bool(jnp.all(jnp.isfinite(out)))
    print("KERNEL_OK")
</pallas_src>

<mosaic_0001>
module attributes {stable_mosaic.version = 11 : i64} {
  func.func @_gemm_kernel(%arg0: i32, %arg1: i32, %arg2: i32, %arg3: memref<128x128xbf16, #tpu.memory_space<vmem>>, %arg4: memref<128x128xbf16, #tpu.memory_space<vmem>>, %arg5: memref<1x128xf32, #tpu.memory_space<vmem>>, %arg6: memref<128x128xbf16, #tpu.memory_space<vmem>>, %arg7: memref<128x128xf32, #tpu.memory_space<vmem>>) attributes {dimension_semantics = [#tpu.dimension_semantics<parallel>, #tpu.dimension_semantics<parallel>, #tpu.dimension_semantics<arbitrary>], iteration_bounds = array<i64: 1, 1, 1>, scalar_prefetch = 0 : i64, scratch_operands = 1 : i64, tpu.core_type = #tpu.core_type<tc>, window_params = [{transform_indices = @transform_0, window_bounds = array<i64: 128, 128>}, {transform_indices = @transform_1, window_bounds = array<i64: 128, 128>}, {transform_indices = @transform_2, window_bounds = array<i64: 1, 128>}, {transform_indices = @transform_3, window_bounds = array<i64: 128, 128>}]} {
    %c0_i32 = arith.constant 0 : i32
    %0 = arith.cmpi eq, %arg2, %c0_i32 : i32
    %1 = arith.extui %0 : i1 to i32
    %c0_i32_0 = arith.constant 0 : i32
    %2 = arith.cmpi ne, %1, %c0_i32_0 : i32
    scf.if %2 {
      %cst_10 = arith.constant 0.000000e+00 : f32
      %12 = vector.broadcast %cst_10 : f32 to vector<128x128xf32>
      %c0_11 = arith.constant 0 : index
      %c0_12 = arith.constant 0 : index
      %13 = vector.load %arg7[%c0_11, %c0_12] : memref<128x128xf32, #tpu.memory_space<vmem>>, vector<128x128xf32>
      tpu.vector_store %arg7[%c0_11, %c0_12], %12 {strides = array<i32>} : memref<128x128xf32, #tpu.memory_space<vmem>>, vector<128x128xf32>,
    } else {
    }
    %c0 = arith.constant 0 : index
    %c0_1 = arith.constant 0 : index
    %3 = vector.load %arg7[%c0, %c0_1] : memref<128x128xf32, #tpu.memory_space<vmem>>, vector<128x128xf32>
    %c0_2 = arith.constant 0 : index
    %c0_3 = arith.constant 0 : index
    %4 = vector.load %arg3[%c0_2, %c0_3] : memref<128x128xbf16, #tpu.memory_space<vmem>>, vector<128x128xbf16>
    %c0_4 = arith.constant 0 : index
    %c0_5 = arith.constant 0 : index
    %5 = vector.load %arg4[%c0_4, %c0_5] : memref<128x128xbf16, #tpu.memory_space<vmem>>, vector<128x128xbf16>
    %cst = arith.constant dense<0.000000e+00> : vector<128x128xf32>
    %6 = tpu.matmul %4, %5, %cst {dimension_numbers = #tpu.dot_dimension_numbers<[1], [0], [0], [1], [0, 0, 1, 1], [], []>} : vector<128x128xbf16>, vector<128x128xbf16>, vector<128x128xf32> -> vector<128x128xf32>
    %7 = arith.addf %3, %6 : vector<128x128xf32>
    %c0_6 = arith.constant 0 : index
    %c0_7 = arith.constant 0 : index
    %8 = vector.load %arg7[%c0_6, %c0_7] : memref<128x128xf32, #tpu.memory_space<vmem>>, vector<128x128xf32>
    tpu.vector_store %arg7[%c0_6, %c0_7], %7 {strides = array<i32>} : memref<128x128xf32, #tpu.memory_space<vmem>>, vector<128x128xf32>,
    %c0_i32_8 = arith.constant 0 : i32
    %9 = arith.cmpi eq, %arg2, %c0_i32_8 : i32
    %10 = arith.extui %9 : i1 to i32
    %c0_i32_9 = arith.constant 0 : i32
    %11 = arith.cmpi ne, %10, %c0_i32_9 : i32
    scf.if %11 {
      %c0_10 = arith.constant 0 : index
      %c0_11 = arith.constant 0 : index
      %12 = vector.load %arg7[%c0_10, %c0_11] : memref<128x128xf32, #tpu.memory_space<vmem>>, vector<128x128xf32>
      %c0_12 = arith.constant 0 : index
      %c0_13 = arith.constant 0 : index
      %13 = vector.load %arg5[%c0_12, %c0_13] : memref<1x128xf32, #tpu.memory_space<vmem>>, vector<1x128xf32>
      %14 = vector.broadcast %13 : vector<1x128xf32> to vector<128x128xf32>
      %15 = arith.addf %12, %14 : vector<128x128xf32>
      %16 = arith.negf %15 : vector<128x128xf32>
      %17 = math.exp %16 : vector<128x128xf32>
      %cst_14 = arith.constant 1.000000e+00 : f32
      %18 = vector.broadcast %cst_14 : f32 to vector<128x128xf32>
      %19 = arith.addf %18, %17 : vector<128x128xf32>
      %20 = arith.divf %18, %19 : vector<128x128xf32>
      %21 = arith.mulf %15, %20 : vector<128x128xf32>
      %22 = arith.truncf %21 : vector<128x128xf32> to vector<128x128xbf16>
      %c0_15 = arith.constant 0 : index
      %c0_16 = arith.constant 0 : index
      %23 = vector.load %arg6[%c0_15, %c0_16] : memref<128x128xbf16, #tpu.memory_space<vmem>>, vector<128x128xbf16>
      tpu.vector_store %arg6[%c0_15, %c0_16], %22 {strides = array<i32>} : memref<128x128xbf16, #tpu.memory_space<vmem>>, vector<128x128xbf16>,
    } else {
    }
    return
  }
  func.func @transform_0(%arg0: i32, %arg1: i32, %arg2: i32) -> (i32, i32) {
    %c0_i32 = arith.constant 0 : i32
    return %arg0, %arg2 : i32, i32
  }
  func.func @transform_1(%arg0: i32, %arg1: i32, %arg2: i32) -> (i32, i32) {
    %c0_i32 = arith.constant 0 : i32
    return %arg2, %arg1 : i32, i32
  }
  func.func @transform_2(%arg0: i32, %arg1: i32, %arg2: i32) -> (i32, i32) {
    %c0_i32 = arith.constant 0 : i32
    %c0_i32_0 = arith.constant 0 : i32
    return %c0_i32, %arg1 : i32, i32
  }
  func.func @transform_3(%arg0: i32, %arg1: i32, %arg2: i32) -> (i32, i32) {
    %c0_i32 = arith.constant 0 : i32
    return %arg0, %arg1 : i32, i32
  }
}

module attributes {stable_mosaic.version = 11 : i64} {
  func.func @_dw_s1_kernel(%arg0: i32, %arg1: i32, %arg2: memref<1x10x10x128xbf16, #tpu.memory_space<vmem>>, %arg3: memref<9x128xbf16, #tpu.memory_space<vmem>>, %arg4: memref<1x128xf32, #tpu.memory_space<vmem>>, %arg5: memref<1x8x8x128xbf16, #tpu.memory_space<vmem>>) attributes {dimension_semantics = [#tpu.dimension_semantics<parallel>, #tpu.dimension_semantics<parallel>], iteration_bounds = array<i64: 2, 1>, scalar_prefetch = 0 : i64, scratch_operands = 0 : i64, tpu.core_type = #tpu.core_type<tc>, window_params = [{transform_indices = @transform_0, window_bounds = array<i64: 1, 10, 10, 128>}, {transform_indices = @transform_1, window_bounds = array<i64: 9, 128>}, {transform_indices = @transform_2, window_bounds = array<i64: 1, 128>}, {transform_indices = @transform_3, window_bounds = array<i64: 1, 8, 8, 128>}]} {
    %c0 = arith.constant 0 : index
    %c0_0 = arith.constant 0 : index
    %c0_1 = arith.constant 0 : index
    %c0_2 = arith.constant 0 : index
    %0 = vector.load %arg2[%c0, %c0_0, %c0_1, %c0_2] : memref<1x10x10x128xbf16, #tpu.memory_space<vmem>>, vector<1x10x10x128xbf16>
    %1 = vector.shape_cast %0 : vector<1x10x10x128xbf16> to vector<10x10x128xbf16>
    %2 = arith.extf %1 : vector<10x10x128xbf16> to vector<10x10x128xf32>
    %c0_3 = arith.constant 0 : index
    %c0_4 = arith.constant 0 : index
    %3 = vector.load %arg3[%c0_3, %c0_4] : memref<9x128xbf16, #tpu.memory_space<vmem>>, vector<9x128xbf16>
    %4 = arith.extf %3 : vector<9x128xbf16> to vector<9x128xf32>
    %cst = arith.constant 0.000000e+00 : f32
    %5 = vector.broadcast %cst : f32 to vector<8x8x128xf32>
    %6 = vector.extract_strided_slice %2 {offsets = [0, 0, 0], sizes = [8, 8, 128], strides = [1, 1, 1]} : vector<10x10x128xf32> to vector<8x8x128xf32>
    %7 = vector.extract_strided_slice %4 {offsets = [0, 0], sizes = [1, 128], strides = [1, 1]} : vector<9x128xf32> to vector<1x128xf32>
    %8 = vector.shape_cast %7 : vector<1x128xf32> to vector<128xf32>
    %9 = vector.shape_cast %8 : vector<128xf32> to vector<1x1x128xf32>
    %10 = vector.broadcast %9 : vector<1x1x128xf32> to vector<8x8x128xf32>
    %11 = arith.mulf %6, %10 : vector<8x8x128xf32>
    %12 = arith.addf %5, %11 : vector<8x8x128xf32>
    %13 = vector.extract_strided_slice %2 {offsets = [0, 1, 0], sizes = [8, 8, 128], strides = [1, 1, 1]} : vector<10x10x128xf32> to vector<8x8x128xf32>
    %14 = vector.extract_strided_slice %4 {offsets = [1, 0], sizes = [1, 128], strides = [1, 1]} : vector<9x128xf32> to vector<1x128xf32>
    %15 = vector.shape_cast %14 : vector<1x128xf32> to vector<128xf32>
    %16 = vector.shape_cast %15 : vector<128xf32> to vector<1x1x128xf32>
    %17 = vector.broadcast %16 : vector<1x1x128xf32> to vector<8x8x128xf32>
    %18 = arith.mulf %13, %17 : vector<8x8x128xf32>
    %19 = arith.addf %12, %18 : vector<8x8x128xf32>
    %20 = vector.extract_strided_slice %2 {offsets = [0, 2, 0], sizes = [8, 8, 128], strides = [1, 1, 1]} : vector<10x10x128xf32> to vector<8x8x128xf32>
    %21 = vector.extract_strided_slice %4 {offsets = [2, 0], sizes = [1, 128], strides = [1, 1]} : vector<9x128xf32> to vector<1x128xf32>
    %22 = vector.shape_cast %21 : vector<1x128xf32> to vector<128xf32>
    %23 = vector.shape_cast %22 : vector<128xf32> to vector<1x1x128xf32>
    %24 = vector.broadcast %23 : vector<1x1x128xf32> to vector<8x8x128xf32>
    %25 = arith.mulf %20, %24 : vector<8x8x128xf32>
    %26 = arith.addf %19, %25 : vector<8x8x128xf32>
    %27 = vector.extract_strided_slice %2 {offsets = [1, 0, 0], sizes = [8, 8, 128], strides = [1, 1, 1]} : vector<10x10x128xf32> to vector<8x8x128xf32>
    %28 = vector.extract_strided_slice %4 {offsets = [3, 0], sizes = [1, 128], strides = [1, 1]} : vector<9x128xf32> to vector<1x128xf32>
    %29 = vector.shape_cast %28 : vector<1x128xf32> to vector<128xf32>
    %30 = vector.shape_cast %29 : vector<128xf32> to vector<1x1x128xf32>
    %31 = vector.broadcast %30 : vector<1x1x128xf32> to vector<8x8x128xf32>
    %32 = arith.mulf %27, %31 : vector<8x8x128xf32>
    %33 = arith.addf %26, %32 : vector<8x8x128xf32>
    %34 = vector.extract_strided_slice %2 {offsets = [1, 1, 0], sizes = [8, 8, 128], strides = [1, 1, 1]} : vector<10x10x128xf32> to vector<8x8x128xf32>
    %35 = vector.extract_strided_slice %4 {offsets = [4, 0], sizes = [1, 128], strides = [1, 1]} : vector<9x128xf32> to vector<1x128xf32>
    %36 = vector.shape_cast %35 : vector<1x128xf32> to vector<128xf32>
    %37 = vector.shape_cast %36 : vector<128xf32> to vector<1x1x128xf32>
    %38 = vector.broadcast %37 : vector<1x1x128xf32> to vector<8x8x128xf32>
    %39 = arith.mulf %34, %38 : vector<8x8x128xf32>
    %40 = arith.addf %33, %39 : vector<8x8x128xf32>
    %41 = vector.extract_strided_slice %2 {offsets = [1, 2, 0], sizes = [8, 8, 128], strides = [1, 1, 1]} : vector<10x10x128xf32> to vector<8x8x128xf32>
    %42 = vector.extract_strided_slice %4 {offsets = [5, 0], sizes = [1, 128], strides = [1, 1]} : vector<9x128xf32> to vector<1x128xf32>
    %43 = vector.shape_cast %42 : vector<1x128xf32> to vector<128xf32>
    %44 = vector.shape_cast %43 : vector<128xf32> to vector<1x1x128xf32>
    %45 = vector.broadcast %44 : vector<1x1x128xf32> to vector<8x8x128xf32>
    %46 = arith.mulf %41, %45 : vector<8x8x128xf32>
    %47 = arith.addf %40, %46 : vector<8x8x128xf32>
    %48 = vector.extract_strided_slice %2 {offsets = [2, 0, 0], sizes = [8, 8, 128], strides = [1, 1, 1]} : vector<10x10x128xf32> to vector<8x8x128xf32>
    %49 = vector.extract_strided_slice %4 {offsets = [6, 0], sizes = [1, 128], strides = [1, 1]} : vector<9x128xf32> to vector<1x128xf32>
    %50 = vector.shape_cast %49 : vector<1x128xf32> to vector<128xf32>
    %51 = vector.shape_cast %50 : vector<128xf32> to vector<1x1x128xf32>
    %52 = vector.broadcast %51 : vector<1x1x128xf32> to vector<8x8x128xf32>
    %53 = arith.mulf %48, %52 : vector<8x8x128xf32>
    %54 = arith.addf %47, %53 : vector<8x8x128xf32>
    %55 = vector.extract_strided_slice %2 {offsets = [2, 1, 0], sizes = [8, 8, 128], strides = [1, 1, 1]} : vector<10x10x128xf32> to vector<8x8x128xf32>
    %56 = vector.extract_strided_slice %4 {offsets = [7, 0], sizes = [1, 128], strides = [1, 1]} : vector<9x128xf32> to vector<1x128xf32>
    %57 = vector.shape_cast %56 : vector<1x128xf32> to vector<128xf32>
    %58 = vector.shape_cast %57 : vector<128xf32> to vector<1x1x128xf32>
    %59 = vector.broadcast %58 : vector<1x1x128xf32> to vector<8x8x128xf32>
    %60 = arith.mulf %55, %59 : vector<8x8x128xf32>
    %61 = arith.addf %54, %60 : vector<8x8x128xf32>
    %62 = vector.extract_strided_slice %2 {offsets = [2, 2, 0], sizes = [8, 8, 128], strides = [1, 1, 1]} : vector<10x10x128xf32> to vector<8x8x128xf32>
    %63 = vector.extract_strided_slice %4 {offsets = [8, 0], sizes = [1, 128], strides = [1, 1]} : vector<9x128xf32> to vector<1x128xf32>
    %64 = vector.shape_cast %63 : vector<1x128xf32> to vector<128xf32>
    %65 = vector.shape_cast %64 : vector<128xf32> to vector<1x1x128xf32>
    %66 = vector.broadcast %65 : vector<1x1x128xf32> to vector<8x8x128xf32>
    %67 = arith.mulf %62, %66 : vector<8x8x128xf32>
    %68 = arith.addf %61, %67 : vector<8x8x128xf32>
    %c0_5 = arith.constant 0 : index
    %c0_6 = arith.constant 0 : index
    %69 = vector.load %arg4[%c0_5, %c0_6] : memref<1x128xf32, #tpu.memory_space<vmem>>, vector<1x128xf32>
    %70 = vector.shape_cast %69 : vector<1x128xf32> to vector<128xf32>
    %71 = vector.shape_cast %70 : vector<128xf32> to vector<1x1x128xf32>
    %72 = vector.broadcast %71 : vector<1x1x128xf32> to vector<8x8x128xf32>
    %73 = arith.addf %68, %72 : vector<8x8x128xf32>
    %74 = arith.negf %73 : vector<8x8x128xf32>
    %75 = math.exp %74 : vector<8x8x128xf32>
    %cst_7 = arith.constant 1.000000e+00 : f32
    %76 = vector.broadcast %cst_7 : f32 to vector<8x8x128xf32>
    %77 = arith.addf %76, %75 : vector<8x8x128xf32>
    %78 = arith.divf %76, %77 : vector<8x8x128xf32>
    %79 = arith.mulf %73, %78 : vector<8x8x128xf32>
    %80 = arith.truncf %79 : vector<8x8x128xf32> to vector<8x8x128xbf16>
    %c0_8 = arith.constant 0 : index
    %c0_9 = arith.constant 0 : index
    %c0_10 = arith.constant 0 : index
    %c0_11 = arith.constant 0 : index
    %81 = vector.load %arg5[%c0_8, %c0_9, %c0_10, %c0_11] : memref<1x8x8x128xbf16, #tpu.memory_space<vmem>>, vector<1x8x8x128xbf16>
    %82 = vector.shape_cast %81 : vector<1x8x8x128xbf16> to vector<8x8x128xbf16>
    %83 = vector.shape_cast %80 : vector<8x8x128xbf16> to vector<1x8x8x128xbf16>
    tpu.vector_store %arg5[%c0_8, %c0_9, %c0_10, %c0_11], %83 {strides = array<i32>} : memref<1x8x8x128xbf16, #tpu.memory_space<vmem>>, vector<1x8x8x128xbf16>,
    return
  }
  func.func @transform_0(%arg0: i32, %arg1: i32) -> (i32, i32, i32, i32) {
    %c0_i32 = arith.constant 0 : i32
    %c0_i32_0 = arith.constant 0 : i32
    %c0_i32_1 = arith.constant 0 : i32
    return %arg0, %c0_i32, %c0_i32_0, %arg1 : i32, i32, i32, i32
  }
  func.func @transform_1(%arg0: i32, %arg1: i32) -> (i32, i32) {
    %c0_i32 = arith.constant 0 : i32
    %c0_i32_0 = arith.constant 0 : i32
    return %c0_i32, %arg1 : i32, i32
  }
  func.func @transform_2(%arg0: i32, %arg1: i32) -> (i32, i32) {
    %c0_i32 = arith.constant 0 : i32
    %c0_i32_0 = arith.constant 0 : i32
    return %c0_i32, %arg1 : i32, i32
  }
  func.func @transform_3(%arg0: i32, %arg1: i32) -> (i32, i32, i32, i32) {
    %c0_i32 = arith.constant 0 : i32
    %c0_i32_0 = arith.constant 0 : i32
    %c0_i32_1 = arith.constant 0 : i32
    return %arg0, %c0_i32, %c0_i32_0, %arg1 : i32, i32, i32, i32
  }
}

module attributes {stable_mosaic.version = 11 : i64} {
  func.func @_se_kernel(%arg0: i32, %arg1: memref<1x64x128xbf16, #tpu.memory_space<vmem>>, %arg2: memref<128x128xbf16, #tpu.memory_space<vmem>>, %arg3: memref<1x128xf32, #tpu.memory_space<vmem>>, %arg4: memref<128x128xbf16, #tpu.memory_space<vmem>>, %arg5: memref<1x128xf32, #tpu.memory_space<vmem>>, %arg6: memref<1x1x128xbf16, #tpu.memory_space<vmem>>) attributes {dimension_semantics = [#tpu.dimension_semantics<parallel>], iteration_bounds = array<i64: 2>, scalar_prefetch = 0 : i64, scratch_operands = 0 : i64, tpu.core_type = #tpu.core_type<tc>, window_params = [{transform_indices = @transform_0, window_bounds = array<i64: 1, 64, 128>}, {pipeline_mode = #tpu.pipeline_mode<synchronous>, transform_indices = @transform_1, window_bounds = array<i64: 128, 128>}, {pipeline_mode = #tpu.pipeline_mode<synchronous>, transform_indices = @transform_2, window_bounds = array<i64: 1, 128>}, {pipeline_mode = #tpu.pipeline_mode<synchronous>, transform_indices = @transform_3, window_bounds = array<i64: 128, 128>}, {pipeline_mode = #tpu.pipeline_mode<synchronous>, transform_indices = @transform_4, window_bounds = array<i64: 1, 128>}, {transform_indices = @transform_5, window_bounds = array<i64: 1, 1, 128>}]} {
    %c0 = arith.constant 0 : index
    %c0_0 = arith.constant 0 : index
    %c0_1 = arith.constant 0 : index
    %0 = vector.load %arg1[%c0, %c0_0, %c0_1] : memref<1x64x128xbf16, #tpu.memory_space<vmem>>, vector<1x64x128xbf16>
    %1 = vector.shape_cast %0 : vector<1x64x128xbf16> to vector<64x128xbf16>
    %2 = arith.extf %1 : vector<64x128xbf16> to vector<64x128xf32>
    %cst = arith.constant dense<0.000000e+00> : vector<128xf32>
    %3 = vector.multi_reduction <add>, %2, %cst [0] : vector<64x128xf32> to vector<128xf32>
    %4 = vector.shape_cast %3 : vector<128xf32> to vector<1x128xf32>
    %cst_2 = arith.constant 6.400000e+01 : f32
    %5 = vector.broadcast %cst_2 : f32 to vector<1x128xf32>
    %6 = arith.divf %4, %5 : vector<1x128xf32>
    %7 = arith.truncf %6 : vector<1x128xf32> to vector<1x128xbf16>
    %c0_3 = arith.constant 0 : index
    %c0_4 = arith.constant 0 : index
    %8 = vector.load %arg2[%c0_3, %c0_4] : memref<128x128xbf16, #tpu.memory_space<vmem>>, vector<128x128xbf16>
    %cst_5 = arith.constant dense<0.000000e+00> : vector<1x128xf32>
    %9 = tpu.matmul %7, %8, %cst_5 {dimension_numbers = #tpu.dot_dimension_numbers<[1], [0], [0], [1], [0, 0, 1, 1], [], []>} : vector<1x128xbf16>, vector<128x128xbf16>, vector<1x128xf32> -> vector<1x128xf32>
    %c0_6 = arith.constant 0 : index
    %c0_7 = arith.constant 0 : index
    %10 = vector.load %arg3[%c0_6, %c0_7] : memref<1x128xf32, #tpu.memory_space<vmem>>, vector<1x128xf32>
    %11 = arith.addf %9, %10 : vector<1x128xf32>
    %12 = arith.truncf %11 : vector<1x128xf32> to vector<1x128xbf16>
    %c0_8 = arith.constant 0 : index
    %c0_9 = arith.constant 0 : index
    %13 = vector.load %arg4[%c0_8, %c0_9] : memref<128x128xbf16, #tpu.memory_space<vmem>>, vector<128x128xbf16>
    %cst_10 = arith.constant dense<0.000000e+00> : vector<1x128xf32>
    %14 = tpu.matmul %12, %13, %cst_10 {dimension_numbers = #tpu.dot_dimension_numbers<[1], [0], [0], [1], [0, 0, 1, 1], [], []>} : vector<1x128xbf16>, vector<128x128xbf16>, vector<1x128xf32> -> vector<1x128xf32>
    %c0_11 = arith.constant 0 : index
    %c0_12 = arith.constant 0 : index
    %15 = vector.load %arg5[%c0_11, %c0_12] : memref<1x128xf32, #tpu.memory_space<vmem>>, vector<1x128xf32>
    %16 = arith.addf %14, %15 : vector<1x128xf32>
    %17 = arith.negf %16 : vector<1x128xf32>
    %18 = math.exp %17 : vector<1x128xf32>
    %cst_13 = arith.constant 1.000000e+00 : f32
    %19 = vector.broadcast %cst_13 : f32 to vector<1x128xf32>
    %20 = arith.addf %19, %18 : vector<1x128xf32>
    %21 = arith.divf %19, %20 : vector<1x128xf32>
    %22 = arith.mulf %16, %21 : vector<1x128xf32>
    %23 = arith.negf %22 : vector<1x128xf32>
    %24 = math.exp %23 : vector<1x128xf32>
    %cst_14 = arith.constant 1.000000e+00 : f32
    %25 = vector.broadcast %cst_14 : f32 to vector<1x128xf32>
    %26 = arith.addf %25, %24 : vector<1x128xf32>
    %27 = arith.divf %25, %26 : vector<1x128xf32>
    %28 = arith.truncf %27 : vector<1x128xf32> to vector<1x128xbf16>
    %c0_15 = arith.constant 0 : index
    %c0_16 = arith.constant 0 : index
    %c0_17 = arith.constant 0 : index
    %29 = vector.load %arg6[%c0_15, %c0_16, %c0_17] : memref<1x1x128xbf16, #tpu.memory_space<vmem>>, vector<1x1x128xbf16>
    %30 = vector.shape_cast %29 : vector<1x1x128xbf16> to vector<1x128xbf16>
    %31 = vector.shape_cast %28 : vector<1x128xbf16> to vector<1x1x128xbf16>
    tpu.vector_store %arg6[%c0_15, %c0_16, %c0_17], %31 {strides = array<i32>} : memref<1x1x128xbf16, #tpu.memory_space<vmem>>, vector<1x1x128xbf16>,
    return
  }
  func.func @transform_0(%arg0: i32) -> (i32, i32, i32) {
    %c0_i32 = arith.constant 0 : i32
    %c0_i32_0 = arith.constant 0 : i32
    %c0_i32_1 = arith.constant 0 : i32
    return %arg0, %c0_i32, %c0_i32_0 : i32, i32, i32
  }
  func.func @transform_1(%arg0: i32) -> (i32, i32) {
    %c0_i32 = arith.constant 0 : i32
    %c0_i32_0 = arith.constant 0 : i32
    %c0_i32_1 = arith.constant 0 : i32
    return %c0_i32, %c0_i32_0 : i32, i32
  }
  func.func @transform_2(%arg0: i32) -> (i32, i32) {
    %c0_i32 = arith.constant 0 : i32
    %c0_i32_0 = arith.constant 0 : i32
    %c0_i32_1 = arith.constant 0 : i32
    return %c0_i32, %c0_i32_0 : i32, i32
  }
  func.func @transform_3(%arg0: i32) -> (i32, i32) {
    %c0_i32 = arith.constant 0 : i32
    %c0_i32_0 = arith.constant 0 : i32
    %c0_i32_1 = arith.constant 0 : i32
    return %c0_i32, %c0_i32_0 : i32, i32
  }
  func.func @transform_4(%arg0: i32) -> (i32, i32) {
    %c0_i32 = arith.constant 0 : i32
    %c0_i32_0 = arith.constant 0 : i32
    %c0_i32_1 = arith.constant 0 : i32
    return %c0_i32, %c0_i32_0 : i32, i32
  }
  func.func @transform_5(%arg0: i32) -> (i32, i32, i32) {
    %c0_i32 = arith.constant 0 : i32
    %c0_i32_0 = arith.constant 0 : i32
    %c0_i32_1 = arith.constant 0 : i32
    return %arg0, %c0_i32, %c0_i32_0 : i32, i32, i32
  }
}

module attributes {stable_mosaic.version = 11 : i64} {
  func.func @_proj_kernel(%arg0: i32, %arg1: i32, %arg2: i32, %arg3: i32, %arg4: memref<1x64x128xbf16, #tpu.memory_space<vmem>>, %arg5: memref<1x1x128xbf16, #tpu.memory_space<vmem>>, %arg6: memref<128x128xbf16, #tpu.memory_space<vmem>>, %arg7: memref<1x128xf32, #tpu.memory_space<vmem>>, %arg8: memref<1x64x128xbf16, #tpu.memory_space<vmem>>, %arg9: memref<64x128xf32, #tpu.memory_space<vmem>>) attributes {dimension_semantics = [#tpu.dimension_semantics<parallel>, #tpu.dimension_semantics<parallel>, #tpu.dimension_semantics<parallel>, #tpu.dimension_semantics<arbitrary>], iteration_bounds = array<i64: 2, 1, 1, 1>, scalar_prefetch = 0 : i64, scratch_operands = 1 : i64, tpu.core_type = #tpu.core_type<tc>, window_params = [{transform_indices = @transform_0, window_bounds = array<i64: 1, 64, 128>}, {transform_indices = @transform_1, window_bounds = array<i64: 1, 1, 128>}, {transform_indices = @transform_2, window_bounds = array<i64: 128, 128>}, {transform_indices = @transform_3, window_bounds = array<i64: 1, 128>}, {transform_indices = @transform_4, window_bounds = array<i64: 1, 64, 128>}]} {
    %c0_i32 = arith.constant 0 : i32
    %0 = arith.cmpi eq, %arg3, %c0_i32 : i32
    %1 = arith.extui %0 : i1 to i32
    %c0_i32_0 = arith.constant 0 : i32
    %2 = arith.cmpi ne, %1, %c0_i32_0 : i32
    scf.if %2 {
      %cst_14 = arith.constant 0.000000e+00 : f32
      %20 = vector.broadcast %cst_14 : f32 to vector<64x128xf32>
      %c0_15 = arith.constant 0 : index
      %c0_16 = arith.constant 0 : index
      %21 = vector.load %arg9[%c0_15, %c0_16] : memref<64x128xf32, #tpu.memory_space<vmem>>, vector<64x128xf32>
      tpu.vector_store %arg9[%c0_15, %c0_16], %20 {strides = array<i32>} : memref<64x128xf32, #tpu.memory_space<vmem>>, vector<64x128xf32>,
    } else {
    }
    %c0 = arith.constant 0 : index
    %c0_1 = arith.constant 0 : index
    %c0_2 = arith.constant 0 : index
    %3 = vector.load %arg4[%c0, %c0_1, %c0_2] : memref<1x64x128xbf16, #tpu.memory_space<vmem>>, vector<1x64x128xbf16>
    %4 = vector.shape_cast %3 : vector<1x64x128xbf16> to vector<64x128xbf16>
    %5 = arith.extf %4 : vector<64x128xbf16> to vector<64x128xf32>
    %c0_3 = arith.constant 0 : index
    %c0_4 = arith.constant 0 : index
    %c0_5 = arith.constant 0 : index
    %6 = vector.load %arg5[%c0_3, %c0_4, %c0_5] : memref<1x1x128xbf16, #tpu.memory_space<vmem>>, vector<1x1x128xbf16>
    %7 = vector.shape_cast %6 : vector<1x1x128xbf16> to vector<1x128xbf16>
    %8 = arith.extf %7 : vector<1x128xbf16> to vector<1x128xf32>
    %9 = vector.broadcast %8 : vector<1x128xf32> to vector<64x128xf32>
    %10 = arith.mulf %5, %9 : vector<64x128xf32>
    %c0_6 = arith.constant 0 : index
    %c0_7 = arith.constant 0 : index
    %11 = vector.load %arg9[%c0_6, %c0_7] : memref<64x128xf32, #tpu.memory_space<vmem>>, vector<64x128xf32>
    %12 = arith.truncf %10 : vector<64x128xf32> to vector<64x128xbf16>
    %c0_8 = arith.constant 0 : index
    %c0_9 = arith.constant 0 : index
    %13 = vector.load %arg6[%c0_8, %c0_9] : memref<128x128xbf16, #tpu.memory_space<vmem>>, vector<128x128xbf16>
    %cst = arith.constant dense<0.000000e+00> : vector<64x128xf32>
    %14 = tpu.matmul %12, %13, %cst {dimension_numbers = #tpu.dot_dimension_numbers<[1], [0], [0], [1], [0, 0, 1, 1], [], []>} : vector<64x128xbf16>, vector<128x128xbf16>, vector<64x128xf32> -> vector<64x128xf32>
    %15 = arith.addf %11, %14 : vector<64x128xf32>
    %c0_10 = arith.constant 0 : index
    %c0_11 = arith.constant 0 : index
    %16 = vector.load %arg9[%c0_10, %c0_11] : memref<64x128xf32, #tpu.memory_space<vmem>>, vector<64x128xf32>
    tpu.vector_store %arg9[%c0_10, %c0_11], %15 {strides = array<i32>} : memref<64x128xf32, #tpu.memory_space<vmem>>, vector<64x128xf32>,
    %c0_i32_12 = arith.constant 0 : i32
    %17 = arith.cmpi eq, %arg3, %c0_i32_12 : i32
    %18 = arith.extui %17 : i1 to i32
    %c0_i32_13 = arith.constant 0 : i32
    %19 = arith.cmpi ne, %18, %c0_i32_13 : i32
    scf.if %19 {
      %c0_14 = arith.constant 0 : index
      %c0_15 = arith.constant 0 : index
      %20 = vector.load %arg9[%c0_14, %c0_15] : memref<64x128xf32, #tpu.memory_space<vmem>>, vector<64x128xf32>
      %c0_16 = arith.constant 0 : index
      %c0_17 = arith.constant 0 : index
      %21 = vector.load %arg7[%c0_16, %c0_17] : memref<1x128xf32, #tpu.memory_space<vmem>>, vector<1x128xf32>
      %22 = vector.broadcast %21 : vector<1x128xf32> to vector<64x128xf32>
      %23 = arith.addf %20, %22 : vector<64x128xf32>
      %24 = arith.truncf %23 : vector<64x128xf32> to vector<64x128xbf16>
      %c0_18 = arith.constant 0 : index
      %c0_19 = arith.constant 0 : index
      %c0_20 = arith.constant 0 : index
      %25 = vector.load %arg8[%c0_18, %c0_19, %c0_20] : memref<1x64x128xbf16, #tpu.memory_space<vmem>>, vector<1x64x128xbf16>
      %26 = vector.shape_cast %25 : vector<1x64x128xbf16> to vector<64x128xbf16>
      %27 = vector.shape_cast %24 : vector<64x128xbf16> to vector<1x64x128xbf16>
      tpu.vector_store %arg8[%c0_18, %c0_19, %c0_20], %27 {strides = array<i32>} : memref<1x64x128xbf16, #tpu.memory_space<vmem>>, vector<1x64x128xbf16>,
    } else {
    }
    return
  }
  func.func @transform_0(%arg0: i32, %arg1: i32, %arg2: i32, %arg3: i32) -> (i32, i32, i32) {
    %c0_i32 = arith.constant 0 : i32
    return %arg0, %arg1, %arg3 : i32, i32, i32
  }
  func.func @transform_1(%arg0: i32, %arg1: i32, %arg2: i32, %arg3: i32) -> (i32, i32, i32) {
    %c0_i32 = arith.constant 0 : i32
    %c0_i32_0 = arith.constant 0 : i32
    return %arg0, %c0_i32, %arg3 : i32, i32, i32
  }
  func.func @transform_2(%arg0: i32, %arg1: i32, %arg2: i32, %arg3: i32) -> (i32, i32) {
    %c0_i32 = arith.constant 0 : i32
    return %arg3, %arg2 : i32, i32
  }
  func.func @transform_3(%arg0: i32, %arg1: i32, %arg2: i32, %arg3: i32) -> (i32, i32) {
    %c0_i32 = arith.constant 0 : i32
    %c0_i32_0 = arith.constant 0 : i32
    return %c0_i32, %arg2 : i32, i32
  }
  func.func @transform_4(%arg0: i32, %arg1: i32, %arg2: i32, %arg3: i32) -> (i32, i32, i32) {
    %c0_i32 = arith.constant 0 : i32
    return %arg0, %arg1, %arg2 : i32, i32, i32
  }
}

module attributes {stable_mosaic.version = 11 : i64} {
  func.func @_dw_taps_kernel(%arg0: i32, %arg1: i32, %arg2: memref<9x32x128xbf16, #tpu.memory_space<vmem>>, %arg3: memref<9x1x128xbf16, #tpu.memory_space<vmem>>, %arg4: memref<1x128xf32, #tpu.memory_space<vmem>>, %arg5: memref<32x128xbf16, #tpu.memory_space<vmem>>) attributes {dimension_semantics = [#tpu.dimension_semantics<parallel>, #tpu.dimension_semantics<parallel>], iteration_bounds = array<i64: 1, 1>, scalar_prefetch = 0 : i64, scratch_operands = 0 : i64, tpu.core_type = #tpu.core_type<tc>, window_params = [{transform_indices = @transform_0, window_bounds = array<i64: 9, 32, 128>}, {transform_indices = @transform_1, window_bounds = array<i64: 9, 1, 128>}, {transform_indices = @transform_2, window_bounds = array<i64: 1, 128>}, {transform_indices = @transform_3, window_bounds = array<i64: 32, 128>}]} {
    %c0 = arith.constant 0 : index
    %c0_0 = arith.constant 0 : index
    %c0_1 = arith.constant 0 : index
    %0 = vector.load %arg2[%c0, %c0_0, %c0_1] : memref<9x32x128xbf16, #tpu.memory_space<vmem>>, vector<9x32x128xbf16>
    %1 = arith.extf %0 : vector<9x32x128xbf16> to vector<9x32x128xf32>
    %c0_2 = arith.constant 0 : index
    %c0_3 = arith.constant 0 : index
    %c0_4 = arith.constant 0 : index
    %2 = vector.load %arg3[%c0_2, %c0_3, %c0_4] : memref<9x1x128xbf16, #tpu.memory_space<vmem>>, vector<9x1x128xbf16>
    %3 = arith.extf %2 : vector<9x1x128xbf16> to vector<9x1x128xf32>
    %4 = vector.broadcast %3 : vector<9x1x128xf32> to vector<9x32x128xf32>
    %5 = arith.mulf %1, %4 : vector<9x32x128xf32>
    %cst = arith.constant dense<0.000000e+00> : vector<32x128xf32>
    %6 = vector.multi_reduction <add>, %5, %cst [0] : vector<9x32x128xf32> to vector<32x128xf32>
    %c0_5 = arith.constant 0 : index
    %c0_6 = arith.constant 0 : index
    %7 = vector.load %arg4[%c0_5, %c0_6] : memref<1x128xf32, #tpu.memory_space<vmem>>, vector<1x128xf32>
    %8 = vector.broadcast %7 : vector<1x128xf32> to vector<32x128xf32>
    %9 = arith.addf %6, %8 : vector<32x128xf32>
    %10 = arith.negf %9 : vector<32x128xf32>
    %11 = math.exp %10 : vector<32x128xf32>
    %cst_7 = arith.constant 1.000000e+00 : f32
    %12 = vector.broadcast %cst_7 : f32 to vector<32x128xf32>
    %13 = arith.addf %12, %11 : vector<32x128xf32>
    %14 = arith.divf %12, %13 : vector<32x128xf32>
    %15 = arith.mulf %9, %14 : vector<32x128xf32>
    %16 = arith.truncf %15 : vector<32x128xf32> to vector<32x128xbf16>
    %c0_8 = arith.constant 0 : index
    %c0_9 = arith.constant 0 : index
    %17 = vector.load %arg5[%c0_8, %c0_9] : memref<32x128xbf16, #tpu.memory_space<vmem>>, vector<32x128xbf16>
    tpu.vector_store %arg5[%c0_8, %c0_9], %16 {strides = array<i32>} : memref<32x128xbf16, #tpu.memory_space<vmem>>, vector<32x128xbf16>,
    return
  }
  func.func @transform_0(%arg0: i32, %arg1: i32) -> (i32, i32, i32) {
    %c0_i32 = arith.constant 0 : i32
    %c0_i32_0 = arith.constant 0 : i32
    return %c0_i32, %arg0, %arg1 : i32, i32, i32
  }
  func.func @transform_1(%arg0: i32, %arg1: i32) -> (i32, i32, i32) {
    %c0_i32 = arith.constant 0 : i32
    %c0_i32_0 = arith.constant 0 : i32
    %c0_i32_1 = arith.constant 0 : i32
    return %c0_i32, %c0_i32_0, %arg1 : i32, i32, i32
  }
  func.func @transform_2(%arg0: i32, %arg1: i32) -> (i32, i32) {
    %c0_i32 = arith.constant 0 : i32
    %c0_i32_0 = arith.constant 0 : i32
    return %c0_i32, %arg1 : i32, i32
  }
  func.func @transform_3(%arg0: i32, %arg1: i32) -> (i32, i32) {
    %c0_i32 = arith.constant 0 : i32
    return %arg0, %arg1 : i32, i32
  }
}

module attributes {stable_mosaic.version = 11 : i64} {
  func.func @_se_kernel(%arg0: i32, %arg1: memref<1x16x128xbf16, #tpu.memory_space<vmem>>, %arg2: memref<128x128xbf16, #tpu.memory_space<vmem>>, %arg3: memref<1x128xf32, #tpu.memory_space<vmem>>, %arg4: memref<128x128xbf16, #tpu.memory_space<vmem>>, %arg5: memref<1x128xf32, #tpu.memory_space<vmem>>, %arg6: memref<1x1x128xbf16, #tpu.memory_space<vmem>>) attributes {dimension_semantics = [#tpu.dimension_semantics<parallel>], iteration_bounds = array<i64: 2>, scalar_prefetch = 0 : i64, scratch_operands = 0 : i64, tpu.core_type = #tpu.core_type<tc>, window_params = [{transform_indices = @transform_0, window_bounds = array<i64: 1, 16, 128>}, {pipeline_mode = #tpu.pipeline_mode<synchronous>, transform_indices = @transform_1, window_bounds = array<i64: 128, 128>}, {pipeline_mode = #tpu.pipeline_mode<synchronous>, transform_indices = @transform_2, window_bounds = array<i64: 1, 128>}, {pipeline_mode = #tpu.pipeline_mode<synchronous>, transform_indices = @transform_3, window_bounds = array<i64: 128, 128>}, {pipeline_mode = #tpu.pipeline_mode<synchronous>, transform_indices = @transform_4, window_bounds = array<i64: 1, 128>}, {transform_indices = @transform_5, window_bounds = array<i64: 1, 1, 128>}]} {
    %c0 = arith.constant 0 : index
    %c0_0 = arith.constant 0 : index
    %c0_1 = arith.constant 0 : index
    %0 = vector.load %arg1[%c0, %c0_0, %c0_1] : memref<1x16x128xbf16, #tpu.memory_space<vmem>>, vector<1x16x128xbf16>
    %1 = vector.shape_cast %0 : vector<1x16x128xbf16> to vector<16x128xbf16>
    %2 = arith.extf %1 : vector<16x128xbf16> to vector<16x128xf32>
    %cst = arith.constant dense<0.000000e+00> : vector<128xf32>
    %3 = vector.multi_reduction <add>, %2, %cst [0] : vector<16x128xf32> to vector<128xf32>
    %4 = vector.shape_cast %3 : vector<128xf32> to vector<1x128xf32>
    %cst_2 = arith.constant 1.600000e+01 : f32
    %5 = vector.broadcast %cst_2 : f32 to vector<1x128xf32>
    %6 = arith.divf %4, %5 : vector<1x128xf32>
    %7 = arith.truncf %6 : vector<1x128xf32> to vector<1x128xbf16>
    %c0_3 = arith.constant 0 : index
    %c0_4 = arith.constant 0 : index
    %8 = vector.load %arg2[%c0_3, %c0_4] : memref<128x128xbf16, #tpu.memory_space<vmem>>, vector<128x128xbf16>
    %cst_5 = arith.constant dense<0.000000e+00> : vector<1x128xf32>
    %9 = tpu.matmul %7, %8, %cst_5 {dimension_numbers = #tpu.dot_dimension_numbers<[1], [0], [0], [1], [0, 0, 1, 1], [], []>} : vector<1x128xbf16>, vector<128x128xbf16>, vector<1x128xf32> -> vector<1x128xf32>
    %c0_6 = arith.constant 0 : index
    %c0_7 = arith.constant 0 : index
    %10 = vector.load %arg3[%c0_6, %c0_7] : memref<1x128xf32, #tpu.memory_space<vmem>>, vector<1x128xf32>
    %11 = arith.addf %9, %10 : vector<1x128xf32>
    %12 = arith.truncf %11 : vector<1x128xf32> to vector<1x128xbf16>
    %c0_8 = arith.constant 0 : index
    %c0_9 = arith.constant 0 : index
    %13 = vector.load %arg4[%c0_8, %c0_9] : memref<128x128xbf16, #tpu.memory_space<vmem>>, vector<128x128xbf16>
    %cst_10 = arith.constant dense<0.000000e+00> : vector<1x128xf32>
    %14 = tpu.matmul %12, %13, %cst_10 {dimension_numbers = #tpu.dot_dimension_numbers<[1], [0], [0], [1], [0, 0, 1, 1], [], []>} : vector<1x128xbf16>, vector<128x128xbf16>, vector<1x128xf32> -> vector<1x128xf32>
    %c0_11 = arith.constant 0 : index
    %c0_12 = arith.constant 0 : index
    %15 = vector.load %arg5[%c0_11, %c0_12] : memref<1x128xf32, #tpu.memory_space<vmem>>, vector<1x128xf32>
    %16 = arith.addf %14, %15 : vector<1x128xf32>
    %17 = arith.negf %16 : vector<1x128xf32>
    %18 = math.exp %17 : vector<1x128xf32>
    %cst_13 = arith.constant 1.000000e+00 : f32
    %19 = vector.broadcast %cst_13 : f32 to vector<1x128xf32>
    %20 = arith.addf %19, %18 : vector<1x128xf32>
    %21 = arith.divf %19, %20 : vector<1x128xf32>
    %22 = arith.mulf %16, %21 : vector<1x128xf32>
    %23 = arith.negf %22 : vector<1x128xf32>
    %24 = math.exp %23 : vector<1x128xf32>
    %cst_14 = arith.constant 1.000000e+00 : f32
    %25 = vector.broadcast %cst_14 : f32 to vector<1x128xf32>
    %26 = arith.addf %25, %24 : vector<1x128xf32>
    %27 = arith.divf %25, %26 : vector<1x128xf32>
    %28 = arith.truncf %27 : vector<1x128xf32> to vector<1x128xbf16>
    %c0_15 = arith.constant 0 : index
    %c0_16 = arith.constant 0 : index
    %c0_17 = arith.constant 0 : index
    %29 = vector.load %arg6[%c0_15, %c0_16, %c0_17] : memref<1x1x128xbf16, #tpu.memory_space<vmem>>, vector<1x1x128xbf16>
    %30 = vector.shape_cast %29 : vector<1x1x128xbf16> to vector<1x128xbf16>
    %31 = vector.shape_cast %28 : vector<1x128xbf16> to vector<1x1x128xbf16>
    tpu.vector_store %arg6[%c0_15, %c0_16, %c0_17], %31 {strides = array<i32>} : memref<1x1x128xbf16, #tpu.memory_space<vmem>>, vector<1x1x128xbf16>,
    return
  }
  func.func @transform_0(%arg0: i32) -> (i32, i32, i32) {
    %c0_i32 = arith.constant 0 : i32
    %c0_i32_0 = arith.constant 0 : i32
    %c0_i32_1 = arith.constant 0 : i32
    return %arg0, %c0_i32, %c0_i32_0 : i32, i32, i32
  }
  func.func @transform_1(%arg0: i32) -> (i32, i32) {
    %c0_i32 = arith.constant 0 : i32
    %c0_i32_0 = arith.constant 0 : i32
    %c0_i32_1 = arith.constant 0 : i32
    return %c0_i32, %c0_i32_0 : i32, i32
  }
  func.func @transform_2(%arg0: i32) -> (i32, i32) {
    %c0_i32 = arith.constant 0 : i32
    %c0_i32_0 = arith.constant 0 : i32
    %c0_i32_1 = arith.constant 0 : i32
    return %c0_i32, %c0_i32_0 : i32, i32
  }
  func.func @transform_3(%arg0: i32) -> (i32, i32) {
    %c0_i32 = arith.constant 0 : i32
    %c0_i32_0 = arith.constant 0 : i32
    %c0_i32_1 = arith.constant 0 : i32
    return %c0_i32, %c0_i32_0 : i32, i32
  }
  func.func @transform_4(%arg0: i32) -> (i32, i32) {
    %c0_i32 = arith.constant 0 : i32
    %c0_i32_0 = arith.constant 0 : i32
    %c0_i32_1 = arith.constant 0 : i32
    return %c0_i32, %c0_i32_0 : i32, i32
  }
  func.func @transform_5(%arg0: i32) -> (i32, i32, i32) {
    %c0_i32 = arith.constant 0 : i32
    %c0_i32_0 = arith.constant 0 : i32
    %c0_i32_1 = arith.constant 0 : i32
    return %arg0, %c0_i32, %c0_i32_0 : i32, i32, i32
  }
}

module attributes {stable_mosaic.version = 11 : i64} {
  func.func @_proj_kernel(%arg0: i32, %arg1: i32, %arg2: i32, %arg3: i32, %arg4: memref<1x16x128xbf16, #tpu.memory_space<vmem>>, %arg5: memref<1x1x128xbf16, #tpu.memory_space<vmem>>, %arg6: memref<128x128xbf16, #tpu.memory_space<vmem>>, %arg7: memref<1x128xf32, #tpu.memory_space<vmem>>, %arg8: memref<1x16x128xbf16, #tpu.memory_space<vmem>>, %arg9: memref<16x128xf32, #tpu.memory_space<vmem>>) attributes {dimension_semantics = [#tpu.dimension_semantics<parallel>, #tpu.dimension_semantics<parallel>, #tpu.dimension_semantics<parallel>, #tpu.dimension_semantics<arbitrary>], iteration_bounds = array<i64: 2, 1, 1, 1>, scalar_prefetch = 0 : i64, scratch_operands = 1 : i64, tpu.core_type = #tpu.core_type<tc>, window_params = [{transform_indices = @transform_0, window_bounds = array<i64: 1, 16, 128>}, {transform_indices = @transform_1, window_bounds = array<i64: 1, 1, 128>}, {transform_indices = @transform_2, window_bounds = array<i64: 128, 128>}, {transform_indices = @transform_3, window_bounds = array<i64: 1, 128>}, {transform_indices = @transform_4, window_bounds = array<i64: 1, 16, 128>}]} {
    %c0_i32 = arith.constant 0 : i32
    %0 = arith.cmpi eq, %arg3, %c0_i32 : i32
    %1 = arith.extui %0 : i1 to i32
    %c0_i32_0 = arith.constant 0 : i32
    %2 = arith.cmpi ne, %1, %c0_i32_0 : i32
    scf.if %2 {
      %cst_14 = arith.constant 0.000000e+00 : f32
      %20 = vector.broadcast %cst_14 : f32 to vector<16x128xf32>
      %c0_15 = arith.constant 0 : index
      %c0_16 = arith.constant 0 : index
      %21 = vector.load %arg9[%c0_15, %c0_16] : memref<16x128xf32, #tpu.memory_space<vmem>>, vector<16x128xf32>
      tpu.vector_store %arg9[%c0_15, %c0_16], %20 {strides = array<i32>} : memref<16x128xf32, #tpu.memory_space<vmem>>, vector<16x128xf32>,
    } else {
    }
    %c0 = arith.constant 0 : index
    %c0_1 = arith.constant 0 : index
    %c0_2 = arith.constant 0 : index
    %3 = vector.load %arg4[%c0, %c0_1, %c0_2] : memref<1x16x128xbf16, #tpu.memory_space<vmem>>, vector<1x16x128xbf16>
    %4 = vector.shape_cast %3 : vector<1x16x128xbf16> to vector<16x128xbf16>
    %5 = arith.extf %4 : vector<16x128xbf16> to vector<16x128xf32>
    %c0_3 = arith.constant 0 : index
    %c0_4 = arith.constant 0 : index
    %c0_5 = arith.constant 0 : index
    %6 = vector.load %arg5[%c0_3, %c0_4, %c0_5] : memref<1x1x128xbf16, #tpu.memory_space<vmem>>, vector<1x1x128xbf16>
    %7 = vector.shape_cast %6 : vector<1x1x128xbf16> to vector<1x128xbf16>
    %8 = arith.extf %7 : vector<1x128xbf16> to vector<1x128xf32>
    %9 = vector.broadcast %8 : vector<1x128xf32> to vector<16x128xf32>
    %10 = arith.mulf %5, %9 : vector<16x128xf32>
    %c0_6 = arith.constant 0 : index
    %c0_7 = arith.constant 0 : index
    %11 = vector.load %arg9[%c0_6, %c0_7] : memref<16x128xf32, #tpu.memory_space<vmem>>, vector<16x128xf32>
    %12 = arith.truncf %10 : vector<16x128xf32> to vector<16x128xbf16>
    %c0_8 = arith.constant 0 : index
    %c0_9 = arith.constant 0 : index
    %13 = vector.load %arg6[%c0_8, %c0_9] : memref<128x128xbf16, #tpu.memory_space<vmem>>, vector<128x128xbf16>
    %cst = arith.constant dense<0.000000e+00> : vector<16x128xf32>
    %14 = tpu.matmul %12, %13, %cst {dimension_numbers = #tpu.dot_dimension_numbers<[1], [0], [0], [1], [0, 0, 1, 1], [], []>} : vector<16x128xbf16>, vector<128x128xbf16>, vector<16x128xf32> -> vector<16x128xf32>
    %15 = arith.addf %11, %14 : vector<16x128xf32>
    %c0_10 = arith.constant 0 : index
    %c0_11 = arith.constant 0 : index
    %16 = vector.load %arg9[%c0_10, %c0_11] : memref<16x128xf32, #tpu.memory_space<vmem>>, vector<16x128xf32>
    tpu.vector_store %arg9[%c0_10, %c0_11], %15 {strides = array<i32>} : memref<16x128xf32, #tpu.memory_space<vmem>>, vector<16x128xf32>,
    %c0_i32_12 = arith.constant 0 : i32
    %17 = arith.cmpi eq, %arg3, %c0_i32_12 : i32
    %18 = arith.extui %17 : i1 to i32
    %c0_i32_13 = arith.constant 0 : i32
    %19 = arith.cmpi ne, %18, %c0_i32_13 : i32
    scf.if %19 {
      %c0_14 = arith.constant 0 : index
      %c0_15 = arith.constant 0 : index
      %20 = vector.load %arg9[%c0_14, %c0_15] : memref<16x128xf32, #tpu.memory_space<vmem>>, vector<16x128xf32>
      %c0_16 = arith.constant 0 : index
      %c0_17 = arith.constant 0 : index
      %21 = vector.load %arg7[%c0_16, %c0_17] : memref<1x128xf32, #tpu.memory_space<vmem>>, vector<1x128xf32>
      %22 = vector.broadcast %21 : vector<1x128xf32> to vector<16x128xf32>
      %23 = arith.addf %20, %22 : vector<16x128xf32>
      %24 = arith.truncf %23 : vector<16x128xf32> to vector<16x128xbf16>
      %c0_18 = arith.constant 0 : index
      %c0_19 = arith.constant 0 : index
      %c0_20 = arith.constant 0 : index
      %25 = vector.load %arg8[%c0_18, %c0_19, %c0_20] : memref<1x16x128xbf16, #tpu.memory_space<vmem>>, vector<1x16x128xbf16>
      %26 = vector.shape_cast %25 : vector<1x16x128xbf16> to vector<16x128xbf16>
      %27 = vector.shape_cast %24 : vector<16x128xbf16> to vector<1x16x128xbf16>
      tpu.vector_store %arg8[%c0_18, %c0_19, %c0_20], %27 {strides = array<i32>} : memref<1x16x128xbf16, #tpu.memory_space<vmem>>, vector<1x16x128xbf16>,
    } else {
    }
    return
  }
  func.func @transform_0(%arg0: i32, %arg1: i32, %arg2: i32, %arg3: i32) -> (i32, i32, i32) {
    %c0_i32 = arith.constant 0 : i32
    return %arg0, %arg1, %arg3 : i32, i32, i32
  }
  func.func @transform_1(%arg0: i32, %arg1: i32, %arg2: i32, %arg3: i32) -> (i32, i32, i32) {
    %c0_i32 = arith.constant 0 : i32
    %c0_i32_0 = arith.constant 0 : i32
    return %arg0, %c0_i32, %arg3 : i32, i32, i32
  }
  func.func @transform_2(%arg0: i32, %arg1: i32, %arg2: i32, %arg3: i32) -> (i32, i32) {
    %c0_i32 = arith.constant 0 : i32
    return %arg3, %arg2 : i32, i32
  }
  func.func @transform_3(%arg0: i32, %arg1: i32, %arg2: i32, %arg3: i32) -> (i32, i32) {
    %c0_i32 = arith.constant 0 : i32
    %c0_i32_0 = arith.constant 0 : i32
    return %c0_i32, %arg2 : i32, i32
  }
  func.func @transform_4(%arg0: i32, %arg1: i32, %arg2: i32, %arg3: i32) -> (i32, i32, i32) {
    %c0_i32 = arith.constant 0 : i32
    return %arg0, %arg1, %arg2 : i32, i32, i32
  }
}

module attributes {stable_mosaic.version = 11 : i64} {
  func.func @_gemm_kernel(%arg0: i32, %arg1: i32, %arg2: i32, %arg3: memref<32x128xbf16, #tpu.memory_space<vmem>>, %arg4: memref<128x256xbf16, #tpu.memory_space<vmem>>, %arg5: memref<1x256xf32, #tpu.memory_space<vmem>>, %arg6: memref<32x256xbf16, #tpu.memory_space<vmem>>, %arg7: memref<32x256xf32, #tpu.memory_space<vmem>>) attributes {dimension_semantics = [#tpu.dimension_semantics<parallel>, #tpu.dimension_semantics<parallel>, #tpu.dimension_semantics<arbitrary>], iteration_bounds = array<i64: 1, 1, 1>, scalar_prefetch = 0 : i64, scratch_operands = 1 : i64, tpu.core_type = #tpu.core_type<tc>, window_params = [{transform_indices = @transform_0, window_bounds = array<i64: 32, 128>}, {transform_indices = @transform_1, window_bounds = array<i64: 128, 256>}, {transform_indices = @transform_2, window_bounds = array<i64: 1, 256>}, {transform_indices = @transform_3, window_bounds = array<i64: 32, 256>}]} {
    %c0_i32 = arith.constant 0 : i32
    %0 = arith.cmpi eq, %arg2, %c0_i32 : i32
    %1 = arith.extui %0 : i1 to i32
    %c0_i32_0 = arith.constant 0 : i32
    %2 = arith.cmpi ne, %1, %c0_i32_0 : i32
    scf.if %2 {
      %cst_10 = arith.constant 0.000000e+00 : f32
      %12 = vector.broadcast %cst_10 : f32 to vector<32x256xf32>
      %c0_11 = arith.constant 0 : index
      %c0_12 = arith.constant 0 : index
      %13 = vector.load %arg7[%c0_11, %c0_12] : memref<32x256xf32, #tpu.memory_space<vmem>>, vector<32x256xf32>
      tpu.vector_store %arg7[%c0_11, %c0_12], %12 {strides = array<i32>} : memref<32x256xf32, #tpu.memory_space<vmem>>, vector<32x256xf32>,
    } else {
    }
    %c0 = arith.constant 0 : index
    %c0_1 = arith.constant 0 : index
    %3 = vector.load %arg7[%c0, %c0_1] : memref<32x256xf32, #tpu.memory_space<vmem>>, vector<32x256xf32>
    %c0_2 = arith.constant 0 : index
    %c0_3 = arith.constant 0 : index
    %4 = vector.load %arg3[%c0_2, %c0_3] : memref<32x128xbf16, #tpu.memory_space<vmem>>, vector<32x128xbf16>
    %c0_4 = arith.constant 0 : index
    %c0_5 = arith.constant 0 : index
    %5 = vector.load %arg4[%c0_4, %c0_5] : memref<128x256xbf16, #tpu.memory_space<vmem>>, vector<128x256xbf16>
    %cst = arith.constant dense<0.000000e+00> : vector<32x256xf32>
    %6 = tpu.matmul %4, %5, %cst {dimension_numbers = #tpu.dot_dimension_numbers<[1], [0], [0], [1], [0, 0, 1, 1], [], []>} : vector<32x128xbf16>, vector<128x256xbf16>, vector<32x256xf32> -> vector<32x256xf32>
    %7 = arith.addf %3, %6 : vector<32x256xf32>
    %c0_6 = arith.constant 0 : index
    %c0_7 = arith.constant 0 : index
    %8 = vector.load %arg7[%c0_6, %c0_7] : memref<32x256xf32, #tpu.memory_space<vmem>>, vector<32x256xf32>
    tpu.vector_store %arg7[%c0_6, %c0_7], %7 {strides = array<i32>} : memref<32x256xf32, #tpu.memory_space<vmem>>, vector<32x256xf32>,
    %c0_i32_8 = arith.constant 0 : i32
    %9 = arith.cmpi eq, %arg2, %c0_i32_8 : i32
    %10 = arith.extui %9 : i1 to i32
    %c0_i32_9 = arith.constant 0 : i32
    %11 = arith.cmpi ne, %10, %c0_i32_9 : i32
    scf.if %11 {
      %c0_10 = arith.constant 0 : index
      %c0_11 = arith.constant 0 : index
      %12 = vector.load %arg7[%c0_10, %c0_11] : memref<32x256xf32, #tpu.memory_space<vmem>>, vector<32x256xf32>
      %c0_12 = arith.constant 0 : index
      %c0_13 = arith.constant 0 : index
      %13 = vector.load %arg5[%c0_12, %c0_13] : memref<1x256xf32, #tpu.memory_space<vmem>>, vector<1x256xf32>
      %14 = vector.broadcast %13 : vector<1x256xf32> to vector<32x256xf32>
      %15 = arith.addf %12, %14 : vector<32x256xf32>
      %16 = arith.negf %15 : vector<32x256xf32>
      %17 = math.exp %16 : vector<32x256xf32>
      %cst_14 = arith.constant 1.000000e+00 : f32
      %18 = vector.broadcast %cst_14 : f32 to vector<32x256xf32>
      %19 = arith.addf %18, %17 : vector<32x256xf32>
      %20 = arith.divf %18, %19 : vector<32x256xf32>
      %21 = arith.mulf %15, %20 : vector<32x256xf32>
      %22 = arith.truncf %21 : vector<32x256xf32> to vector<32x256xbf16>
      %c0_15 = arith.constant 0 : index
      %c0_16 = arith.constant 0 : index
      %23 = vector.load %arg6[%c0_15, %c0_16] : memref<32x256xbf16, #tpu.memory_space<vmem>>, vector<32x256xbf16>
      tpu.vector_store %arg6[%c0_15, %c0_16], %22 {strides = array<i32>} : memref<32x256xbf16, #tpu.memory_space<vmem>>, vector<32x256xbf16>,
    } else {
    }
    return
  }
  func.func @transform_0(%arg0: i32, %arg1: i32, %arg2: i32) -> (i32, i32) {
    %c0_i32 = arith.constant 0 : i32
    return %arg0, %arg2 : i32, i32
  }
  func.func @transform_1(%arg0: i32, %arg1: i32, %arg2: i32) -> (i32, i32) {
    %c0_i32 = arith.constant 0 : i32
    return %arg2, %arg1 : i32, i32
  }
  func.func @transform_2(%arg0: i32, %arg1: i32, %arg2: i32) -> (i32, i32) {
    %c0_i32 = arith.constant 0 : i32
    %c0_i32_0 = arith.constant 0 : i32
    return %c0_i32, %arg1 : i32, i32
  }
  func.func @transform_3(%arg0: i32, %arg1: i32, %arg2: i32) -> (i32, i32) {
    %c0_i32 = arith.constant 0 : i32
    return %arg0, %arg1 : i32, i32
  }
}

module attributes {stable_mosaic.version = 11 : i64} {
  func.func @_dw_s1_kernel(%arg0: i32, %arg1: i32, %arg2: memref<1x6x6x256xbf16, #tpu.memory_space<vmem>>, %arg3: memref<9x256xbf16, #tpu.memory_space<vmem>>, %arg4: memref<1x256xf32, #tpu.memory_space<vmem>>, %arg5: memref<1x4x4x256xbf16, #tpu.memory_space<vmem>>) attributes {dimension_semantics = [#tpu.dimension_semantics<parallel>, #tpu.dimension_semantics<parallel>], iteration_bounds = array<i64: 2, 1>, scalar_prefetch = 0 : i64, scratch_operands = 0 : i64, tpu.core_type = #tpu.core_type<tc>, window_params = [{transform_indices = @transform_0, window_bounds = array<i64: 1, 6, 6, 256>}, {transform_indices = @transform_1, window_bounds = array<i64: 9, 256>}, {transform_indices = @transform_2, window_bounds = array<i64: 1, 256>}, {transform_indices = @transform_3, window_bounds = array<i64: 1, 4, 4, 256>}]} {
    %c0 = arith.constant 0 : index
    %c0_0 = arith.constant 0 : index
    %c0_1 = arith.constant 0 : index
    %c0_2 = arith.constant 0 : index
    %0 = vector.load %arg2[%c0, %c0_0, %c0_1, %c0_2] : memref<1x6x6x256xbf16, #tpu.memory_space<vmem>>, vector<1x6x6x256xbf16>
    %1 = vector.shape_cast %0 : vector<1x6x6x256xbf16> to vector<6x6x256xbf16>
    %2 = arith.extf %1 : vector<6x6x256xbf16> to vector<6x6x256xf32>
    %c0_3 = arith.constant 0 : index
    %c0_4 = arith.constant 0 : index
    %3 = vector.load %arg3[%c0_3, %c0_4] : memref<9x256xbf16, #tpu.memory_space<vmem>>, vector<9x256xbf16>
    %4 = arith.extf %3 : vector<9x256xbf16> to vector<9x256xf32>
    %cst = arith.constant 0.000000e+00 : f32
    %5 = vector.broadcast %cst : f32 to vector<4x4x256xf32>
    %6 = vector.extract_strided_slice %2 {offsets = [0, 0, 0], sizes = [4, 4, 256], strides = [1, 1, 1]} : vector<6x6x256xf32> to vector<4x4x256xf32>
    %7 = vector.extract_strided_slice %4 {offsets = [0, 0], sizes = [1, 256], strides = [1, 1]} : vector<9x256xf32> to vector<1x256xf32>
    %8 = vector.shape_cast %7 : vector<1x256xf32> to vector<256xf32>
    %9 = vector.shape_cast %8 : vector<256xf32> to vector<1x1x256xf32>
    %10 = vector.broadcast %9 : vector<1x1x256xf32> to vector<4x4x256xf32>
    %11 = arith.mulf %6, %10 : vector<4x4x256xf32>
    %12 = arith.addf %5, %11 : vector<4x4x256xf32>
    %13 = vector.extract_strided_slice %2 {offsets = [0, 1, 0], sizes = [4, 4, 256], strides = [1, 1, 1]} : vector<6x6x256xf32> to vector<4x4x256xf32>
    %14 = vector.extract_strided_slice %4 {offsets = [1, 0], sizes = [1, 256], strides = [1, 1]} : vector<9x256xf32> to vector<1x256xf32>
    %15 = vector.shape_cast %14 : vector<1x256xf32> to vector<256xf32>
    %16 = vector.shape_cast %15 : vector<256xf32> to vector<1x1x256xf32>
    %17 = vector.broadcast %16 : vector<1x1x256xf32> to vector<4x4x256xf32>
    %18 = arith.mulf %13, %17 : vector<4x4x256xf32>
    %19 = arith.addf %12, %18 : vector<4x4x256xf32>
    %20 = vector.extract_strided_slice %2 {offsets = [0, 2, 0], sizes = [4, 4, 256], strides = [1, 1, 1]} : vector<6x6x256xf32> to vector<4x4x256xf32>
    %21 = vector.extract_strided_slice %4 {offsets = [2, 0], sizes = [1, 256], strides = [1, 1]} : vector<9x256xf32> to vector<1x256xf32>
    %22 = vector.shape_cast %21 : vector<1x256xf32> to vector<256xf32>
    %23 = vector.shape_cast %22 : vector<256xf32> to vector<1x1x256xf32>
    %24 = vector.broadcast %23 : vector<1x1x256xf32> to vector<4x4x256xf32>
    %25 = arith.mulf %20, %24 : vector<4x4x256xf32>
    %26 = arith.addf %19, %25 : vector<4x4x256xf32>
    %27 = vector.extract_strided_slice %2 {offsets = [1, 0, 0], sizes = [4, 4, 256], strides = [1, 1, 1]} : vector<6x6x256xf32> to vector<4x4x256xf32>
    %28 = vector.extract_strided_slice %4 {offsets = [3, 0], sizes = [1, 256], strides = [1, 1]} : vector<9x256xf32> to vector<1x256xf32>
    %29 = vector.shape_cast %28 : vector<1x256xf32> to vector<256xf32>
    %30 = vector.shape_cast %29 : vector<256xf32> to vector<1x1x256xf32>
    %31 = vector.broadcast %30 : vector<1x1x256xf32> to vector<4x4x256xf32>
    %32 = arith.mulf %27, %31 : vector<4x4x256xf32>
    %33 = arith.addf %26, %32 : vector<4x4x256xf32>
    %34 = vector.extract_strided_slice %2 {offsets = [1, 1, 0], sizes = [4, 4, 256], strides = [1, 1, 1]} : vector<6x6x256xf32> to vector<4x4x256xf32>
    %35 = vector.extract_strided_slice %4 {offsets = [4, 0], sizes = [1, 256], strides = [1, 1]} : vector<9x256xf32> to vector<1x256xf32>
    %36 = vector.shape_cast %35 : vector<1x256xf32> to vector<256xf32>
    %37 = vector.shape_cast %36 : vector<256xf32> to vector<1x1x256xf32>
    %38 = vector.broadcast %37 : vector<1x1x256xf32> to vector<4x4x256xf32>
    %39 = arith.mulf %34, %38 : vector<4x4x256xf32>
    %40 = arith.addf %33, %39 : vector<4x4x256xf32>
    %41 = vector.extract_strided_slice %2 {offsets = [1, 2, 0], sizes = [4, 4, 256], strides = [1, 1, 1]} : vector<6x6x256xf32> to vector<4x4x256xf32>
    %42 = vector.extract_strided_slice %4 {offsets = [5, 0], sizes = [1, 256], strides = [1, 1]} : vector<9x256xf32> to vector<1x256xf32>
    %43 = vector.shape_cast %42 : vector<1x256xf32> to vector<256xf32>
    %44 = vector.shape_cast %43 : vector<256xf32> to vector<1x1x256xf32>
    %45 = vector.broadcast %44 : vector<1x1x256xf32> to vector<4x4x256xf32>
    %46 = arith.mulf %41, %45 : vector<4x4x256xf32>
    %47 = arith.addf %40, %46 : vector<4x4x256xf32>
    %48 = vector.extract_strided_slice %2 {offsets = [2, 0, 0], sizes = [4, 4, 256], strides = [1, 1, 1]} : vector<6x6x256xf32> to vector<4x4x256xf32>
    %49 = vector.extract_strided_slice %4 {offsets = [6, 0], sizes = [1, 256], strides = [1, 1]} : vector<9x256xf32> to vector<1x256xf32>
    %50 = vector.shape_cast %49 : vector<1x256xf32> to vector<256xf32>
    %51 = vector.shape_cast %50 : vector<256xf32> to vector<1x1x256xf32>
    %52 = vector.broadcast %51 : vector<1x1x256xf32> to vector<4x4x256xf32>
    %53 = arith.mulf %48, %52 : vector<4x4x256xf32>
    %54 = arith.addf %47, %53 : vector<4x4x256xf32>
    %55 = vector.extract_strided_slice %2 {offsets = [2, 1, 0], sizes = [4, 4, 256], strides = [1, 1, 1]} : vector<6x6x256xf32> to vector<4x4x256xf32>
    %56 = vector.extract_strided_slice %4 {offsets = [7, 0], sizes = [1, 256], strides = [1, 1]} : vector<9x256xf32> to vector<1x256xf32>
    %57 = vector.shape_cast %56 : vector<1x256xf32> to vector<256xf32>
    %58 = vector.shape_cast %57 : vector<256xf32> to vector<1x1x256xf32>
    %59 = vector.broadcast %58 : vector<1x1x256xf32> to vector<4x4x256xf32>
    %60 = arith.mulf %55, %59 : vector<4x4x256xf32>
    %61 = arith.addf %54, %60 : vector<4x4x256xf32>
    %62 = vector.extract_strided_slice %2 {offsets = [2, 2, 0], sizes = [4, 4, 256], strides = [1, 1, 1]} : vector<6x6x256xf32> to vector<4x4x256xf32>
    %63 = vector.extract_strided_slice %4 {offsets = [8, 0], sizes = [1, 256], strides = [1, 1]} : vector<9x256xf32> to vector<1x256xf32>
    %64 = vector.shape_cast %63 : vector<1x256xf32> to vector<256xf32>
    %65 = vector.shape_cast %64 : vector<256xf32> to vector<1x1x256xf32>
    %66 = vector.broadcast %65 : vector<1x1x256xf32> to vector<4x4x256xf32>
    %67 = arith.mulf %62, %66 : vector<4x4x256xf32>
    %68 = arith.addf %61, %67 : vector<4x4x256xf32>
    %c0_5 = arith.constant 0 : index
    %c0_6 = arith.constant 0 : index
    %69 = vector.load %arg4[%c0_5, %c0_6] : memref<1x256xf32, #tpu.memory_space<vmem>>, vector<1x256xf32>
    %70 = vector.shape_cast %69 : vector<1x256xf32> to vector<256xf32>
    %71 = vector.shape_cast %70 : vector<256xf32> to vector<1x1x256xf32>
    %72 = vector.broadcast %71 : vector<1x1x256xf32> to vector<4x4x256xf32>
    %73 = arith.addf %68, %72 : vector<4x4x256xf32>
    %74 = arith.negf %73 : vector<4x4x256xf32>
    %75 = math.exp %74 : vector<4x4x256xf32>
    %cst_7 = arith.constant 1.000000e+00 : f32
    %76 = vector.broadcast %cst_7 : f32 to vector<4x4x256xf32>
    %77 = arith.addf %76, %75 : vector<4x4x256xf32>
    %78 = arith.divf %76, %77 : vector<4x4x256xf32>
    %79 = arith.mulf %73, %78 : vector<4x4x256xf32>
    %80 = arith.truncf %79 : vector<4x4x256xf32> to vector<4x4x256xbf16>
    %c0_8 = arith.constant 0 : index
    %c0_9 = arith.constant 0 : index
    %c0_10 = arith.constant 0 : index
    %c0_11 = arith.constant 0 : index
    %81 = vector.load %arg5[%c0_8, %c0_9, %c0_10, %c0_11] : memref<1x4x4x256xbf16, #tpu.memory_space<vmem>>, vector<1x4x4x256xbf16>
    %82 = vector.shape_cast %81 : vector<1x4x4x256xbf16> to vector<4x4x256xbf16>
    %83 = vector.shape_cast %80 : vector<4x4x256xbf16> to vector<1x4x4x256xbf16>
    tpu.vector_store %arg5[%c0_8, %c0_9, %c0_10, %c0_11], %83 {strides = array<i32>} : memref<1x4x4x256xbf16, #tpu.memory_space<vmem>>, vector<1x4x4x256xbf16>,
    return
  }
  func.func @transform_0(%arg0: i32, %arg1: i32) -> (i32, i32, i32, i32) {
    %c0_i32 = arith.constant 0 : i32
    %c0_i32_0 = arith.constant 0 : i32
    %c0_i32_1 = arith.constant 0 : i32
    return %arg0, %c0_i32, %c0_i32_0, %arg1 : i32, i32, i32, i32
  }
  func.func @transform_1(%arg0: i32, %arg1: i32) -> (i32, i32) {
    %c0_i32 = arith.constant 0 : i32
    %c0_i32_0 = arith.constant 0 : i32
    return %c0_i32, %arg1 : i32, i32
  }
  func.func @transform_2(%arg0: i32, %arg1: i32) -> (i32, i32) {
    %c0_i32 = arith.constant 0 : i32
    %c0_i32_0 = arith.constant 0 : i32
    return %c0_i32, %arg1 : i32, i32
  }
  func.func @transform_3(%arg0: i32, %arg1: i32) -> (i32, i32, i32, i32) {
    %c0_i32 = arith.constant 0 : i32
    %c0_i32_0 = arith.constant 0 : i32
    %c0_i32_1 = arith.constant 0 : i32
    return %arg0, %c0_i32, %c0_i32_0, %arg1 : i32, i32, i32, i32
  }
}

module attributes {stable_mosaic.version = 11 : i64} {
  func.func @_se_kernel(%arg0: i32, %arg1: memref<1x16x256xbf16, #tpu.memory_space<vmem>>, %arg2: memref<256x128xbf16, #tpu.memory_space<vmem>>, %arg3: memref<1x128xf32, #tpu.memory_space<vmem>>, %arg4: memref<128x256xbf16, #tpu.memory_space<vmem>>, %arg5: memref<1x256xf32, #tpu.memory_space<vmem>>, %arg6: memref<1x1x256xbf16, #tpu.memory_space<vmem>>) attributes {dimension_semantics = [#tpu.dimension_semantics<parallel>], iteration_bounds = array<i64: 2>, scalar_prefetch = 0 : i64, scratch_operands = 0 : i64, tpu.core_type = #tpu.core_type<tc>, window_params = [{transform_indices = @transform_0, window_bounds = array<i64: 1, 16, 256>}, {pipeline_mode = #tpu.pipeline_mode<synchronous>, transform_indices = @transform_1, window_bounds = array<i64: 256, 128>}, {pipeline_mode = #tpu.pipeline_mode<synchronous>, transform_indices = @transform_2, window_bounds = array<i64: 1, 128>}, {pipeline_mode = #tpu.pipeline_mode<synchronous>, transform_indices = @transform_3, window_bounds = array<i64: 128, 256>}, {pipeline_mode = #tpu.pipeline_mode<synchronous>, transform_indices = @transform_4, window_bounds = array<i64: 1, 256>}, {transform_indices = @transform_5, window_bounds = array<i64: 1, 1, 256>}]} {
    %c0 = arith.constant 0 : index
    %c0_0 = arith.constant 0 : index
    %c0_1 = arith.constant 0 : index
    %0 = vector.load %arg1[%c0, %c0_0, %c0_1] : memref<1x16x256xbf16, #tpu.memory_space<vmem>>, vector<1x16x256xbf16>
    %1 = vector.shape_cast %0 : vector<1x16x256xbf16> to vector<16x256xbf16>
    %2 = arith.extf %1 : vector<16x256xbf16> to vector<16x256xf32>
    %cst = arith.constant dense<0.000000e+00> : vector<256xf32>
    %3 = vector.multi_reduction <add>, %2, %cst [0] : vector<16x256xf32> to vector<256xf32>
    %4 = vector.shape_cast %3 : vector<256xf32> to vector<1x256xf32>
    %cst_2 = arith.constant 1.600000e+01 : f32
    %5 = vector.broadcast %cst_2 : f32 to vector<1x256xf32>
    %6 = arith.divf %4, %5 : vector<1x256xf32>
    %7 = arith.truncf %6 : vector<1x256xf32> to vector<1x256xbf16>
    %c0_3 = arith.constant 0 : index
    %c0_4 = arith.constant 0 : index
    %8 = vector.load %arg2[%c0_3, %c0_4] : memref<256x128xbf16, #tpu.memory_space<vmem>>, vector<256x128xbf16>
    %cst_5 = arith.constant dense<0.000000e+00> : vector<1x128xf32>
    %9 = tpu.matmul %7, %8, %cst_5 {dimension_numbers = #tpu.dot_dimension_numbers<[1], [0], [0], [1], [0, 0, 1, 1], [], []>} : vector<1x256xbf16>, vector<256x128xbf16>, vector<1x128xf32> -> vector<1x128xf32>
    %c0_6 = arith.constant 0 : index
    %c0_7 = arith.constant 0 : index
    %10 = vector.load %arg3[%c0_6, %c0_7] : memref<1x128xf32, #tpu.memory_space<vmem>>, vector<1x128xf32>
    %11 = arith.addf %9, %10 : vector<1x128xf32>
    %12 = arith.truncf %11 : vector<1x128xf32> to vector<1x128xbf16>
    %c0_8 = arith.constant 0 : index
    %c0_9 = arith.constant 0 : index
    %13 = vector.load %arg4[%c0_8, %c0_9] : memref<128x256xbf16, #tpu.memory_space<vmem>>, vector<128x256xbf16>
    %cst_10 = arith.constant dense<0.000000e+00> : vector<1x256xf32>
    %14 = tpu.matmul %12, %13, %cst_10 {dimension_numbers = #tpu.dot_dimension_numbers<[1], [0], [0], [1], [0, 0, 1, 1], [], []>} : vector<1x128xbf16>, vector<128x256xbf16>, vector<1x256xf32> -> vector<1x256xf32>
    %c0_11 = arith.constant 0 : index
    %c0_12 = arith.constant 0 : index
    %15 = vector.load %arg5[%c0_11, %c0_12] : memref<1x256xf32, #tpu.memory_space<vmem>>, vector<1x256xf32>
    %16 = arith.addf %14, %15 : vector<1x256xf32>
    %17 = arith.negf %16 : vector<1x256xf32>
    %18 = math.exp %17 : vector<1x256xf32>
    %cst_13 = arith.constant 1.000000e+00 : f32
    %19 = vector.broadcast %cst_13 : f32 to vector<1x256xf32>
    %20 = arith.addf %19, %18 : vector<1x256xf32>
    %21 = arith.divf %19, %20 : vector<1x256xf32>
    %22 = arith.mulf %16, %21 : vector<1x256xf32>
    %23 = arith.negf %22 : vector<1x256xf32>
    %24 = math.exp %23 : vector<1x256xf32>
    %cst_14 = arith.constant 1.000000e+00 : f32
    %25 = vector.broadcast %cst_14 : f32 to vector<1x256xf32>
    %26 = arith.addf %25, %24 : vector<1x256xf32>
    %27 = arith.divf %25, %26 : vector<1x256xf32>
    %28 = arith.truncf %27 : vector<1x256xf32> to vector<1x256xbf16>
    %c0_15 = arith.constant 0 : index
    %c0_16 = arith.constant 0 : index
    %c0_17 = arith.constant 0 : index
    %29 = vector.load %arg6[%c0_15, %c0_16, %c0_17] : memref<1x1x256xbf16, #tpu.memory_space<vmem>>, vector<1x1x256xbf16>
    %30 = vector.shape_cast %29 : vector<1x1x256xbf16> to vector<1x256xbf16>
    %31 = vector.shape_cast %28 : vector<1x256xbf16> to vector<1x1x256xbf16>
    tpu.vector_store %arg6[%c0_15, %c0_16, %c0_17], %31 {strides = array<i32>} : memref<1x1x256xbf16, #tpu.memory_space<vmem>>, vector<1x1x256xbf16>,
    return
  }
  func.func @transform_0(%arg0: i32) -> (i32, i32, i32) {
    %c0_i32 = arith.constant 0 : i32
    %c0_i32_0 = arith.constant 0 : i32
    %c0_i32_1 = arith.constant 0 : i32
    return %arg0, %c0_i32, %c0_i32_0 : i32, i32, i32
  }
  func.func @transform_1(%arg0: i32) -> (i32, i32) {
    %c0_i32 = arith.constant 0 : i32
    %c0_i32_0 = arith.constant 0 : i32
    %c0_i32_1 = arith.constant 0 : i32
    return %c0_i32, %c0_i32_0 : i32, i32
  }
  func.func @transform_2(%arg0: i32) -> (i32, i32) {
    %c0_i32 = arith.constant 0 : i32
    %c0_i32_0 = arith.constant 0 : i32
    %c0_i32_1 = arith.constant 0 : i32
    return %c0_i32, %c0_i32_0 : i32, i32
  }
  func.func @transform_3(%arg0: i32) -> (i32, i32) {
    %c0_i32 = arith.constant 0 : i32
    %c0_i32_0 = arith.constant 0 : i32
    %c0_i32_1 = arith.constant 0 : i32
    return %c0_i32, %c0_i32_0 : i32, i32
  }
  func.func @transform_4(%arg0: i32) -> (i32, i32) {
    %c0_i32 = arith.constant 0 : i32
    %c0_i32_0 = arith.constant 0 : i32
    %c0_i32_1 = arith.constant 0 : i32
    return %c0_i32, %c0_i32_0 : i32, i32
  }
  func.func @transform_5(%arg0: i32) -> (i32, i32, i32) {
    %c0_i32 = arith.constant 0 : i32
    %c0_i32_0 = arith.constant 0 : i32
    %c0_i32_1 = arith.constant 0 : i32
    return %arg0, %c0_i32, %c0_i32_0 : i32, i32, i32
  }
}

module attributes {stable_mosaic.version = 11 : i64} {
  func.func @_proj_kernel(%arg0: i32, %arg1: i32, %arg2: i32, %arg3: i32, %arg4: memref<1x16x256xbf16, #tpu.memory_space<vmem>>, %arg5: memref<1x1x256xbf16, #tpu.memory_space<vmem>>, %arg6: memref<256x128xbf16, #tpu.memory_space<vmem>>, %arg7: memref<1x128xf32, #tpu.memory_space<vmem>>, %arg8: memref<1x16x128xbf16, #tpu.memory_space<vmem>>, %arg9: memref<1x16x128xbf16, #tpu.memory_space<vmem>>, %arg10: memref<16x128xf32, #tpu.memory_space<vmem>>) attributes {dimension_semantics = [#tpu.dimension_semantics<parallel>, #tpu.dimension_semantics<parallel>, #tpu.dimension_semantics<parallel>, #tpu.dimension_semantics<arbitrary>], iteration_bounds = array<i64: 2, 1, 1, 1>, scalar_prefetch = 0 : i64, scratch_operands = 1 : i64, tpu.core_type = #tpu.core_type<tc>, window_params = [{transform_indices = @transform_0, window_bounds = array<i64: 1, 16, 256>}, {transform_indices = @transform_1, window_bounds = array<i64: 1, 1, 256>}, {transform_indices = @transform_2, window_bounds = array<i64: 256, 128>}, {transform_indices = @transform_3, window_bounds = array<i64: 1, 128>}, {transform_indices = @transform_4, window_bounds = array<i64: 1, 16, 128>}, {transform_indices = @transform_5, window_bounds = array<i64: 1, 16, 128>}]} {
    %c0_i32 = arith.constant 0 : i32
    %0 = arith.cmpi eq, %arg3, %c0_i32 : i32
    %1 = arith.extui %0 : i1 to i32
    %c0_i32_0 = arith.constant 0 : i32
    %2 = arith.cmpi ne, %1, %c0_i32_0 : i32
    scf.if %2 {
      %cst_14 = arith.constant 0.000000e+00 : f32
      %20 = vector.broadcast %cst_14 : f32 to vector<16x128xf32>
      %c0_15 = arith.constant 0 : index
      %c0_16 = arith.constant 0 : index
      %21 = vector.load %arg10[%c0_15, %c0_16] : memref<16x128xf32, #tpu.memory_space<vmem>>, vector<16x128xf32>
      tpu.vector_store %arg10[%c0_15, %c0_16], %20 {strides = array<i32>} : memref<16x128xf32, #tpu.memory_space<vmem>>, vector<16x128xf32>,
    } else {
    }
    %c0 = arith.constant 0 : index
    %c0_1 = arith.constant 0 : index
    %c0_2 = arith.constant 0 : index
    %3 = vector.load %arg4[%c0, %c0_1, %c0_2] : memref<1x16x256xbf16, #tpu.memory_space<vmem>>, vector<1x16x256xbf16>
    %4 = vector.shape_cast %3 : vector<1x16x256xbf16> to vector<16x256xbf16>
    %5 = arith.extf %4 : vector<16x256xbf16> to vector<16x256xf32>
    %c0_3 = arith.constant 0 : index
    %c0_4 = arith.constant 0 : index
    %c0_5 = arith.constant 0 : index
    %6 = vector.load %arg5[%c0_3, %c0_4, %c0_5] : memref<1x1x256xbf16, #tpu.memory_space<vmem>>, vector<1x1x256xbf16>
    %7 = vector.shape_cast %6 : vector<1x1x256xbf16> to vector<1x256xbf16>
    %8 = arith.extf %7 : vector<1x256xbf16> to vector<1x256xf32>
    %9 = vector.broadcast %8 : vector<1x256xf32> to vector<16x256xf32>
    %10 = arith.mulf %5, %9 : vector<16x256xf32>
    %c0_6 = arith.constant 0 : index
    %c0_7 = arith.constant 0 : index
    %11 = vector.load %arg10[%c0_6, %c0_7] : memref<16x128xf32, #tpu.memory_space<vmem>>, vector<16x128xf32>
    %12 = arith.truncf %10 : vector<16x256xf32> to vector<16x256xbf16>
    %c0_8 = arith.constant 0 : index
    %c0_9 = arith.constant 0 : index
    %13 = vector.load %arg6[%c0_8, %c0_9] : memref<256x128xbf16, #tpu.memory_space<vmem>>, vector<256x128xbf16>
    %cst = arith.constant dense<0.000000e+00> : vector<16x128xf32>
    %14 = tpu.matmul %12, %13, %cst {dimension_numbers = #tpu.dot_dimension_numbers<[1], [0], [0], [1], [0, 0, 1, 1], [], []>} : vector<16x256xbf16>, vector<256x128xbf16>, vector<16x128xf32> -> vector<16x128xf32>
    %15 = arith.addf %11, %14 : vector<16x128xf32>
    %c0_10 = arith.constant 0 : index
    %c0_11 = arith.constant 0 : index
    %16 = vector.load %arg10[%c0_10, %c0_11] : memref<16x128xf32, #tpu.memory_space<vmem>>, vector<16x128xf32>
    tpu.vector_store %arg10[%c0_10, %c0_11], %15 {strides = array<i32>} : memref<16x128xf32, #tpu.memory_space<vmem>>, vector<16x128xf32>,
    %c0_i32_12 = arith.constant 0 : i32
    %17 = arith.cmpi eq, %arg3, %c0_i32_12 : i32
    %18 = arith.extui %17 : i1 to i32
    %c0_i32_13 = arith.constant 0 : i32
    %19 = arith.cmpi ne, %18, %c0_i32_13 : i32
    scf.if %19 {
      %c0_14 = arith.constant 0 : index
      %c0_15 = arith.constant 0 : index
      %20 = vector.load %arg10[%c0_14, %c0_15] : memref<16x128xf32, #tpu.memory_space<vmem>>, vector<16x128xf32>
      %c0_16 = arith.constant 0 : index
      %c0_17 = arith.constant 0 : index
      %21 = vector.load %arg7[%c0_16, %c0_17] : memref<1x128xf32, #tpu.memory_space<vmem>>, vector<1x128xf32>
      %22 = vector.broadcast %21 : vector<1x128xf32> to vector<16x128xf32>
      %23 = arith.addf %20, %22 : vector<16x128xf32>
      %c0_18 = arith.constant 0 : index
      %c0_19 = arith.constant 0 : index
      %c0_20 = arith.constant 0 : index
      %24 = vector.load %arg8[%c0_18, %c0_19, %c0_20] : memref<1x16x128xbf16, #tpu.memory_space<vmem>>, vector<1x16x128xbf16>
      %25 = vector.shape_cast %24 : vector<1x16x128xbf16> to vector<16x128xbf16>
      %26 = arith.extf %25 : vector<16x128xbf16> to vector<16x128xf32>
      %27 = arith.addf %23, %26 : vector<16x128xf32>
      %28 = arith.truncf %27 : vector<16x128xf32> to vector<16x128xbf16>
      %c0_21 = arith.constant 0 : index
      %c0_22 = arith.constant 0 : index
      %c0_23 = arith.constant 0 : index
      %29 = vector.load %arg9[%c0_21, %c0_22, %c0_23] : memref<1x16x128xbf16, #tpu.memory_space<vmem>>, vector<1x16x128xbf16>
      %30 = vector.shape_cast %29 : vector<1x16x128xbf16> to vector<16x128xbf16>
      %31 = vector.shape_cast %28 : vector<16x128xbf16> to vector<1x16x128xbf16>
      tpu.vector_store %arg9[%c0_21, %c0_22, %c0_23], %31 {strides = array<i32>} : memref<1x16x128xbf16, #tpu.memory_space<vmem>>, vector<1x16x128xbf16>,
    } else {
    }
    return
  }
  func.func @transform_0(%arg0: i32, %arg1: i32, %arg2: i32, %arg3: i32) -> (i32, i32, i32) {
    %c0_i32 = arith.constant 0 : i32
    return %arg0, %arg1, %arg3 : i32, i32, i32
  }
  func.func @transform_1(%arg0: i32, %arg1: i32, %arg2: i32, %arg3: i32) -> (i32, i32, i32) {
    %c0_i32 = arith.constant 0 : i32
    %c0_i32_0 = arith.constant 0 : i32
    return %arg0, %c0_i32, %arg3 : i32, i32, i32
  }
  func.func @transform_2(%arg0: i32, %arg1: i32, %arg2: i32, %arg3: i32) -> (i32, i32) {
    %c0_i32 = arith.constant 0 : i32
    return %arg3, %arg2 : i32, i32
  }
  func.func @transform_3(%arg0: i32, %arg1: i32, %arg2: i32, %arg3: i32) -> (i32, i32) {
    %c0_i32 = arith.constant 0 : i32
    %c0_i32_0 = arith.constant 0 : i32
    return %c0_i32, %arg2 : i32, i32
  }
  func.func @transform_4(%arg0: i32, %arg1: i32, %arg2: i32, %arg3: i32) -> (i32, i32, i32) {
    %c0_i32 = arith.constant 0 : i32
    return %arg0, %arg1, %arg2 : i32, i32, i32
  }
  func.func @transform_5(%arg0: i32, %arg1: i32, %arg2: i32, %arg3: i32) -> (i32, i32, i32) {
    %c0_i32 = arith.constant 0 : i32
    return %arg0, %arg1, %arg2 : i32, i32, i32
  }
}

module attributes {stable_mosaic.version = 11 : i64} {
  func.func @_gemm_kernel(%arg0: i32, %arg1: i32, %arg2: i32, %arg3: memref<32x128xbf16, #tpu.memory_space<vmem>>, %arg4: memref<128x256xbf16, #tpu.memory_space<vmem>>, %arg5: memref<1x256xf32, #tpu.memory_space<vmem>>, %arg6: memref<32x256xbf16, #tpu.memory_space<vmem>>, %arg7: memref<32x256xf32, #tpu.memory_space<vmem>>) attributes {dimension_semantics = [#tpu.dimension_semantics<parallel>, #tpu.dimension_semantics<parallel>, #tpu.dimension_semantics<arbitrary>], iteration_bounds = array<i64: 1, 5, 1>, scalar_prefetch = 0 : i64, scratch_operands = 1 : i64, tpu.core_type = #tpu.core_type<tc>, window_params = [{transform_indices = @transform_0, window_bounds = array<i64: 32, 128>}, {transform_indices = @transform_1, window_bounds = array<i64: 128, 256>}, {transform_indices = @transform_2, window_bounds = array<i64: 1, 256>}, {transform_indices = @transform_3, window_bounds = array<i64: 32, 256>}]} {
    %c0_i32 = arith.constant 0 : i32
    %0 = arith.cmpi eq, %arg2, %c0_i32 : i32
    %1 = arith.extui %0 : i1 to i32
    %c0_i32_0 = arith.constant 0 : i32
    %2 = arith.cmpi ne, %1, %c0_i32_0 : i32
    scf.if %2 {
      %cst_10 = arith.constant 0.000000e+00 : f32
      %12 = vector.broadcast %cst_10 : f32 to vector<32x256xf32>
      %c0_11 = arith.constant 0 : index
      %c0_12 = arith.constant 0 : index
      %13 = vector.load %arg7[%c0_11, %c0_12] : memref<32x256xf32, #tpu.memory_space<vmem>>, vector<32x256xf32>
      tpu.vector_store %arg7[%c0_11, %c0_12], %12 {strides = array<i32>} : memref<32x256xf32, #tpu.memory_space<vmem>>, vector<32x256xf32>,
    } else {
    }
    %c0 = arith.constant 0 : index
    %c0_1 = arith.constant 0 : index
    %3 = vector.load %arg7[%c0, %c0_1] : memref<32x256xf32, #tpu.memory_space<vmem>>, vector<32x256xf32>
    %c0_2 = arith.constant 0 : index
    %c0_3 = arith.constant 0 : index
    %4 = vector.load %arg3[%c0_2, %c0_3] : memref<32x128xbf16, #tpu.memory_space<vmem>>, vector<32x128xbf16>
    %c0_4 = arith.constant 0 : index
    %c0_5 = arith.constant 0 : index
    %5 = vector.load %arg4[%c0_4, %c0_5] : memref<128x256xbf16, #tpu.memory_space<vmem>>, vector<128x256xbf16>
    %cst = arith.constant dense<0.000000e+00> : vector<32x256xf32>
    %6 = tpu.matmul %4, %5, %cst {dimension_numbers = #tpu.dot_dimension_numbers<[1], [0], [0], [1], [0, 0, 1, 1], [], []>} : vector<32x128xbf16>, vector<128x256xbf16>, vector<32x256xf32> -> vector<32x256xf32>
    %7 = arith.addf %3, %6 : vector<32x256xf32>
    %c0_6 = arith.constant 0 : index
    %c0_7 = arith.constant 0 : index
    %8 = vector.load %arg7[%c0_6, %c0_7] : memref<32x256xf32, #tpu.memory_space<vmem>>, vector<32x256xf32>
    tpu.vector_store %arg7[%c0_6, %c0_7], %7 {strides = array<i32>} : memref<32x256xf32, #tpu.memory_space<vmem>>, vector<32x256xf32>,
    %c0_i32_8 = arith.constant 0 : i32
    %9 = arith.cmpi eq, %arg2, %c0_i32_8 : i32
    %10 = arith.extui %9 : i1 to i32
    %c0_i32_9 = arith.constant 0 : i32
    %11 = arith.cmpi ne, %10, %c0_i32_9 : i32
    scf.if %11 {
      %c0_10 = arith.constant 0 : index
      %c0_11 = arith.constant 0 : index
      %12 = vector.load %arg7[%c0_10, %c0_11] : memref<32x256xf32, #tpu.memory_space<vmem>>, vector<32x256xf32>
      %c0_12 = arith.constant 0 : index
      %c0_13 = arith.constant 0 : index
      %13 = vector.load %arg5[%c0_12, %c0_13] : memref<1x256xf32, #tpu.memory_space<vmem>>, vector<1x256xf32>
      %14 = vector.broadcast %13 : vector<1x256xf32> to vector<32x256xf32>
      %15 = arith.addf %12, %14 : vector<32x256xf32>
      %16 = arith.negf %15 : vector<32x256xf32>
      %17 = math.exp %16 : vector<32x256xf32>
      %cst_14 = arith.constant 1.000000e+00 : f32
      %18 = vector.broadcast %cst_14 : f32 to vector<32x256xf32>
      %19 = arith.addf %18, %17 : vector<32x256xf32>
      %20 = arith.divf %18, %19 : vector<32x256xf32>
      %21 = arith.mulf %15, %20 : vector<32x256xf32>
      %22 = arith.truncf %21 : vector<32x256xf32> to vector<32x256xbf16>
      %c0_15 = arith.constant 0 : index
      %c0_16 = arith.constant 0 : index
      %23 = vector.load %arg6[%c0_15, %c0_16] : memref<32x256xbf16, #tpu.memory_space<vmem>>, vector<32x256xbf16>
      tpu.vector_store %arg6[%c0_15, %c0_16], %22 {strides = array<i32>} : memref<32x256xbf16, #tpu.memory_space<vmem>>, vector<32x256xbf16>,
    } else {
    }
    return
  }
  func.func @transform_0(%arg0: i32, %arg1: i32, %arg2: i32) -> (i32, i32) {
    %c0_i32 = arith.constant 0 : i32
    return %arg0, %arg2 : i32, i32
  }
  func.func @transform_1(%arg0: i32, %arg1: i32, %arg2: i32) -> (i32, i32) {
    %c0_i32 = arith.constant 0 : i32
    return %arg2, %arg1 : i32, i32
  }
  func.func @transform_2(%arg0: i32, %arg1: i32, %arg2: i32) -> (i32, i32) {
    %c0_i32 = arith.constant 0 : i32
    %c0_i32_0 = arith.constant 0 : i32
    return %c0_i32, %arg1 : i32, i32
  }
  func.func @transform_3(%arg0: i32, %arg1: i32, %arg2: i32) -> (i32, i32) {
    %c0_i32 = arith.constant 0 : i32
    return %arg0, %arg1 : i32, i32
  }
}

module attributes {stable_mosaic.version = 11 : i64} {
  func.func @_head_kernel(%arg0: i32, %arg1: memref<1x16x1280xbf16, #tpu.memory_space<vmem>>, %arg2: memref<1280x128xbf16, #tpu.memory_space<vmem>>, %arg3: memref<1x128xf32, #tpu.memory_space<vmem>>, %arg4: memref<1x1x128xf32, #tpu.memory_space<vmem>>) attributes {dimension_semantics = [#tpu.dimension_semantics<parallel>], iteration_bounds = array<i64: 2>, scalar_prefetch = 0 : i64, scratch_operands = 0 : i64, tpu.core_type = #tpu.core_type<tc>, window_params = [{transform_indices = @transform_0, window_bounds = array<i64: 1, 16, 1280>}, {pipeline_mode = #tpu.pipeline_mode<synchronous>, transform_indices = @transform_1, window_bounds = array<i64: 1280, 128>}, {pipeline_mode = #tpu.pipeline_mode<synchronous>, transform_indices = @transform_2, window_bounds = array<i64: 1, 128>}, {transform_indices = @transform_3, window_bounds = array<i64: 1, 1, 128>}]} {
    %c0 = arith.constant 0 : index
    %c0_0 = arith.constant 0 : index
    %c0_1 = arith.constant 0 : index
    %0 = vector.load %arg1[%c0, %c0_0, %c0_1] : memref<1x16x1280xbf16, #tpu.memory_space<vmem>>, vector<1x16x1280xbf16>
    %1 = vector.shape_cast %0 : vector<1x16x1280xbf16> to vector<16x1280xbf16>
    %2 = arith.extf %1 : vector<16x1280xbf16> to vector<16x1280xf32>
    %cst = arith.constant dense<0.000000e+00> : vector<1280xf32>
    %3 = vector.multi_reduction <add>, %2, %cst [0] : vector<16x1280xf32> to vector<1280xf32>
    %4 = vector.shape_cast %3 : vector<1280xf32> to vector<1x1280xf32>
    %cst_2 = arith.constant 1.600000e+01 : f32
    %5 = vector.broadcast %cst_2 : f32 to vector<1x1280xf32>
    %6 = arith.divf %4, %5 : vector<1x1280xf32>
    %7 = arith.truncf %6 : vector<1x1280xf32> to vector<1x1280xbf16>
    %c0_3 = arith.constant 0 : index
    %c0_4 = arith.constant 0 : index
    %8 = vector.load %arg2[%c0_3, %c0_4] : memref<1280x128xbf16, #tpu.memory_space<vmem>>, vector<1280x128xbf16>
    %cst_5 = arith.constant dense<0.000000e+00> : vector<1x128xf32>
    %9 = tpu.matmul %7, %8, %cst_5 {dimension_numbers = #tpu.dot_dimension_numbers<[1], [0], [0], [1], [0, 0, 1, 1], [], []>} : vector<1x1280xbf16>, vector<1280x128xbf16>, vector<1x128xf32> -> vector<1x128xf32>
    %c0_6 = arith.constant 0 : index
    %c0_7 = arith.constant 0 : index
    %10 = vector.load %arg3[%c0_6, %c0_7] : memref<1x128xf32, #tpu.memory_space<vmem>>, vector<1x128xf32>
    %11 = arith.addf %9, %10 : vector<1x128xf32>
    %c0_8 = arith.constant 0 : index
    %c0_9 = arith.constant 0 : index
    %c0_10 = arith.constant 0 : index
    %12 = vector.load %arg4[%c0_8, %c0_9, %c0_10] : memref<1x1x128xf32, #tpu.memory_space<vmem>>, vector<1x1x128xf32>
    %13 = vector.shape_cast %12 : vector<1x1x128xf32> to vector<1x128xf32>
    %14 = vector.shape_cast %11 : vector<1x128xf32> to vector<1x1x128xf32>
    tpu.vector_store %arg4[%c0_8, %c0_9, %c0_10], %14 {strides = array<i32>} : memref<1x1x128xf32, #tpu.memory_space<vmem>>, vector<1x1x128xf32>,
    return
  }
  func.func @transform_0(%arg0: i32) -> (i32, i32, i32) {
    %c0_i32 = arith.constant 0 : i32
    %c0_i32_0 = arith.constant 0 : i32
    %c0_i32_1 = arith.constant 0 : i32
    return %arg0, %c0_i32, %c0_i32_0 : i32, i32, i32
  }
  func.func @transform_1(%arg0: i32) -> (i32, i32) {
    %c0_i32 = arith.constant 0 : i32
    %c0_i32_0 = arith.constant 0 : i32
    %c0_i32_1 = arith.constant 0 : i32
    return %c0_i32, %c0_i32_0 : i32, i32
  }
  func.func @transform_2(%arg0: i32) -> (i32, i32) {
    %c0_i32 = arith.constant 0 : i32
    %c0_i32_0 = arith.constant 0 : i32
    %c0_i32_1 = arith.constant 0 : i32
    return %c0_i32, %c0_i32_0 : i32, i32
  }
  func.func @transform_3(%arg0: i32) -> (i32, i32, i32) {
    %c0_i32 = arith.constant 0 : i32
    %c0_i32_0 = arith.constant 0 : i32
    %c0_i32_1 = arith.constant 0 : i32
    return %arg0, %c0_i32, %c0_i32_0 : i32, i32, i32
  }
}

</mosaic_0001>

<llo_original>
// kernel: _lambda_.16
$region0: #{_lambda_.16}
  #allocation0 [shape = 'u32[]', space=smem, size = 0x4, offset = 0x4, fixed_abs, tag = 'smem constant byte address 0x4 - core index']
  #allocation1 [shape = 'u32[144,128]{1,0:T(1,128)}', space=vmem, size = 0x12000, scoped, tag = 'internal scratch']
  %s0 = inlined_call_operand.vmem [shape: bf16[2,64,128], index: 0, kind: input, shape index: {}]
  %s1 = inlined_call_operand.vmem [shape: bf16[128,128], index: 1, kind: input, shape index: {}]
  %s2 = inlined_call_operand.vmem [shape: f32[1,128], index: 2, kind: input, shape index: {}, may-alias: {2,4}]
  %s3 = inlined_call_operand.vmem [shape: bf16[128,128], index: 3, kind: input, shape index: {}]
  %s4 = inlined_call_operand.vmem [shape: f32[1,128], index: 4, kind: input, shape index: {}, may-alias: {2,4}]
  %s5 = inlined_call_operand.vmem [shape: bf16[2,1,128], index: 5, kind: output, shape index: {}]
  %s6 = sld [smem:[#allocation0]]
  $region53: #{_lambda_.16} parent=0
    _
  %s8 = ssub.s32 1, %s6
  %s9 = scalar_select 0, %s8, %s6
  loop: start=0, step=1, limit=4
  $region2: #{_lambda_.16} parent=0 // loop_pre_header
    _
  $region3: #{_lambda_.16} parent=0 // loop_header
    %s11 = sphi 0, %s15
    %p12 = scmp.ge.s32.totalorder %s11, 4
    %s21 = sphi 0, %s23
    %s24 = sphi 0, %s21
    %s25 = sphi 0, %s24
    %s41 = sphi 0, %s25
    %s45 = sphi 0, %s45
    %s47 = sphi 0, %s45
    %s48 = sphi 0, %s47
    %s62 = sphi 0, %s48
    %s66 = sphi 0, %s66
    %s68 = sphi 0, %s66
    %s69 = sphi 0, %s68
    %s83 = sphi 0, %s69
    %s87 = sphi 0, %s87
    %s89 = sphi 0, %s87
    %s90 = sphi 0, %s89
    %s104 = sphi 0, %s90
    %s108 = sphi 0, %s108
    %s110 = sphi 0, %s108
    %s111 = sphi 0, %s110
    %s125 = sphi 0, %s111
    %s131 = sphi 0, %s133
    %s134 = sphi 0, %s131
    %s135 = sphi 0, %s134
    %s151 = sphi 0, %s135
  $region4: #{_lambda_.16} parent=0 // loop_header_branch
    %14 = sbr.rel (%p12) target = $region8
  $region5: #{_lambda_.16} parent=0 // loop_body
    %s16 = ssub.s32 %s11, 1
    %s17 = ssub.s32 %s11, 2
    %s18 = sadd.s32 %s11, 1
    %s19 = ssub.s32 %s11, %s18
    %p20 = scmp.eq.s32.totalorder %s19, 0
    %s22 = sadd.s32 %s21, 1
    %s23 = scalar_select %p20, %s21, %s22
    %p26 = pneg %p20
    %p27 = scmp.eq.s32.totalorder %s11, 1
    %p28 = por %p26, %p27
    %p29 = scmp.ne.s32.totalorder %s21, %s24
    %p30 = scmp.eq.s32.totalorder %s11, 0
    %p31 = por %p29, %p30
    %p32 = scmp.ne.s32.totalorder %s21, %s24
    %p33 = scmp.eq.s32.totalorder %s16, 1
    %p34 = por %p32, %p33
    %p35 = scmp.ne.s32.totalorder %s24, %s25
    %p36 = scmp.eq.s32.totalorder %s16, 0
    %p37 = por %p35, %p36
    %p38 = scmp.ne.s32.totalorder %s24, %s25
    %p39 = scmp.eq.s32.totalorder %s17, 1
    %p40 = por %p38, %p39
    %p42 = scmp.ne.s32.totalorder %s25, %s41
    %p43 = scmp.eq.s32.totalorder %s17, 0
    %p44 = por %p42, %p43
    %s46 = sadd.s32 %s45, 1
    %p49 = scmp.eq.s32.totalorder %s11, 1
    %p50 = scmp.ne.s32.totalorder %s45, %s47
    %p51 = scmp.eq.s32.totalorder %s11, 0
    %p52 = por %p50, %p51
    %p53 = scmp.ne.s32.totalorder %s45, %s47
    %p54 = scmp.eq.s32.totalorder %s16, 1
    %p55 = por %p53, %p54
    %p56 = scmp.ne.s32.totalorder %s47, %s48
    %p57 = scmp.eq.s32.totalorder %s16, 0
    %p58 = por %p56, %p57
    %p59 = scmp.ne.s32.totalorder %s47, %s48
    %p60 = scmp.eq.s32.totalorder %s17, 1
    %p61 = por %p59, %p60
    %p63 = scmp.ne.s32.totalorder %s48, %s62
    %p64 = scmp.eq.s32.totalorder %s17, 0
    %p65 = por %p63, %p64
    %s67 = sadd.s32 %s66, 1
    %p70 = scmp.eq.s32.totalorder %s11, 1
    %p71 = scmp.ne.s32.totalorder %s66, %s68
    %p72 = scmp.eq.s32.totalorder %s11, 0
    %p73 = por %p71, %p72
    %p74 = scmp.ne.s32.totalorder %s66, %s68
    %p75 = scmp.eq.s32.totalorder %s16, 1
    %p76 = por %p74, %p75
    %p77 = scmp.ne.s32.totalorder %s68, %s69
    %p78 = scmp.eq.s32.totalorder %s16, 0
    %p79 = por %p77, %p78
    %p80 = scmp.ne.s32.totalorder %s68, %s69
    %p81 = scmp.eq.s32.totalorder %s17, 1
    %p82 = por %p80, %p81
    %p84 = scmp.ne.s32.totalorder %s69, %s83
    %p85 = scmp.eq.s32.totalorder %s17, 0
    %p86 = por %p84, %p85
    %s88 = sadd.s32 %s87, 1
    %p91 = scmp.eq.s32.totalorder %s11, 1
    %p92 = scmp.ne.s32.totalorder %s87, %s89
    %p93 = scmp.eq.s32.totalorder %s11, 0
    %p94 = por %p92, %p93
    %p95 = scmp.ne.s32.totalorder %s87, %s89
    %p96 = scmp.eq.s32.totalorder %s16, 1
    %p97 = por %p95, %p96
    %p98 = scmp.ne.s32.totalorder %s89, %s90
    %p99 = scmp.eq.s32.totalorder %s16, 0
    %p100 = por %p98, %p99
    %p101 = scmp.ne.s32.totalorder %s89, %s90
    %p102 = scmp.eq.s32.totalorder %s17, 1
    %p103 = por %p101, %p102
    %p105 = scmp.ne.s32.totalorder %s90, %s104
    %p106 = scmp.eq.s32.totalorder %s17, 0
    %p107 = por %p105, %p106
    %s109 = sadd.s32 %s108, 1
    %p112 = scmp.eq.s32.totalorder %s11, 1
    %p113 = scmp.ne.s32.totalorder %s108, %s110
    %p114 = scmp.eq.s32.totalorder %s11, 0
    %p115 = por %p113, %p114
    %p116 = scmp.ne.s32.totalorder %s108, %s110
    %p117 = scmp.eq.s32.totalorder %s16, 1
    %p118 = por %p116, %p117
    %p119 = scmp.ne.s32.totalorder %s110, %s111
    %p120 = scmp.eq.s32.totalorder %s16, 0
    %p121 = por %p119, %p120
    %p122 = scmp.ne.s32.totalorder %s110, %s111
    %p123 = scmp.eq.s32.totalorder %s17, 1
    %p124 = por %p122, %p123
    %p126 = scmp.ne.s32.totalorder %s111, %s125
    %p127 = scmp.eq.s32.totalorder %s17, 0
    %p128 = por %p126, %p127
    %s129 = ssub.s32 %s11, %s18
    %p130 = scmp.eq.s32.totalorder %s129, 0
    %s132 = sadd.s32 %s131, 1
    %s133 = scalar_select %p130, %s131, %s132
    %p136 = pneg %p130
    %p137 = scmp.eq.s32.totalorder %s11, 1
    %p138 = por %p136, %p137
    %p139 = scmp.ne.s32.totalorder %s131, %s134
    %p140 = scmp.eq.s32.totalorder %s11, 0
    %p141 = por %p139, %p140
    %p142 = scmp.ne.s32.totalorder %s131, %s134
    %p143 = scmp.eq.s32.totalorder %s16, 1
    %p144 = por %p142, %p143
    %p145 = scmp.ne.s32.totalorder %s134, %s135
    %p146 = scmp.eq.s32.totalorder %s16, 0
    %p147 = por %p145, %p146
    %p148 = scmp.ne.s32.totalorder %s134, %s135
    %p149 = scmp.eq.s32.totalorder %s17, 1
    %p150 = por %p148, %p149
    %p152 = scmp.ne.s32.totalorder %s135, %s151
    %p153 = scmp.eq.s32.totalorder %s17, 0
    %p154 = por %p152, %p153
    %p155 = scmp.le.s32.totalorder 1, %s11
    %p156 = scmp.lt.s32.totalorder %s11, 3
    %p157 = pnand %p155, %p156
    %p158 = pneg %p157
    // Predicated region
    $region9: #{_lambda_.16} parent=5 // pred_check
      _
    $region10: #{_lambda_.16} parent=5 // pred_check_branch
      %160 = sbr.rel (%p157) target = $region12
    $region11: #{_lambda_.16} parent=5 // pred_region
      %s161 = ssub.s32 %s11, 1
      // Predicated region
      $region13: #{_lambda_.16} parent=11 // pred_check
        %p162 = pneg %p58
      $region14: #{_lambda_.16} parent=11 // pred_check_branch
        %164 = sbr.rel (%p162) target = $region16
      $region15: #{_lambda_.16} parent=11 // pred_region
        _
      $region16: #{_lambda_.16} parent=11 // pred_fallthru
        _
      // Predicated region
      $region17: #{_lambda_.16} parent=11 // pred_check
        %p165 = pneg %p79
      $region18: #{_lambda_.16} parent=11 // pred_check_branch
        %167 = sbr.rel (%p165) target = $region20
      $region19: #{_lambda_.16} parent=11 // pred_region
        _
      $region20: #{_lambda_.16} parent=11 // pred_fallthru
        _
      // Predicated region
      $region21: #{_lambda_.16} parent=11 // pred_check
        %p168 = pneg %p100
      $region22: #{_lambda_.16} parent=11 // pred_check_branch
        %170 = sbr.rel (%p168) target = $region24
      $region23: #{_lambda_.16} parent=11 // pred_region
        _
      $region24: #{_lambda_.16} parent=11 // pred_fallthru
        _
      // Predicated region
      $region25: #{_lambda_.16} parent=11 // pred_check
        %p171 = pneg %p121
      $region26: #{_lambda_.16} parent=11 // pred_check_branch
        %173 = sbr.rel (%p171) target = $region28
      $region27: #{_lambda_.16} parent=11 // pred_region
        _
      $region28: #{_lambda_.16} parent=11 // pred_fallthru
        _
    $region12: #{_lambda_.16} parent=5 // pred_fallthru
      _
    %p174 = scmp.lt.s32.totalorder %s11, 2
    // Predicated region
    $region29: #{_lambda_.16} parent=5 // pred_check
      %p175 = pneg %p174
    $region30: #{_lambda_.16} parent=5 // pred_check_branch
      %177 = sbr.rel (%p175) target = $region32
    $region31: #{_lambda_.16} parent=5 // pred_region
      // Predicated region
      $region33: #{_lambda_.16} parent=31 // pred_check
        %p178 = pneg %p31
      $region34: #{_lambda_.16} parent=31 // pred_check_branch
        %180 = sbr.rel (%p178) target = $region36
      $region35: #{_lambda_.16} parent=31 // pred_region
        %p181 = scmp.lt.s32.totalorder %s11, 1
        %s182 = scalar_select %p181, %s11, 1
        %s183 = smul.addr %s182, 8
        %s184 = smul.addr %s183, 4
        %s185 = scalar_lea.vmem %s0, %s184
      $region36: #{_lambda_.16} parent=31 // pred_fallthru
        _
    $region32: #{_lambda_.16} parent=5 // pred_fallthru
      _
    %p186 = scmp.le.s32.totalorder 1, %s11
    %p187 = scmp.lt.s32.totalorder %s11, 3
    %p188 = pnand %p186, %p187
    %p189 = pneg %p188
    // Predicated region
    $region37: #{_lambda_.16} parent=5 // pred_check
      _
    $region38: #{_lambda_.16} parent=5 // pred_check_branch
      %191 = sbr.rel (%p188) target = $region40
    $region39: #{_lambda_.16} parent=5 // pred_region
      %s192 = ssub.s32 %s11, 1
      %p193 = scmp.lt.s32.totalorder %s16, 1
      %s194 = scalar_select %p193, %s16, 1
      %s195 = smul.addr %s194, 8
      %s196 = smul.addr %s195, 4
      %s197 = scalar_lea.vmem %s0, %s196
      %p198 = pneg %p37
      %p199 = pneg %p34
      %p200 = pneg %p58
      %p201 = pneg %p55
      %p202 = pneg %p79
      %p203 = pneg %p76
      %p204 = pneg %p100
      %p205 = pneg %p97
      %p206 = pneg %p121
      %p207 = pneg %p118
      %p208 = pneg %p147
      %p209 = pneg %p144
      %p210 = scmp.lt.s32.totalorder %s16, 1
      %s211 = scalar_select %p210, %s16, 1
      %s212 = scalar_lea.vmem %s5, %s211
      %p213 = scmp.lt.s32.totalorder %s16, 1
      %s214 = scalar_select %p213, %s16, 1
      %s215 = smul.addr %s214, 8
      %s216 = smul.addr %s215, 4
      %s217 = scalar_lea.vmem %s0, %s216
      %p218 = scmp.lt.s32.totalorder %s16, 1
      %s219 = scalar_select %p218, %s16, 1
      %s220 = scalar_lea.vmem %s5, %s219
      %v222 = vld [vmem:[%s217] sm:$0xf]
      %v223 = vld [vmem:[%s217 + $0x4] sm:$0xf]
      %v224 = vld [vmem:[%s217 + $0x8] sm:$0xf]
      %v225 = vld [vmem:[%s217 + $0xc] sm:$0xf]
      %v226 = vld [vmem:[%s217 + $0x10] sm:$0xf]
      %v227 = vld [vmem:[%s217 + $0x14] sm:$0xf]
      %v228 = vld [vmem:[%s217 + $0x18] sm:$0xf]
      %v229 = vld [vmem:[%s217 + $0x1c] sm:$0xf]
      %v230 = vunpack.c.l.bf16 %v222
      %v231 = vunpack.c.l.bf16 %v223
      %v232 = vunpack.c.l.bf16 %v224
      %v233 = vunpack.c.l.bf16 %v225
      %v234 = vunpack.c.l.bf16 %v226
      %v235 = vunpack.c.l.bf16 %v227
      %v236 = vunpack.c.l.bf16 %v228
      %v237 = vunpack.c.l.bf16 %v229
      %v238 = vadd.f32 %v230, %v231
      %v239 = vadd.f32 %v238, %v232
      %v240 = vadd.f32 %v239, %v233
      %v241 = vadd.f32 %v240, %v234
      %v242 = vadd.f32 %v241, %v235
      %v243 = vadd.f32 %v242, %v236
      %v244 = vadd.f32 %v243, %v237
      %v245 = vrot.slane %v244, 4
      %v246 = vadd.f32 %v244, %v245
      %v247 = vrot.slane %v246, 2
      %v248 = vadd.f32 %v246, %v247
      %v249 = vrot.slane %v248, 1
      %v250 = vadd.f32 %v248, %v249
      %v251 = vrcp.pop 64.0
      %v252 = vmul.f32 %v250, %v251
      %v253 = vpack.c.bf16 %v252, %v252
      %v254 = vld [vmem:[%s1] sm:$0xf]
      %v255 = vld [vmem:[%s1 + $0x4] sm:$0xf]
      %v256 = vld [vmem:[%s1 + $0x8] sm:$0xf]
      %v257 = vld [vmem:[%s1 + $0xc] sm:$0xf]
      %v258 = vld [vmem:[%s1 + $0x10] sm:$0xf]
      %v259 = vld [vmem:[%s1 + $0x14] sm:$0xf]
      %v260 = vld [vmem:[%s1 + $0x18] sm:$0xf]
      %v261 = vld [vmem:[%s1 + $0x1c] sm:$0xf]
      %v262 = vld [vmem:[%s1 + $0x20] sm:$0xf]
      %v263 = vld [vmem:[%s1 + $0x24] sm:$0xf]
      %v264 = vld [vmem:[%s1 + $0x28] sm:$0xf]
      %v265 = vld [vmem:[%s1 + $0x2c] sm:$0xf]
      %v266 = vld [vmem:[%s1 + $0x30] sm:$0xf]
      %v267 = vld [vmem:[%s1 + $0x34] sm:$0xf]
      %v268 = vld [vmem:[%s1 + $0x38] sm:$0xf]
      %v269 = vld [vmem:[%s1 + $0x3c] sm:$0xf]
      %v270 = vld [vmem:[%s2] sm:$0x1]
      %v287 = vunpack.c.l.b16 %v254
      %v288 = vunpack.c.l.b16 %v255
      %v289 = vunpack.c.l.b16 %v256
      %v290 = vunpack.c.l.b16 %v257
      %v291 = vunpack.c.l.b16 %v258
      %v292 = vunpack.c.l.b16 %v259
      %v293 = vunpack.c.l.b16 %v260
      %v294 = vunpack.c.l.b16 %v261
      %v295 = vunpack.c.l.b16 %v262
      %v296 = vunpack.c.l.b16 %v263
      %v297 = vunpack.c.l.b16 %v264
      %v298 = vunpack.c.l.b16 %v265
      %v299 = vunpack.c.l.b16 %v266
      %v300 = vunpack.c.l.b16 %v267
      %v301 = vunpack.c.l.b16 %v268
      %v302 = vunpack.c.l.b16 %v269
      %v303 = vpack.c.b16 %v288, %v287
      %v304 = vpack.c.b16 %v290, %v289
      %v305 = vpack.c.b16 %v292, %v291
      %v306 = vpack.c.b16 %v294, %v293
      %v307 = vpack.c.b16 %v296, %v295
      %v308 = vpack.c.b16 %v298, %v297
      %v309 = vpack.c.b16 %v300, %v299
      %v310 = vpack.c.b16 %v302, %v301
      %319 = vmatprep.subr.bf16.mxu0 0
      %320 = vmatpush1.bf16.msra.mxu0 %v303
      %321 = vmatprep.subr.bf16.mxu0 0
      %322 = vmatpush1.bf16.msra.mxu0 %v304
      %323 = vmatprep.subr.bf16.mxu0 0
      %324 = vmatpush1.bf16.msra.mxu0 %v305
      %325 = vmatprep.subr.bf16.mxu0 0
      %326 = vmatpush1.bf16.msra.mxu0 %v306
      %327 = vmatprep.subr.bf16.mxu0 0
      %328 = vmatpush1.bf16.msra.mxu0 %v307
      %329 = vmatprep.subr.bf16.mxu0 0
      %330 = vmatpush1.bf16.msra.mxu0 %v308
      %331 = vmatprep.subr.bf16.mxu0 0
      %332 = vmatpush1.bf16.msra.mxu0 %v309
      %333 = vmatprep.subr.bf16.mxu0 0
      %334 = vmatpush1.bf16.msra.mxu0 %v310
      %335 = vmatprep.subr.bf16.mxu0 0
      %336 = vmatpush1.bf16.msra.mxu0 0
      %337 = vmatprep.subr.bf16.mxu0 0
      %338 = vmatpush1.bf16.msra.mxu0 0
      %339 = vmatprep.subr.bf16.mxu0 0
      %340 = vmatpush1.bf16.msra.mxu0 0
      %341 = vmatprep.subr.bf16.mxu0 0
      %342 = vmatpush1.bf16.msra.mxu0 0
      %343 = vmatprep.subr.bf16.mxu0 0
      %344 = vmatpush1.bf16.msra.mxu0 0
      %345 = vmatprep.subr.bf16.mxu0 0
      %346 = vmatpush1.bf16.msra.mxu0 0
      %347 = vmatprep.subr.bf16.mxu0 0
      %348 = vmatpush1.bf16.msra.mxu0 0
      %349 = vmatprep.subr.bf16.mxu0 0
      %350 = vmatpush1.bf16.msra.mxu0 0
      %351 = vmatprep.mubr.bf16.mxu0 0
      %352 = vmatmul.mubr.bf16.gmra.mrb[0].mxu0 %v253
      %v353 = vpop.f32.mrb[0].mxu0
      %v354 = vadd.f32 %v270, %v353
      %v355 = vpop.f32.mrb[0].mxu0
      %v356 = vpop.f32.mrb[0].mxu0
      %v357 = vpop.f32.mrb[0].mxu0
      %358 = vdwg.mxu0
      %v359 = vpack.c.bf16 %v354, %v354
      %v360 = vld [vmem:[%s3] sm:$0xf]
      %v361 = vld [vmem:[%s3 + $0x4] sm:$0xf]
      %v362 = vld [vmem:[%s3 + $0x8] sm:$0xf]
      %v363 = vld [vmem:[%s3 + $0xc] sm:$0xf]
      %v364 = vld [vmem:[%s3 + $0x10] sm:$0xf]
      %v365 = vld [vmem:[%s3 + $0x14] sm:$0xf]
      %v366 = vld [vmem:[%s3 + $0x18] sm:$0xf]
      %v367 = vld [vmem:[%s3 + $0x1c] sm:$0xf]
      %v368 = vld [vmem:[%s3 + $0x20] sm:$0xf]
      %v369 = vld [vmem:[%s3 + $0x24] sm:$0xf]
      %v370 = vld [vmem:[%s3 + $0x28] sm:$0xf]
      %v371 = vld [vmem:[%s3 + $0x2c] sm:$0xf]
      %v372 = vld [vmem:[%s3 + $0x30] sm:$0xf]
      %v373 = vld [vmem:[%s3 + $0x34] sm:$0xf]
      %v374 = vld [vmem:[%s3 + $0x38] sm:$0xf]
      %v375 = vld [vmem:[%s3 + $0x3c] sm:$0xf]
      %v376 = vld [vmem:[%s4] sm:$0x1]
      %v393 = vunpack.c.l.b16 %v360
      %v394 = vunpack.c.l.b16 %v361
      %v395 = vunpack.c.l.b16 %v362
      %v396 = vunpack.c.l.b16 %v363
      %v397 = vunpack.c.l.b16 %v364
      %v398 = vunpack.c.l.b16 %v365
      %v399 = vunpack.c.l.b16 %v366
      %v400 = vunpack.c.l.b16 %v367
      %v401 = vunpack.c.l.b16 %v368
      %v402 = vunpack.c.l.b16 %v369
      %v403 = vunpack.c.l.b16 %v370
      %v404 = vunpack.c.l.b16 %v371
      %v405 = vunpack.c.l.b16 %v372
      %v406 = vunpack.c.l.b16 %v373
      %v407 = vunpack.c.l.b16 %v374
      %v408 = vunpack.c.l.b16 %v375
      %v409 = vpack.c.b16 %v394, %v393
      %v410 = vpack.c.b16 %v396, %v395
      %v411 = vpack.c.b16 %v398, %v397
      %v412 = vpack.c.b16 %v400, %v399
      %v413 = vpack.c.b16 %v402, %v401
      %v414 = vpack.c.b16 %v404, %v403
      %v415 = vpack.c.b16 %v406, %v405
      %v416 = vpack.c.b16 %v408, %v407
      %425 = vmatprep.subr.bf16.mxu0 0
      %426 = vmatpush1.bf16.msra.mxu0 %v409
      %427 = vmatprep.subr.bf16.mxu0 0
      %428 = vmatpush1.bf16.msra.mxu0 %v410
      %429 = vmatprep.subr.bf16.mxu0 0
      %430 = vmatpush1.bf16.msra.mxu0 %v411
      %431 = vmatprep.subr.bf16.mxu0 0
      %432 = vmatpush1.bf16.msra.mxu0 %v412
      %433 = vmatprep.subr.bf16.mxu0 0
      %434 = vmatpush1.bf16.msra.mxu0 %v413
      %435 = vmatprep.subr.bf16.mxu0 0
      %436 = vmatpush1.bf16.msra.mxu0 %v414
      %437 = vmatprep.subr.bf16.mxu0 0
      %438 = vmatpush1.bf16.msra.mxu0 %v415
      %439 = vmatprep.subr.bf16.mxu0 0
      %440 = vmatpush1.bf16.msra.mxu0 %v416
      %441 = vmatprep.subr.bf16.mxu0 0
      %442 = vmatpush1.bf16.msra.mxu0 0
      %443 = vmatprep.subr.bf16.mxu0 0
      %444 = vmatpush1.bf16.msra.mxu0 0
      %445 = vmatprep.subr.bf16.mxu0 0
      %446 = vmatpush1.bf16.msra.mxu0 0
      %447 = vmatprep.subr.bf16.mxu0 0
      %448 = vmatpush1.bf16.msra.mxu0 0
      %449 = vmatprep.subr.bf16.mxu0 0
      %450 = vmatpush1.bf16.msra.mxu0 0
      %451 = vmatprep.subr.bf16.mxu0 0
      %452 = vmatpush1.bf16.msra.mxu0 0
      %453 = vmatprep.subr.bf16.mxu0 0
      %454 = vmatpush1.bf16.msra.mxu0 0
      %455 = vmatprep.subr.bf16.mxu0 0
      %456 = vmatpush1.bf16.msra.mxu0 0
      %457 = vmatprep.mubr.bf16.mxu0 0
      %458 = vmatmul.mubr.bf16.gmra.mrb[0].mxu0 %v359
      %v459 = vpop.f32.mrb[0].mxu0
      %v460 = vadd.f32 %v376, %v459
      %v461 = vpop.f32.mrb[0].mxu0
      %v462 = vpop.f32.mrb[0].mxu0
      %v463 = vpop.f32.mrb[0].mxu0
      %464 = vdwg.mxu0
      %v465 = vxor.u32 %v460, 2147483648
      %v466 = vmul.f32 %v465, 1.442695
      %v467 = vpow.pop %v466
      %v468 = vadd.f32 %v467, 1.0
      %v469 = vrcp.pop %v468
      %v470 = vmul.f32 1.0, %v469
      %v471 = vmul.f32 %v460, %v470
      %v472 = vxor.u32 %v471, 2147483648
      %v473 = vmul.f32 %v472, 1.442695
      %v474 = vpow.pop %v473
      %v475 = vadd.f32 %v474, 1.0
      %v476 = vrcp.pop %v475
      %v477 = vmul.f32 1.0, %v476
      %v478 = vpack.c.bf16 %v477, %v477
      %vm479 = vcmask 1040384
      %vm480 = vsmask.f32 256
      %vm481 = vmand %vm479, %vm480
      %v482 = vld [vmem:[%s220] sm:$0x1]
      %v483 = vsel %vm481, %v478, %v482
      %484 = vst [vmem:[%s220] sm:$0x1] %v483
      %p485 = scmp.lt.s32.totalorder %s16, 1
      %s486 = scalar_select %p485, %s16, 1
      %s487 = scalar_lea.vmem %s5, %s486
      // Predicated region
      $region41: #{_lambda_.16} parent=39 // pred_check
        %p488 = pneg %p144
      $region42: #{_lambda_.16} parent=39 // pred_check_branch
        %490 = sbr.rel (%p488) target = $region44
      $region43: #{_lambda_.16} parent=39 // pred_region
        _
      $region44: #{_lambda_.16} parent=39 // pred_fallthru
        _
    $region40: #{_lambda_.16} parent=5 // pred_fallthru
      _
    %p491 = scmp.le.s32.totalorder 2, %s11
    // Predicated region
    $region45: #{_lambda_.16} parent=5 // pred_check
      %p492 = pneg %p491
    $region46: #{_lambda_.16} parent=5 // pred_check_branch
      %494 = sbr.rel (%p492) target = $region48
    $region47: #{_lambda_.16} parent=5 // pred_region
      %s495 = ssub.s32 %s11, 2
      // Predicated region
      $region49: #{_lambda_.16} parent=47 // pred_check
        %p496 = pneg %p150
      $region50: #{_lambda_.16} parent=47 // pred_check_branch
        %498 = sbr.rel (%p496) target = $region52
      $region51: #{_lambda_.16} parent=47 // pred_region
        %p499 = scmp.lt.s32.totalorder %s17, 1
        %s500 = scalar_select %p499, %s17, 1
        %s501 = scalar_lea.vmem %s5, %s500
      $region52: #{_lambda_.16} parent=47 // pred_fallthru
        _
    $region48: #{_lambda_.16} parent=5 // pred_fallthru
      _
  $region6: #{_lambda_.16} parent=0 // loop_footer
    %s15 = sadd.s32 1, %s11
  $region7: #{_lambda_.16} parent=0 // loop_footer_branch
    %10 = sbr.rel target = $region3
  $region8: #{_lambda_.16} parent=0 // loop_exit
    _

// kernel: _lambda_.15
$region0: #{_lambda_.15}
  #allocation0 [shape = 'u32[]', space=smem, size = 0x4, offset = 0x4, fixed_abs, tag = 'smem constant byte address 0x4 - core index']
  #allocation1 [shape = 'u32[144,128]{1,0:T(1,128)}', space=vmem, size = 0x12000, scoped, tag = 'internal scratch']
  %s0 = inlined_call_operand.vmem [shape: bf16[2,10,10,128], index: 0, kind: input, shape index: {}]
  %s1 = inlined_call_operand.vmem [shape: bf16[9,128], index: 1, kind: input, shape index: {}]
  %s2 = inlined_call_operand.vmem [shape: f32[1,128], index: 2, kind: input, shape index: {}]
  %s3 = inlined_call_operand.vmem [shape: bf16[2,8,8,128], index: 3, kind: output, shape index: {}]
  %s4 = sld [smem:[#allocation0]]
  $region45: #{_lambda_.15} parent=0
    _
  %s6 = ssub.s32 1, %s4
  %s7 = scalar_select 0, %s6, %s4
  loop: start=0, step=1, limit=4
  $region2: #{_lambda_.15} parent=0 // loop_pre_header
    _
  $region3: #{_lambda_.15} parent=0 // loop_header
    %s9 = sphi 0, %s13
    %p10 = scmp.ge.s32.totalorder %s9, 4
    %s16 = sphi 0, %s28
    %s17 = sphi 0, %s24
    %s18 = sphi 0, %s16
    %s19 = sphi 0, %s17
    %s20 = sphi 0, %s18
    %s21 = sphi 0, %s19
    %s33 = sphi 0, %s35
    %s36 = sphi 0, %s33
    %s37 = sphi 0, %s36
    %s53 = sphi 0, %s37
    %s59 = sphi 0, %s61
    %s62 = sphi 0, %s59
    %s63 = sphi 0, %s62
    %s79 = sphi 0, %s63
    %s85 = sphi 0, %s87
    %s88 = sphi 0, %s85
    %s89 = sphi 0, %s88
    %s105 = sphi 0, %s89
    %s113 = sphi 0, %s115
    %s116 = sphi 0, %s113
    %s117 = sphi 0, %s116
    %s133 = sphi 0, %s117
  $region4: #{_lambda_.15} parent=0 // loop_header_branch
    %12 = sbr.rel (%p10) target = $region8
  $region5: #{_lambda_.15} parent=0 // loop_body
    %s14 = ssub.s32 %s9, 1
    %s15 = ssub.s32 %s9, 2
    %s22 = sadd.s32 1, %s17
    %p23 = scmp.ge.s32.totalorder %s22, 1
    %s24 = scalar_select %p23, 0, %s22
    %s25 = sadd.s32 1, %s16
    %s26 = scalar_select %p23, %s25, %s16
    %p27 = scmp.ge.s32.totalorder %s26, 2
    %s28 = scalar_select %p27, 0, %s26
    %s29 = ssub.s32 %s16, %s28
    %s30 = ssub.s32 %s17, %s24
    %s31 = sor.u32 %s29, %s30
    %p32 = scmp.eq.s32.totalorder %s31, 0
    %s34 = sadd.s32 %s33, 1
    %s35 = scalar_select %p32, %s33, %s34
    %p38 = pneg %p32
    %p39 = scmp.eq.s32.totalorder %s9, 1
    %p40 = por %p38, %p39
    %p41 = scmp.ne.s32.totalorder %s33, %s36
    %p42 = scmp.eq.s32.totalorder %s9, 0
    %p43 = por %p41, %p42
    %p44 = scmp.ne.s32.totalorder %s33, %s36
    %p45 = scmp.eq.s32.totalorder %s14, 1
    %p46 = por %p44, %p45
    %p47 = scmp.ne.s32.totalorder %s36, %s37
    %p48 = scmp.eq.s32.totalorder %s14, 0
    %p49 = por %p47, %p48
    %p50 = scmp.ne.s32.totalorder %s36, %s37
    %p51 = scmp.eq.s32.totalorder %s15, 1
    %p52 = por %p50, %p51
    %p54 = scmp.ne.s32.totalorder %s37, %s53
    %p55 = scmp.eq.s32.totalorder %s15, 0
    %p56 = por %p54, %p55
    %s57 = ssub.s32 %s17, %s24
    %p58 = scmp.eq.s32.totalorder %s57, 0
    %s60 = sadd.s32 %s59, 1
    %s61 = scalar_select %p58, %s59, %s60
    %p64 = pneg %p58
    %p65 = scmp.eq.s32.totalorder %s9, 1
    %p66 = por %p64, %p65
    %p67 = scmp.ne.s32.totalorder %s59, %s62
    %p68 = scmp.eq.s32.totalorder %s9, 0
    %p69 = por %p67, %p68
    %p70 = scmp.ne.s32.totalorder %s59, %s62
    %p71 = scmp.eq.s32.totalorder %s14, 1
    %p72 = por %p70, %p71
    %p73 = scmp.ne.s32.totalorder %s62, %s63
    %p74 = scmp.eq.s32.totalorder %s14, 0
    %p75 = por %p73, %p74
    %p76 = scmp.ne.s32.totalorder %s62, %s63
    %p77 = scmp.eq.s32.totalorder %s15, 1
    %p78 = por %p76, %p77
    %p80 = scmp.ne.s32.totalorder %s63, %s79
    %p81 = scmp.eq.s32.totalorder %s15, 0
    %p82 = por %p80, %p81
    %s83 = ssub.s32 %s17, %s24
    %p84 = scmp.eq.s32.totalorder %s83, 0
    %s86 = sadd.s32 %s85, 1
    %s87 = scalar_select %p84, %s85, %s86
    %p90 = pneg %p84
    %p91 = scmp.eq.s32.totalorder %s9, 1
    %p92 = por %p90, %p91
    %p93 = scmp.ne.s32.totalorder %s85, %s88
    %p94 = scmp.eq.s32.totalorder %s9, 0
    %p95 = por %p93, %p94
    %p96 = scmp.ne.s32.totalorder %s85, %s88
    %p97 = scmp.eq.s32.totalorder %s14, 1
    %p98 = por %p96, %p97
    %p99 = scmp.ne.s32.totalorder %s88, %s89
    %p100 = scmp.eq.s32.totalorder %s14, 0
    %p101 = por %p99, %p100
    %p102 = scmp.ne.s32.totalorder %s88, %s89
    %p103 = scmp.eq.s32.totalorder %s15, 1
    %p104 = por %p102, %p103
    %p106 = scmp.ne.s32.totalorder %s89, %s105
    %p107 = scmp.eq.s32.totalorder %s15, 0
    %p108 = por %p106, %p107
    %s109 = ssub.s32 %s16, %s28
    %s110 = ssub.s32 %s17, %s24
    %s111 = sor.u32 %s109, %s110
    %p112 = scmp.eq.s32.totalorder %s111, 0
    %s114 = sadd.s32 %s113, 1
    %s115 = scalar_select %p112, %s113, %s114
    %p118 = pneg %p112
    %p119 = scmp.eq.s32.totalorder %s9, 1
    %p120 = por %p118, %p119
    %p121 = scmp.ne.s32.totalorder %s113, %s116
    %p122 = scmp.eq.s32.totalorder %s9, 0
    %p123 = por %p121, %p122
    %p124 = scmp.ne.s32.totalorder %s113, %s116
    %p125 = scmp.eq.s32.totalorder %s14, 1
    %p126 = por %p124, %p125
    %p127 = scmp.ne.s32.totalorder %s116, %s117
    %p128 = scmp.eq.s32.totalorder %s14, 0
    %p129 = por %p127, %p128
    %p130 = scmp.ne.s32.totalorder %s116, %s117
    %p131 = scmp.eq.s32.totalorder %s15, 1
    %p132 = por %p130, %p131
    %p134 = scmp.ne.s32.totalorder %s117, %s133
    %p135 = scmp.eq.s32.totalorder %s15, 0
    %p136 = por %p134, %p135
    %p137 = scmp.le.s32.totalorder 1, %s9
    %p138 = scmp.lt.s32.totalorder %s9, 3
    %p139 = pnand %p137, %p138
    %p140 = pneg %p139
    // Predicated region
    $region9: #{_lambda_.15} parent=5 // pred_check
      _
    $region10: #{_lambda_.15} parent=5 // pred_check_branch
      %142 = sbr.rel (%p139) target = $region12
    $region11: #{_lambda_.15} parent=5 // pred_region
      %s143 = ssub.s32 %s9, 1
      // Predicated region
      $region13: #{_lambda_.15} parent=11 // pred_check
        %p144 = pneg %p75
      $region14: #{_lambda_.15} parent=11 // pred_check_branch
        %146 = sbr.rel (%p144) target = $region16
      $region15: #{_lambda_.15} parent=11 // pred_region
        %p147 = scmp.lt.s32.totalorder %s19, 0
        %s148 = scalar_select %p147, %s19, 0
        %s149 = smul.addr %s148, 4
        %s150 = scalar_lea.vmem %s1, %s149
      $region16: #{_lambda_.15} parent=11 // pred_fallthru
        _
      // Predicated region
      $region17: #{_lambda_.15} parent=11 // pred_check
        %p151 = pneg %p101
      $region18: #{_lambda_.15} parent=11 // pred_check_branch
        %153 = sbr.rel (%p151) target = $region20
      $region19: #{_lambda_.15} parent=11 // pred_region
        %p154 = scmp.lt.s32.totalorder %s19, 0
        %s155 = scalar_select %p154, %s19, 0
        %s156 = scalar_lea.vmem %s2, %s155
      $region20: #{_lambda_.15} parent=11 // pred_fallthru
        _
    $region12: #{_lambda_.15} parent=5 // pred_fallthru
      _
    %p157 = scmp.lt.s32.totalorder %s9, 2
    // Predicated region
    $region21: #{_lambda_.15} parent=5 // pred_check
      %p158 = pneg %p157
    $region22: #{_lambda_.15} parent=5 // pred_check_branch
      %160 = sbr.rel (%p158) target = $region24
    $region23: #{_lambda_.15} parent=5 // pred_region
      // Predicated region
      $region25: #{_lambda_.15} parent=23 // pred_check
        %p161 = pneg %p43
      $region26: #{_lambda_.15} parent=23 // pred_check_branch
        %163 = sbr.rel (%p161) target = $region28
      $region27: #{_lambda_.15} parent=23 // pred_region
        %p164 = scmp.lt.s32.totalorder %s16, 1
        %s165 = scalar_select %p164, %s16, 1
        %p166 = scmp.lt.s32.totalorder %s17, 0
        %s167 = scalar_select %p166, %s17, 0
        %s168 = smul.addr %s165, 20
        %s169 = sadd.s32 %s167, %s168
        %s170 = smul.addr %s169, 4
        %s171 = scalar_lea.vmem %s0, %s170
      $region28: #{_lambda_.15} parent=23 // pred_fallthru
        _
    $region24: #{_lambda_.15} parent=5 // pred_fallthru
      _
    %p172 = scmp.le.s32.totalorder 1, %s9
    %p173 = scmp.lt.s32.totalorder %s9, 3
    %p174 = pnand %p172, %p173
    %p175 = pneg %p174
    // Predicated region
    $region29: #{_lambda_.15} parent=5 // pred_check
      _
    $region30: #{_lambda_.15} parent=5 // pred_check_branch
      %177 = sbr.rel (%p174) target = $region32
    $region31: #{_lambda_.15} parent=5 // pred_region
      %s178 = ssub.s32 %s9, 1
      %p179 = scmp.lt.s32.totalorder %s18, 1
      %s180 = scalar_select %p179, %s18, 1
      %p181 = scmp.lt.s32.totalorder %s19, 0
      %s182 = scalar_select %p181, %s19, 0
      %s183 = smul.addr %s180, 20
      %s184 = sadd.s32 %s182, %s183
      %s185 = smul.addr %s184, 4
      %s186 = scalar_lea.vmem %s0, %s185
      %p187 = pneg %p49
      %p188 = pneg %p46
      %p189 = scmp.lt.s32.totalorder %s19, 0
      %s190 = scalar_select %p189, %s19, 0
      %s191 = smul.addr %s190, 4
      %s192 = scalar_lea.vmem %s1, %s191
      %p193 = pneg %p75
      %p194 = pneg %p72
      %p195 = scmp.lt.s32.totalorder %s19, 0
      %s196 = scalar_select %p195, %s19, 0
      %s197 = scalar_lea.vmem %s2, %s196
      %p198 = pneg %p101
      %p199 = pneg %p98
      %p200 = pneg %p129
      %p201 = pneg %p126
      %p202 = scmp.lt.s32.totalorder %s18, 1
      %s203 = scalar_select %p202, %s18, 1
      %p204 = scmp.lt.s32.totalorder %s19, 0
      %s205 = scalar_select %p204, %s19, 0
      %s206 = smul.addr %s203, 8
      %s207 = sadd.s32 %s205, %s206
      %s208 = smul.addr %s207, 4
      %s209 = scalar_lea.vmem %s3, %s208
      %p210 = scmp.lt.s32.totalorder %s18, 1
      %s211 = scalar_select %p210, %s18, 1
      %p212 = scmp.lt.s32.totalorder %s19, 0
      %s213 = scalar_select %p212, %s19, 0
      %s214 = smul.addr %s211, 20
      %s215 = sadd.s32 %s213, %s214
      %s216 = smul.addr %s215, 4
      %s217 = scalar_lea.vmem %s0, %s216
      %p218 = scmp.lt.s32.totalorder %s19, 0
      %s219 = scalar_select %p218, %s19, 0
      %s220 = smul.addr %s219, 4
      %s221 = scalar_lea.vmem %s1, %s220
      %p222 = scmp.lt.s32.totalorder %s19, 0
      %s223 = scalar_select %p222, %s19, 0
      %s224 = scalar_lea.vmem %s2, %s223
      %p225 = scmp.lt.s32.totalorder %s18, 1
      %s226 = scalar_select %p225, %s18, 1
      %p227 = scmp.lt.s32.totalorder %s19, 0
      %s228 = scalar_select %p227, %s19, 0
      %s229 = smul.addr %s226, 8
      %s230 = sadd.s32 %s228, %s229
      %s231 = smul.addr %s230, 4
      %s232 = scalar_lea.vmem %s3, %s231
      %v233 = vld [vmem:[%s217] sm:$0xf]
      %v234 = vld [vmem:[%s217 + $0x4] sm:$0x1]
      %v235 = vld [vmem:[%s217 + $0x8] sm:$0xf]
      %v236 = vld [vmem:[%s217 + $0xc] sm:$0x1]
      %v237 = vld [vmem:[%s217 + $0x10] sm:$0xf]
      %v238 = vld [vmem:[%s217 + $0x14] sm:$0x1]
      %v239 = vld [vmem:[%s217 + $0x18] sm:$0xf]
      %v240 = vld [vmem:[%s217 + $0x1c] sm:$0x1]
      %v241 = vld [vmem:[%s217 + $0x20] sm:$0xf]
      %v242 = vld [vmem:[%s217 + $0x24] sm:$0x1]
      %v243 = vld [vmem:[%s217 + $0x28] sm:$0xf]
      %v244 = vld [vmem:[%s217 + $0x2c] sm:$0x1]
      %v245 = vld [vmem:[%s217 + $0x30] sm:$0xf]
      %v246 = vld [vmem:[%s217 + $0x34] sm:$0x1]
      %v247 = vld [vmem:[%s217 + $0x38] sm:$0xf]
      %v248 = vld [vmem:[%s217 + $0x3c] sm:$0x1]
      %v249 = vld [vmem:[%s217 + $0x40] sm:$0xf]
      %v250 = vld [vmem:[%s217 + $0x44] sm:$0x1]
      %v251 = vld [vmem:[%s217 + $0x48] sm:$0xf]
      %v252 = vld [vmem:[%s217 + $0x4c] sm:$0x1]
      %v253 = vunpack.c.l.bf16 %v233
      %v254 = vunpack.c.l.bf16 %v234
      %v255 = vunpack.c.l.bf16 %v235
      %v256 = vunpack.c.l.bf16 %v236
      %v257 = vunpack.c.l.bf16 %v237
      %v258 = vunpack.c.l.bf16 %v238
      %v259 = vunpack.c.l.bf16 %v239
      %v260 = vunpack.c.l.bf16 %v240
      %v261 = vunpack.c.l.bf16 %v241
      %v262 = vunpack.c.l.bf16 %v242
      %v263 = vunpack.c.l.bf16 %v243
      %v264 = vunpack.c.l.bf16 %v244
      %v265 = vunpack.c.l.bf16 %v245
      %v266 = vunpack.c.l.bf16 %v246
      %v267 = vunpack.c.l.bf16 %v247
      %v268 = vunpack.c.l.bf16 %v248
      %v269 = vunpack.c.l.bf16 %v249
      %v270 = vunpack.c.l.bf16 %v250
      %v271 = vunpack.c.l.bf16 %v251
      %v272 = vunpack.c.l.bf16 %v252
      %v273 = vld [vmem:[%s221] sm:$0xf]
      %v274 = vld [vmem:[%s221 + $0x4] sm:$0x1]
      %v275 = vunpack.c.l.bf16 %v273
      %v276 = vunpack.c.l.bf16 %v274
      %v277 = vlaneseq
      %v278 = vshrl.u32 %v277, 7
      %v279 = vsub.s32 0, %v278
      %v280 = vrot.slane %v275, %v279
      %v281 = vmul.f32 %v253, %v280
      %v282 = vmul.f32 %v255, %v280
      %v283 = vmul.f32 %v257, %v280
      %v284 = vmul.f32 %v259, %v280
      %v285 = vmul.f32 %v261, %v280
      %v286 = vmul.f32 %v263, %v280
      %v287 = vmul.f32 %v265, %v280
      %v288 = vmul.f32 %v267, %v280
      %v289 = vadd.f32 %v281, 0.0
      %v290 = vadd.f32 %v282, 0.0
      %v291 = vadd.f32 %v283, 0.0
      %v292 = vadd.f32 %v284, 0.0
      %v293 = vadd.f32 %v285, 0.0
      %v294 = vadd.f32 %v286, 0.0
      %v295 = vadd.f32 %v287, 0.0
      %v296 = vadd.f32 %v288, 0.0
      %v297 = vlaneseq
      %v298 = vshrl.u32 %v297, 7
      %v299 = vsub.s32 1, %v298
      %v300 = vrot.slane %v275, %v299
      %v301 = vmul.f32 %v253, %v300
      %v302 = vmul.f32 %v254, %v300
      %v303 = vmul.f32 %v255, %v300
      %v304 = vmul.f32 %v256, %v300
      %v305 = vmul.f32 %v257, %v300
      %v306 = vmul.f32 %v258, %v300
      %v307 = vmul.f32 %v259, %v300
      %v308 = vmul.f32 %v260, %v300
      %v309 = vmul.f32 %v261, %v300
      %v310 = vmul.f32 %v262, %v300
      %v311 = vmul.f32 %v263, %v300
      %v312 = vmul.f32 %v264, %v300
      %v313 = vmul.f32 %v265, %v300
      %v314 = vmul.f32 %v266, %v300
      %v315 = vmul.f32 %v267, %v300
      %v316 = vmul.f32 %v268, %v300
      %vm333 = vcmask 1046528
      %v334 = vrot.slane %v301, 1
      %v335 = vrot.slane %v302, 1
      %v336 = vsel %vm333, %v334, %v335
      %v337 = vrot.slane %v303, 1
      %v338 = vrot.slane %v304, 1
      %v339 = vsel %vm333, %v337, %v338
      %v340 = vrot.slane %v305, 1
      %v341 = vrot.slane %v306, 1
      %v342 = vsel %vm333, %v340, %v341
      %v343 = vrot.slane %v307, 1
      %v344 = vrot.slane %v308, 1
      %v345 = vsel %vm333, %v343, %v344
      %v346 = vrot.slane %v309, 1
      %v347 = vrot.slane %v310, 1
      %v348 = vsel %vm333, %v346, %v347
      %v349 = vrot.slane %v311, 1
      %v350 = vrot.slane %v312, 1
      %v351 = vsel %vm333, %v349, %v350
      %v352 = vrot.slane %v313, 1
      %v353 = vrot.slane %v314, 1
      %v354 = vsel %vm333, %v352, %v353
      %v355 = vrot.slane %v315, 1
      %v356 = vrot.slane %v316, 1
      %v357 = vsel %vm333, %v355, %v356
      %v366 = vadd.f32 %v289, %v336
      %v367 = vadd.f32 %v290, %v339
      %v368 = vadd.f32 %v291, %v342
      %v369 = vadd.f32 %v292, %v345
      %v370 = vadd.f32 %v293, %v348
      %v371 = vadd.f32 %v294, %v351
      %v372 = vadd.f32 %v295, %v354
      %v373 = vadd.f32 %v296, %v357
      %v374 = vlaneseq
      %v375 = vshrl.u32 %v374, 7
      %v376 = vsub.s32 2, %v375
      %v377 = vrot.slane %v275, %v376
      %v378 = vmul.f32 %v253, %v377
      %v379 = vmul.f32 %v254, %v377
      %v380 = vmul.f32 %v255, %v377
      %v381 = vmul.f32 %v256, %v377
      %v382 = vmul.f32 %v257, %v377
      %v383 = vmul.f32 %v258, %v377
      %v384 = vmul.f32 %v259, %v377
      %v385 = vmul.f32 %v260, %v377
      %v386 = vmul.f32 %v261, %v377
      %v387 = vmul.f32 %v262, %v377
      %v388 = vmul.f32 %v263, %v377
      %v389 = vmul.f32 %v264, %v377
      %v390 = vmul.f32 %v265, %v377
      %v391 = vmul.f32 %v266, %v377
      %v392 = vmul.f32 %v267, %v377
      %v393 = vmul.f32 %v268, %v377
      %vm410 = vcmask 1045504
      %v411 = vrot.slane %v378, 2
      %v412 = vrot.slane %v379, 2
      %v413 = vsel %vm410, %v411, %v412
      %v414 = vrot.slane %v380, 2
      %v415 = vrot.slane %v381, 2
      %v416 = vsel %vm410, %v414, %v415
      %v417 = vrot.slane %v382, 2
      %v418 = vrot.slane %v383, 2
      %v419 = vsel %vm410, %v417, %v418
      %v420 = vrot.slane %v384, 2
      %v421 = vrot.slane %v385, 2
      %v422 = vsel %vm410, %v420, %v421
      %v423 = vrot.slane %v386, 2
      %v424 = vrot.slane %v387, 2
      %v425 = vsel %vm410, %v423, %v424
      %v426 = vrot.slane %v388, 2
      %v427 = vrot.slane %v389, 2
      %v428 = vsel %vm410, %v426, %v427
      %v429 = vrot.slane %v390, 2
      %v430 = vrot.slane %v391, 2
      %v431 = vsel %vm410, %v429, %v430
      %v432 = vrot.slane %v392, 2
      %v433 = vrot.slane %v393, 2
      %v434 = vsel %vm410, %v432, %v433
      %v443 = vadd.f32 %v366, %v413
      %v444 = vadd.f32 %v367, %v416
      %v445 = vadd.f32 %v368, %v419
      %v446 = vadd.f32 %v369, %v422
      %v447 = vadd.f32 %v370, %v425
      %v448 = vadd.f32 %v371, %v428
      %v449 = vadd.f32 %v372, %v431
      %v450 = vadd.f32 %v373, %v434
      %v451 = vlaneseq
      %v452 = vshrl.u32 %v451, 7
      %v453 = vsub.s32 3, %v452
      %v454 = vrot.slane %v275, %v453
      %v455 = vmul.f32 %v255, %v454
      %v456 = vmul.f32 %v257, %v454
      %v457 = vmul.f32 %v259, %v454
      %v458 = vmul.f32 %v261, %v454
      %v459 = vmul.f32 %v263, %v454
      %v460 = vmul.f32 %v265, %v454
      %v461 = vmul.f32 %v267, %v454
      %v462 = vmul.f32 %v269, %v454
      %v463 = vadd.f32 %v443, %v455
      %v464 = vadd.f32 %v444, %v456
      %v465 = vadd.f32 %v445, %v457
      %v466 = vadd.f32 %v446, %v458
      %v467 = vadd.f32 %v447, %v459
      %v468 = vadd.f32 %v448, %v460
      %v469 = vadd.f32 %v449, %v461
      %v470 = vadd.f32 %v450, %v462
      %v471 = vlaneseq
      %v472 = vshrl.u32 %v471, 7
      %v473 = vsub.s32 4, %v472
      %v474 = vrot.slane %v275, %v473
      %v475 = vmul.f32 %v255, %v474
      %v476 = vmul.f32 %v256, %v474
      %v477 = vmul.f32 %v257, %v474
      %v478 = vmul.f32 %v258, %v474
      %v479 = vmul.f32 %v259, %v474
      %v480 = vmul.f32 %v260, %v474
      %v481 = vmul.f32 %v261, %v474
      %v482 = vmul.f32 %v262, %v474
      %v483 = vmul.f32 %v263, %v474
      %v484 = vmul.f32 %v264, %v474
      %v485 = vmul.f32 %v265, %v474
      %v486 = vmul.f32 %v266, %v474
      %v487 = vmul.f32 %v267, %v474
      %v488 = vmul.f32 %v268, %v474
      %v489 = vmul.f32 %v269, %v474
      %v490 = vmul.f32 %v270, %v474
      %v507 = vrot.slane %v475, 1
      %v508 = vrot.slane %v476, 1
      %v509 = vsel %vm333, %v507, %v508
      %v510 = vrot.slane %v477, 1
      %v511 = vrot.slane %v478, 1
      %v512 = vsel %vm333, %v510, %v511
      %v513 = vrot.slane %v479, 1
      %v514 = vrot.slane %v480, 1
      %v515 = vsel %vm333, %v513, %v514
      %v516 = vrot.slane %v481, 1
      %v517 = vrot.slane %v482, 1
      %v518 = vsel %vm333, %v516, %v517
      %v519 = vrot.slane %v483, 1
      %v520 = vrot.slane %v484, 1
      %v521 = vsel %vm333, %v519, %v520
      %v522 = vrot.slane %v485, 1
      %v523 = vrot.slane %v486, 1
      %v524 = vsel %vm333, %v522, %v523
      %v525 = vrot.slane %v487, 1
      %v526 = vrot.slane %v488, 1
      %v527 = vsel %vm333, %v525, %v526
      %v528 = vrot.slane %v489, 1
      %v529 = vrot.slane %v490, 1
      %v530 = vsel %vm333, %v528, %v529
      %v539 = vadd.f32 %v463, %v509
      %v540 = vadd.f32 %v464, %v512
      %v541 = vadd.f32 %v465, %v515
      %v542 = vadd.f32 %v466, %v518
      %v543 = vadd.f32 %v467, %v521
      %v544 = vadd.f32 %v468, %v524
      %v545 = vadd.f32 %v469, %v527
      %v546 = vadd.f32 %v470, %v530
      %v547 = vlaneseq
      %v548 = vshrl.u32 %v547, 7
      %v549 = vsub.s32 5, %v548
      %v550 = vrot.slane %v275, %v549
      %v551 = vmul.f32 %v255, %v550
      %v552 = vmul.f32 %v256, %v550
      %v553 = vmul.f32 %v257, %v550
      %v554 = vmul.f32 %v258, %v550
      %v555 = vmul.f32 %v259, %v550
      %v556 = vmul.f32 %v260, %v550
      %v557 = vmul.f32 %v261, %v550
      %v558 = vmul.f32 %v262, %v550
      %v559 = vmul.f32 %v263, %v550
      %v560 = vmul.f32 %v264, %v550
      %v561 = vmul.f32 %v265, %v550
      %v562 = vmul.f32 %v266, %v550
      %v563 = vmul.f32 %v267, %v550
      %v564 = vmul.f32 %v268, %v550
      %v565 = vmul.f32 %v269, %v550
      %v566 = vmul.f32 %v270, %v550
      %v583 = vrot.slane %v551, 2
      %v584 = vrot.slane %v552, 2
      %v585 = vsel %vm410, %v583, %v584
      %v586 = vrot.slane %v553, 2
      %v587 = vrot.slane %v554, 2
      %v588 = vsel %vm410, %v586, %v587
      %v589 = vrot.slane %v555, 2
      %v590 = vrot.slane %v556, 2
      %v591 = vsel %vm410, %v589, %v590
      %v592 = vrot.slane %v557, 2
      %v593 = vrot.slane %v558, 2
      %v594 = vsel %vm410, %v592, %v593
      %v595 = vrot.slane %v559, 2
      %v596 = vrot.slane %v560, 2
      %v597 = vsel %vm410, %v595, %v596
      %v598 = vrot.slane %v561, 2
      %v599 = vrot.slane %v562, 2
      %v600 = vsel %vm410, %v598, %v599
      %v601 = vrot.slane %v563, 2
      %v602 = vrot.slane %v564, 2
      %v603 = vsel %vm410, %v601, %v602
      %v604 = vrot.slane %v565, 2
      %v605 = vrot.slane %v566, 2
      %v606 = vsel %vm410, %v604, %v605
      %v615 = vadd.f32 %v539, %v585
      %v616 = vadd.f32 %v540, %v588
      %v617 = vadd.f32 %v541, %v591
      %v618 = vadd.f32 %v542, %v594
      %v619 = vadd.f32 %v543, %v597
      %v620 = vadd.f32 %v544, %v600
      %v621 = vadd.f32 %v545, %v603
      %v622 = vadd.f32 %v546, %v606
      %v623 = vlaneseq
      %v624 = vshrl.u32 %v623, 7
      %v625 = vsub.s32 6, %v624
      %v626 = vrot.slane %v275, %v625
      %v627 = vmul.f32 %v257, %v626
      %v628 = vmul.f32 %v259, %v626
      %v629 = vmul.f32 %v261, %v626
      %v630 = vmul.f32 %v263, %v626
      %v631 = vmul.f32 %v265, %v626
      %v632 = vmul.f32 %v267, %v626
      %v633 = vmul.f32 %v269, %v626
      %v634 = vmul.f32 %v271, %v626
      %v635 = vadd.f32 %v615, %v627
      %v636 = vadd.f32 %v616, %v628
      %v637 = vadd.f32 %v617, %v629
      %v638 = vadd.f32 %v618, %v630
      %v639 = vadd.f32 %v619, %v631
      %v640 = vadd.f32 %v620, %v632
      %v641 = vadd.f32 %v621, %v633
      %v642 = vadd.f32 %v622, %v634
      %v643 = vlaneseq
      %v644 = vshrl.u32 %v643, 7
      %v645 = vsub.s32 7, %v644
      %v646 = vrot.slane %v275, %v645
      %v647 = vmul.f32 %v257, %v646
      %v648 = vmul.f32 %v258, %v646
      %v649 = vmul.f32 %v259, %v646
      %v650 = vmul.f32 %v260, %v646
      %v651 = vmul.f32 %v261, %v646
      %v652 = vmul.f32 %v262, %v646
      %v653 = vmul.f32 %v263, %v646
      %v654 = vmul.f32 %v264, %v646
      %v655 = vmul.f32 %v265, %v646
      %v656 = vmul.f32 %v266, %v646
      %v657 = vmul.f32 %v267, %v646
      %v658 = vmul.f32 %v268, %v646
      %v659 = vmul.f32 %v269, %v646
      %v660 = vmul.f32 %v270, %v646
      %v661 = vmul.f32 %v271, %v646
      %v662 = vmul.f32 %v272, %v646
      %v679 = vrot.slane %v647, 1
      %v680 = vrot.slane %v648, 1
      %v681 = vsel %vm333, %v679, %v680
      %v682 = vrot.slane %v649, 1
      %v683 = vrot.slane %v650, 1
      %v684 = vsel %vm333, %v682, %v683
      %v685 = vrot.slane %v651, 1
      %v686 = vrot.slane %v652, 1
      %v687 = vsel %vm333, %v685, %v686
      %v688 = vrot.slane %v653, 1
      %v689 = vrot.slane %v654, 1
      %v690 = vsel %vm333, %v688, %v689
      %v691 = vrot.slane %v655, 1
      %v692 = vrot.slane %v656, 1
      %v693 = vsel %vm333, %v691, %v692
      %v694 = vrot.slane %v657, 1
      %v695 = vrot.slane %v658, 1
      %v696 = vsel %vm333, %v694, %v695
      %v697 = vrot.slane %v659, 1
      %v698 = vrot.slane %v660, 1
      %v699 = vsel %vm333, %v697, %v698
      %v700 = vrot.slane %v661, 1
      %v701 = vrot.slane %v662, 1
      %v702 = vsel %vm333, %v700, %v701
      %v711 = vadd.f32 %v635, %v681
      %v712 = vadd.f32 %v636, %v684
      %v713 = vadd.f32 %v637, %v687
      %v714 = vadd.f32 %v638, %v690
      %v715 = vadd.f32 %v639, %v693
      %v716 = vadd.f32 %v640, %v696
      %v717 = vadd.f32 %v641, %v699
      %v718 = vadd.f32 %v642, %v702
      %v719 = vlaneseq
      %v720 = vshrl.u32 %v719, 7
      %v721 = vsub.s32 0, %v720
      %v722 = vrot.slane %v276, %v721
      %v723 = vmul.f32 %v257, %v722
      %v724 = vmul.f32 %v258, %v722
      %v725 = vmul.f32 %v259, %v722
      %v726 = vmul.f32 %v260, %v722
      %v727 = vmul.f32 %v261, %v722
      %v728 = vmul.f32 %v262, %v722
      %v729 = vmul.f32 %v263, %v722
      %v730 = vmul.f32 %v264, %v722
      %v731 = vmul.f32 %v265, %v722
      %v732 = vmul.f32 %v266, %v722
      %v733 = vmul.f32 %v267, %v722
      %v734 = vmul.f32 %v268, %v722
      %v735 = vmul.f32 %v269, %v722
      %v736 = vmul.f32 %v270, %v722
      %v737 = vmul.f32 %v271, %v722
      %v738 = vmul.f32 %v272, %v722
      %v755 = vrot.slane %v723, 2
      %v756 = vrot.slane %v724, 2
      %v757 = vsel %vm410, %v755, %v756
      %v758 = vrot.slane %v725, 2
      %v759 = vrot.slane %v726, 2
      %v760 = vsel %vm410, %v758, %v759
      %v761 = vrot.slane %v727, 2
      %v762 = vrot.slane %v728, 2
      %v763 = vsel %vm410, %v761, %v762
      %v764 = vrot.slane %v729, 2
      %v765 = vrot.slane %v730, 2
      %v766 = vsel %vm410, %v764, %v765
      %v767 = vrot.slane %v731, 2
      %v768 = vrot.slane %v732, 2
      %v769 = vsel %vm410, %v767, %v768
      %v770 = vrot.slane %v733, 2
      %v771 = vrot.slane %v734, 2
      %v772 = vsel %vm410, %v770, %v771
      %v773 = vrot.slane %v735, 2
      %v774 = vrot.slane %v736, 2
      %v775 = vsel %vm410, %v773, %v774
      %v776 = vrot.slane %v737, 2
      %v777 = vrot.slane %v738, 2
      %v778 = vsel %vm410, %v776, %v777
      %v787 = vadd.f32 %v711, %v757
      %v788 = vadd.f32 %v712, %v760
      %v789 = vadd.f32 %v713, %v763
      %v790 = vadd.f32 %v714, %v766
      %v791 = vadd.f32 %v715, %v769
      %v792 = vadd.f32 %v716, %v772
      %v793 = vadd.f32 %v717, %v775
      %v794 = vadd.f32 %v718, %v778
      %v795 = vld [vmem:[%s224] sm:$0x1]
      %v797 = vlaneseq
      %v798 = vshrl.u32 %v797, 7
      %v799 = vsub.s32 0, %v798
      %v800 = vrot.slane %v795, %v799
      %v802 = vadd.f32 %v787, %v800
      %v803 = vadd.f32 %v788, %v800
      %v804 = vadd.f32 %v789, %v800
      %v805 = vadd.f32 %v790, %v800
      %v806 = vadd.f32 %v791, %v800
      %v807 = vadd.f32 %v792, %v800
      %v808 = vadd.f32 %v793, %v800
      %v809 = vadd.f32 %v794, %v800
      %v810 = vxor.u32 %v802, 2147483648
      %v811 = vxor.u32 %v803, 2147483648
      %v812 = vxor.u32 %v804, 2147483648
      %v813 = vxor.u32 %v805, 2147483648
      %v814 = vxor.u32 %v806, 2147483648
      %v815 = vxor.u32 %v807, 2147483648
      %v816 = vxor.u32 %v808, 2147483648
      %v817 = vxor.u32 %v809, 2147483648
      %v818 = vmul.f32 %v810, 1.442695
      %v819 = vpow.pop %v818
      %v820 = vmul.f32 %v811, 1.442695
      %v821 = vpow.pop %v820
      %v822 = vmul.f32 %v812, 1.442695
      %v823 = vpow.pop %v822
      %v824 = vmul.f32 %v813, 1.442695
      %v825 = vpow.pop %v824
      %v826 = vmul.f32 %v814, 1.442695
      %v827 = vpow.pop %v826
      %v828 = vmul.f32 %v815, 1.442695
      %v829 = vpow.pop %v828
      %v830 = vmul.f32 %v816, 1.442695
      %v831 = vpow.pop %v830
      %v832 = vmul.f32 %v817, 1.442695
      %v833 = vpow.pop %v832
      %v834 = vadd.f32 %v819, 1.0
      %v835 = vadd.f32 %v821, 1.0
      %v836 = vadd.f32 %v823, 1.0
      %v837 = vadd.f32 %v825, 1.0
      %v838 = vadd.f32 %v827, 1.0
      %v839 = vadd.f32 %v829, 1.0
      %v840 = vadd.f32 %v831, 1.0
      %v841 = vadd.f32 %v833, 1.0
      %v842 = vrcp.pop %v834
      %v843 = vmul.f32 1.0, %v842
      %v844 = vrcp.pop %v835
      %v845 = vmul.f32 1.0, %v844
      %v846 = vrcp.pop %v836
      %v847 = vmul.f32 1.0, %v846
      %v848 = vrcp.pop %v837
      %v849 = vmul.f32 1.0, %v848
      %v850 = vrcp.pop %v838
      %v851 = vmul.f32 1.0, %v850
      %v852 = vrcp.pop %v839
      %v853 = vmul.f32 1.0, %v852
      %v854 = vrcp.pop %v840
      %v855 = vmul.f32 1.0, %v854
      %v856 = vrcp.pop %v841
      %v857 = vmul.f32 1.0, %v856
      %v858 = vmul.f32 %v802, %v843
      %v859 = vmul.f32 %v803, %v845
      %v860 = vmul.f32 %v804, %v847
      %v861 = vmul.f32 %v805, %v849
      %v862 = vmul.f32 %v806, %v851
      %v863 = vmul.f32 %v807, %v853
      %v864 = vmul.f32 %v808, %v855
      %v865 = vmul.f32 %v809, %v857
      %v866 = vpack.c.bf16 %v858, %v858
      %v867 = vpack.c.bf16 %v859, %v859
      %v868 = vpack.c.bf16 %v860, %v860
      %v869 = vpack.c.bf16 %v861, %v861
      %v870 = vpack.c.bf16 %v862, %v862
      %v871 = vpack.c.bf16 %v863, %v863
      %v872 = vpack.c.bf16 %v864, %v864
      %v873 = vpack.c.bf16 %v865, %v865
      %874 = vst [vmem:[%s232] sm:$0xf] %v866
      %875 = vst [vmem:[%s232 + $0x4] sm:$0xf] %v867
      %876 = vst [vmem:[%s232 + $0x8] sm:$0xf] %v868
      %877 = vst [vmem:[%s232 + $0xc] sm:$0xf] %v869
      %878 = vst [vmem:[%s232 + $0x10] sm:$0xf] %v870
      %879 = vst [vmem:[%s232 + $0x14] sm:$0xf] %v871
      %880 = vst [vmem:[%s232 + $0x18] sm:$0xf] %v872
      %881 = vst [vmem:[%s232 + $0x1c] sm:$0xf] %v873
      %p882 = scmp.lt.s32.totalorder %s18, 1
      %s883 = scalar_select %p882, %s18, 1
      %p884 = scmp.lt.s32.totalorder %s19, 0
      %s885 = scalar_select %p884, %s19, 0
      %s886 = smul.addr %s883, 8
      %s887 = sadd.s32 %s885, %s886
      %s888 = smul.addr %s887, 4
      %s889 = scalar_lea.vmem %s3, %s888
      // Predicated region
      $region33: #{_lambda_.15} parent=31 // pred_check
        %p890 = pneg %p126
      $region34: #{_lambda_.15} parent=31 // pred_check_branch
        %892 = sbr.rel (%p890) target = $region36
      $region35: #{_lambda_.15} parent=31 // pred_region
        _
      $region36: #{_lambda_.15} parent=31 // pred_fallthru
        _
    $region32: #{_lambda_.15} parent=5 // pred_fallthru
      _
    %p893 = scmp.le.s32.totalorder 2, %s9
    // Predicated region
    $region37: #{_lambda_.15} parent=5 // pred_check
      %p894 = pneg %p893
    $region38: #{_lambda_.15} parent=5 // pred_check_branch
      %896 = sbr.rel (%p894) target = $region40
    $region39: #{_lambda_.15} parent=5 // pred_region
      %s897 = ssub.s32 %s9, 2
      // Predicated region
      $region41: #{_lambda_.15} parent=39 // pred_check
        %p898 = pneg %p132
      $region42: #{_lambda_.15} parent=39 // pred_check_branch
        %900 = sbr.rel (%p898) target = $region44
      $region43: #{_lambda_.15} parent=39 // pred_region
        %p901 = scmp.lt.s32.totalorder %s20, 1
        %s902 = scalar_select %p901, %s20, 1
        %p903 = scmp.lt.s32.totalorder %s21, 0
        %s904 = scalar_select %p903, %s21, 0
        %s905 = smul.addr %s902, 8
        %s906 = sadd.s32 %s904, %s905
        %s907 = smul.addr %s906, 4
        %s908 = scalar_lea.vmem %s3, %s907
      $region44: #{_lambda_.15} parent=39 // pred_fallthru
        _
    $region40: #{_lambda_.15} parent=5 // pred_fallthru
      _
  $region6: #{_lambda_.15} parent=0 // loop_footer
    %s13 = sadd.s32 1, %s9
  $region7: #{_lambda_.15} parent=0 // loop_footer_branch
    %8 = sbr.rel target = $region3
  $region8: #{_lambda_.15} parent=0 // loop_exit
    _

// kernel: _lambda_.14
$region0: #{_lambda_.14}
  #allocation0 [shape = 'u32[]', space=smem, size = 0x4, offset = 0x4, fixed_abs, tag = 'smem constant byte address 0x4 - core index']
  #allocation1 [shape = 'u32[144,128]{1,0:T(1,128)}', space=vmem, size = 0x12000, scoped, tag = 'internal scratch']
  #allocation2 [shape = 'f32[128,128]{1,0:T(8,128)}', space=vmem, size = 0x10000, scoped, tag = 'scratch operand']
  %s0 = inlined_call_operand.vmem [shape: bf16[128,128], index: 0, kind: input, shape index: {}]
  %s1 = inlined_call_operand.vmem [shape: bf16[128,128], index: 1, kind: input, shape index: {}]
  %s2 = inlined_call_operand.vmem [shape: f32[1,128], index: 2, kind: input, shape index: {}]
  %s3 = inlined_call_operand.vmem [shape: bf16[128,128], index: 3, kind: output, shape index: {}]
  %s4 = sld [smem:[#allocation0]]
  $region30: #{_lambda_.14} parent=0
    _
  %s6 = ssub.s32 1, %s4
  %s7 = scalar_select 0, %s6, %s4
  // Predicated region
  $region2: #{_lambda_.14} parent=0 // pred_check
    _
  $region3: #{_lambda_.14} parent=0 // pred_check_branch
    %9 = sbr.rel (0) target = $region5
  $region4: #{_lambda_.14} parent=0 // pred_region
    _
  $region5: #{_lambda_.14} parent=0 // pred_fallthru
    _
  // Predicated region
  $region6: #{_lambda_.14} parent=0 // pred_check
    _
  $region7: #{_lambda_.14} parent=0 // pred_check_branch
    %11 = sbr.rel (0) target = $region9
  $region8: #{_lambda_.14} parent=0 // pred_region
    _
  $region9: #{_lambda_.14} parent=0 // pred_fallthru
    _
  // Predicated region
  $region10: #{_lambda_.14} parent=0 // pred_check
    _
  $region11: #{_lambda_.14} parent=0 // pred_check_branch
    %13 = sbr.rel (0) target = $region13
  $region12: #{_lambda_.14} parent=0 // pred_region
    _
  $region13: #{_lambda_.14} parent=0 // pred_fallthru
    _
  %p15 = scmp.eq.s32.totalorder 0, 0
  // Predicated region
  $region14: #{_lambda_.14} parent=0 // pred_check
    %p16 = pneg %p15
  $region15: #{_lambda_.14} parent=0 // pred_check_branch
    %18 = sbr.rel (%p16) target = $region17
  $region16: #{_lambda_.14} parent=0 // pred_region
    %19 = vst [vmem:[#allocation2] sm:$0xff] 0.0
    %20 = vst [vmem:[#allocation2 + $0x8] sm:$0xff] 0.0
    %21 = vst [vmem:[#allocation2 + $0x10] sm:$0xff] 0.0
    %22 = vst [vmem:[#allocation2 + $0x18] sm:$0xff] 0.0
    %23 = vst [vmem:[#allocation2 + $0x20] sm:$0xff] 0.0
    %24 = vst [vmem:[#allocation2 + $0x28] sm:$0xff] 0.0
    %25 = vst [vmem:[#allocation2 + $0x30] sm:$0xff] 0.0
    %26 = vst [vmem:[#allocation2 + $0x38] sm:$0xff] 0.0
    %27 = vst [vmem:[#allocation2 + $0x40] sm:$0xff] 0.0
    %28 = vst [vmem:[#allocation2 + $0x48] sm:$0xff] 0.0
    %29 = vst [vmem:[#allocation2 + $0x50] sm:$0xff] 0.0
    %30 = vst [vmem:[#allocation2 + $0x58] sm:$0xff] 0.0
    %31 = vst [vmem:[#allocation2 + $0x60] sm:$0xff] 0.0
    %32 = vst [vmem:[#allocation2 + $0x68] sm:$0xff] 0.0
    %33 = vst [vmem:[#allocation2 + $0x70] sm:$0xff] 0.0
    %34 = vst [vmem:[#allocation2 + $0x78] sm:$0xff] 0.0
  $region17: #{_lambda_.14} parent=0 // pred_fallthru
    _
  %v35 = vld [vmem:[#allocation2] sm:$0xff]
  %v36 = vld [vmem:[#allocation2 + $0x8] sm:$0xff]
  %v37 = vld [vmem:[#allocation2 + $0x10] sm:$0xff]
  %v38 = vld [vmem:[#allocation2 + $0x18] sm:$0xff]
  %v39 = vld [vmem:[#allocation2 + $0x20] sm:$0xff]
  %v40 = vld [vmem:[#allocation2 + $0x28] sm:$0xff]
  %v41 = vld [vmem:[#allocation2 + $0x30] sm:$0xff]
  %v42 = vld [vmem:[#allocation2 + $0x38] sm:$0xff]
  %v43 = vld [vmem:[#allocation2 + $0x40] sm:$0xff]
  %v44 = vld [vmem:[#allocation2 + $0x48] sm:$0xff]
  %v45 = vld [vmem:[#allocation2 + $0x50] sm:$0xff]
  %v46 = vld [vmem:[#allocation2 + $0x58] sm:$0xff]
  %v47 = vld [vmem:[#allocation2 + $0x60] sm:$0xff]
  %v48 = vld [vmem:[#allocation2 + $0x68] sm:$0xff]
  %v49 = vld [vmem:[#allocation2 + $0x70] sm:$0xff]
  %v50 = vld [vmem:[#allocation2 + $0x78] sm:$0xff]
  %v51 = vld [vmem:[%s0] sm:$0xf]
  %v52 = vld [vmem:[%s0 + $0x4] sm:$0xf]
  %v53 = vld [vmem:[%s0 + $0x8] sm:$0xf]
  %v54 = vld [vmem:[%s0 + $0xc] sm:$0xf]
  %v55 = vld [vmem:[%s0 + $0x10] sm:$0xf]
  %v56 = vld [vmem:[%s0 + $0x14] sm:$0xf]
  %v57 = vld [vmem:[%s0 + $0x18] sm:$0xf]
  %v58 = vld [vmem:[%s0 + $0x1c] sm:$0xf]
  %v59 = vld [vmem:[%s0 + $0x20] sm:$0xf]
  %v60 = vld [vmem:[%s0 + $0x24] sm:$0xf]
  %v61 = vld [vmem:[%s0 + $0x28] sm:$0xf]
  %v62 = vld [vmem:[%s0 + $0x2c] sm:$0xf]
  %v63 = vld [vmem:[%s0 + $0x30] sm:$0xf]
  %v64 = vld [vmem:[%s0 + $0x34] sm:$0xf]
  %v65 = vld [vmem:[%s0 + $0x38] sm:$0xf]
  %v66 = vld [vmem:[%s0 + $0x3c] sm:$0xf]
  %v67 = vld [vmem:[%s1] sm:$0xf]
  %v68 = vld [vmem:[%s1 + $0x4] sm:$0xf]
  %v69 = vld [vmem:[%s1 + $0x8] sm:$0xf]
  %v70 = vld [vmem:[%s1 + $0xc] sm:$0xf]
  %v71 = vld [vmem:[%s1 + $0x10] sm:$0xf]
  %v72 = vld [vmem:[%s1 + $0x14] sm:$0xf]
  %v73 = vld [vmem:[%s1 + $0x18] sm:$0xf]
  %v74 = vld [vmem:[%s1 + $0x1c] sm:$0xf]
  %v75 = vld [vmem:[%s1 + $0x20] sm:$0xf]
  %v76 = vld [vmem:[%s1 + $0x24] sm:$0xf]
  %v77 = vld [vmem:[%s1 + $0x28] sm:$0xf]
  %v78 = vld [vmem:[%s1 + $0x2c] sm:$0xf]
  %v79 = vld [vmem:[%s1 + $0x30] sm:$0xf]
  %v80 = vld [vmem:[%s1 + $0x34] sm:$0xf]
  %v81 = vld [vmem:[%s1 + $0x38] sm:$0xf]
  %v82 = vld [vmem:[%s1 + $0x3c] sm:$0xf]
  %v99 = vunpack.c.l.b16 %v51
  %v100 = vunpack.c.l.b16 %v52
  %v101 = vunpack.c.l.b16 %v53
  %v102 = vunpack.c.l.b16 %v54
  %v103 = vunpack.c.l.b16 %v55
  %v104 = vunpack.c.l.b16 %v56
  %v105 = vunpack.c.l.b16 %v57
  %v106 = vunpack.c.l.b16 %v58
  %v107 = vunpack.c.l.b16 %v59
  %v108 = vunpack.c.l.b16 %v60
  %v109 = vunpack.c.l.b16 %v61
  %v110 = vunpack.c.l.b16 %v62
  %v111 = vunpack.c.l.b16 %v63
  %v112 = vunpack.c.l.b16 %v64
  %v113 = vunpack.c.l.b16 %v65
  %v114 = vunpack.c.l.b16 %v66
  %v115 = vpack.c.b16 %v100, %v99
  %v116 = vpack.c.b16 %v102, %v101
  %v117 = vpack.c.b16 %v104, %v103
  %v118 = vpack.c.b16 %v106, %v105
  %v119 = vpack.c.b16 %v108, %v107
  %v120 = vpack.c.b16 %v110, %v109
  %v121 = vpack.c.b16 %v112, %v111
  %v122 = vpack.c.b16 %v114, %v113
  %v147 = vunpack.c.l.b16 %v67
  %v148 = vunpack.c.l.b16 %v68
  %v149 = vunpack.c.l.b16 %v69
  %v150 = vunpack.c.l.b16 %v70
  %v151 = vunpack.c.l.b16 %v71
  %v152 = vunpack.c.l.b16 %v72
  %v153 = vunpack.c.l.b16 %v73
  %v154 = vunpack.c.l.b16 %v74
  %v155 = vunpack.c.l.b16 %v75
  %v156 = vunpack.c.l.b16 %v76
  %v157 = vunpack.c.l.b16 %v77
  %v158 = vunpack.c.l.b16 %v78
  %v159 = vunpack.c.l.b16 %v79
  %v160 = vunpack.c.l.b16 %v80
  %v161 = vunpack.c.l.b16 %v81
  %v162 = vunpack.c.l.b16 %v82
  %v163 = vpack.c.b16 %v148, %v147
  %v164 = vpack.c.b16 %v150, %v149
  %v165 = vpack.c.b16 %v152, %v151
  %v166 = vpack.c.b16 %v154, %v153
  %v167 = vpack.c.b16 %v156, %v155
  %v168 = vpack.c.b16 %v158, %v157
  %v169 = vpack.c.b16 %v160, %v159
  %v170 = vpack.c.b16 %v162, %v161
  %179 = vmatprep.subr.bf16.mxu0 0
  %180 = vmatpush1.bf16.msra.mxu0 %v163
  %181 = vmatprep.subr.bf16.mxu0 0
  %182 = vmatpush1.bf16.msra.mxu0 %v164
  %183 = vmatprep.subr.bf16.mxu0 0
  %184 = vmatpush1.bf16.msra.mxu0 %v165
  %185 = vmatprep.subr.bf16.mxu0 0
  %186 = vmatpush1.bf16.msra.mxu0 %v166
  %187 = vmatprep.subr.bf16.mxu0 0
  %188 = vmatpush1.bf16.msra.mxu0 %v167
  %189 = vmatprep.subr.bf16.mxu0 0
  %190 = vmatpush1.bf16.msra.mxu0 %v168
  %191 = vmatprep.subr.bf16.mxu0 0
  %192 = vmatpush1.bf16.msra.mxu0 %v169
  %193 = vmatprep.subr.bf16.mxu0 0
  %194 = vmatpush1.bf16.msra.mxu0 %v170
  %195 = vmatprep.subr.bf16.mxu0 0
  %196 = vmatpush1.bf16.msra.mxu0 0
  %197 = vmatprep.subr.bf16.mxu0 0
  %198 = vmatpush1.bf16.msra.mxu0 0
  %199 = vmatprep.subr.bf16.mxu0 0
  %200 = vmatpush1.bf16.msra.mxu0 0
  %201 = vmatprep.subr.bf16.mxu0 0
  %202 = vmatpush1.bf16.msra.mxu0 0
  %203 = vmatprep.subr.bf16.mxu0 0
  %204 = vmatpush1.bf16.msra.mxu0 0
  %205 = vmatprep.subr.bf16.mxu0 0
  %206 = vmatpush1.bf16.msra.mxu0 0
  %207 = vmatprep.subr.bf16.mxu0 0
  %208 = vmatpush1.bf16.msra.mxu0 0
  %209 = vmatprep.subr.bf16.mxu0 0
  %210 = vmatpush1.bf16.msra.mxu0 0
  %211 = vmatprep.mubr.bf16.mxu0 0
  %212 = vmatmul.mubr.bf16.gmra.mrb[0].mxu0 %v115
  %v213 = vpop.f32.mrb[0].mxu0
  %v214 = vadd.f32 0.0, %v213
  %v215 = vpop.f32.mrb[0].mxu0
  %v216 = vpop.f32.mrb[0].mxu0
  %v217 = vadd.f32 0.0, %v216
  %v218 = vpop.f32.mrb[0].mxu0
  %219 = vmatprep.mubr.bf16.mxu0 0
  %220 = vmatmul.mubr.bf16.gmra.mrb[0].mxu0 %v116
  %v221 = vpop.f32.mrb[0].mxu0
  %v222 = vadd.f32 0.0, %v221
  %v223 = vpop.f32.mrb[0].mxu0
  %v224 = vpop.f32.mrb[0].mxu0
  %v225 = vadd.f32 0.0, %v224
  %v226 = vpop.f32.mrb[0].mxu0
  %227 = vmatprep.mubr.bf16.mxu0 0
  %228 = vmatmul.mubr.bf16.gmra.mrb[0].mxu0 %v117
  %v229 = vpop.f32.mrb[0].mxu0
  %v230 = vadd.f32 0.0, %v229
  %v231 = vpop.f32.mrb[0].mxu0
  %v232 = vpop.f32.mrb[0].mxu0
  %v233 = vadd.f32 0.0, %v232
  %v234 = vpop.f32.mrb[0].mxu0
  %235 = vmatprep.mubr.bf16.mxu0 0
  %236 = vmatmul.mubr.bf16.gmra.mrb[0].mxu0 %v118
  %v237 = vpop.f32.mrb[0].mxu0
  %v238 = vadd.f32 0.0, %v237
  %v239 = vpop.f32.mrb[0].mxu0
  %v240 = vpop.f32.mrb[0].mxu0
  %v241 = vadd.f32 0.0, %v240
  %v242 = vpop.f32.mrb[0].mxu0
  %243 = vmatprep.mubr.bf16.mxu0 0
  %244 = vmatmul.mubr.bf16.gmra.mrb[0].mxu0 %v119
  %v245 = vpop.f32.mrb[0].mxu0
  %v246 = vadd.f32 0.0, %v245
  %v247 = vpop.f32.mrb[0].mxu0
  %v248 = vpop.f32.mrb[0].mxu0
  %v249 = vadd.f32 0.0, %v248
  %v250 = vpop.f32.mrb[0].mxu0
  %251 = vmatprep.mubr.bf16.mxu0 0
  %252 = vmatmul.mubr.bf16.gmra.mrb[0].mxu0 %v120
  %v253 = vpop.f32.mrb[0].mxu0
  %v254 = vadd.f32 0.0, %v253
  %v255 = vpop.f32.mrb[0].mxu0
  %v256 = vpop.f32.mrb[0].mxu0
  %v257 = vadd.f32 0.0, %v256
  %v258 = vpop.f32.mrb[0].mxu0
  %259 = vmatprep.mubr.bf16.mxu0 0
  %260 = vmatmul.mubr.bf16.gmra.mrb[0].mxu0 %v121
  %v261 = vpop.f32.mrb[0].mxu0
  %v262 = vadd.f32 0.0, %v261
  %v263 = vpop.f32.mrb[0].mxu0
  %v264 = vpop.f32.mrb[0].mxu0
  %v265 = vadd.f32 0.0, %v264
  %v266 = vpop.f32.mrb[0].mxu0
  %267 = vmatprep.mubr.bf16.mxu0 0
  %268 = vmatmul.mubr.bf16.gmra.mrb[0].mxu0 %v122
  %v269 = vpop.f32.mrb[0].mxu0
  %v270 = vadd.f32 0.0, %v269
  %v271 = vpop.f32.mrb[0].mxu0
  %v272 = vpop.f32.mrb[0].mxu0
  %v273 = vadd.f32 0.0, %v272
  %v274 = vpop.f32.mrb[0].mxu0
  %275 = vdwg.mxu0
  %v276 = vadd.f32 %v35, %v214
  %v277 = vadd.f32 %v36, %v217
  %v278 = vadd.f32 %v37, %v222
  %v279 = vadd.f32 %v38, %v225
  %v280 = vadd.f32 %v39, %v230
  %v281 = vadd.f32 %v40, %v233
  %v282 = vadd.f32 %v41, %v238
  %v283 = vadd.f32 %v42, %v241
  %v284 = vadd.f32 %v43, %v246
  %v285 = vadd.f32 %v44, %v249
  %v286 = vadd.f32 %v45, %v254
  %v287 = vadd.f32 %v46, %v257
  %v288 = vadd.f32 %v47, %v262
  %v289 = vadd.f32 %v48, %v265
  %v290 = vadd.f32 %v49, %v270
  %v291 = vadd.f32 %v50, %v273
  %292 = vst [vmem:[#allocation2] sm:$0xff] %v276
  %293 = vst [vmem:[#allocation2 + $0x8] sm:$0xff] %v277
  %294 = vst [vmem:[#allocation2 + $0x10] sm:$0xff] %v278
  %295 = vst [vmem:[#allocation2 + $0x18] sm:$0xff] %v279
  %296 = vst [vmem:[#allocation2 + $0x20] sm:$0xff] %v280
  %297 = vst [vmem:[#allocation2 + $0x28] sm:$0xff] %v281
  %298 = vst [vmem:[#allocation2 + $0x30] sm:$0xff] %v282
  %299 = vst [vmem:[#allocation2 + $0x38] sm:$0xff] %v283
  %300 = vst [vmem:[#allocation2 + $0x40] sm:$0xff] %v284
  %301 = vst [vmem:[#allocation2 + $0x48] sm:$0xff] %v285
  %302 = vst [vmem:[#allocation2 + $0x50] sm:$0xff] %v286
  %303 = vst [vmem:[#allocation2 + $0x58] sm:$0xff] %v287
  %304 = vst [vmem:[#allocation2 + $0x60] sm:$0xff] %v288
  %305 = vst [vmem:[#allocation2 + $0x68] sm:$0xff] %v289
  %306 = vst [vmem:[#allocation2 + $0x70] sm:$0xff] %v290
  %307 = vst [vmem:[#allocation2 + $0x78] sm:$0xff] %v291
  // Predicated region
  $region18: #{_lambda_.14} parent=0 // pred_check
    %p308 = pneg %p15
  $region19: #{_lambda_.14} parent=0 // pred_check_branch
    %310 = sbr.rel (%p308) target = $region21
  $region20: #{_lambda_.14} parent=0 // pred_region
    %v311 = vld [vmem:[#allocation2] sm:$0xff]
    %v312 = vld [vmem:[#allocation2 + $0x8] sm:$0xff]
    %v313 = vld [vmem:[#allocation2 + $0x10] sm:$0xff]
    %v314 = vld [vmem:[#allocation2 + $0x18] sm:$0xff]
    %v315 = vld [vmem:[#allocation2 + $0x20] sm:$0xff]
    %v316 = vld [vmem:[#allocation2 + $0x28] sm:$0xff]
    %v317 = vld [vmem:[#allocation2 + $0x30] sm:$0xff]
    %v318 = vld [vmem:[#allocation2 + $0x38] sm:$0xff]
    %v319 = vld [vmem:[#allocation2 + $0x40] sm:$0xff]
    %v320 = vld [vmem:[#allocation2 + $0x48] sm:$0xff]
    %v321 = vld [vmem:[#allocation2 + $0x50] sm:$0xff]
    %v322 = vld [vmem:[#allocation2 + $0x58] sm:$0xff]
    %v323 = vld [vmem:[#allocation2 + $0x60] sm:$0xff]
    %v324 = vld [vmem:[#allocation2 + $0x68] sm:$0xff]
    %v325 = vld [vmem:[#allocation2 + $0x70] sm:$0xff]
    %v326 = vld [vmem:[#allocation2 + $0x78] sm:$0xff]
    %v327 = vld [vmem:[%s2] sm:$0x1]
    %v329 = vlaneseq
    %v330 = vshrl.u32 %v329, 7
    %v331 = vsub.s32 0, %v330
    %v332 = vrot.slane %v327, %v331
    %v334 = vadd.f32 %v311, %v332
    %v335 = vadd.f32 %v312, %v332
    %v336 = vadd.f32 %v313, %v332
    %v337 = vadd.f32 %v314, %v332
    %v338 = vadd.f32 %v315, %v332
    %v339 = vadd.f32 %v316, %v332
    %v340 = vadd.f32 %v317, %v332
    %v341 = vadd.f32 %v318, %v332
    %v342 = vadd.f32 %v319, %v332
    %v343 = vadd.f32 %v320, %v332
    %v344 = vadd.f32 %v321, %v332
    %v345 = vadd.f32 %v322, %v332
    %v346 = vadd.f32 %v323, %v332
    %v347 = vadd.f32 %v324, %v332
    %v348 = vadd.f32 %v325, %v332
    %v349 = vadd.f32 %v326, %v332
    %v350 = vxor.u32 %v334, 2147483648
    %v351 = vxor.u32 %v335, 2147483648
    %v352 = vxor.u32 %v336, 2147483648
    %v353 = vxor.u32 %v337, 2147483648
    %v354 = vxor.u32 %v338, 2147483648
    %v355 = vxor.u32 %v339, 2147483648
    %v356 = vxor.u32 %v340, 2147483648
    %v357 = vxor.u32 %v341, 2147483648
    %v358 = vxor.u32 %v342, 2147483648
    %v359 = vxor.u32 %v343, 2147483648
    %v360 = vxor.u32 %v344, 2147483648
    %v361 = vxor.u32 %v345, 2147483648
    %v362 = vxor.u32 %v346, 2147483648
    %v363 = vxor.u32 %v347, 2147483648
    %v364 = vxor.u32 %v348, 2147483648
    %v365 = vxor.u32 %v349, 2147483648
    %v366 = vmul.f32 %v350, 1.442695
    %v367 = vpow.pop %v366
    %v368 = vmul.f32 %v351, 1.442695
    %v369 = vpow.pop %v368
    %v370 = vmul.f32 %v352, 1.442695
    %v371 = vpow.pop %v370
    %v372 = vmul.f32 %v353, 1.442695
    %v373 = vpow.pop %v372
    %v374 = vmul.f32 %v354, 1.442695
    %v375 = vpow.pop %v374
    %v376 = vmul.f32 %v355, 1.442695
    %v377 = vpow.pop %v376
    %v378 = vmul.f32 %v356, 1.442695
    %v379 = vpow.pop %v378
    %v380 = vmul.f32 %v357, 1.442695
    %v381 = vpow.pop %v380
    %v382 = vmul.f32 %v358, 1.442695
    %v383 = vpow.pop %v382
    %v384 = vmul.f32 %v359, 1.442695
    %v385 = vpow.pop %v384
    %v386 = vmul.f32 %v360, 1.442695
    %v387 = vpow.pop %v386
    %v388 = vmul.f32 %v361, 1.442695
    %v389 = vpow.pop %v388
    %v390 = vmul.f32 %v362, 1.442695
    %v391 = vpow.pop %v390
    %v392 = vmul.f32 %v363, 1.442695
    %v393 = vpow.pop %v392
    %v394 = vmul.f32 %v364, 1.442695
    %v395 = vpow.pop %v394
    %v396 = vmul.f32 %v365, 1.442695
    %v397 = vpow.pop %v396
    %v398 = vadd.f32 %v367, 1.0
    %v399 = vadd.f32 %v369, 1.0
    %v400 = vadd.f32 %v371, 1.0
    %v401 = vadd.f32 %v373, 1.0
    %v402 = vadd.f32 %v375, 1.0
    %v403 = vadd.f32 %v377, 1.0
    %v404 = vadd.f32 %v379, 1.0
    %v405 = vadd.f32 %v381, 1.0
    %v406 = vadd.f32 %v383, 1.0
    %v407 = vadd.f32 %v385, 1.0
    %v408 = vadd.f32 %v387, 1.0
    %v409 = vadd.f32 %v389, 1.0
    %v410 = vadd.f32 %v391, 1.0
    %v411 = vadd.f32 %v393, 1.0
    %v412 = vadd.f32 %v395, 1.0
    %v413 = vadd.f32 %v397, 1.0
    %v414 = vrcp.pop %v398
    %v415 = vmul.f32 1.0, %v414
    %v416 = vrcp.pop %v399
    %v417 = vmul.f32 1.0, %v416
    %v418 = vrcp.pop %v400
    %v419 = vmul.f32 1.0, %v418
    %v420 = vrcp.pop %v401
    %v421 = vmul.f32 1.0, %v420
    %v422 = vrcp.pop %v402
    %v423 = vmul.f32 1.0, %v422
    %v424 = vrcp.pop %v403
    %v425 = vmul.f32 1.0, %v424
    %v426 = vrcp.pop %v404
    %v427 = vmul.f32 1.0, %v426
    %v428 = vrcp.pop %v405
    %v429 = vmul.f32 1.0, %v428
    %v430 = vrcp.pop %v406
    %v431 = vmul.f32 1.0, %v430
    %v432 = vrcp.pop %v407
    %v433 = vmul.f32 1.0, %v432
    %v434 = vrcp.pop %v408
    %v435 = vmul.f32 1.0, %v434
    %v436 = vrcp.pop %v409
    %v437 = vmul.f32 1.0, %v436
    %v438 = vrcp.pop %v410
    %v439 = vmul.f32 1.0, %v438
    %v440 = vrcp.pop %v411
    %v441 = vmul.f32 1.0, %v440
    %v442 = vrcp.pop %v412
    %v443 = vmul.f32 1.0, %v442
    %v444 = vrcp.pop %v413
    %v445 = vmul.f32 1.0, %v444
    %v446 = vmul.f32 %v334, %v415
    %v447 = vmul.f32 %v335, %v417
    %v448 = vmul.f32 %v336, %v419
    %v449 = vmul.f32 %v337, %v421
    %v450 = vmul.f32 %v338, %v423
    %v451 = vmul.f32 %v339, %v425
    %v452 = vmul.f32 %v340, %v427
    %v453 = vmul.f32 %v341, %v429
    %v454 = vmul.f32 %v342, %v431
    %v455 = vmul.f32 %v343, %v433
    %v456 = vmul.f32 %v344, %v435
    %v457 = vmul.f32 %v345, %v437
    %v458 = vmul.f32 %v346, %v439
    %v459 = vmul.f32 %v347, %v441
    %v460 = vmul.f32 %v348, %v443
    %v461 = vmul.f32 %v349, %v445
    %v462 = vpack.c.bf16 %v447, %v446
    %v463 = vpack.c.bf16 %v449, %v448
    %v464 = vpack.c.bf16 %v451, %v450
    %v465 = vpack.c.bf16 %v453, %v452
    %v466 = vpack.c.bf16 %v455, %v454
    %v467 = vpack.c.bf16 %v457, %v456
    %v468 = vpack.c.bf16 %v459, %v458
    %v469 = vpack.c.bf16 %v461, %v460
    %v478 = vunpack.c.l.b16 %v462
    %v479 = vunpack.c.h.b16 %v462
    %v480 = vunpack.c.l.b16 %v463
    %v481 = vunpack.c.h.b16 %v463
    %v482 = vunpack.c.l.b16 %v464
    %v483 = vunpack.c.h.b16 %v464
    %v484 = vunpack.c.l.b16 %v465
    %v485 = vunpack.c.h.b16 %v465
    %v486 = vunpack.c.l.b16 %v466
    %v487 = vunpack.c.h.b16 %v466
    %v488 = vunpack.c.l.b16 %v467
    %v489 = vunpack.c.h.b16 %v467
    %v490 = vunpack.c.l.b16 %v468
    %v491 = vunpack.c.h.b16 %v468
    %v492 = vunpack.c.l.b16 %v469
    %v493 = vunpack.c.h.b16 %v469
    %v494 = vpack.c.b16 %v478, %v478
    %v495 = vpack.c.b16 %v479, %v479
    %v496 = vpack.c.b16 %v480, %v480
    %v497 = vpack.c.b16 %v481, %v481
    %v498 = vpack.c.b16 %v482, %v482
    %v499 = vpack.c.b16 %v483, %v483
    %v500 = vpack.c.b16 %v484, %v484
    %v501 = vpack.c.b16 %v485, %v485
    %v502 = vpack.c.b16 %v486, %v486
    %v503 = vpack.c.b16 %v487, %v487
    %v504 = vpack.c.b16 %v488, %v488
    %v505 = vpack.c.b16 %v489, %v489
    %v506 = vpack.c.b16 %v490, %v490
    %v507 = vpack.c.b16 %v491, %v491
    %v508 = vpack.c.b16 %v492, %v492
    %v509 = vpack.c.b16 %v493, %v493
    %526 = vst [vmem:[%s3] sm:$0xf] %v494
    %527 = vst [vmem:[%s3 + $0x4] sm:$0xf] %v495
    %528 = vst [vmem:[%s3 + $0x8] sm:$0xf] %v496
    %529 = vst [vmem:[%s3 + $0xc] sm:$0xf] %v497
    %530 = vst [vmem:[%s3 + $0x10] sm:$0xf] %v498
    %531 = vst [vmem:[%s3 + $0x14] sm:$0xf] %v499
    %532 = vst [vmem:[%s3 + $0x18] sm:$0xf] %v500
    %533 = vst [vmem:[%s3 + $0x1c] sm:$0xf] %v501
    %534 = vst [vmem:[%s3 + $0x20] sm:$0xf] %v502
    %535 = vst [vmem:[%s3 + $0x24] sm:$0xf] %v503
    %536 = vst [vmem:[%s3 + $0x28] sm:$0xf] %v504
    %537 = vst [vmem:[%s3 + $0x2c] sm:$0xf] %v505
    %538 = vst [vmem:[%s3 + $0x30] sm:$0xf] %v506
    %539 = vst [vmem:[%s3 + $0x34] sm:$0xf] %v507
    %540 = vst [vmem:[%s3 + $0x38] sm:$0xf] %v508
    %541 = vst [vmem:[%s3 + $0x3c] sm:$0xf] %v509
  $region21: #{_lambda_.14} parent=0 // pred_fallthru
    _
  // Predicated region
  $region22: #{_lambda_.14} parent=0 // pred_check
    _
  $region23: #{_lambda_.14} parent=0 // pred_check_branch
    %543 = sbr.rel (0) target = $region25
  $region24: #{_lambda_.14} parent=0 // pred_region
    _
  $region25: #{_lambda_.14} parent=0 // pred_fallthru
    _
  // Predicated region
  $region26: #{_lambda_.14} parent=0 // pred_check
    _
  $region27: #{_lambda_.14} parent=0 // pred_check_branch
    %545 = sbr.rel (0) target = $region29
  $region28: #{_lambda_.14} parent=0 // pred_region
    _
  $region29: #{_lambda_.14} parent=0 // pred_fallthru
    _

// kernel: _lambda_.17
$region0: #{_lambda_.17}
  #allocation0 [shape = 'u32[]', space=smem, size = 0x4, offset = 0x4, fixed_abs, tag = 'smem constant byte address 0x4 - core index']
  #allocation1 [shape = 'u32[144,128]{1,0:T(1,128)}', space=vmem, size = 0x12000, scoped, tag = 'internal scratch']
  #allocation2 [shape = 'f32[64,128]{1,0:T(8,128)}', space=vmem, size = 0x8000, scoped, tag = 'scratch operand']
  %s0 = inlined_call_operand.vmem [shape: bf16[2,64,128], index: 0, kind: input, shape index: {}]
  %s1 = inlined_call_operand.vmem [shape: bf16[2,1,128], index: 1, kind: input, shape index: {}]
  %s2 = inlined_call_operand.vmem [shape: bf16[128,128], index: 2, kind: input, shape index: {}]
  %s3 = inlined_call_operand.vmem [shape: f32[1,128], index: 3, kind: input, shape index: {}]
  %s4 = inlined_call_operand.vmem [shape: bf16[2,64,128], index: 4, kind: output, shape index: {}]
  %s5 = sld [smem:[#allocation0]]
  $region57: #{_lambda_.17} parent=0
    _
  %s7 = ssub.s32 1, %s5
  %s8 = scalar_select 0, %s7, %s5
  loop: start=0, step=1, limit=4
  $region2: #{_lambda_.17} parent=0 // loop_pre_header
    _
  $region3: #{_lambda_.17} parent=0 // loop_header
    %s10 = sphi 0, %s14
    %p11 = scmp.ge.s32.totalorder %s10, 4
    %s17 = sphi 0, %s43
    %s18 = sphi 0, %s39
    %s19 = sphi 0, %s35
    %s20 = sphi 0, %s31
    %s21 = sphi 0, %s17
    %s22 = sphi 0, %s18
    %s23 = sphi 0, %s19
    %s24 = sphi 0, %s20
    %s25 = sphi 0, %s21
    %s26 = sphi 0, %s22
    %s27 = sphi 0, %s23
    %s28 = sphi 0, %s24
    %s50 = sphi 0, %s52
    %s53 = sphi 0, %s50
    %s54 = sphi 0, %s53
    %s70 = sphi 0, %s54
    %s78 = sphi 0, %s80
    %s81 = sphi 0, %s78
    %s82 = sphi 0, %s81
    %s98 = sphi 0, %s82
    %s106 = sphi 0, %s108
    %s109 = sphi 0, %s106
    %s110 = sphi 0, %s109
    %s126 = sphi 0, %s110
    %s132 = sphi 0, %s134
    %s135 = sphi 0, %s132
    %s136 = sphi 0, %s135
    %s152 = sphi 0, %s136
    %s162 = sphi 0, %s164
    %s165 = sphi 0, %s162
    %s166 = sphi 0, %s165
    %s182 = sphi 0, %s166
  $region4: #{_lambda_.17} parent=0 // loop_header_branch
    %13 = sbr.rel (%p11) target = $region8
  $region5: #{_lambda_.17} parent=0 // loop_body
    %s15 = ssub.s32 %s10, 1
    %s16 = ssub.s32 %s10, 2
    %s29 = sadd.s32 1, %s20
    %p30 = scmp.ge.s32.totalorder %s29, 1
    %s31 = scalar_select %p30, 0, %s29
    %s32 = sadd.s32 1, %s19
    %s33 = scalar_select %p30, %s32, %s19
    %p34 = scmp.ge.s32.totalorder %s33, 1
    %s35 = scalar_select %p34, 0, %s33
    %s36 = sadd.s32 1, %s18
    %s37 = scalar_select %p34, %s36, %s18
    %p38 = scmp.ge.s32.totalorder %s37, 1
    %s39 = scalar_select %p38, 0, %s37
    %s40 = sadd.s32 1, %s17
    %s41 = scalar_select %p38, %s40, %s17
    %p42 = scmp.ge.s32.totalorder %s41, 2
    %s43 = scalar_select %p42, 0, %s41
    %s44 = ssub.s32 %s17, %s43
    %s45 = ssub.s32 %s18, %s39
    %s46 = sor.u32 %s44, %s45
    %s47 = ssub.s32 %s20, %s31
    %s48 = sor.u32 %s46, %s47
    %p49 = scmp.eq.s32.totalorder %s48, 0
    %s51 = sadd.s32 %s50, 1
    %s52 = scalar_select %p49, %s50, %s51
    %p55 = pneg %p49
    %p56 = scmp.eq.s32.totalorder %s10, 1
    %p57 = por %p55, %p56
    %p58 = scmp.ne.s32.totalorder %s50, %s53
    %p59 = scmp.eq.s32.totalorder %s10, 0
    %p60 = por %p58, %p59
    %p61 = scmp.ne.s32.totalorder %s50, %s53
    %p62 = scmp.eq.s32.totalorder %s15, 1
    %p63 = por %p61, %p62
    %p64 = scmp.ne.s32.totalorder %s53, %s54
    %p65 = scmp.eq.s32.totalorder %s15, 0
    %p66 = por %p64, %p65
    %p67 = scmp.ne.s32.totalorder %s53, %s54
    %p68 = scmp.eq.s32.totalorder %s16, 1
    %p69 = por %p67, %p68
    %p71 = scmp.ne.s32.totalorder %s54, %s70
    %p72 = scmp.eq.s32.totalorder %s16, 0
    %p73 = por %p71, %p72
    %s74 = ssub.s32 %s17, %s43
    %s75 = ssub.s32 %s20, %s31
    %s76 = sor.u32 %s74, %s75
    %p77 = scmp.eq.s32.totalorder %s76, 0
    %s79 = sadd.s32 %s78, 1
    %s80 = scalar_select %p77, %s78, %s79
    %p83 = pneg %p77
    %p84 = scmp.eq.s32.totalorder %s10, 1
    %p85 = por %p83, %p84
    %p86 = scmp.ne.s32.totalorder %s78, %s81
    %p87 = scmp.eq.s32.totalorder %s10, 0
    %p88 = por %p86, %p87
    %p89 = scmp.ne.s32.totalorder %s78, %s81
    %p90 = scmp.eq.s32.totalorder %s15, 1
    %p91 = por %p89, %p90
    %p92 = scmp.ne.s32.totalorder %s81, %s82
    %p93 = scmp.eq.s32.totalorder %s15, 0
    %p94 = por %p92, %p93
    %p95 = scmp.ne.s32.totalorder %s81, %s82
    %p96 = scmp.eq.s32.totalorder %s16, 1
    %p97 = por %p95, %p96
    %p99 = scmp.ne.s32.totalorder %s82, %s98
    %p100 = scmp.eq.s32.totalorder %s16, 0
    %p101 = por %p99, %p100
    %s102 = ssub.s32 %s20, %s31
    %s103 = ssub.s32 %s19, %s35
    %s104 = sor.u32 %s102, %s103
    %p105 = scmp.eq.s32.totalorder %s104, 0
    %s107 = sadd.s32 %s106, 1
    %s108 = scalar_select %p105, %s106, %s107
    %p111 = pneg %p105
    %p112 = scmp.eq.s32.totalorder %s10, 1
    %p113 = por %p111, %p112
    %p114 = scmp.ne.s32.totalorder %s106, %s109
    %p115 = scmp.eq.s32.totalorder %s10, 0
    %p116 = por %p114, %p115
    %p117 = scmp.ne.s32.totalorder %s106, %s109
    %p118 = scmp.eq.s32.totalorder %s15, 1
    %p119 = por %p117, %p118
    %p120 = scmp.ne.s32.totalorder %s109, %s110
    %p121 = scmp.eq.s32.totalorder %s15, 0
    %p122 = por %p120, %p121
    %p123 = scmp.ne.s32.totalorder %s109, %s110
    %p124 = scmp.eq.s32.totalorder %s16, 1
    %p125 = por %p123, %p124
    %p127 = scmp.ne.s32.totalorder %s110, %s126
    %p128 = scmp.eq.s32.totalorder %s16, 0
    %p129 = por %p127, %p128
    %s130 = ssub.s32 %s19, %s35
    %p131 = scmp.eq.s32.totalorder %s130, 0
    %s133 = sadd.s32 %s132, 1
    %s134 = scalar_select %p131, %s132, %s133
    %p137 = pneg %p131
    %p138 = scmp.eq.s32.totalorder %s10, 1
    %p139 = por %p137, %p138
    %p140 = scmp.ne.s32.totalorder %s132, %s135
    %p141 = scmp.eq.s32.totalorder %s10, 0
    %p142 = por %p140, %p141
    %p143 = scmp.ne.s32.totalorder %s132, %s135
    %p144 = scmp.eq.s32.totalorder %s15, 1
    %p145 = por %p143, %p144
    %p146 = scmp.ne.s32.totalorder %s135, %s136
    %p147 = scmp.eq.s32.totalorder %s15, 0
    %p148 = por %p146, %p147
    %p149 = scmp.ne.s32.totalorder %s135, %s136
    %p150 = scmp.eq.s32.totalorder %s16, 1
    %p151 = por %p149, %p150
    %p153 = scmp.ne.s32.totalorder %s136, %s152
    %p154 = scmp.eq.s32.totalorder %s16, 0
    %p155 = por %p153, %p154
    %s156 = ssub.s32 %s17, %s43
    %s157 = ssub.s32 %s18, %s39
    %s158 = sor.u32 %s156, %s157
    %s159 = ssub.s32 %s19, %s35
    %s160 = sor.u32 %s158, %s159
    %p161 = scmp.eq.s32.totalorder %s160, 0
    %s163 = sadd.s32 %s162, 1
    %s164 = scalar_select %p161, %s162, %s163
    %p167 = pneg %p161
    %p168 = scmp.eq.s32.totalorder %s10, 1
    %p169 = por %p167, %p168
    %p170 = scmp.ne.s32.totalorder %s162, %s165
    %p171 = scmp.eq.s32.totalorder %s10, 0
    %p172 = por %p170, %p171
    %p173 = scmp.ne.s32.totalorder %s162, %s165
    %p174 = scmp.eq.s32.totalorder %s15, 1
    %p175 = por %p173, %p174
    %p176 = scmp.ne.s32.totalorder %s165, %s166
    %p177 = scmp.eq.s32.totalorder %s15, 0
    %p178 = por %p176, %p177
    %p179 = scmp.ne.s32.totalorder %s165, %s166
    %p180 = scmp.eq.s32.totalorder %s16, 1
    %p181 = por %p179, %p180
    %p183 = scmp.ne.s32.totalorder %s166, %s182
    %p184 = scmp.eq.s32.totalorder %s16, 0
    %p185 = por %p183, %p184
    %p186 = scmp.le.s32.totalorder 1, %s10
    %p187 = scmp.lt.s32.totalorder %s10, 3
    %p188 = pnand %p186, %p187
    %p189 = pneg %p188
    // Predicated region
    $region9: #{_lambda_.17} parent=5 // pred_check
      _
    $region10: #{_lambda_.17} parent=5 // pred_check_branch
      %191 = sbr.rel (%p188) target = $region12
    $region11: #{_lambda_.17} parent=5 // pred_region
      %s192 = ssub.s32 %s10, 1
      // Predicated region
      $region13: #{_lambda_.17} parent=11 // pred_check
        %p193 = pneg %p122
      $region14: #{_lambda_.17} parent=11 // pred_check_branch
        %195 = sbr.rel (%p193) target = $region16
      $region15: #{_lambda_.17} parent=11 // pred_region
        %s196 = smul.u32 16, %s24
        %p197 = scmp.lt.s32.totalorder %s196, 15
        %s198 = scalar_select %p197, %s196, 15
        %p199 = scmp.lt.s32.totalorder %s23, 0
        %s200 = scalar_select %p199, %s23, 0
        %s201 = sadd.s32 %s200, %s198
        %s202 = smul.addr %s201, 4
        %s203 = scalar_lea.vmem %s2, %s202
        %s204 = smul.u32 16, %s24
      $region16: #{_lambda_.17} parent=11 // pred_fallthru
        _
      // Predicated region
      $region17: #{_lambda_.17} parent=11 // pred_check
        %p205 = pneg %p148
      $region18: #{_lambda_.17} parent=11 // pred_check_branch
        %207 = sbr.rel (%p205) target = $region20
      $region19: #{_lambda_.17} parent=11 // pred_region
        %p208 = scmp.lt.s32.totalorder %s23, 0
        %s209 = scalar_select %p208, %s23, 0
        %s210 = scalar_lea.vmem %s3, %s209
      $region20: #{_lambda_.17} parent=11 // pred_fallthru
        _
    $region12: #{_lambda_.17} parent=5 // pred_fallthru
      _
    %p211 = scmp.lt.s32.totalorder %s10, 2
    // Predicated region
    $region21: #{_lambda_.17} parent=5 // pred_check
      %p212 = pneg %p211
    $region22: #{_lambda_.17} parent=5 // pred_check_branch
      %214 = sbr.rel (%p212) target = $region24
    $region23: #{_lambda_.17} parent=5 // pred_region
      // Predicated region
      $region25: #{_lambda_.17} parent=23 // pred_check
        %p215 = pneg %p60
      $region26: #{_lambda_.17} parent=23 // pred_check_branch
        %217 = sbr.rel (%p215) target = $region28
      $region27: #{_lambda_.17} parent=23 // pred_region
        %s218 = smul.u32 8, %s18
        %p219 = scmp.lt.s32.totalorder %s17, 1
        %s220 = scalar_select %p219, %s17, 1
        %p221 = scmp.lt.s32.totalorder %s218, 7
        %s222 = scalar_select %p221, %s218, 7
        %p223 = scmp.lt.s32.totalorder %s20, 0
        %s224 = scalar_select %p223, %s20, 0
        %s225 = sadd.s32 %s224, %s222
        %s226 = smul.addr %s220, 8
        %s227 = sadd.s32 %s225, %s226
        %s228 = smul.addr %s227, 4
        %s229 = scalar_lea.vmem %s0, %s228
        %s230 = smul.u32 8, %s18
      $region28: #{_lambda_.17} parent=23 // pred_fallthru
        _
      // Predicated region
      $region29: #{_lambda_.17} parent=23 // pred_check
        %p231 = pneg %p88
      $region30: #{_lambda_.17} parent=23 // pred_check_branch
        %233 = sbr.rel (%p231) target = $region32
      $region31: #{_lambda_.17} parent=23 // pred_region
        %p234 = scmp.lt.s32.totalorder %s17, 1
        %s235 = scalar_select %p234, %s17, 1
        %p236 = scmp.lt.s32.totalorder %s20, 0
        %s237 = scalar_select %p236, %s20, 0
        %s238 = sadd.s32 %s237, %s235
        %s239 = scalar_lea.vmem %s1, %s238
      $region32: #{_lambda_.17} parent=23 // pred_fallthru
        _
    $region24: #{_lambda_.17} parent=5 // pred_fallthru
      _
    %p240 = scmp.le.s32.totalorder 1, %s10
    %p241 = scmp.lt.s32.totalorder %s10, 3
    %p242 = pnand %p240, %p241
    %p243 = pneg %p242
    // Predicated region
    $region33: #{_lambda_.17} parent=5 // pred_check
      _
    $region34: #{_lambda_.17} parent=5 // pred_check_branch
      %245 = sbr.rel (%p242) target = $region36
    $region35: #{_lambda_.17} parent=5 // pred_region
      %s246 = ssub.s32 %s10, 1
      %s247 = smul.u32 8, %s22
      %p248 = scmp.lt.s32.totalorder %s21, 1
      %s249 = scalar_select %p248, %s21, 1
      %p250 = scmp.lt.s32.totalorder %s247, 7
      %s251 = scalar_select %p250, %s247, 7
      %p252 = scmp.lt.s32.totalorder %s24, 0
      %s253 = scalar_select %p252, %s24, 0
      %s254 = sadd.s32 %s253, %s251
      %s255 = smul.addr %s249, 8
      %s256 = sadd.s32 %s254, %s255
      %s257 = smul.addr %s256, 4
      %s258 = scalar_lea.vmem %s0, %s257
      %p259 = pneg %p66
      %p260 = pneg %p63
      %p261 = scmp.lt.s32.totalorder %s21, 1
      %s262 = scalar_select %p261, %s21, 1
      %p263 = scmp.lt.s32.totalorder %s24, 0
      %s264 = scalar_select %p263, %s24, 0
      %s265 = sadd.s32 %s264, %s262
      %s266 = scalar_lea.vmem %s1, %s265
      %p267 = pneg %p94
      %p268 = pneg %p91
      %s269 = smul.u32 16, %s24
      %p270 = scmp.lt.s32.totalorder %s269, 15
      %s271 = scalar_select %p270, %s269, 15
      %p272 = scmp.lt.s32.totalorder %s23, 0
      %s273 = scalar_select %p272, %s23, 0
      %s274 = sadd.s32 %s273, %s271
      %s275 = smul.addr %s274, 4
      %s276 = scalar_lea.vmem %s2, %s275
      %p277 = pneg %p122
      %p278 = pneg %p119
      %p279 = scmp.lt.s32.totalorder %s23, 0
      %s280 = scalar_select %p279, %s23, 0
      %s281 = scalar_lea.vmem %s3, %s280
      %p282 = pneg %p148
      %p283 = pneg %p145
      %p284 = pneg %p178
      %p285 = pneg %p175
      %s286 = smul.u32 8, %s22
      %p287 = scmp.lt.s32.totalorder %s21, 1
      %s288 = scalar_select %p287, %s21, 1
      %p289 = scmp.lt.s32.totalorder %s286, 7
      %s290 = scalar_select %p289, %s286, 7
      %p291 = scmp.lt.s32.totalorder %s23, 0
      %s292 = scalar_select %p291, %s23, 0
      %s293 = sadd.s32 %s292, %s290
      %s294 = smul.addr %s288, 8
      %s295 = sadd.s32 %s293, %s294
      %s296 = smul.addr %s295, 4
      %s297 = scalar_lea.vmem %s4, %s296
      %s298 = smul.u32 8, %s22
      %p299 = scmp.lt.s32.totalorder %s21, 1
      %s300 = scalar_select %p299, %s21, 1
      %p301 = scmp.lt.s32.totalorder %s298, 7
      %s302 = scalar_select %p301, %s298, 7
      %p303 = scmp.lt.s32.totalorder %s24, 0
      %s304 = scalar_select %p303, %s24, 0
      %s305 = sadd.s32 %s304, %s302
      %s306 = smul.addr %s300, 8
      %s307 = sadd.s32 %s305, %s306
      %s308 = smul.addr %s307, 4
      %s309 = scalar_lea.vmem %s0, %s308
      %s310 = smul.u32 8, %s22
      %p311 = scmp.lt.s32.totalorder %s21, 1
      %s312 = scalar_select %p311, %s21, 1
      %p313 = scmp.lt.s32.totalorder %s24, 0
      %s314 = scalar_select %p313, %s24, 0
      %s315 = sadd.s32 %s314, %s312
      %s316 = scalar_lea.vmem %s1, %s315
      %s317 = smul.u32 16, %s24
      %p318 = scmp.lt.s32.totalorder %s317, 15
      %s319 = scalar_select %p318, %s317, 15
      %p320 = scmp.lt.s32.totalorder %s23, 0
      %s321 = scalar_select %p320, %s23, 0
      %s322 = sadd.s32 %s321, %s319
      %s323 = smul.addr %s322, 4
      %s324 = scalar_lea.vmem %s2, %s323
      %s325 = smul.u32 16, %s24
      %p326 = scmp.lt.s32.totalorder %s23, 0
      %s327 = scalar_select %p326, %s23, 0
      %s328 = scalar_lea.vmem %s3, %s327
      %s329 = smul.u32 8, %s22
      %p330 = scmp.lt.s32.totalorder %s21, 1
      %s331 = scalar_select %p330, %s21, 1
      %p332 = scmp.lt.s32.totalorder %s329, 7
      %s333 = scalar_select %p332, %s329, 7
      %p334 = scmp.lt.s32.totalorder %s23, 0
      %s335 = scalar_select %p334, %s23, 0
      %s336 = sadd.s32 %s335, %s333
      %s337 = smul.addr %s331, 8
      %s338 = sadd.s32 %s336, %s337
      %s339 = smul.addr %s338, 4
      %s340 = scalar_lea.vmem %s4, %s339
      %s341 = smul.u32 8, %s22
      %p343 = scmp.eq.s32.totalorder %s24, 0
      // Predicated region
      $region37: #{_lambda_.17} parent=35 // pred_check
        %p344 = pneg %p343
      $region38: #{_lambda_.17} parent=35 // pred_check_branch
        %346 = sbr.rel (%p344) target = $region40
      $region39: #{_lambda_.17} parent=35 // pred_region
        %347 = vst [vmem:[#allocation2] sm:$0xff] 0.0
        %348 = vst [vmem:[#allocation2 + $0x8] sm:$0xff] 0.0
        %349 = vst [vmem:[#allocation2 + $0x10] sm:$0xff] 0.0
        %350 = vst [vmem:[#allocation2 + $0x18] sm:$0xff] 0.0
        %351 = vst [vmem:[#allocation2 + $0x20] sm:$0xff] 0.0
        %352 = vst [vmem:[#allocation2 + $0x28] sm:$0xff] 0.0
        %353 = vst [vmem:[#allocation2 + $0x30] sm:$0xff] 0.0
        %354 = vst [vmem:[#allocation2 + $0x38] sm:$0xff] 0.0
      $region40: #{_lambda_.17} parent=35 // pred_fallthru
        _
      %v355 = vld [vmem:[%s309] sm:$0xf]
      %v356 = vld [vmem:[%s309 + $0x4] sm:$0xf]
      %v357 = vld [vmem:[%s309 + $0x8] sm:$0xf]
      %v358 = vld [vmem:[%s309 + $0xc] sm:$0xf]
      %v359 = vld [vmem:[%s309 + $0x10] sm:$0xf]
      %v360 = vld [vmem:[%s309 + $0x14] sm:$0xf]
      %v361 = vld [vmem:[%s309 + $0x18] sm:$0xf]
      %v362 = vld [vmem:[%s309 + $0x1c] sm:$0xf]
      %v363 = vunpack.c.l.bf16 %v355
      %v364 = vunpack.c.l.bf16 %v356
      %v365 = vunpack.c.l.bf16 %v357
      %v366 = vunpack.c.l.bf16 %v358
      %v367 = vunpack.c.l.bf16 %v359
      %v368 = vunpack.c.l.bf16 %v360
      %v369 = vunpack.c.l.bf16 %v361
      %v370 = vunpack.c.l.bf16 %v362
      %v371 = vld [vmem:[%s316] sm:$0x1]
      %v372 = vunpack.c.l.bf16 %v371
      %v373 = vlaneseq
      %v374 = vshrl.u32 %v373, 7
      %v375 = vsub.s32 0, %v374
      %v376 = vrot.slane %v372, %v375
      %v377 = vmul.f32 %v363, %v376
      %v378 = vmul.f32 %v364, %v376
      %v379 = vmul.f32 %v365, %v376
      %v380 = vmul.f32 %v366, %v376
      %v381 = vmul.f32 %v367, %v376
      %v382 = vmul.f32 %v368, %v376
      %v383 = vmul.f32 %v369, %v376
      %v384 = vmul.f32 %v370, %v376
      %v385 = vld [vmem:[#allocation2] sm:$0xff]
      %v386 = vld [vmem:[#allocation2 + $0x8] sm:$0xff]
      %v387 = vld [vmem:[#allocation2 + $0x10] sm:$0xff]
      %v388 = vld [vmem:[#allocation2 + $0x18] sm:$0xff]
      %v389 = vld [vmem:[#allocation2 + $0x20] sm:$0xff]
      %v390 = vld [vmem:[#allocation2 + $0x28] sm:$0xff]
      %v391 = vld [vmem:[#allocation2 + $0x30] sm:$0xff]
      %v392 = vld [vmem:[#allocation2 + $0x38] sm:$0xff]
      %v393 = vpack.c.bf16 %v378, %v377
      %v394 = vpack.c.bf16 %v380, %v379
      %v395 = vpack.c.bf16 %v382, %v381
      %v396 = vpack.c.bf16 %v384, %v383
      %v397 = vld [vmem:[%s324] sm:$0xf]
      %v398 = vld [vmem:[%s324 + $0x4] sm:$0xf]
      %v399 = vld [vmem:[%s324 + $0x8] sm:$0xf]
      %v400 = vld [vmem:[%s324 + $0xc] sm:$0xf]
      %v401 = vld [vmem:[%s324 + $0x10] sm:$0xf]
      %v402 = vld [vmem:[%s324 + $0x14] sm:$0xf]
      %v403 = vld [vmem:[%s324 + $0x18] sm:$0xf]
      %v404 = vld [vmem:[%s324 + $0x1c] sm:$0xf]
      %v405 = vld [vmem:[%s324 + $0x20] sm:$0xf]
      %v406 = vld [vmem:[%s324 + $0x24] sm:$0xf]
      %v407 = vld [vmem:[%s324 + $0x28] sm:$0xf]
      %v408 = vld [vmem:[%s324 + $0x2c] sm:$0xf]
      %v409 = vld [vmem:[%s324 + $0x30] sm:$0xf]
      %v410 = vld [vmem:[%s324 + $0x34] sm:$0xf]
      %v411 = vld [vmem:[%s324 + $0x38] sm:$0xf]
      %v412 = vld [vmem:[%s324 + $0x3c] sm:$0xf]
      %v429 = vunpack.c.l.b16 %v397
      %v430 = vunpack.c.l.b16 %v398
      %v431 = vunpack.c.l.b16 %v399
      %v432 = vunpack.c.l.b16 %v400
      %v433 = vunpack.c.l.b16 %v401
      %v434 = vunpack.c.l.b16 %v402
      %v435 = vunpack.c.l.b16 %v403
      %v436 = vunpack.c.l.b16 %v404
      %v437 = vunpack.c.l.b16 %v405
      %v438 = vunpack.c.l.b16 %v406
      %v439 = vunpack.c.l.b16 %v407
      %v440 = vunpack.c.l.b16 %v408
      %v441 = vunpack.c.l.b16 %v409
      %v442 = vunpack.c.l.b16 %v410
      %v443 = vunpack.c.l.b16 %v411
      %v444 = vunpack.c.l.b16 %v412
      %v445 = vpack.c.b16 %v430, %v429
      %v446 = vpack.c.b16 %v432, %v431
      %v447 = vpack.c.b16 %v434, %v433
      %v448 = vpack.c.b16 %v436, %v435
      %v449 = vpack.c.b16 %v438, %v437
      %v450 = vpack.c.b16 %v440, %v439
      %v451 = vpack.c.b16 %v442, %v441
      %v452 = vpack.c.b16 %v444, %v443
      %461 = vmatprep.subr.bf16.mxu0 0
      %462 = vmatpush1.bf16.msra.mxu0 %v445
      %463 = vmatprep.subr.bf16.mxu0 0
      %464 = vmatpush1.bf16.msra.mxu0 %v446
      %465 = vmatprep.subr.bf16.mxu0 0
      %466 = vmatpush1.bf16.msra.mxu0 %v447
      %467 = vmatprep.subr.bf16.mxu0 0
      %468 = vmatpush1.bf16.msra.mxu0 %v448
      %469 = vmatprep.subr.bf16.mxu0 0
      %470 = vmatpush1.bf16.msra.mxu0 %v449
      %471 = vmatprep.subr.bf16.mxu0 0
      %472 = vmatpush1.bf16.msra.mxu0 %v450
      %473 = vmatprep.subr.bf16.mxu0 0
      %474 = vmatpush1.bf16.msra.mxu0 %v451
      %475 = vmatprep.subr.bf16.mxu0 0
      %476 = vmatpush1.bf16.msra.mxu0 %v452
      %477 = vmatprep.subr.bf16.mxu0 0
      %478 = vmatpush1.bf16.msra.mxu0 0
      %479 = vmatprep.subr.bf16.mxu0 0
      %480 = vmatpush1.bf16.msra.mxu0 0
      %481 = vmatprep.subr.bf16.mxu0 0
      %482 = vmatpush1.bf16.msra.mxu0 0
      %483 = vmatprep.subr.bf16.mxu0 0
      %484 = vmatpush1.bf16.msra.mxu0 0
      %485 = vmatprep.subr.bf16.mxu0 0
      %486 = vmatpush1.bf16.msra.mxu0 0
      %487 = vmatprep.subr.bf16.mxu0 0
      %488 = vmatpush1.bf16.msra.mxu0 0
      %489 = vmatprep.subr.bf16.mxu0 0
      %490 = vmatpush1.bf16.msra.mxu0 0
      %491 = vmatprep.subr.bf16.mxu0 0
      %492 = vmatpush1.bf16.msra.mxu0 0
      %493 = vmatprep.mubr.bf16.mxu0 0
      %494 = vmatmul.mubr.bf16.gmra.mrb[0].mxu0 %v393
      %v495 = vpop.f32.mrb[0].mxu0
      %v496 = vadd.f32 0.0, %v495
      %v497 = vpop.f32.mrb[0].mxu0
      %v498 = vpop.f32.mrb[0].mxu0
      %v499 = vadd.f32 0.0, %v498
      %v500 = vpop.f32.mrb[0].mxu0
      %501 = vmatprep.mubr.bf16.mxu0 0
      %502 = vmatmul.mubr.bf16.gmra.mrb[0].mxu0 %v394
      %v503 = vpop.f32.mrb[0].mxu0
      %v504 = vadd.f32 0.0, %v503
      %v505 = vpop.f32.mrb[0].mxu0
      %v506 = vpop.f32.mrb[0].mxu0
      %v507 = vadd.f32 0.0, %v506
      %v508 = vpop.f32.mrb[0].mxu0
      %509 = vmatprep.mubr.bf16.mxu0 0
      %510 = vmatmul.mubr.bf16.gmra.mrb[0].mxu0 %v395
      %v511 = vpop.f32.mrb[0].mxu0
      %v512 = vadd.f32 0.0, %v511
      %v513 = vpop.f32.mrb[0].mxu0
      %v514 = vpop.f32.mrb[0].mxu0
      %v515 = vadd.f32 0.0, %v514
      %v516 = vpop.f32.mrb[0].mxu0
      %517 = vmatprep.mubr.bf16.mxu0 0
      %518 = vmatmul.mubr.bf16.gmra.mrb[0].mxu0 %v396
      %v519 = vpop.f32.mrb[0].mxu0
      %v520 = vadd.f32 0.0, %v519
      %v521 = vpop.f32.mrb[0].mxu0
      %v522 = vpop.f32.mrb[0].mxu0
      %v523 = vadd.f32 0.0, %v522
      %v524 = vpop.f32.mrb[0].mxu0
      %525 = vdwg.mxu0
      %v526 = vadd.f32 %v385, %v496
      %v527 = vadd.f32 %v386, %v499
      %v528 = vadd.f32 %v387, %v504
      %v529 = vadd.f32 %v388, %v507
      %v530 = vadd.f32 %v389, %v512
      %v531 = vadd.f32 %v390, %v515
      %v532 = vadd.f32 %v391, %v520
      %v533 = vadd.f32 %v392, %v523
      %534 = vst [vmem:[#allocation2] sm:$0xff] %v526
      %535 = vst [vmem:[#allocation2 + $0x8] sm:$0xff] %v527
      %536 = vst [vmem:[#allocation2 + $0x10] sm:$0xff] %v528
      %537 = vst [vmem:[#allocation2 + $0x18] sm:$0xff] %v529
      %538 = vst [vmem:[#allocation2 + $0x20] sm:$0xff] %v530
      %539 = vst [vmem:[#allocation2 + $0x28] sm:$0xff] %v531
      %540 = vst [vmem:[#allocation2 + $0x30] sm:$0xff] %v532
      %541 = vst [vmem:[#allocation2 + $0x38] sm:$0xff] %v533
      // Predicated region
      $region41: #{_lambda_.17} parent=35 // pred_check
        %p542 = pneg %p343
      $region42: #{_lambda_.17} parent=35 // pred_check_branch
        %544 = sbr.rel (%p542) target = $region44
      $region43: #{_lambda_.17} parent=35 // pred_region
        %v545 = vld [vmem:[#allocation2] sm:$0xff]
        %v546 = vld [vmem:[#allocation2 + $0x8] sm:$0xff]
        %v547 = vld [vmem:[#allocation2 + $0x10] sm:$0xff]
        %v548 = vld [vmem:[#allocation2 + $0x18] sm:$0xff]
        %v549 = vld [vmem:[#allocation2 + $0x20] sm:$0xff]
        %v550 = vld [vmem:[#allocation2 + $0x28] sm:$0xff]
        %v551 = vld [vmem:[#allocation2 + $0x30] sm:$0xff]
        %v552 = vld [vmem:[#allocation2 + $0x38] sm:$0xff]
        %v553 = vld [vmem:[%s328] sm:$0x1]
        %v555 = vlaneseq
        %v556 = vshrl.u32 %v555, 7
        %v557 = vsub.s32 0, %v556
        %v558 = vrot.slane %v553, %v557
        %v560 = vadd.f32 %v545, %v558
        %v561 = vadd.f32 %v546, %v558
        %v562 = vadd.f32 %v547, %v558
        %v563 = vadd.f32 %v548, %v558
        %v564 = vadd.f32 %v549, %v558
        %v565 = vadd.f32 %v550, %v558
        %v566 = vadd.f32 %v551, %v558
        %v567 = vadd.f32 %v552, %v558
        %v568 = vpack.c.bf16 %v561, %v560
        %v569 = vpack.c.bf16 %v563, %v562
        %v570 = vpack.c.bf16 %v565, %v564
        %v571 = vpack.c.bf16 %v567, %v566
        %v576 = vunpack.c.l.b16 %v568
        %v577 = vunpack.c.h.b16 %v568
        %v578 = vunpack.c.l.b16 %v569
        %v579 = vunpack.c.h.b16 %v569
        %v580 = vunpack.c.l.b16 %v570
        %v581 = vunpack.c.h.b16 %v570
        %v582 = vunpack.c.l.b16 %v571
        %v583 = vunpack.c.h.b16 %v571
        %v584 = vpack.c.b16 %v576, %v576
        %v585 = vpack.c.b16 %v577, %v577
        %v586 = vpack.c.b16 %v578, %v578
        %v587 = vpack.c.b16 %v579, %v579
        %v588 = vpack.c.b16 %v580, %v580
        %v589 = vpack.c.b16 %v581, %v581
        %v590 = vpack.c.b16 %v582, %v582
        %v591 = vpack.c.b16 %v583, %v583
        %600 = vst [vmem:[%s340] sm:$0xf] %v584
        %601 = vst [vmem:[%s340 + $0x4] sm:$0xf] %v585
        %602 = vst [vmem:[%s340 + $0x8] sm:$0xf] %v586
        %603 = vst [vmem:[%s340 + $0xc] sm:$0xf] %v587
        %604 = vst [vmem:[%s340 + $0x10] sm:$0xf] %v588
        %605 = vst [vmem:[%s340 + $0x14] sm:$0xf] %v589
        %606 = vst [vmem:[%s340 + $0x18] sm:$0xf] %v590
        %607 = vst [vmem:[%s340 + $0x1c] sm:$0xf] %v591
      $region44: #{_lambda_.17} parent=35 // pred_fallthru
        _
      %s608 = smul.u32 8, %s22
      %p609 = scmp.lt.s32.totalorder %s21, 1
      %s610 = scalar_select %p609, %s21, 1
      %p611 = scmp.lt.s32.totalorder %s608, 7
      %s612 = scalar_select %p611, %s608, 7
      %p613 = scmp.lt.s32.totalorder %s23, 0
      %s614 = scalar_select %p613, %s23, 0
      %s615 = sadd.s32 %s614, %s612
      %s616 = smul.addr %s610, 8
      %s617 = sadd.s32 %s615, %s616
      %s618 = smul.addr %s617, 4
      %s619 = scalar_lea.vmem %s4, %s618
      // Predicated region
      $region45: #{_lambda_.17} parent=35 // pred_check
        %p620 = pneg %p175
      $region46: #{_lambda_.17} parent=35 // pred_check_branch
        %622 = sbr.rel (%p620) target = $region48
      $region47: #{_lambda_.17} parent=35 // pred_region
        %s623 = smul.u32 8, %s22
      $region48: #{_lambda_.17} parent=35 // pred_fallthru
        _
    $region36: #{_lambda_.17} parent=5 // pred_fallthru
      _
    %p624 = scmp.le.s32.totalorder 2, %s10
    // Predicated region
    $region49: #{_lambda_.17} parent=5 // pred_check
      %p625 = pneg %p624
    $region50: #{_lambda_.17} parent=5 // pred_check_branch
      %627 = sbr.rel (%p625) target = $region52
    $region51: #{_lambda_.17} parent=5 // pred_region
      %s628 = ssub.s32 %s10, 2
      // Predicated region
      $region53: #{_lambda_.17} parent=51 // pred_check
        %p629 = pneg %p181
      $region54: #{_lambda_.17} parent=51 // pred_check_branch
        %631 = sbr.rel (%p629) target = $region56
      $region55: #{_lambda_.17} parent=51 // pred_region
        %s632 = smul.u32 8, %s26
        %p633 = scmp.lt.s32.totalorder %s25, 1
        %s634 = scalar_select %p633, %s25, 1
        %p635 = scmp.lt.s32.totalorder %s632, 7
        %s636 = scalar_select %p635, %s632, 7
        %p637 = scmp.lt.s32.totalorder %s27, 0
        %s638 = scalar_select %p637, %s27, 0
        %s639 = sadd.s32 %s638, %s636
        %s640 = smul.addr %s634, 8
        %s641 = sadd.s32 %s639, %s640
        %s642 = smul.addr %s641, 4
        %s643 = scalar_lea.vmem %s4, %s642
      $region56: #{_lambda_.17} parent=51 // pred_fallthru
        _
    $region52: #{_lambda_.17} parent=5 // pred_fallthru
      _
  $region6: #{_lambda_.17} parent=0 // loop_footer
    %s14 = sadd.s32 1, %s10
  $region7: #{_lambda_.17} parent=0 // loop_footer_branch
    %9 = sbr.rel target = $region3
  $region8: #{_lambda_.17} parent=0 // loop_exit
    _

// kernel: _lambda_.19
$region0: #{_lambda_.19}
  #allocation0 [shape = 'u32[]', space=smem, size = 0x4, offset = 0x4, fixed_abs, tag = 'smem constant byte address 0x4 - core index']
  #allocation1 [shape = 'u32[144,128]{1,0:T(1,128)}', space=vmem, size = 0x12000, scoped, tag = 'internal scratch']
  %s0 = inlined_call_operand.vmem [shape: bf16[9,32,128], index: 0, kind: input, shape index: {}]
  %s1 = inlined_call_operand.vmem [shape: bf16[9,1,128], index: 1, kind: input, shape index: {}]
  %s2 = inlined_call_operand.vmem [shape: f32[1,128], index: 2, kind: input, shape index: {}]
  %s3 = inlined_call_operand.vmem [shape: bf16[32,128], index: 3, kind: output, shape index: {}]
  %s4 = sld [smem:[#allocation0]]
  $region22: #{_lambda_.19} parent=0
    _
  %s6 = ssub.s32 1, %s4
  %s7 = scalar_select 0, %s6, %s4
  // Predicated region
  $region2: #{_lambda_.19} parent=0 // pred_check
    _
  $region3: #{_lambda_.19} parent=0 // pred_check_branch
    %9 = sbr.rel (0) target = $region5
  $region4: #{_lambda_.19} parent=0 // pred_region
    _
  $region5: #{_lambda_.19} parent=0 // pred_fallthru
    _
  // Predicated region
  $region6: #{_lambda_.19} parent=0 // pred_check
    _
  $region7: #{_lambda_.19} parent=0 // pred_check_branch
    %11 = sbr.rel (0) target = $region9
  $region8: #{_lambda_.19} parent=0 // pred_region
    _
  $region9: #{_lambda_.19} parent=0 // pred_fallthru
    _
  // Predicated region
  $region10: #{_lambda_.19} parent=0 // pred_check
    _
  $region11: #{_lambda_.19} parent=0 // pred_check_branch
    %13 = sbr.rel (0) target = $region13
  $region12: #{_lambda_.19} parent=0 // pred_region
    _
  $region13: #{_lambda_.19} parent=0 // pred_fallthru
    _
  %v14 = vld [vmem:[%s0] sm:$0xf]
  %v15 = vld [vmem:[%s0 + $0x4] sm:$0xf]
  %v16 = vld [vmem:[%s0 + $0x8] sm:$0xf]
  %v17 = vld [vmem:[%s0 + $0xc] sm:$0xf]
  %v18 = vld [vmem:[%s0 + $0x10] sm:$0xf]
  %v19 = vld [vmem:[%s0 + $0x14] sm:$0xf]
  %v20 = vld [vmem:[%s0 + $0x18] sm:$0xf]
  %v21 = vld [vmem:[%s0 + $0x1c] sm:$0xf]
  %v22 = vld [vmem:[%s0 + $0x20] sm:$0xf]
  %v23 = vld [vmem:[%s0 + $0x24] sm:$0xf]
  %v24 = vld [vmem:[%s0 + $0x28] sm:$0xf]
  %v25 = vld [vmem:[%s0 + $0x2c] sm:$0xf]
  %v26 = vld [vmem:[%s0 + $0x30] sm:$0xf]
  %v27 = vld [vmem:[%s0 + $0x34] sm:$0xf]
  %v28 = vld [vmem:[%s0 + $0x38] sm:$0xf]
  %v29 = vld [vmem:[%s0 + $0x3c] sm:$0xf]
  %v30 = vld [vmem:[%s0 + $0x40] sm:$0xf]
  %v31 = vld [vmem:[%s0 + $0x44] sm:$0xf]
  %v32 = vld [vmem:[%s0 + $0x48] sm:$0xf]
  %v33 = vld [vmem:[%s0 + $0x4c] sm:$0xf]
  %v34 = vld [vmem:[%s0 + $0x50] sm:$0xf]
  %v35 = vld [vmem:[%s0 + $0x54] sm:$0xf]
  %v36 = vld [vmem:[%s0 + $0x58] sm:$0xf]
  %v37 = vld [vmem:[%s0 + $0x5c] sm:$0xf]
  %v38 = vld [vmem:[%s0 + $0x60] sm:$0xf]
  %v39 = vld [vmem:[%s0 + $0x64] sm:$0xf]
  %v40 = vld [vmem:[%s0 + $0x68] sm:$0xf]
  %v41 = vld [vmem:[%s0 + $0x6c] sm:$0xf]
  %v42 = vld [vmem:[%s0 + $0x70] sm:$0xf]
  %v43 = vld [vmem:[%s0 + $0x74] sm:$0xf]
  %v44 = vld [vmem:[%s0 + $0x78] sm:$0xf]
  %v45 = vld [vmem:[%s0 + $0x7c] sm:$0xf]
  %v46 = vld [vmem:[%s0 + $0x80] sm:$0xf]
  %v47 = vld [vmem:[%s0 + $0x84] sm:$0xf]
  %v48 = vld [vmem:[%s0 + $0x88] sm:$0xf]
  %v49 = vld [vmem:[%s0 + $0x8c] sm:$0xf]
  %v50 = vunpack.c.l.bf16 %v14
  %v51 = vunpack.c.l.bf16 %v15
  %v52 = vunpack.c.l.bf16 %v16
  %v53 = vunpack.c.l.bf16 %v17
  %v54 = vunpack.c.l.bf16 %v18
  %v55 = vunpack.c.l.bf16 %v19
  %v56 = vunpack.c.l.bf16 %v20
  %v57 = vunpack.c.l.bf16 %v21
  %v58 = vunpack.c.l.bf16 %v22
  %v59 = vunpack.c.l.bf16 %v23
  %v60 = vunpack.c.l.bf16 %v24
  %v61 = vunpack.c.l.bf16 %v25
  %v62 = vunpack.c.l.bf16 %v26
  %v63 = vunpack.c.l.bf16 %v27
  %v64 = vunpack.c.l.bf16 %v28
  %v65 = vunpack.c.l.bf16 %v29
  %v66 = vunpack.c.l.bf16 %v30
  %v67 = vunpack.c.l.bf16 %v31
  %v68 = vunpack.c.l.bf16 %v32
  %v69 = vunpack.c.l.bf16 %v33
  %v70 = vunpack.c.l.bf16 %v34
  %v71 = vunpack.c.l.bf16 %v35
  %v72 = vunpack.c.l.bf16 %v36
  %v73 = vunpack.c.l.bf16 %v37
  %v74 = vunpack.c.l.bf16 %v38
  %v75 = vunpack.c.l.bf16 %v39
  %v76 = vunpack.c.l.bf16 %v40
  %v77 = vunpack.c.l.bf16 %v41
  %v78 = vunpack.c.l.bf16 %v42
  %v79 = vunpack.c.l.bf16 %v43
  %v80 = vunpack.c.l.bf16 %v44
  %v81 = vunpack.c.l.bf16 %v45
  %v82 = vunpack.c.l.bf16 %v46
  %v83 = vunpack.c.l.bf16 %v47
  %v84 = vunpack.c.l.bf16 %v48
  %v85 = vunpack.c.l.bf16 %v49
  %v86 = vld [vmem:[%s1] sm:$0x1]
  %v87 = vld [vmem:[%s1 + $0x1] sm:$0x1]
  %v88 = vld [vmem:[%s1 + $0x2] sm:$0x1]
  %v89 = vld [vmem:[%s1 + $0x3] sm:$0x1]
  %v90 = vld [vmem:[%s1 + $0x4] sm:$0x1]
  %v91 = vld [vmem:[%s1 + $0x5] sm:$0x1]
  %v92 = vld [vmem:[%s1 + $0x6] sm:$0x1]
  %v93 = vld [vmem:[%s1 + $0x7] sm:$0x1]
  %v94 = vld [vmem:[%s1 + $0x8] sm:$0x1]
  %v95 = vunpack.c.l.bf16 %v86
  %v96 = vunpack.c.l.bf16 %v87
  %v97 = vunpack.c.l.bf16 %v88
  %v98 = vunpack.c.l.bf16 %v89
  %v99 = vunpack.c.l.bf16 %v90
  %v100 = vunpack.c.l.bf16 %v91
  %v101 = vunpack.c.l.bf16 %v92
  %v102 = vunpack.c.l.bf16 %v93
  %v103 = vunpack.c.l.bf16 %v94
  %v104 = vlaneseq
  %v105 = vshrl.u32 %v104, 7
  %v106 = vsub.s32 0, %v105
  %v107 = vrot.slane %v95, %v106
  %v108 = vlaneseq
  %v109 = vshrl.u32 %v108, 7
  %v110 = vsub.s32 0, %v109
  %v111 = vrot.slane %v96, %v110
  %v112 = vlaneseq
  %v113 = vshrl.u32 %v112, 7
  %v114 = vsub.s32 0, %v113
  %v115 = vrot.slane %v97, %v114
  %v116 = vlaneseq
  %v117 = vshrl.u32 %v116, 7
  %v118 = vsub.s32 0, %v117
  %v119 = vrot.slane %v98, %v118
  %v120 = vlaneseq
  %v121 = vshrl.u32 %v120, 7
  %v122 = vsub.s32 0, %v121
  %v123 = vrot.slane %v99, %v122
  %v124 = vlaneseq
  %v125 = vshrl.u32 %v124, 7
  %v126 = vsub.s32 0, %v125
  %v127 = vrot.slane %v100, %v126
  %v128 = vlaneseq
  %v129 = vshrl.u32 %v128, 7
  %v130 = vsub.s32 0, %v129
  %v131 = vrot.slane %v101, %v130
  %v132 = vlaneseq
  %v133 = vshrl.u32 %v132, 7
  %v134 = vsub.s32 0, %v133
  %v135 = vrot.slane %v102, %v134
  %v136 = vlaneseq
  %v137 = vshrl.u32 %v136, 7
  %v138 = vsub.s32 0, %v137
  %v139 = vrot.slane %v103, %v138
  %v140 = vmul.f32 %v50, %v107
  %v141 = vmul.f32 %v51, %v107
  %v142 = vmul.f32 %v52, %v107
  %v143 = vmul.f32 %v53, %v107
  %v144 = vmul.f32 %v54, %v111
  %v145 = vmul.f32 %v55, %v111
  %v146 = vmul.f32 %v56, %v111
  %v147 = vmul.f32 %v57, %v111
  %v148 = vmul.f32 %v58, %v115
  %v149 = vmul.f32 %v59, %v115
  %v150 = vmul.f32 %v60, %v115
  %v151 = vmul.f32 %v61, %v115
  %v152 = vmul.f32 %v62, %v119
  %v153 = vmul.f32 %v63, %v119
  %v154 = vmul.f32 %v64, %v119
  %v155 = vmul.f32 %v65, %v119
  %v156 = vmul.f32 %v66, %v123
  %v157 = vmul.f32 %v67, %v123
  %v158 = vmul.f32 %v68, %v123
  %v159 = vmul.f32 %v69, %v123
  %v160 = vmul.f32 %v70, %v127
  %v161 = vmul.f32 %v71, %v127
  %v162 = vmul.f32 %v72, %v127
  %v163 = vmul.f32 %v73, %v127
  %v164 = vmul.f32 %v74, %v131
  %v165 = vmul.f32 %v75, %v131
  %v166 = vmul.f32 %v76, %v131
  %v167 = vmul.f32 %v77, %v131
  %v168 = vmul.f32 %v78, %v135
  %v169 = vmul.f32 %v79, %v135
  %v170 = vmul.f32 %v80, %v135
  %v171 = vmul.f32 %v81, %v135
  %v172 = vmul.f32 %v82, %v139
  %v173 = vmul.f32 %v83, %v139
  %v174 = vmul.f32 %v84, %v139
  %v175 = vmul.f32 %v85, %v139
  %v176 = vadd.f32 %v140, %v144
  %v177 = vadd.f32 %v176, %v148
  %v178 = vadd.f32 %v177, %v152
  %v179 = vadd.f32 %v178, %v156
  %v180 = vadd.f32 %v179, %v160
  %v181 = vadd.f32 %v180, %v164
  %v182 = vadd.f32 %v181, %v168
  %v183 = vadd.f32 %v182, %v172
  %v184 = vadd.f32 %v141, %v145
  %v185 = vadd.f32 %v184, %v149
  %v186 = vadd.f32 %v185, %v153
  %v187 = vadd.f32 %v186, %v157
  %v188 = vadd.f32 %v187, %v161
  %v189 = vadd.f32 %v188, %v165
  %v190 = vadd.f32 %v189, %v169
  %v191 = vadd.f32 %v190, %v173
  %v192 = vadd.f32 %v142, %v146
  %v193 = vadd.f32 %v192, %v150
  %v194 = vadd.f32 %v193, %v154
  %v195 = vadd.f32 %v194, %v158
  %v196 = vadd.f32 %v195, %v162
  %v197 = vadd.f32 %v196, %v166
  %v198 = vadd.f32 %v197, %v170
  %v199 = vadd.f32 %v198, %v174
  %v200 = vadd.f32 %v143, %v147
  %v201 = vadd.f32 %v200, %v151
  %v202 = vadd.f32 %v201, %v155
  %v203 = vadd.f32 %v202, %v159
  %v204 = vadd.f32 %v203, %v163
  %v205 = vadd.f32 %v204, %v167
  %v206 = vadd.f32 %v205, %v171
  %v207 = vadd.f32 %v206, %v175
  %v208 = vld [vmem:[%s2] sm:$0x1]
  %v210 = vlaneseq
  %v211 = vshrl.u32 %v210, 7
  %v212 = vsub.s32 0, %v211
  %v213 = vrot.slane %v208, %v212
  %v215 = vadd.f32 %v183, %v213
  %v216 = vadd.f32 %v191, %v213
  %v217 = vadd.f32 %v199, %v213
  %v218 = vadd.f32 %v207, %v213
  %v219 = vxor.u32 %v215, 2147483648
  %v220 = vxor.u32 %v216, 2147483648
  %v221 = vxor.u32 %v217, 2147483648
  %v222 = vxor.u32 %v218, 2147483648
  %v223 = vmul.f32 %v219, 1.442695
  %v224 = vpow.pop %v223
  %v225 = vmul.f32 %v220, 1.442695
  %v226 = vpow.pop %v225
  %v227 = vmul.f32 %v221, 1.442695
  %v228 = vpow.pop %v227
  %v229 = vmul.f32 %v222, 1.442695
  %v230 = vpow.pop %v229
  %v231 = vadd.f32 %v224, 1.0
  %v232 = vadd.f32 %v226, 1.0
  %v233 = vadd.f32 %v228, 1.0
  %v234 = vadd.f32 %v230, 1.0
  %v235 = vrcp.pop %v231
  %v236 = vmul.f32 1.0, %v235
  %v237 = vrcp.pop %v232
  %v238 = vmul.f32 1.0, %v237
  %v239 = vrcp.pop %v233
  %v240 = vmul.f32 1.0, %v239
  %v241 = vrcp.pop %v234
  %v242 = vmul.f32 1.0, %v241
  %v243 = vmul.f32 %v215, %v236
  %v244 = vmul.f32 %v216, %v238
  %v245 = vmul.f32 %v217, %v240
  %v246 = vmul.f32 %v218, %v242
  %v247 = vpack.c.bf16 %v244, %v243
  %v248 = vpack.c.bf16 %v246, %v245
  %v251 = vunpack.c.l.b16 %v247
  %v252 = vunpack.c.h.b16 %v247
  %v253 = vunpack.c.l.b16 %v248
  %v254 = vunpack.c.h.b16 %v248
  %v255 = vpack.c.b16 %v251, %v251
  %v256 = vpack.c.b16 %v252, %v252
  %v257 = vpack.c.b16 %v253, %v253
  %v258 = vpack.c.b16 %v254, %v254
  %263 = vst [vmem:[%s3] sm:$0xf] %v255
  %264 = vst [vmem:[%s3 + $0x4] sm:$0xf] %v256
  %265 = vst [vmem:[%s3 + $0x8] sm:$0xf] %v257
  %266 = vst [vmem:[%s3 + $0xc] sm:$0xf] %v258
  // Predicated region
  $region14: #{_lambda_.19} parent=0 // pred_check
    _
  $region15: #{_lambda_.19} parent=0 // pred_check_branch
    %268 = sbr.rel (0) target = $region17
  $region16: #{_lambda_.19} parent=0 // pred_region
    _
  $region17: #{_lambda_.19} parent=0 // pred_fallthru
    _
  // Predicated region
  $region18: #{_lambda_.19} parent=0 // pred_check
    _
  $region19: #{_lambda_.19} parent=0 // pred_check_branch
    %270 = sbr.rel (0) target = $region21
  $region20: #{_lambda_.19} parent=0 // pred_region
    _
  $region21: #{_lambda_.19} parent=0 // pred_fallthru
    _

// kernel: _lambda_.20
$region0: #{_lambda_.20}
  #allocation0 [shape = 'u32[]', space=smem, size = 0x4, offset = 0x4, fixed_abs, tag = 'smem constant byte address 0x4 - core index']
  #allocation1 [shape = 'u32[144,128]{1,0:T(1,128)}', space=vmem, size = 0x12000, scoped, tag = 'internal scratch']
  %s0 = inlined_call_operand.vmem [shape: bf16[2,16,128], index: 0, kind: input, shape index: {}]
  %s1 = inlined_call_operand.vmem [shape: bf16[128,128], index: 1, kind: input, shape index: {}]
  %s2 = inlined_call_operand.vmem [shape: f32[1,128], index: 2, kind: input, shape index: {}, may-alias: {2,4}]
  %s3 = inlined_call_operand.vmem [shape: bf16[128,128], index: 3, kind: input, shape index: {}]
  %s4 = inlined_call_operand.vmem [shape: f32[1,128], index: 4, kind: input, shape index: {}, may-alias: {2,4}]
  %s5 = inlined_call_operand.vmem [shape: bf16[2,1,128], index: 5, kind: output, shape index: {}]
  %s6 = sld [smem:[#allocation0]]
  $region53: #{_lambda_.20} parent=0
    _
  %s8 = ssub.s32 1, %s6
  %s9 = scalar_select 0, %s8, %s6
  loop: start=0, step=1, limit=4
  $region2: #{_lambda_.20} parent=0 // loop_pre_header
    _
  $region3: #{_lambda_.20} parent=0 // loop_header
    %s11 = sphi 0, %s15
    %p12 = scmp.ge.s32.totalorder %s11, 4
    %s21 = sphi 0, %s23
    %s24 = sphi 0, %s21
    %s25 = sphi 0, %s24
    %s41 = sphi 0, %s25
    %s45 = sphi 0, %s45
    %s47 = sphi 0, %s45
    %s48 = sphi 0, %s47
    %s62 = sphi 0, %s48
    %s66 = sphi 0, %s66
    %s68 = sphi 0, %s66
    %s69 = sphi 0, %s68
    %s83 = sphi 0, %s69
    %s87 = sphi 0, %s87
    %s89 = sphi 0, %s87
    %s90 = sphi 0, %s89
    %s104 = sphi 0, %s90
    %s108 = sphi 0, %s108
    %s110 = sphi 0, %s108
    %s111 = sphi 0, %s110
    %s125 = sphi 0, %s111
    %s131 = sphi 0, %s133
    %s134 = sphi 0, %s131
    %s135 = sphi 0, %s134
    %s151 = sphi 0, %s135
  $region4: #{_lambda_.20} parent=0 // loop_header_branch
    %14 = sbr.rel (%p12) target = $region8
  $region5: #{_lambda_.20} parent=0 // loop_body
    %s16 = ssub.s32 %s11, 1
    %s17 = ssub.s32 %s11, 2
    %s18 = sadd.s32 %s11, 1
    %s19 = ssub.s32 %s11, %s18
    %p20 = scmp.eq.s32.totalorder %s19, 0
    %s22 = sadd.s32 %s21, 1
    %s23 = scalar_select %p20, %s21, %s22
    %p26 = pneg %p20
    %p27 = scmp.eq.s32.totalorder %s11, 1
    %p28 = por %p26, %p27
    %p29 = scmp.ne.s32.totalorder %s21, %s24
    %p30 = scmp.eq.s32.totalorder %s11, 0
    %p31 = por %p29, %p30
    %p32 = scmp.ne.s32.totalorder %s21, %s24
    %p33 = scmp.eq.s32.totalorder %s16, 1
    %p34 = por %p32, %p33
    %p35 = scmp.ne.s32.totalorder %s24, %s25
    %p36 = scmp.eq.s32.totalorder %s16, 0
    %p37 = por %p35, %p36
    %p38 = scmp.ne.s32.totalorder %s24, %s25
    %p39 = scmp.eq.s32.totalorder %s17, 1
    %p40 = por %p38, %p39
    %p42 = scmp.ne.s32.totalorder %s25, %s41
    %p43 = scmp.eq.s32.totalorder %s17, 0
    %p44 = por %p42, %p43
    %s46 = sadd.s32 %s45, 1
    %p49 = scmp.eq.s32.totalorder %s11, 1
    %p50 = scmp.ne.s32.totalorder %s45, %s47
    %p51 = scmp.eq.s32.totalorder %s11, 0
    %p52 = por %p50, %p51
    %p53 = scmp.ne.s32.totalorder %s45, %s47
    %p54 = scmp.eq.s32.totalorder %s16, 1
    %p55 = por %p53, %p54
    %p56 = scmp.ne.s32.totalorder %s47, %s48
    %p57 = scmp.eq.s32.totalorder %s16, 0
    %p58 = por %p56, %p57
    %p59 = scmp.ne.s32.totalorder %s47, %s48
    %p60 = scmp.eq.s32.totalorder %s17, 1
    %p61 = por %p59, %p60
    %p63 = scmp.ne.s32.totalorder %s48, %s62
    %p64 = scmp.eq.s32.totalorder %s17, 0
    %p65 = por %p63, %p64
    %s67 = sadd.s32 %s66, 1
    %p70 = scmp.eq.s32.totalorder %s11, 1
    %p71 = scmp.ne.s32.totalorder %s66, %s68
    %p72 = scmp.eq.s32.totalorder %s11, 0
    %p73 = por %p71, %p72
    %p74 = scmp.ne.s32.totalorder %s66, %s68
    %p75 = scmp.eq.s32.totalorder %s16, 1
    %p76 = por %p74, %p75
    %p77 = scmp.ne.s32.totalorder %s68, %s69
    %p78 = scmp.eq.s32.totalorder %s16, 0
    %p79 = por %p77, %p78
    %p80 = scmp.ne.s32.totalorder %s68, %s69
    %p81 = scmp.eq.s32.totalorder %s17, 1
    %p82 = por %p80, %p81
    %p84 = scmp.ne.s32.totalorder %s69, %s83
    %p85 = scmp.eq.s32.totalorder %s17, 0
    %p86 = por %p84, %p85
    %s88 = sadd.s32 %s87, 1
    %p91 = scmp.eq.s32.totalorder %s11, 1
    %p92 = scmp.ne.s32.totalorder %s87, %s89
    %p93 = scmp.eq.s32.totalorder %s11, 0
    %p94 = por %p92, %p93
    %p95 = scmp.ne.s32.totalorder %s87, %s89
    %p96 = scmp.eq.s32.totalorder %s16, 1
    %p97 = por %p95, %p96
    %p98 = scmp.ne.s32.totalorder %s89, %s90
    %p99 = scmp.eq.s32.totalorder %s16, 0
    %p100 = por %p98, %p99
    %p101 = scmp.ne.s32.totalorder %s89, %s90
    %p102 = scmp.eq.s32.totalorder %s17, 1
    %p103 = por %p101, %p102
    %p105 = scmp.ne.s32.totalorder %s90, %s104
    %p106 = scmp.eq.s32.totalorder %s17, 0
    %p107 = por %p105, %p106
    %s109 = sadd.s32 %s108, 1
    %p112 = scmp.eq.s32.totalorder %s11, 1
    %p113 = scmp.ne.s32.totalorder %s108, %s110
    %p114 = scmp.eq.s32.totalorder %s11, 0
    %p115 = por %p113, %p114
    %p116 = scmp.ne.s32.totalorder %s108, %s110
    %p117 = scmp.eq.s32.totalorder %s16, 1
    %p118 = por %p116, %p117
    %p119 = scmp.ne.s32.totalorder %s110, %s111
    %p120 = scmp.eq.s32.totalorder %s16, 0
    %p121 = por %p119, %p120
    %p122 = scmp.ne.s32.totalorder %s110, %s111
    %p123 = scmp.eq.s32.totalorder %s17, 1
    %p124 = por %p122, %p123
    %p126 = scmp.ne.s32.totalorder %s111, %s125
    %p127 = scmp.eq.s32.totalorder %s17, 0
    %p128 = por %p126, %p127
    %s129 = ssub.s32 %s11, %s18
    %p130 = scmp.eq.s32.totalorder %s129, 0
    %s132 = sadd.s32 %s131, 1
    %s133 = scalar_select %p130, %s131, %s132
    %p136 = pneg %p130
    %p137 = scmp.eq.s32.totalorder %s11, 1
    %p138 = por %p136, %p137
    %p139 = scmp.ne.s32.totalorder %s131, %s134
    %p140 = scmp.eq.s32.totalorder %s11, 0
    %p141 = por %p139, %p140
    %p142 = scmp.ne.s32.totalorder %s131, %s134
    %p143 = scmp.eq.s32.totalorder %s16, 1
    %p144 = por %p142, %p143
    %p145 = scmp.ne.s32.totalorder %s134, %s135
    %p146 = scmp.eq.s32.totalorder %s16, 0
    %p147 = por %p145, %p146
    %p148 = scmp.ne.s32.totalorder %s134, %s135
    %p149 = scmp.eq.s32.totalorder %s17, 1
    %p150 = por %p148, %p149
    %p152 = scmp.ne.s32.totalorder %s135, %s151
    %p153 = scmp.eq.s32.totalorder %s17, 0
    %p154 = por %p152, %p153
    %p155 = scmp.le.s32.totalorder 1, %s11
    %p156 = scmp.lt.s32.totalorder %s11, 3
    %p157 = pnand %p155, %p156
    %p158 = pneg %p157
    // Predicated region
    $region9: #{_lambda_.20} parent=5 // pred_check
      _
    $region10: #{_lambda_.20} parent=5 // pred_check_branch
      %160 = sbr.rel (%p157) target = $region12
    $region11: #{_lambda_.20} parent=5 // pred_region
      %s161 = ssub.s32 %s11, 1
      // Predicated region
      $region13: #{_lambda_.20} parent=11 // pred_check
        %p162 = pneg %p58
      $region14: #{_lambda_.20} parent=11 // pred_check_branch
        %164 = sbr.rel (%p162) target = $region16
      $region15: #{_lambda_.20} parent=11 // pred_region
        _
      $region16: #{_lambda_.20} parent=11 // pred_fallthru
        _
      // Predicated region
      $region17: #{_lambda_.20} parent=11 // pred_check
        %p165 = pneg %p79
      $region18: #{_lambda_.20} parent=11 // pred_check_branch
        %167 = sbr.rel (%p165) target = $region20
      $region19: #{_lambda_.20} parent=11 // pred_region
        _
      $region20: #{_lambda_.20} parent=11 // pred_fallthru
        _
      // Predicated region
      $region21: #{_lambda_.20} parent=11 // pred_check
        %p168 = pneg %p100
      $region22: #{_lambda_.20} parent=11 // pred_check_branch
        %170 = sbr.rel (%p168) target = $region24
      $region23: #{_lambda_.20} parent=11 // pred_region
        _
      $region24: #{_lambda_.20} parent=11 // pred_fallthru
        _
      // Predicated region
      $region25: #{_lambda_.20} parent=11 // pred_check
        %p171 = pneg %p121
      $region26: #{_lambda_.20} parent=11 // pred_check_branch
        %173 = sbr.rel (%p171) target = $region28
      $region27: #{_lambda_.20} parent=11 // pred_region
        _
      $region28: #{_lambda_.20} parent=11 // pred_fallthru
        _
    $region12: #{_lambda_.20} parent=5 // pred_fallthru
      _
    %p174 = scmp.lt.s32.totalorder %s11, 2
    // Predicated region
    $region29: #{_lambda_.20} parent=5 // pred_check
      %p175 = pneg %p174
    $region30: #{_lambda_.20} parent=5 // pred_check_branch
      %177 = sbr.rel (%p175) target = $region32
    $region31: #{_lambda_.20} parent=5 // pred_region
      // Predicated region
      $region33: #{_lambda_.20} parent=31 // pred_check
        %p178 = pneg %p31
      $region34: #{_lambda_.20} parent=31 // pred_check_branch
        %180 = sbr.rel (%p178) target = $region36
      $region35: #{_lambda_.20} parent=31 // pred_region
        %p181 = scmp.lt.s32.totalorder %s11, 1
        %s182 = scalar_select %p181, %s11, 1
        %s183 = smul.addr %s182, 2
        %s184 = smul.addr %s183, 4
        %s185 = scalar_lea.vmem %s0, %s184
      $region36: #{_lambda_.20} parent=31 // pred_fallthru
        _
    $region32: #{_lambda_.20} parent=5 // pred_fallthru
      _
    %p186 = scmp.le.s32.totalorder 1, %s11
    %p187 = scmp.lt.s32.totalorder %s11, 3
    %p188 = pnand %p186, %p187
    %p189 = pneg %p188
    // Predicated region
    $region37: #{_lambda_.20} parent=5 // pred_check
      _
    $region38: #{_lambda_.20} parent=5 // pred_check_branch
      %191 = sbr.rel (%p188) target = $region40
    $region39: #{_lambda_.20} parent=5 // pred_region
      %s192 = ssub.s32 %s11, 1
      %p193 = scmp.lt.s32.totalorder %s16, 1
      %s194 = scalar_select %p193, %s16, 1
      %s195 = smul.addr %s194, 2
      %s196 = smul.addr %s195, 4
      %s197 = scalar_lea.vmem %s0, %s196
      %p198 = pneg %p37
      %p199 = pneg %p34
      %p200 = pneg %p58
      %p201 = pneg %p55
      %p202 = pneg %p79
      %p203 = pneg %p76
      %p204 = pneg %p100
      %p205 = pneg %p97
      %p206 = pneg %p121
      %p207 = pneg %p118
      %p208 = pneg %p147
      %p209 = pneg %p144
      %p210 = scmp.lt.s32.totalorder %s16, 1
      %s211 = scalar_select %p210, %s16, 1
      %s212 = scalar_lea.vmem %s5, %s211
      %p213 = scmp.lt.s32.totalorder %s16, 1
      %s214 = scalar_select %p213, %s16, 1
      %s215 = smul.addr %s214, 2
      %s216 = smul.addr %s215, 4
      %s217 = scalar_lea.vmem %s0, %s216
      %p218 = scmp.lt.s32.totalorder %s16, 1
      %s219 = scalar_select %p218, %s16, 1
      %s220 = scalar_lea.vmem %s5, %s219
      %v222 = vld [vmem:[%s217] sm:$0xf]
      %v223 = vld [vmem:[%s217 + $0x4] sm:$0xf]
      %v224 = vunpack.c.l.bf16 %v222
      %v225 = vunpack.c.l.bf16 %v223
      %v226 = vadd.f32 %v224, %v225
      %v227 = vrot.slane %v226, 4
      %v228 = vadd.f32 %v226, %v227
      %v229 = vrot.slane %v228, 2
      %v230 = vadd.f32 %v228, %v229
      %v231 = vrot.slane %v230, 1
      %v232 = vadd.f32 %v230, %v231
      %v233 = vrcp.pop 16.0
      %v234 = vmul.f32 %v232, %v233
      %v235 = vpack.c.bf16 %v234, %v234
      %v236 = vld [vmem:[%s1] sm:$0xf]
      %v237 = vld [vmem:[%s1 + $0x4] sm:$0xf]
      %v238 = vld [vmem:[%s1 + $0x8] sm:$0xf]
      %v239 = vld [vmem:[%s1 + $0xc] sm:$0xf]
      %v240 = vld [vmem:[%s1 + $0x10] sm:$0xf]
      %v241 = vld [vmem:[%s1 + $0x14] sm:$0xf]
      %v242 = vld [vmem:[%s1 + $0x18] sm:$0xf]
      %v243 = vld [vmem:[%s1 + $0x1c] sm:$0xf]
      %v244 = vld [vmem:[%s1 + $0x20] sm:$0xf]
      %v245 = vld [vmem:[%s1 + $0x24] sm:$0xf]
      %v246 = vld [vmem:[%s1 + $0x28] sm:$0xf]
      %v247 = vld [vmem:[%s1 + $0x2c] sm:$0xf]
      %v248 = vld [vmem:[%s1 + $0x30] sm:$0xf]
      %v249 = vld [vmem:[%s1 + $0x34] sm:$0xf]
      %v250 = vld [vmem:[%s1 + $0x38] sm:$0xf]
      %v251 = vld [vmem:[%s1 + $0x3c] sm:$0xf]
      %v252 = vld [vmem:[%s2] sm:$0x1]
      %v269 = vunpack.c.l.b16 %v236
      %v270 = vunpack.c.l.b16 %v237
      %v271 = vunpack.c.l.b16 %v238
      %v272 = vunpack.c.l.b16 %v239
      %v273 = vunpack.c.l.b16 %v240
      %v274 = vunpack.c.l.b16 %v241
      %v275 = vunpack.c.l.b16 %v242
      %v276 = vunpack.c.l.b16 %v243
      %v277 = vunpack.c.l.b16 %v244
      %v278 = vunpack.c.l.b16 %v245
      %v279 = vunpack.c.l.b16 %v246
      %v280 = vunpack.c.l.b16 %v247
      %v281 = vunpack.c.l.b16 %v248
      %v282 = vunpack.c.l.b16 %v249
      %v283 = vunpack.c.l.b16 %v250
      %v284 = vunpack.c.l.b16 %v251
      %v285 = vpack.c.b16 %v270, %v269
      %v286 = vpack.c.b16 %v272, %v271
      %v287 = vpack.c.b16 %v274, %v273
      %v288 = vpack.c.b16 %v276, %v275
      %v289 = vpack.c.b16 %v278, %v277
      %v290 = vpack.c.b16 %v280, %v279
      %v291 = vpack.c.b16 %v282, %v281
      %v292 = vpack.c.b16 %v284, %v283
      %301 = vmatprep.subr.bf16.mxu0 0
      %302 = vmatpush1.bf16.msra.mxu0 %v285
      %303 = vmatprep.subr.bf16.mxu0 0
      %304 = vmatpush1.bf16.msra.mxu0 %v286
      %305 = vmatprep.subr.bf16.mxu0 0
      %306 = vmatpush1.bf16.msra.mxu0 %v287
      %307 = vmatprep.subr.bf16.mxu0 0
      %308 = vmatpush1.bf16.msra.mxu0 %v288
      %309 = vmatprep.subr.bf16.mxu0 0
      %310 = vmatpush1.bf16.msra.mxu0 %v289
      %311 = vmatprep.subr.bf16.mxu0 0
      %312 = vmatpush1.bf16.msra.mxu0 %v290
      %313 = vmatprep.subr.bf16.mxu0 0
      %314 = vmatpush1.bf16.msra.mxu0 %v291
      %315 = vmatprep.subr.bf16.mxu0 0
      %316 = vmatpush1.bf16.msra.mxu0 %v292
      %317 = vmatprep.subr.bf16.mxu0 0
      %318 = vmatpush1.bf16.msra.mxu0 0
      %319 = vmatprep.subr.bf16.mxu0 0
      %320 = vmatpush1.bf16.msra.mxu0 0
      %321 = vmatprep.subr.bf16.mxu0 0
      %322 = vmatpush1.bf16.msra.mxu0 0
      %323 = vmatprep.subr.bf16.mxu0 0
      %324 = vmatpush1.bf16.msra.mxu0 0
      %325 = vmatprep.subr.bf16.mxu0 0
      %326 = vmatpush1.bf16.msra.mxu0 0
      %327 = vmatprep.subr.bf16.mxu0 0
      %328 = vmatpush1.bf16.msra.mxu0 0
      %329 = vmatprep.subr.bf16.mxu0 0
      %330 = vmatpush1.bf16.msra.mxu0 0
      %331 = vmatprep.subr.bf16.mxu0 0
      %332 = vmatpush1.bf16.msra.mxu0 0
      %333 = vmatprep.mubr.bf16.mxu0 0
      %334 = vmatmul.mubr.bf16.gmra.mrb[0].mxu0 %v235
      %v335 = vpop.f32.mrb[0].mxu0
      %v336 = vadd.f32 %v252, %v335
      %v337 = vpop.f32.mrb[0].mxu0
      %v338 = vpop.f32.mrb[0].mxu0
      %v339 = vpop.f32.mrb[0].mxu0
      %340 = vdwg.mxu0
      %v341 = vpack.c.bf16 %v336, %v336
      %v342 = vld [vmem:[%s3] sm:$0xf]
      %v343 = vld [vmem:[%s3 + $0x4] sm:$0xf]
      %v344 = vld [vmem:[%s3 + $0x8] sm:$0xf]
      %v345 = vld [vmem:[%s3 + $0xc] sm:$0xf]
      %v346 = vld [vmem:[%s3 + $0x10] sm:$0xf]
      %v347 = vld [vmem:[%s3 + $0x14] sm:$0xf]
      %v348 = vld [vmem:[%s3 + $0x18] sm:$0xf]
      %v349 = vld [vmem:[%s3 + $0x1c] sm:$0xf]
      %v350 = vld [vmem:[%s3 + $0x20] sm:$0xf]
      %v351 = vld [vmem:[%s3 + $0x24] sm:$0xf]
      %v352 = vld [vmem:[%s3 + $0x28] sm:$0xf]
      %v353 = vld [vmem:[%s3 + $0x2c] sm:$0xf]
      %v354 = vld [vmem:[%s3 + $0x30] sm:$0xf]
      %v355 = vld [vmem:[%s3 + $0x34] sm:$0xf]
      %v356 = vld [vmem:[%s3 + $0x38] sm:$0xf]
      %v357 = vld [vmem:[%s3 + $0x3c] sm:$0xf]
      %v358 = vld [vmem:[%s4] sm:$0x1]
      %v375 = vunpack.c.l.b16 %v342
      %v376 = vunpack.c.l.b16 %v343
      %v377 = vunpack.c.l.b16 %v344
      %v378 = vunpack.c.l.b16 %v345
      %v379 = vunpack.c.l.b16 %v346
      %v380 = vunpack.c.l.b16 %v347
      %v381 = vunpack.c.l.b16 %v348
      %v382 = vunpack.c.l.b16 %v349
      %v383 = vunpack.c.l.b16 %v350
      %v384 = vunpack.c.l.b16 %v351
      %v385 = vunpack.c.l.b16 %v352
      %v386 = vunpack.c.l.b16 %v353
      %v387 = vunpack.c.l.b16 %v354
      %v388 = vunpack.c.l.b16 %v355
      %v389 = vunpack.c.l.b16 %v356
      %v390 = vunpack.c.l.b16 %v357
      %v391 = vpack.c.b16 %v376, %v375
      %v392 = vpack.c.b16 %v378, %v377
      %v393 = vpack.c.b16 %v380, %v379
      %v394 = vpack.c.b16 %v382, %v381
      %v395 = vpack.c.b16 %v384, %v383
      %v396 = vpack.c.b16 %v386, %v385
      %v397 = vpack.c.b16 %v388, %v387
      %v398 = vpack.c.b16 %v390, %v389
      %407 = vmatprep.subr.bf16.mxu0 0
      %408 = vmatpush1.bf16.msra.mxu0 %v391
      %409 = vmatprep.subr.bf16.mxu0 0
      %410 = vmatpush1.bf16.msra.mxu0 %v392
      %411 = vmatprep.subr.bf16.mxu0 0
      %412 = vmatpush1.bf16.msra.mxu0 %v393
      %413 = vmatprep.subr.bf16.mxu0 0
      %414 = vmatpush1.bf16.msra.mxu0 %v394
      %415 = vmatprep.subr.bf16.mxu0 0
      %416 = vmatpush1.bf16.msra.mxu0 %v395
      %417 = vmatprep.subr.bf16.mxu0 0
      %418 = vmatpush1.bf16.msra.mxu0 %v396
      %419 = vmatprep.subr.bf16.mxu0 0
      %420 = vmatpush1.bf16.msra.mxu0 %v397
      %421 = vmatprep.subr.bf16.mxu0 0
      %422 = vmatpush1.bf16.msra.mxu0 %v398
      %423 = vmatprep.subr.bf16.mxu0 0
      %424 = vmatpush1.bf16.msra.mxu0 0
      %425 = vmatprep.subr.bf16.mxu0 0
      %426 = vmatpush1.bf16.msra.mxu0 0
      %427 = vmatprep.subr.bf16.mxu0 0
      %428 = vmatpush1.bf16.msra.mxu0 0
      %429 = vmatprep.subr.bf16.mxu0 0
      %430 = vmatpush1.bf16.msra.mxu0 0
      %431 = vmatprep.subr.bf16.mxu0 0
      %432 = vmatpush1.bf16.msra.mxu0 0
      %433 = vmatprep.subr.bf16.mxu0 0
      %434 = vmatpush1.bf16.msra.mxu0 0
      %435 = vmatprep.subr.bf16.mxu0 0
      %436 = vmatpush1.bf16.msra.mxu0 0
      %437 = vmatprep.subr.bf16.mxu0 0
      %438 = vmatpush1.bf16.msra.mxu0 0
      %439 = vmatprep.mubr.bf16.mxu0 0
      %440 = vmatmul.mubr.bf16.gmra.mrb[0].mxu0 %v341
      %v441 = vpop.f32.mrb[0].mxu0
      %v442 = vadd.f32 %v358, %v441
      %v443 = vpop.f32.mrb[0].mxu0
      %v444 = vpop.f32.mrb[0].mxu0
      %v445 = vpop.f32.mrb[0].mxu0
      %446 = vdwg.mxu0
      %v447 = vxor.u32 %v442, 2147483648
      %v448 = vmul.f32 %v447, 1.442695
      %v449 = vpow.pop %v448
      %v450 = vadd.f32 %v449, 1.0
      %v451 = vrcp.pop %v450
      %v452 = vmul.f32 1.0, %v451
      %v453 = vmul.f32 %v442, %v452
      %v454 = vxor.u32 %v453, 2147483648
      %v455 = vmul.f32 %v454, 1.442695
      %v456 = vpow.pop %v455
      %v457 = vadd.f32 %v456, 1.0
      %v458 = vrcp.pop %v457
      %v459 = vmul.f32 1.0, %v458
      %v460 = vpack.c.bf16 %v459, %v459
      %vm461 = vcmask 1040384
      %vm462 = vsmask.f32 256
      %vm463 = vmand %vm461, %vm462
      %v464 = vld [vmem:[%s220] sm:$0x1]
      %v465 = vsel %vm463, %v460, %v464
      %466 = vst [vmem:[%s220] sm:$0x1] %v465
      %p467 = scmp.lt.s32.totalorder %s16, 1
      %s468 = scalar_select %p467, %s16, 1
      %s469 = scalar_lea.vmem %s5, %s468
      // Predicated region
      $region41: #{_lambda_.20} parent=39 // pred_check
        %p470 = pneg %p144
      $region42: #{_lambda_.20} parent=39 // pred_check_branch
        %472 = sbr.rel (%p470) target = $region44
      $region43: #{_lambda_.20} parent=39 // pred_region
        _
      $region44: #{_lambda_.20} parent=39 // pred_fallthru
        _
    $region40: #{_lambda_.20} parent=5 // pred_fallthru
      _
    %p473 = scmp.le.s32.totalorder 2, %s11
    // Predicated region
    $region45: #{_lambda_.20} parent=5 // pred_check
      %p474 = pneg %p473
    $region46: #{_lambda_.20} parent=5 // pred_check_branch
      %476 = sbr.rel (%p474) target = $region48
    $region47: #{_lambda_.20} parent=5 // pred_region
      %s477 = ssub.s32 %s11, 2
      // Predicated region
      $region49: #{_lambda_.20} parent=47 // pred_check
        %p478 = pneg %p150
      $region50: #{_lambda_.20} parent=47 // pred_check_branch
        %480 = sbr.rel (%p478) target = $region52
      $region51: #{_lambda_.20} parent=47 // pred_region
        %p481 = scmp.lt.s32.totalorder %s17, 1
        %s482 = scalar_select %p481, %s17, 1
        %s483 = scalar_lea.vmem %s5, %s482
      $region52: #{_lambda_.20} parent=47 // pred_fallthru
        _
    $region48: #{_lambda_.20} parent=5 // pred_fallthru
      _
  $region6: #{_lambda_.20} parent=0 // loop_footer
    %s15 = sadd.s32 1, %s11
  $region7: #{_lambda_.20} parent=0 // loop_footer_branch
    %10 = sbr.rel target = $region3
  $region8: #{_lambda_.20} parent=0 // loop_exit
    _

// kernel: _lambda_.21
$region0: #{_lambda_.21}
  #allocation0 [shape = 'u32[]', space=smem, size = 0x4, offset = 0x4, fixed_abs, tag = 'smem constant byte address 0x4 - core index']
  #allocation1 [shape = 'u32[144,128]{1,0:T(1,128)}', space=vmem, size = 0x12000, scoped, tag = 'internal scratch']
  #allocation2 [shape = 'f32[16,128]{1,0:T(8,128)}', space=vmem, size = 0x2000, scoped, tag = 'scratch operand']
  %s0 = inlined_call_operand.vmem [shape: bf16[2,16,128], index: 0, kind: input, shape index: {}]
  %s1 = inlined_call_operand.vmem [shape: bf16[2,1,128], index: 1, kind: input, shape index: {}]
  %s2 = inlined_call_operand.vmem [shape: bf16[128,128], index: 2, kind: input, shape index: {}]
  %s3 = inlined_call_operand.vmem [shape: f32[1,128], index: 3, kind: input, shape index: {}]
  %s4 = inlined_call_operand.vmem [shape: bf16[2,16,128], index: 4, kind: output, shape index: {}]
  %s5 = sld [smem:[#allocation0]]
  $region57: #{_lambda_.21} parent=0
    _
  %s7 = ssub.s32 1, %s5
  %s8 = scalar_select 0, %s7, %s5
  loop: start=0, step=1, limit=4
  $region2: #{_lambda_.21} parent=0 // loop_pre_header
    _
  $region3: #{_lambda_.21} parent=0 // loop_header
    %s10 = sphi 0, %s14
    %p11 = scmp.ge.s32.totalorder %s10, 4
    %s17 = sphi 0, %s43
    %s18 = sphi 0, %s39
    %s19 = sphi 0, %s35
    %s20 = sphi 0, %s31
    %s21 = sphi 0, %s17
    %s22 = sphi 0, %s18
    %s23 = sphi 0, %s19
    %s24 = sphi 0, %s20
    %s25 = sphi 0, %s21
    %s26 = sphi 0, %s22
    %s27 = sphi 0, %s23
    %s28 = sphi 0, %s24
    %s50 = sphi 0, %s52
    %s53 = sphi 0, %s50
    %s54 = sphi 0, %s53
    %s70 = sphi 0, %s54
    %s78 = sphi 0, %s80
    %s81 = sphi 0, %s78
    %s82 = sphi 0, %s81
    %s98 = sphi 0, %s82
    %s106 = sphi 0, %s108
    %s109 = sphi 0, %s106
    %s110 = sphi 0, %s109
    %s126 = sphi 0, %s110
    %s132 = sphi 0, %s134
    %s135 = sphi 0, %s132
    %s136 = sphi 0, %s135
    %s152 = sphi 0, %s136
    %s162 = sphi 0, %s164
    %s165 = sphi 0, %s162
    %s166 = sphi 0, %s165
    %s182 = sphi 0, %s166
  $region4: #{_lambda_.21} parent=0 // loop_header_branch
    %13 = sbr.rel (%p11) target = $region8
  $region5: #{_lambda_.21} parent=0 // loop_body
    %s15 = ssub.s32 %s10, 1
    %s16 = ssub.s32 %s10, 2
    %s29 = sadd.s32 1, %s20
    %p30 = scmp.ge.s32.totalorder %s29, 1
    %s31 = scalar_select %p30, 0, %s29
    %s32 = sadd.s32 1, %s19
    %s33 = scalar_select %p30, %s32, %s19
    %p34 = scmp.ge.s32.totalorder %s33, 1
    %s35 = scalar_select %p34, 0, %s33
    %s36 = sadd.s32 1, %s18
    %s37 = scalar_select %p34, %s36, %s18
    %p38 = scmp.ge.s32.totalorder %s37, 1
    %s39 = scalar_select %p38, 0, %s37
    %s40 = sadd.s32 1, %s17
    %s41 = scalar_select %p38, %s40, %s17
    %p42 = scmp.ge.s32.totalorder %s41, 2
    %s43 = scalar_select %p42, 0, %s41
    %s44 = ssub.s32 %s17, %s43
    %s45 = ssub.s32 %s18, %s39
    %s46 = sor.u32 %s44, %s45
    %s47 = ssub.s32 %s20, %s31
    %s48 = sor.u32 %s46, %s47
    %p49 = scmp.eq.s32.totalorder %s48, 0
    %s51 = sadd.s32 %s50, 1
    %s52 = scalar_select %p49, %s50, %s51
    %p55 = pneg %p49
    %p56 = scmp.eq.s32.totalorder %s10, 1
    %p57 = por %p55, %p56
    %p58 = scmp.ne.s32.totalorder %s50, %s53
    %p59 = scmp.eq.s32.totalorder %s10, 0
    %p60 = por %p58, %p59
    %p61 = scmp.ne.s32.totalorder %s50, %s53
    %p62 = scmp.eq.s32.totalorder %s15, 1
    %p63 = por %p61, %p62
    %p64 = scmp.ne.s32.totalorder %s53, %s54
    %p65 = scmp.eq.s32.totalorder %s15, 0
    %p66 = por %p64, %p65
    %p67 = scmp.ne.s32.totalorder %s53, %s54
    %p68 = scmp.eq.s32.totalorder %s16, 1
    %p69 = por %p67, %p68
    %p71 = scmp.ne.s32.totalorder %s54, %s70
    %p72 = scmp.eq.s32.totalorder %s16, 0
    %p73 = por %p71, %p72
    %s74 = ssub.s32 %s17, %s43
    %s75 = ssub.s32 %s20, %s31
    %s76 = sor.u32 %s74, %s75
    %p77 = scmp.eq.s32.totalorder %s76, 0
    %s79 = sadd.s32 %s78, 1
    %s80 = scalar_select %p77, %s78, %s79
    %p83 = pneg %p77
    %p84 = scmp.eq.s32.totalorder %s10, 1
    %p85 = por %p83, %p84
    %p86 = scmp.ne.s32.totalorder %s78, %s81
    %p87 = scmp.eq.s32.totalorder %s10, 0
    %p88 = por %p86, %p87
    %p89 = scmp.ne.s32.totalorder %s78, %s81
    %p90 = scmp.eq.s32.totalorder %s15, 1
    %p91 = por %p89, %p90
    %p92 = scmp.ne.s32.totalorder %s81, %s82
    %p93 = scmp.eq.s32.totalorder %s15, 0
    %p94 = por %p92, %p93
    %p95 = scmp.ne.s32.totalorder %s81, %s82
    %p96 = scmp.eq.s32.totalorder %s16, 1
    %p97 = por %p95, %p96
    %p99 = scmp.ne.s32.totalorder %s82, %s98
    %p100 = scmp.eq.s32.totalorder %s16, 0
    %p101 = por %p99, %p100
    %s102 = ssub.s32 %s20, %s31
    %s103 = ssub.s32 %s19, %s35
    %s104 = sor.u32 %s102, %s103
    %p105 = scmp.eq.s32.totalorder %s104, 0
    %s107 = sadd.s32 %s106, 1
    %s108 = scalar_select %p105, %s106, %s107
    %p111 = pneg %p105
    %p112 = scmp.eq.s32.totalorder %s10, 1
    %p113 = por %p111, %p112
    %p114 = scmp.ne.s32.totalorder %s106, %s109
    %p115 = scmp.eq.s32.totalorder %s10, 0
    %p116 = por %p114, %p115
    %p117 = scmp.ne.s32.totalorder %s106, %s109
    %p118 = scmp.eq.s32.totalorder %s15, 1
    %p119 = por %p117, %p118
    %p120 = scmp.ne.s32.totalorder %s109, %s110
    %p121 = scmp.eq.s32.totalorder %s15, 0
    %p122 = por %p120, %p121
    %p123 = scmp.ne.s32.totalorder %s109, %s110
    %p124 = scmp.eq.s32.totalorder %s16, 1
    %p125 = por %p123, %p124
    %p127 = scmp.ne.s32.totalorder %s110, %s126
    %p128 = scmp.eq.s32.totalorder %s16, 0
    %p129 = por %p127, %p128
    %s130 = ssub.s32 %s19, %s35
    %p131 = scmp.eq.s32.totalorder %s130, 0
    %s133 = sadd.s32 %s132, 1
    %s134 = scalar_select %p131, %s132, %s133
    %p137 = pneg %p131
    %p138 = scmp.eq.s32.totalorder %s10, 1
    %p139 = por %p137, %p138
    %p140 = scmp.ne.s32.totalorder %s132, %s135
    %p141 = scmp.eq.s32.totalorder %s10, 0
    %p142 = por %p140, %p141
    %p143 = scmp.ne.s32.totalorder %s132, %s135
    %p144 = scmp.eq.s32.totalorder %s15, 1
    %p145 = por %p143, %p144
    %p146 = scmp.ne.s32.totalorder %s135, %s136
    %p147 = scmp.eq.s32.totalorder %s15, 0
    %p148 = por %p146, %p147
    %p149 = scmp.ne.s32.totalorder %s135, %s136
    %p150 = scmp.eq.s32.totalorder %s16, 1
    %p151 = por %p149, %p150
    %p153 = scmp.ne.s32.totalorder %s136, %s152
    %p154 = scmp.eq.s32.totalorder %s16, 0
    %p155 = por %p153, %p154
    %s156 = ssub.s32 %s17, %s43
    %s157 = ssub.s32 %s18, %s39
    %s158 = sor.u32 %s156, %s157
    %s159 = ssub.s32 %s19, %s35
    %s160 = sor.u32 %s158, %s159
    %p161 = scmp.eq.s32.totalorder %s160, 0
    %s163 = sadd.s32 %s162, 1
    %s164 = scalar_select %p161, %s162, %s163
    %p167 = pneg %p161
    %p168 = scmp.eq.s32.totalorder %s10, 1
    %p169 = por %p167, %p168
    %p170 = scmp.ne.s32.totalorder %s162, %s165
    %p171 = scmp.eq.s32.totalorder %s10, 0
    %p172 = por %p170, %p171
    %p173 = scmp.ne.s32.totalorder %s162, %s165
    %p174 = scmp.eq.s32.totalorder %s15, 1
    %p175 = por %p173, %p174
    %p176 = scmp.ne.s32.totalorder %s165, %s166
    %p177 = scmp.eq.s32.totalorder %s15, 0
    %p178 = por %p176, %p177
    %p179 = scmp.ne.s32.totalorder %s165, %s166
    %p180 = scmp.eq.s32.totalorder %s16, 1
    %p181 = por %p179, %p180
    %p183 = scmp.ne.s32.totalorder %s166, %s182
    %p184 = scmp.eq.s32.totalorder %s16, 0
    %p185 = por %p183, %p184
    %p186 = scmp.le.s32.totalorder 1, %s10
    %p187 = scmp.lt.s32.totalorder %s10, 3
    %p188 = pnand %p186, %p187
    %p189 = pneg %p188
    // Predicated region
    $region9: #{_lambda_.21} parent=5 // pred_check
      _
    $region10: #{_lambda_.21} parent=5 // pred_check_branch
      %191 = sbr.rel (%p188) target = $region12
    $region11: #{_lambda_.21} parent=5 // pred_region
      %s192 = ssub.s32 %s10, 1
      // Predicated region
      $region13: #{_lambda_.21} parent=11 // pred_check
        %p193 = pneg %p122
      $region14: #{_lambda_.21} parent=11 // pred_check_branch
        %195 = sbr.rel (%p193) target = $region16
      $region15: #{_lambda_.21} parent=11 // pred_region
        %s196 = smul.u32 16, %s24
        %p197 = scmp.lt.s32.totalorder %s196, 15
        %s198 = scalar_select %p197, %s196, 15
        %p199 = scmp.lt.s32.totalorder %s23, 0
        %s200 = scalar_select %p199, %s23, 0
        %s201 = sadd.s32 %s200, %s198
        %s202 = smul.addr %s201, 4
        %s203 = scalar_lea.vmem %s2, %s202
        %s204 = smul.u32 16, %s24
      $region16: #{_lambda_.21} parent=11 // pred_fallthru
        _
      // Predicated region
      $region17: #{_lambda_.21} parent=11 // pred_check
        %p205 = pneg %p148
      $region18: #{_lambda_.21} parent=11 // pred_check_branch
        %207 = sbr.rel (%p205) target = $region20
      $region19: #{_lambda_.21} parent=11 // pred_region
        %p208 = scmp.lt.s32.totalorder %s23, 0
        %s209 = scalar_select %p208, %s23, 0
        %s210 = scalar_lea.vmem %s3, %s209
      $region20: #{_lambda_.21} parent=11 // pred_fallthru
        _
    $region12: #{_lambda_.21} parent=5 // pred_fallthru
      _
    %p211 = scmp.lt.s32.totalorder %s10, 2
    // Predicated region
    $region21: #{_lambda_.21} parent=5 // pred_check
      %p212 = pneg %p211
    $region22: #{_lambda_.21} parent=5 // pred_check_branch
      %214 = sbr.rel (%p212) target = $region24
    $region23: #{_lambda_.21} parent=5 // pred_region
      // Predicated region
      $region25: #{_lambda_.21} parent=23 // pred_check
        %p215 = pneg %p60
      $region26: #{_lambda_.21} parent=23 // pred_check_branch
        %217 = sbr.rel (%p215) target = $region28
      $region27: #{_lambda_.21} parent=23 // pred_region
        %s218 = smul.u32 2, %s18
        %p219 = scmp.lt.s32.totalorder %s17, 1
        %s220 = scalar_select %p219, %s17, 1
        %p221 = scmp.lt.s32.totalorder %s218, 1
        %s222 = scalar_select %p221, %s218, 1
        %p223 = scmp.lt.s32.totalorder %s20, 0
        %s224 = scalar_select %p223, %s20, 0
        %s225 = sadd.s32 %s224, %s222
        %s226 = smul.addr %s220, 2
        %s227 = sadd.s32 %s225, %s226
        %s228 = smul.addr %s227, 4
        %s229 = scalar_lea.vmem %s0, %s228
        %s230 = smul.u32 2, %s18
      $region28: #{_lambda_.21} parent=23 // pred_fallthru
        _
      // Predicated region
      $region29: #{_lambda_.21} parent=23 // pred_check
        %p231 = pneg %p88
      $region30: #{_lambda_.21} parent=23 // pred_check_branch
        %233 = sbr.rel (%p231) target = $region32
      $region31: #{_lambda_.21} parent=23 // pred_region
        %p234 = scmp.lt.s32.totalorder %s17, 1
        %s235 = scalar_select %p234, %s17, 1
        %p236 = scmp.lt.s32.totalorder %s20, 0
        %s237 = scalar_select %p236, %s20, 0
        %s238 = sadd.s32 %s237, %s235
        %s239 = scalar_lea.vmem %s1, %s238
      $region32: #{_lambda_.21} parent=23 // pred_fallthru
        _
    $region24: #{_lambda_.21} parent=5 // pred_fallthru
      _
    %p240 = scmp.le.s32.totalorder 1, %s10
    %p241 = scmp.lt.s32.totalorder %s10, 3
    %p242 = pnand %p240, %p241
    %p243 = pneg %p242
    // Predicated region
    $region33: #{_lambda_.21} parent=5 // pred_check
      _
    $region34: #{_lambda_.21} parent=5 // pred_check_branch
      %245 = sbr.rel (%p242) target = $region36
    $region35: #{_lambda_.21} parent=5 // pred_region
      %s246 = ssub.s32 %s10, 1
      %s247 = smul.u32 2, %s22
      %p248 = scmp.lt.s32.totalorder %s21, 1
      %s249 = scalar_select %p248, %s21, 1
      %p250 = scmp.lt.s32.totalorder %s247, 1
      %s251 = scalar_select %p250, %s247, 1
      %p252 = scmp.lt.s32.totalorder %s24, 0
      %s253 = scalar_select %p252, %s24, 0
      %s254 = sadd.s32 %s253, %s251
      %s255 = smul.addr %s249, 2
      %s256 = sadd.s32 %s254, %s255
      %s257 = smul.addr %s256, 4
      %s258 = scalar_lea.vmem %s0, %s257
      %p259 = pneg %p66
      %p260 = pneg %p63
      %p261 = scmp.lt.s32.totalorder %s21, 1
      %s262 = scalar_select %p261, %s21, 1
      %p263 = scmp.lt.s32.totalorder %s24, 0
      %s264 = scalar_select %p263, %s24, 0
      %s265 = sadd.s32 %s264, %s262
      %s266 = scalar_lea.vmem %s1, %s265
      %p267 = pneg %p94
      %p268 = pneg %p91
      %s269 = smul.u32 16, %s24
      %p270 = scmp.lt.s32.totalorder %s269, 15
      %s271 = scalar_select %p270, %s269, 15
      %p272 = scmp.lt.s32.totalorder %s23, 0
      %s273 = scalar_select %p272, %s23, 0
      %s274 = sadd.s32 %s273, %s271
      %s275 = smul.addr %s274, 4
      %s276 = scalar_lea.vmem %s2, %s275
      %p277 = pneg %p122
      %p278 = pneg %p119
      %p279 = scmp.lt.s32.totalorder %s23, 0
      %s280 = scalar_select %p279, %s23, 0
      %s281 = scalar_lea.vmem %s3, %s280
      %p282 = pneg %p148
      %p283 = pneg %p145
      %p284 = pneg %p178
      %p285 = pneg %p175
      %s286 = smul.u32 2, %s22
      %p287 = scmp.lt.s32.totalorder %s21, 1
      %s288 = scalar_select %p287, %s21, 1
      %p289 = scmp.lt.s32.totalorder %s286, 1
      %s290 = scalar_select %p289, %s286, 1
      %p291 = scmp.lt.s32.totalorder %s23, 0
      %s292 = scalar_select %p291, %s23, 0
      %s293 = sadd.s32 %s292, %s290
      %s294 = smul.addr %s288, 2
      %s295 = sadd.s32 %s293, %s294
      %s296 = smul.addr %s295, 4
      %s297 = scalar_lea.vmem %s4, %s296
      %s298 = smul.u32 2, %s22
      %p299 = scmp.lt.s32.totalorder %s21, 1
      %s300 = scalar_select %p299, %s21, 1
      %p301 = scmp.lt.s32.totalorder %s298, 1
      %s302 = scalar_select %p301, %s298, 1
      %p303 = scmp.lt.s32.totalorder %s24, 0
      %s304 = scalar_select %p303, %s24, 0
      %s305 = sadd.s32 %s304, %s302
      %s306 = smul.addr %s300, 2
      %s307 = sadd.s32 %s305, %s306
      %s308 = smul.addr %s307, 4
      %s309 = scalar_lea.vmem %s0, %s308
      %s310 = smul.u32 2, %s22
      %p311 = scmp.lt.s32.totalorder %s21, 1
      %s312 = scalar_select %p311, %s21, 1
      %p313 = scmp.lt.s32.totalorder %s24, 0
      %s314 = scalar_select %p313, %s24, 0
      %s315 = sadd.s32 %s314, %s312
      %s316 = scalar_lea.vmem %s1, %s315
      %s317 = smul.u32 16, %s24
      %p318 = scmp.lt.s32.totalorder %s317, 15
      %s319 = scalar_select %p318, %s317, 15
      %p320 = scmp.lt.s32.totalorder %s23, 0
      %s321 = scalar_select %p320, %s23, 0
      %s322 = sadd.s32 %s321, %s319
      %s323 = smul.addr %s322, 4
      %s324 = scalar_lea.vmem %s2, %s323
      %s325 = smul.u32 16, %s24
      %p326 = scmp.lt.s32.totalorder %s23, 0
      %s327 = scalar_select %p326, %s23, 0
      %s328 = scalar_lea.vmem %s3, %s327
      %s329 = smul.u32 2, %s22
      %p330 = scmp.lt.s32.totalorder %s21, 1
      %s331 = scalar_select %p330, %s21, 1
      %p332 = scmp.lt.s32.totalorder %s329, 1
      %s333 = scalar_select %p332, %s329, 1
      %p334 = scmp.lt.s32.totalorder %s23, 0
      %s335 = scalar_select %p334, %s23, 0
      %s336 = sadd.s32 %s335, %s333
      %s337 = smul.addr %s331, 2
      %s338 = sadd.s32 %s336, %s337
      %s339 = smul.addr %s338, 4
      %s340 = scalar_lea.vmem %s4, %s339
      %s341 = smul.u32 2, %s22
      %p343 = scmp.eq.s32.totalorder %s24, 0
      // Predicated region
      $region37: #{_lambda_.21} parent=35 // pred_check
        %p344 = pneg %p343
      $region38: #{_lambda_.21} parent=35 // pred_check_branch
        %346 = sbr.rel (%p344) target = $region40
      $region39: #{_lambda_.21} parent=35 // pred_region
        %347 = vst [vmem:[#allocation2] sm:$0xff] 0.0
        %348 = vst [vmem:[#allocation2 + $0x8] sm:$0xff] 0.0
      $region40: #{_lambda_.21} parent=35 // pred_fallthru
        _
      %v349 = vld [vmem:[%s309] sm:$0xf]
      %v350 = vld [vmem:[%s309 + $0x4] sm:$0xf]
      %v351 = vunpack.c.l.bf16 %v349
      %v352 = vunpack.c.l.bf16 %v350
      %v353 = vld [vmem:[%s316] sm:$0x1]
      %v354 = vunpack.c.l.bf16 %v353
      %v355 = vlaneseq
      %v356 = vshrl.u32 %v355, 7
      %v357 = vsub.s32 0, %v356
      %v358 = vrot.slane %v354, %v357
      %v359 = vmul.f32 %v351, %v358
      %v360 = vmul.f32 %v352, %v358
      %v361 = vld [vmem:[#allocation2] sm:$0xff]
      %v362 = vld [vmem:[#allocation2 + $0x8] sm:$0xff]
      %v363 = vpack.c.bf16 %v360, %v359
      %v364 = vld [vmem:[%s324] sm:$0xf]
      %v365 = vld [vmem:[%s324 + $0x4] sm:$0xf]
      %v366 = vld [vmem:[%s324 + $0x8] sm:$0xf]
      %v367 = vld [vmem:[%s324 + $0xc] sm:$0xf]
      %v368 = vld [vmem:[%s324 + $0x10] sm:$0xf]
      %v369 = vld [vmem:[%s324 + $0x14] sm:$0xf]
      %v370 = vld [vmem:[%s324 + $0x18] sm:$0xf]
      %v371 = vld [vmem:[%s324 + $0x1c] sm:$0xf]
      %v372 = vld [vmem:[%s324 + $0x20] sm:$0xf]
      %v373 = vld [vmem:[%s324 + $0x24] sm:$0xf]
      %v374 = vld [vmem:[%s324 + $0x28] sm:$0xf]
      %v375 = vld [vmem:[%s324 + $0x2c] sm:$0xf]
      %v376 = vld [vmem:[%s324 + $0x30] sm:$0xf]
      %v377 = vld [vmem:[%s324 + $0x34] sm:$0xf]
      %v378 = vld [vmem:[%s324 + $0x38] sm:$0xf]
      %v379 = vld [vmem:[%s324 + $0x3c] sm:$0xf]
      %v396 = vunpack.c.l.b16 %v364
      %v397 = vunpack.c.l.b16 %v365
      %v398 = vunpack.c.l.b16 %v366
      %v399 = vunpack.c.l.b16 %v367
      %v400 = vunpack.c.l.b16 %v368
      %v401 = vunpack.c.l.b16 %v369
      %v402 = vunpack.c.l.b16 %v370
      %v403 = vunpack.c.l.b16 %v371
      %v404 = vunpack.c.l.b16 %v372
      %v405 = vunpack.c.l.b16 %v373
      %v406 = vunpack.c.l.b16 %v374
      %v407 = vunpack.c.l.b16 %v375
      %v408 = vunpack.c.l.b16 %v376
      %v409 = vunpack.c.l.b16 %v377
      %v410 = vunpack.c.l.b16 %v378
      %v411 = vunpack.c.l.b16 %v379
      %v412 = vpack.c.b16 %v397, %v396
      %v413 = vpack.c.b16 %v399, %v398
      %v414 = vpack.c.b16 %v401, %v400
      %v415 = vpack.c.b16 %v403, %v402
      %v416 = vpack.c.b16 %v405, %v404
      %v417 = vpack.c.b16 %v407, %v406
      %v418 = vpack.c.b16 %v409, %v408
      %v419 = vpack.c.b16 %v411, %v410
      %428 = vmatprep.subr.bf16.mxu0 0
      %429 = vmatpush1.bf16.msra.mxu0 %v412
      %430 = vmatprep.subr.bf16.mxu0 0
      %431 = vmatpush1.bf16.msra.mxu0 %v413
      %432 = vmatprep.subr.bf16.mxu0 0
      %433 = vmatpush1.bf16.msra.mxu0 %v414
      %434 = vmatprep.subr.bf16.mxu0 0
      %435 = vmatpush1.bf16.msra.mxu0 %v415
      %436 = vmatprep.subr.bf16.mxu0 0
      %437 = vmatpush1.bf16.msra.mxu0 %v416
      %438 = vmatprep.subr.bf16.mxu0 0
      %439 = vmatpush1.bf16.msra.mxu0 %v417
      %440 = vmatprep.subr.bf16.mxu0 0
      %441 = vmatpush1.bf16.msra.mxu0 %v418
      %442 = vmatprep.subr.bf16.mxu0 0
      %443 = vmatpush1.bf16.msra.mxu0 %v419
      %444 = vmatprep.subr.bf16.mxu0 0
      %445 = vmatpush1.bf16.msra.mxu0 0
      %446 = vmatprep.subr.bf16.mxu0 0
      %447 = vmatpush1.bf16.msra.mxu0 0
      %448 = vmatprep.subr.bf16.mxu0 0
      %449 = vmatpush1.bf16.msra.mxu0 0
      %450 = vmatprep.subr.bf16.mxu0 0
      %451 = vmatpush1.bf16.msra.mxu0 0
      %452 = vmatprep.subr.bf16.mxu0 0
      %453 = vmatpush1.bf16.msra.mxu0 0
      %454 = vmatprep.subr.bf16.mxu0 0
      %455 = vmatpush1.bf16.msra.mxu0 0
      %456 = vmatprep.subr.bf16.mxu0 0
      %457 = vmatpush1.bf16.msra.mxu0 0
      %458 = vmatprep.subr.bf16.mxu0 0
      %459 = vmatpush1.bf16.msra.mxu0 0
      %460 = vmatprep.mubr.bf16.mxu0 0
      %461 = vmatmul.mubr.bf16.gmra.mrb[0].mxu0 %v363
      %v462 = vpop.f32.mrb[0].mxu0
      %v463 = vadd.f32 0.0, %v462
      %v464 = vpop.f32.mrb[0].mxu0
      %v465 = vpop.f32.mrb[0].mxu0
      %v466 = vadd.f32 0.0, %v465
      %v467 = vpop.f32.mrb[0].mxu0
      %468 = vdwg.mxu0
      %v469 = vadd.f32 %v361, %v463
      %v470 = vadd.f32 %v362, %v466
      %471 = vst [vmem:[#allocation2] sm:$0xff] %v469
      %472 = vst [vmem:[#allocation2 + $0x8] sm:$0xff] %v470
      // Predicated region
      $region41: #{_lambda_.21} parent=35 // pred_check
        %p473 = pneg %p343
      $region42: #{_lambda_.21} parent=35 // pred_check_branch
        %475 = sbr.rel (%p473) target = $region44
      $region43: #{_lambda_.21} parent=35 // pred_region
        %v476 = vld [vmem:[#allocation2] sm:$0xff]
        %v477 = vld [vmem:[#allocation2 + $0x8] sm:$0xff]
        %v478 = vld [vmem:[%s328] sm:$0x1]
        %v480 = vlaneseq
        %v481 = vshrl.u32 %v480, 7
        %v482 = vsub.s32 0, %v481
        %v483 = vrot.slane %v478, %v482
        %v485 = vadd.f32 %v476, %v483
        %v486 = vadd.f32 %v477, %v483
        %v487 = vpack.c.bf16 %v486, %v485
        %v489 = vunpack.c.l.b16 %v487
        %v490 = vunpack.c.h.b16 %v487
        %v491 = vpack.c.b16 %v489, %v489
        %v492 = vpack.c.b16 %v490, %v490
        %495 = vst [vmem:[%s340] sm:$0xf] %v491
        %496 = vst [vmem:[%s340 + $0x4] sm:$0xf] %v492
      $region44: #{_lambda_.21} parent=35 // pred_fallthru
        _
      %s497 = smul.u32 2, %s22
      %p498 = scmp.lt.s32.totalorder %s21, 1
      %s499 = scalar_select %p498, %s21, 1
      %p500 = scmp.lt.s32.totalorder %s497, 1
      %s501 = scalar_select %p500, %s497, 1
      %p502 = scmp.lt.s32.totalorder %s23, 0
      %s503 = scalar_select %p502, %s23, 0
      %s504 = sadd.s32 %s503, %s501
      %s505 = smul.addr %s499, 2
      %s506 = sadd.s32 %s504, %s505
      %s507 = smul.addr %s506, 4
      %s508 = scalar_lea.vmem %s4, %s507
      // Predicated region
      $region45: #{_lambda_.21} parent=35 // pred_check
        %p509 = pneg %p175
      $region46: #{_lambda_.21} parent=35 // pred_check_branch
        %511 = sbr.rel (%p509) target = $region48
      $region47: #{_lambda_.21} parent=35 // pred_region
        %s512 = smul.u32 2, %s22
      $region48: #{_lambda_.21} parent=35 // pred_fallthru
        _
    $region36: #{_lambda_.21} parent=5 // pred_fallthru
      _
    %p513 = scmp.le.s32.totalorder 2, %s10
    // Predicated region
    $region49: #{_lambda_.21} parent=5 // pred_check
      %p514 = pneg %p513
    $region50: #{_lambda_.21} parent=5 // pred_check_branch
      %516 = sbr.rel (%p514) target = $region52
    $region51: #{_lambda_.21} parent=5 // pred_region
      %s517 = ssub.s32 %s10, 2
      // Predicated region
      $region53: #{_lambda_.21} parent=51 // pred_check
        %p518 = pneg %p181
      $region54: #{_lambda_.21} parent=51 // pred_check_branch
        %520 = sbr.rel (%p518) target = $region56
      $region55: #{_lambda_.21} parent=51 // pred_region
        %s521 = smul.u32 2, %s26
        %p522 = scmp.lt.s32.totalorder %s25, 1
        %s523 = scalar_select %p522, %s25, 1
        %p524 = scmp.lt.s32.totalorder %s521, 1
        %s525 = scalar_select %p524, %s521, 1
        %p526 = scmp.lt.s32.totalorder %s27, 0
        %s527 = scalar_select %p526, %s27, 0
        %s528 = sadd.s32 %s527, %s525
        %s529 = smul.addr %s523, 2
        %s530 = sadd.s32 %s528, %s529
        %s531 = smul.addr %s530, 4
        %s532 = scalar_lea.vmem %s4, %s531
      $region56: #{_lambda_.21} parent=51 // pred_fallthru
        _
    $region52: #{_lambda_.21} parent=5 // pred_fallthru
      _
  $region6: #{_lambda_.21} parent=0 // loop_footer
    %s14 = sadd.s32 1, %s10
  $region7: #{_lambda_.21} parent=0 // loop_footer_branch
    %9 = sbr.rel target = $region3
  $region8: #{_lambda_.21} parent=0 // loop_exit
    _

// kernel: _lambda_.22
$region0: #{_lambda_.22}
  #allocation0 [shape = 'u32[]', space=smem, size = 0x4, offset = 0x4, fixed_abs, tag = 'smem constant byte address 0x4 - core index']
  #allocation1 [shape = 'u32[144,128]{1,0:T(1,128)}', space=vmem, size = 0x12000, scoped, tag = 'internal scratch']
  #allocation2 [shape = 'f32[32,256]{1,0:T(8,128)}', space=vmem, size = 0x8000, scoped, tag = 'scratch operand']
  %s0 = inlined_call_operand.vmem [shape: bf16[32,128], index: 0, kind: input, shape index: {}]
  %s1 = inlined_call_operand.vmem [shape: bf16[128,256], index: 1, kind: input, shape index: {}]
  %s2 = inlined_call_operand.vmem [shape: f32[1,256], index: 2, kind: input, shape index: {}]
  %s3 = inlined_call_operand.vmem [shape: bf16[32,256], index: 3, kind: output, shape index: {}]
  %s4 = sld [smem:[#allocation0]]
  $region30: #{_lambda_.22} parent=0
    _
  %s6 = ssub.s32 1, %s4
  %s7 = scalar_select 0, %s6, %s4
  // Predicated region
  $region2: #{_lambda_.22} parent=0 // pred_check
    _
  $region3: #{_lambda_.22} parent=0 // pred_check_branch
    %9 = sbr.rel (0) target = $region5
  $region4: #{_lambda_.22} parent=0 // pred_region
    _
  $region5: #{_lambda_.22} parent=0 // pred_fallthru
    _
  // Predicated region
  $region6: #{_lambda_.22} parent=0 // pred_check
    _
  $region7: #{_lambda_.22} parent=0 // pred_check_branch
    %11 = sbr.rel (0) target = $region9
  $region8: #{_lambda_.22} parent=0 // pred_region
    _
  $region9: #{_lambda_.22} parent=0 // pred_fallthru
    _
  // Predicated region
  $region10: #{_lambda_.22} parent=0 // pred_check
    _
  $region11: #{_lambda_.22} parent=0 // pred_check_branch
    %13 = sbr.rel (0) target = $region13
  $region12: #{_lambda_.22} parent=0 // pred_region
    _
  $region13: #{_lambda_.22} parent=0 // pred_fallthru
    _
  %p15 = scmp.eq.s32.totalorder 0, 0
  // Predicated region
  $region14: #{_lambda_.22} parent=0 // pred_check
    %p16 = pneg %p15
  $region15: #{_lambda_.22} parent=0 // pred_check_branch
    %18 = sbr.rel (%p16) target = $region17
  $region16: #{_lambda_.22} parent=0 // pred_region
    %19 = vst [vmem:[#allocation2] sm:$0xff] 0.0
    %20 = vst [vmem:[#allocation2 + $0x8] sm:$0xff] 0.0
    %21 = vst [vmem:[#allocation2 + $0x10] sm:$0xff] 0.0
    %22 = vst [vmem:[#allocation2 + $0x18] sm:$0xff] 0.0
    %23 = vst [vmem:[#allocation2 + $0x20] sm:$0xff] 0.0
    %24 = vst [vmem:[#allocation2 + $0x28] sm:$0xff] 0.0
    %25 = vst [vmem:[#allocation2 + $0x30] sm:$0xff] 0.0
    %26 = vst [vmem:[#allocation2 + $0x38] sm:$0xff] 0.0
  $region17: #{_lambda_.22} parent=0 // pred_fallthru
    _
  %v27 = vld [vmem:[#allocation2] sm:$0xff]
  %v28 = vld [vmem:[#allocation2 + $0x8] sm:$0xff]
  %v29 = vld [vmem:[#allocation2 + $0x10] sm:$0xff]
  %v30 = vld [vmem:[#allocation2 + $0x18] sm:$0xff]
  %v31 = vld [vmem:[#allocation2 + $0x20] sm:$0xff]
  %v32 = vld [vmem:[#allocation2 + $0x28] sm:$0xff]
  %v33 = vld [vmem:[#allocation2 + $0x30] sm:$0xff]
  %v34 = vld [vmem:[#allocation2 + $0x38] sm:$0xff]
  %v35 = vld [vmem:[%s0] sm:$0xf]
  %v36 = vld [vmem:[%s0 + $0x4] sm:$0xf]
  %v37 = vld [vmem:[%s0 + $0x8] sm:$0xf]
  %v38 = vld [vmem:[%s0 + $0xc] sm:$0xf]
  %v39 = vld [vmem:[%s1] sm:$0xff]
  %v40 = vld [vmem:[%s1 + $0x8] sm:$0xff]
  %v41 = vld [vmem:[%s1 + $0x10] sm:$0xff]
  %v42 = vld [vmem:[%s1 + $0x18] sm:$0xff]
  %v43 = vld [vmem:[%s1 + $0x20] sm:$0xff]
  %v44 = vld [vmem:[%s1 + $0x28] sm:$0xff]
  %v45 = vld [vmem:[%s1 + $0x30] sm:$0xff]
  %v46 = vld [vmem:[%s1 + $0x38] sm:$0xff]
  %v47 = vld [vmem:[%s1 + $0x40] sm:$0xff]
  %v48 = vld [vmem:[%s1 + $0x48] sm:$0xff]
  %v49 = vld [vmem:[%s1 + $0x50] sm:$0xff]
  %v50 = vld [vmem:[%s1 + $0x58] sm:$0xff]
  %v51 = vld [vmem:[%s1 + $0x60] sm:$0xff]
  %v52 = vld [vmem:[%s1 + $0x68] sm:$0xff]
  %v53 = vld [vmem:[%s1 + $0x70] sm:$0xff]
  %v54 = vld [vmem:[%s1 + $0x78] sm:$0xff]
  %v59 = vunpack.c.l.b16 %v35
  %v60 = vunpack.c.l.b16 %v36
  %v61 = vunpack.c.l.b16 %v37
  %v62 = vunpack.c.l.b16 %v38
  %v63 = vpack.c.b16 %v60, %v59
  %v64 = vpack.c.b16 %v62, %v61
  %v83 = vunpack.c.l.b16 %v39
  %v84 = vunpack.c.h.b16 %v39
  %v85 = vunpack.c.l.b16 %v40
  %v86 = vunpack.c.h.b16 %v40
  %v87 = vunpack.c.l.b16 %v41
  %v88 = vunpack.c.h.b16 %v41
  %v89 = vunpack.c.l.b16 %v42
  %v90 = vunpack.c.h.b16 %v42
  %v91 = vunpack.c.l.b16 %v43
  %v92 = vunpack.c.h.b16 %v43
  %v93 = vunpack.c.l.b16 %v44
  %v94 = vunpack.c.h.b16 %v44
  %v95 = vunpack.c.l.b16 %v45
  %v96 = vunpack.c.h.b16 %v45
  %v97 = vunpack.c.l.b16 %v46
  %v98 = vunpack.c.h.b16 %v46
  %v99 = vunpack.c.l.b16 %v47
  %v100 = vunpack.c.h.b16 %v47
  %v101 = vunpack.c.l.b16 %v48
  %v102 = vunpack.c.h.b16 %v48
  %v103 = vunpack.c.l.b16 %v49
  %v104 = vunpack.c.h.b16 %v49
  %v105 = vunpack.c.l.b16 %v50
  %v106 = vunpack.c.h.b16 %v50
  %v107 = vunpack.c.l.b16 %v51
  %v108 = vunpack.c.h.b16 %v51
  %v109 = vunpack.c.l.b16 %v52
  %v110 = vunpack.c.h.b16 %v52
  %v111 = vunpack.c.l.b16 %v53
  %v112 = vunpack.c.h.b16 %v53
  %v113 = vunpack.c.l.b16 %v54
  %v114 = vunpack.c.h.b16 %v54
  %v115 = vpack.c.b16 %v85, %v83
  %v116 = vpack.c.b16 %v86, %v84
  %v117 = vpack.c.b16 %v89, %v87
  %v118 = vpack.c.b16 %v90, %v88
  %v119 = vpack.c.b16 %v93, %v91
  %v120 = vpack.c.b16 %v94, %v92
  %v121 = vpack.c.b16 %v97, %v95
  %v122 = vpack.c.b16 %v98, %v96
  %v123 = vpack.c.b16 %v101, %v99
  %v124 = vpack.c.b16 %v102, %v100
  %v125 = vpack.c.b16 %v105, %v103
  %v126 = vpack.c.b16 %v106, %v104
  %v127 = vpack.c.b16 %v109, %v107
  %v128 = vpack.c.b16 %v110, %v108
  %v129 = vpack.c.b16 %v113, %v111
  %v130 = vpack.c.b16 %v114, %v112
  %147 = vmatprep.subr.bf16.mxu0 %v116
  %148 = vmatpush1.bf16.msra.mxu0 %v115
  %149 = vmatprep.subr.bf16.mxu0 %v118
  %150 = vmatpush1.bf16.msra.mxu0 %v117
  %151 = vmatprep.subr.bf16.mxu0 %v120
  %152 = vmatpush1.bf16.msra.mxu0 %v119
  %153 = vmatprep.subr.bf16.mxu0 %v122
  %154 = vmatpush1.bf16.msra.mxu0 %v121
  %155 = vmatprep.subr.bf16.mxu0 %v124
  %156 = vmatpush1.bf16.msra.mxu0 %v123
  %157 = vmatprep.subr.bf16.mxu0 %v126
  %158 = vmatpush1.bf16.msra.mxu0 %v125
  %159 = vmatprep.subr.bf16.mxu0 %v128
  %160 = vmatpush1.bf16.msra.mxu0 %v127
  %161 = vmatprep.subr.bf16.mxu0 %v130
  %162 = vmatpush1.bf16.msra.mxu0 %v129
  %163 = vmatprep.subr.bf16.mxu0 0
  %164 = vmatpush1.bf16.msra.mxu0 0
  %165 = vmatprep.subr.bf16.mxu0 0
  %166 = vmatpush1.bf16.msra.mxu0 0
  %167 = vmatprep.subr.bf16.mxu0 0
  %168 = vmatpush1.bf16.msra.mxu0 0
  %169 = vmatprep.subr.bf16.mxu0 0
  %170 = vmatpush1.bf16.msra.mxu0 0
  %171 = vmatprep.subr.bf16.mxu0 0
  %172 = vmatpush1.bf16.msra.mxu0 0
  %173 = vmatprep.subr.bf16.mxu0 0
  %174 = vmatpush1.bf16.msra.mxu0 0
  %175 = vmatprep.subr.bf16.mxu0 0
  %176 = vmatpush1.bf16.msra.mxu0 0
  %177 = vmatprep.subr.bf16.mxu0 0
  %178 = vmatpush1.bf16.msra.mxu0 0
  %179 = vmatprep.mubr.bf16.mxu0 0
  %180 = vmatmul.mubr.bf16.gmra.mrb[0].mxu0 %v63
  %v181 = vpop.f32.mrb[0].mxu0
  %v182 = vadd.f32 0.0, %v181
  %v183 = vpop.f32.mrb[0].mxu0
  %v184 = vadd.f32 0.0, %v183
  %v185 = vpop.f32.mrb[0].mxu0
  %v186 = vadd.f32 0.0, %v185
  %v187 = vpop.f32.mrb[0].mxu0
  %v188 = vadd.f32 0.0, %v187
  %189 = vmatprep.mubr.bf16.mxu0 0
  %190 = vmatmul.mubr.bf16.gmra.mrb[0].mxu0 %v64
  %v191 = vpop.f32.mrb[0].mxu0
  %v192 = vadd.f32 0.0, %v191
  %v193 = vpop.f32.mrb[0].mxu0
  %v194 = vadd.f32 0.0, %v193
  %v195 = vpop.f32.mrb[0].mxu0
  %v196 = vadd.f32 0.0, %v195
  %v197 = vpop.f32.mrb[0].mxu0
  %v198 = vadd.f32 0.0, %v197
  %199 = vdwg.mxu0
  %v200 = vadd.f32 %v27, %v182
  %v201 = vadd.f32 %v28, %v184
  %v202 = vadd.f32 %v29, %v186
  %v203 = vadd.f32 %v30, %v188
  %v204 = vadd.f32 %v31, %v192
  %v205 = vadd.f32 %v32, %v194
  %v206 = vadd.f32 %v33, %v196
  %v207 = vadd.f32 %v34, %v198
  %208 = vst [vmem:[#allocation2] sm:$0xff] %v200
  %209 = vst [vmem:[#allocation2 + $0x8] sm:$0xff] %v201
  %210 = vst [vmem:[#allocation2 + $0x10] sm:$0xff] %v202
  %211 = vst [vmem:[#allocation2 + $0x18] sm:$0xff] %v203
  %212 = vst [vmem:[#allocation2 + $0x20] sm:$0xff] %v204
  %213 = vst [vmem:[#allocation2 + $0x28] sm:$0xff] %v205
  %214 = vst [vmem:[#allocation2 + $0x30] sm:$0xff] %v206
  %215 = vst [vmem:[#allocation2 + $0x38] sm:$0xff] %v207
  // Predicated region
  $region18: #{_lambda_.22} parent=0 // pred_check
    %p216 = pneg %p15
  $region19: #{_lambda_.22} parent=0 // pred_check_branch
    %218 = sbr.rel (%p216) target = $region21
  $region20: #{_lambda_.22} parent=0 // pred_region
    %v219 = vld [vmem:[#allocation2] sm:$0xff]
    %v220 = vld [vmem:[#allocation2 + $0x8] sm:$0xff]
    %v221 = vld [vmem:[#allocation2 + $0x10] sm:$0xff]
    %v222 = vld [vmem:[#allocation2 + $0x18] sm:$0xff]
    %v223 = vld [vmem:[#allocation2 + $0x20] sm:$0xff]
    %v224 = vld [vmem:[#allocation2 + $0x28] sm:$0xff]
    %v225 = vld [vmem:[#allocation2 + $0x30] sm:$0xff]
    %v226 = vld [vmem:[#allocation2 + $0x38] sm:$0xff]
    %v227 = vld [vmem:[%s2] sm:$0x3]
    %v229 = vlaneseq
    %v230 = vshrl.u32 %v229, 7
    %v231 = vsub.s32 0, %v230
    %v232 = vrot.slane %v227, %v231
    %v233 = vlaneseq
    %v234 = vshrl.u32 %v233, 7
    %v235 = vsub.s32 1, %v234
    %v236 = vrot.slane %v227, %v235
    %v239 = vadd.f32 %v219, %v232
    %v240 = vadd.f32 %v220, %v236
    %v241 = vadd.f32 %v221, %v232
    %v242 = vadd.f32 %v222, %v236
    %v243 = vadd.f32 %v223, %v232
    %v244 = vadd.f32 %v224, %v236
    %v245 = vadd.f32 %v225, %v232
    %v246 = vadd.f32 %v226, %v236
    %v247 = vxor.u32 %v239, 2147483648
    %v248 = vxor.u32 %v240, 2147483648
    %v249 = vxor.u32 %v241, 2147483648
    %v250 = vxor.u32 %v242, 2147483648
    %v251 = vxor.u32 %v243, 2147483648
    %v252 = vxor.u32 %v244, 2147483648
    %v253 = vxor.u32 %v245, 2147483648
    %v254 = vxor.u32 %v246, 2147483648
    %v255 = vmul.f32 %v247, 1.442695
    %v256 = vpow.pop %v255
    %v257 = vmul.f32 %v248, 1.442695
    %v258 = vpow.pop %v257
    %v259 = vmul.f32 %v249, 1.442695
    %v260 = vpow.pop %v259
    %v261 = vmul.f32 %v250, 1.442695
    %v262 = vpow.pop %v261
    %v263 = vmul.f32 %v251, 1.442695
    %v264 = vpow.pop %v263
    %v265 = vmul.f32 %v252, 1.442695
    %v266 = vpow.pop %v265
    %v267 = vmul.f32 %v253, 1.442695
    %v268 = vpow.pop %v267
    %v269 = vmul.f32 %v254, 1.442695
    %v270 = vpow.pop %v269
    %v271 = vadd.f32 %v256, 1.0
    %v272 = vadd.f32 %v258, 1.0
    %v273 = vadd.f32 %v260, 1.0
    %v274 = vadd.f32 %v262, 1.0
    %v275 = vadd.f32 %v264, 1.0
    %v276 = vadd.f32 %v266, 1.0
    %v277 = vadd.f32 %v268, 1.0
    %v278 = vadd.f32 %v270, 1.0
    %v279 = vrcp.pop %v271
    %v280 = vmul.f32 1.0, %v279
    %v281 = vrcp.pop %v272
    %v282 = vmul.f32 1.0, %v281
    %v283 = vrcp.pop %v273
    %v284 = vmul.f32 1.0, %v283
    %v285 = vrcp.pop %v274
    %v286 = vmul.f32 1.0, %v285
    %v287 = vrcp.pop %v275
    %v288 = vmul.f32 1.0, %v287
    %v289 = vrcp.pop %v276
    %v290 = vmul.f32 1.0, %v289
    %v291 = vrcp.pop %v277
    %v292 = vmul.f32 1.0, %v291
    %v293 = vrcp.pop %v278
    %v294 = vmul.f32 1.0, %v293
    %v295 = vmul.f32 %v239, %v280
    %v296 = vmul.f32 %v240, %v282
    %v297 = vmul.f32 %v241, %v284
    %v298 = vmul.f32 %v242, %v286
    %v299 = vmul.f32 %v243, %v288
    %v300 = vmul.f32 %v244, %v290
    %v301 = vmul.f32 %v245, %v292
    %v302 = vmul.f32 %v246, %v294
    %v303 = vpack.c.bf16 %v297, %v295
    %v304 = vpack.c.bf16 %v298, %v296
    %v305 = vpack.c.bf16 %v301, %v299
    %v306 = vpack.c.bf16 %v302, %v300
    %v311 = vunpack.c.l.b16 %v303
    %v312 = vunpack.c.l.b16 %v304
    %v313 = vunpack.c.h.b16 %v303
    %v314 = vunpack.c.h.b16 %v304
    %v315 = vunpack.c.l.b16 %v305
    %v316 = vunpack.c.l.b16 %v306
    %v317 = vunpack.c.h.b16 %v305
    %v318 = vunpack.c.h.b16 %v306
    %v319 = vpack.c.b16 %v312, %v311
    %v320 = vpack.c.b16 %v314, %v313
    %v321 = vpack.c.b16 %v316, %v315
    %v322 = vpack.c.b16 %v318, %v317
    %327 = vst [vmem:[%s3] sm:$0xff] %v319
    %328 = vst [vmem:[%s3 + $0x8] sm:$0xff] %v320
    %329 = vst [vmem:[%s3 + $0x10] sm:$0xff] %v321
    %330 = vst [vmem:[%s3 + $0x18] sm:$0xff] %v322
  $region21: #{_lambda_.22} parent=0 // pred_fallthru
    _
  // Predicated region
  $region22: #{_lambda_.22} parent=0 // pred_check
    _
  $region23: #{_lambda_.22} parent=0 // pred_check_branch
    %332 = sbr.rel (0) target = $region25
  $region24: #{_lambda_.22} parent=0 // pred_region
    _
  $region25: #{_lambda_.22} parent=0 // pred_fallthru
    _
  // Predicated region
  $region26: #{_lambda_.22} parent=0 // pred_check
    _
  $region27: #{_lambda_.22} parent=0 // pred_check_branch
    %334 = sbr.rel (0) target = $region29
  $region28: #{_lambda_.22} parent=0 // pred_region
    _
  $region29: #{_lambda_.22} parent=0 // pred_fallthru
    _

// kernel: _lambda_.23
$region0: #{_lambda_.23}
  #allocation0 [shape = 'u32[]', space=smem, size = 0x4, offset = 0x4, fixed_abs, tag = 'smem constant byte address 0x4 - core index']
  #allocation1 [shape = 'u32[144,128]{1,0:T(1,128)}', space=vmem, size = 0x12000, scoped, tag = 'internal scratch']
  %s0 = inlined_call_operand.vmem [shape: bf16[2,6,6,256], index: 0, kind: input, shape index: {}]
  %s1 = inlined_call_operand.vmem [shape: bf16[9,256], index: 1, kind: input, shape index: {}]
  %s2 = inlined_call_operand.vmem [shape: f32[1,256], index: 2, kind: input, shape index: {}]
  %s3 = inlined_call_operand.vmem [shape: bf16[2,4,4,256], index: 3, kind: output, shape index: {}]
  %s4 = sld [smem:[#allocation0]]
  $region45: #{_lambda_.23} parent=0
    _
  %s6 = ssub.s32 1, %s4
  %s7 = scalar_select 0, %s6, %s4
  loop: start=0, step=1, limit=4
  $region2: #{_lambda_.23} parent=0 // loop_pre_header
    _
  $region3: #{_lambda_.23} parent=0 // loop_header
    %s9 = sphi 0, %s13
    %p10 = scmp.ge.s32.totalorder %s9, 4
    %s16 = sphi 0, %s28
    %s17 = sphi 0, %s24
    %s18 = sphi 0, %s16
    %s19 = sphi 0, %s17
    %s20 = sphi 0, %s18
    %s21 = sphi 0, %s19
    %s33 = sphi 0, %s35
    %s36 = sphi 0, %s33
    %s37 = sphi 0, %s36
    %s53 = sphi 0, %s37
    %s59 = sphi 0, %s61
    %s62 = sphi 0, %s59
    %s63 = sphi 0, %s62
    %s79 = sphi 0, %s63
    %s85 = sphi 0, %s87
    %s88 = sphi 0, %s85
    %s89 = sphi 0, %s88
    %s105 = sphi 0, %s89
    %s113 = sphi 0, %s115
    %s116 = sphi 0, %s113
    %s117 = sphi 0, %s116
    %s133 = sphi 0, %s117
  $region4: #{_lambda_.23} parent=0 // loop_header_branch
    %12 = sbr.rel (%p10) target = $region8
  $region5: #{_lambda_.23} parent=0 // loop_body
    %s14 = ssub.s32 %s9, 1
    %s15 = ssub.s32 %s9, 2
    %s22 = sadd.s32 1, %s17
    %p23 = scmp.ge.s32.totalorder %s22, 1
    %s24 = scalar_select %p23, 0, %s22
    %s25 = sadd.s32 1, %s16
    %s26 = scalar_select %p23, %s25, %s16
    %p27 = scmp.ge.s32.totalorder %s26, 2
    %s28 = scalar_select %p27, 0, %s26
    %s29 = ssub.s32 %s16, %s28
    %s30 = ssub.s32 %s17, %s24
    %s31 = sor.u32 %s29, %s30
    %p32 = scmp.eq.s32.totalorder %s31, 0
    %s34 = sadd.s32 %s33, 1
    %s35 = scalar_select %p32, %s33, %s34
    %p38 = pneg %p32
    %p39 = scmp.eq.s32.totalorder %s9, 1
    %p40 = por %p38, %p39
    %p41 = scmp.ne.s32.totalorder %s33, %s36
    %p42 = scmp.eq.s32.totalorder %s9, 0
    %p43 = por %p41, %p42
    %p44 = scmp.ne.s32.totalorder %s33, %s36
    %p45 = scmp.eq.s32.totalorder %s14, 1
    %p46 = por %p44, %p45
    %p47 = scmp.ne.s32.totalorder %s36, %s37
    %p48 = scmp.eq.s32.totalorder %s14, 0
    %p49 = por %p47, %p48
    %p50 = scmp.ne.s32.totalorder %s36, %s37
    %p51 = scmp.eq.s32.totalorder %s15, 1
    %p52 = por %p50, %p51
    %p54 = scmp.ne.s32.totalorder %s37, %s53
    %p55 = scmp.eq.s32.totalorder %s15, 0
    %p56 = por %p54, %p55
    %s57 = ssub.s32 %s17, %s24
    %p58 = scmp.eq.s32.totalorder %s57, 0
    %s60 = sadd.s32 %s59, 1
    %s61 = scalar_select %p58, %s59, %s60
    %p64 = pneg %p58
    %p65 = scmp.eq.s32.totalorder %s9, 1
    %p66 = por %p64, %p65
    %p67 = scmp.ne.s32.totalorder %s59, %s62
    %p68 = scmp.eq.s32.totalorder %s9, 0
    %p69 = por %p67, %p68
    %p70 = scmp.ne.s32.totalorder %s59, %s62
    %p71 = scmp.eq.s32.totalorder %s14, 1
    %p72 = por %p70, %p71
    %p73 = scmp.ne.s32.totalorder %s62, %s63
    %p74 = scmp.eq.s32.totalorder %s14, 0
    %p75 = por %p73, %p74
    %p76 = scmp.ne.s32.totalorder %s62, %s63
    %p77 = scmp.eq.s32.totalorder %s15, 1
    %p78 = por %p76, %p77
    %p80 = scmp.ne.s32.totalorder %s63, %s79
    %p81 = scmp.eq.s32.totalorder %s15, 0
    %p82 = por %p80, %p81
    %s83 = ssub.s32 %s17, %s24
    %p84 = scmp.eq.s32.totalorder %s83, 0
    %s86 = sadd.s32 %s85, 1
    %s87 = scalar_select %p84, %s85, %s86
    %p90 = pneg %p84
    %p91 = scmp.eq.s32.totalorder %s9, 1
    %p92 = por %p90, %p91
    %p93 = scmp.ne.s32.totalorder %s85, %s88
    %p94 = scmp.eq.s32.totalorder %s9, 0
    %p95 = por %p93, %p94
    %p96 = scmp.ne.s32.totalorder %s85, %s88
    %p97 = scmp.eq.s32.totalorder %s14, 1
    %p98 = por %p96, %p97
    %p99 = scmp.ne.s32.totalorder %s88, %s89
    %p100 = scmp.eq.s32.totalorder %s14, 0
    %p101 = por %p99, %p100
    %p102 = scmp.ne.s32.totalorder %s88, %s89
    %p103 = scmp.eq.s32.totalorder %s15, 1
    %p104 = por %p102, %p103
    %p106 = scmp.ne.s32.totalorder %s89, %s105
    %p107 = scmp.eq.s32.totalorder %s15, 0
    %p108 = por %p106, %p107
    %s109 = ssub.s32 %s16, %s28
    %s110 = ssub.s32 %s17, %s24
    %s111 = sor.u32 %s109, %s110
    %p112 = scmp.eq.s32.totalorder %s111, 0
    %s114 = sadd.s32 %s113, 1
    %s115 = scalar_select %p112, %s113, %s114
    %p118 = pneg %p112
    %p119 = scmp.eq.s32.totalorder %s9, 1
    %p120 = por %p118, %p119
    %p121 = scmp.ne.s32.totalorder %s113, %s116
    %p122 = scmp.eq.s32.totalorder %s9, 0
    %p123 = por %p121, %p122
    %p124 = scmp.ne.s32.totalorder %s113, %s116
    %p125 = scmp.eq.s32.totalorder %s14, 1
    %p126 = por %p124, %p125
    %p127 = scmp.ne.s32.totalorder %s116, %s117
    %p128 = scmp.eq.s32.totalorder %s14, 0
    %p129 = por %p127, %p128
    %p130 = scmp.ne.s32.totalorder %s116, %s117
    %p131 = scmp.eq.s32.totalorder %s15, 1
    %p132 = por %p130, %p131
    %p134 = scmp.ne.s32.totalorder %s117, %s133
    %p135 = scmp.eq.s32.totalorder %s15, 0
    %p136 = por %p134, %p135
    %p137 = scmp.le.s32.totalorder 1, %s9
    %p138 = scmp.lt.s32.totalorder %s9, 3
    %p139 = pnand %p137, %p138
    %p140 = pneg %p139
    // Predicated region
    $region9: #{_lambda_.23} parent=5 // pred_check
      _
    $region10: #{_lambda_.23} parent=5 // pred_check_branch
      %142 = sbr.rel (%p139) target = $region12
    $region11: #{_lambda_.23} parent=5 // pred_region
      %s143 = ssub.s32 %s9, 1
      // Predicated region
      $region13: #{_lambda_.23} parent=11 // pred_check
        %p144 = pneg %p75
      $region14: #{_lambda_.23} parent=11 // pred_check_branch
        %146 = sbr.rel (%p144) target = $region16
      $region15: #{_lambda_.23} parent=11 // pred_region
        %s147 = smul.u32 2, %s19
        %p148 = scmp.lt.s32.totalorder %s147, 1
        %s149 = scalar_select %p148, %s147, 1
        %s150 = smul.addr %s149, 4
        %s151 = scalar_lea.vmem %s1, %s150
        %s152 = smul.u32 2, %s19
      $region16: #{_lambda_.23} parent=11 // pred_fallthru
        _
      // Predicated region
      $region17: #{_lambda_.23} parent=11 // pred_check
        %p153 = pneg %p101
      $region18: #{_lambda_.23} parent=11 // pred_check_branch
        %155 = sbr.rel (%p153) target = $region20
      $region19: #{_lambda_.23} parent=11 // pred_region
        %s156 = smul.u32 2, %s19
        %p157 = scmp.lt.s32.totalorder %s156, 1
        %s158 = scalar_select %p157, %s156, 1
        %s159 = scalar_lea.vmem %s2, %s158
        %s160 = smul.u32 2, %s19
      $region20: #{_lambda_.23} parent=11 // pred_fallthru
        _
    $region12: #{_lambda_.23} parent=5 // pred_fallthru
      _
    %p161 = scmp.lt.s32.totalorder %s9, 2
    // Predicated region
    $region21: #{_lambda_.23} parent=5 // pred_check
      %p162 = pneg %p161
    $region22: #{_lambda_.23} parent=5 // pred_check_branch
      %164 = sbr.rel (%p162) target = $region24
    $region23: #{_lambda_.23} parent=5 // pred_region
      // Predicated region
      $region25: #{_lambda_.23} parent=23 // pred_check
        %p165 = pneg %p43
      $region26: #{_lambda_.23} parent=23 // pred_check_branch
        %167 = sbr.rel (%p165) target = $region28
      $region27: #{_lambda_.23} parent=23 // pred_region
        %s168 = smul.u32 2, %s17
        %p169 = scmp.lt.s32.totalorder %s16, 1
        %s170 = scalar_select %p169, %s16, 1
        %p171 = scmp.lt.s32.totalorder %s168, 1
        %s172 = scalar_select %p171, %s168, 1
        %s173 = smul.addr %s170, 12
        %s174 = sadd.s32 %s172, %s173
        %s175 = smul.addr %s174, 4
        %s176 = scalar_lea.vmem %s0, %s175
        %s177 = smul.u32 2, %s17
      $region28: #{_lambda_.23} parent=23 // pred_fallthru
        _
    $region24: #{_lambda_.23} parent=5 // pred_fallthru
      _
    %p178 = scmp.le.s32.totalorder 1, %s9
    %p179 = scmp.lt.s32.totalorder %s9, 3
    %p180 = pnand %p178, %p179
    %p181 = pneg %p180
    // Predicated region
    $region29: #{_lambda_.23} parent=5 // pred_check
      _
    $region30: #{_lambda_.23} parent=5 // pred_check_branch
      %183 = sbr.rel (%p180) target = $region32
    $region31: #{_lambda_.23} parent=5 // pred_region
      %s184 = ssub.s32 %s9, 1
      %s185 = smul.u32 2, %s19
      %p186 = scmp.lt.s32.totalorder %s18, 1
      %s187 = scalar_select %p186, %s18, 1
      %p188 = scmp.lt.s32.totalorder %s185, 1
      %s189 = scalar_select %p188, %s185, 1
      %s190 = smul.addr %s187, 12
      %s191 = sadd.s32 %s189, %s190
      %s192 = smul.addr %s191, 4
      %s193 = scalar_lea.vmem %s0, %s192
      %p194 = pneg %p49
      %p195 = pneg %p46
      %s196 = smul.u32 2, %s19
      %p197 = scmp.lt.s32.totalorder %s196, 1
      %s198 = scalar_select %p197, %s196, 1
      %s199 = smul.addr %s198, 4
      %s200 = scalar_lea.vmem %s1, %s199
      %p201 = pneg %p75
      %p202 = pneg %p72
      %s203 = smul.u32 2, %s19
      %p204 = scmp.lt.s32.totalorder %s203, 1
      %s205 = scalar_select %p204, %s203, 1
      %s206 = scalar_lea.vmem %s2, %s205
      %p207 = pneg %p101
      %p208 = pneg %p98
      %p209 = pneg %p129
      %p210 = pneg %p126
      %s211 = smul.u32 2, %s19
      %p212 = scmp.lt.s32.totalorder %s18, 1
      %s213 = scalar_select %p212, %s18, 1
      %p214 = scmp.lt.s32.totalorder %s211, 1
      %s215 = scalar_select %p214, %s211, 1
      %s216 = smul.addr %s213, 8
      %s217 = sadd.s32 %s215, %s216
      %s218 = smul.addr %s217, 2
      %s219 = scalar_lea.vmem %s3, %s218
      %s220 = smul.u32 2, %s19
      %p221 = scmp.lt.s32.totalorder %s18, 1
      %s222 = scalar_select %p221, %s18, 1
      %p223 = scmp.lt.s32.totalorder %s220, 1
      %s224 = scalar_select %p223, %s220, 1
      %s225 = smul.addr %s222, 12
      %s226 = sadd.s32 %s224, %s225
      %s227 = smul.addr %s226, 4
      %s228 = scalar_lea.vmem %s0, %s227
      %s229 = smul.u32 2, %s19
      %s230 = smul.u32 2, %s19
      %p231 = scmp.lt.s32.totalorder %s230, 1
      %s232 = scalar_select %p231, %s230, 1
      %s233 = smul.addr %s232, 4
      %s234 = scalar_lea.vmem %s1, %s233
      %s235 = smul.u32 2, %s19
      %s236 = smul.u32 2, %s19
      %p237 = scmp.lt.s32.totalorder %s236, 1
      %s238 = scalar_select %p237, %s236, 1
      %s239 = scalar_lea.vmem %s2, %s238
      %s240 = smul.u32 2, %s19
      %s241 = smul.u32 2, %s19
      %p242 = scmp.lt.s32.totalorder %s18, 1
      %s243 = scalar_select %p242, %s18, 1
      %p244 = scmp.lt.s32.totalorder %s241, 1
      %s245 = scalar_select %p244, %s241, 1
      %s246 = smul.addr %s243, 8
      %s247 = sadd.s32 %s245, %s246
      %s248 = smul.addr %s247, 2
      %s249 = scalar_lea.vmem %s3, %s248
      %s250 = smul.u32 2, %s19
      %v251 = vld [vmem:[%s228] sm:$0x77]
      %v252 = vld [vmem:[%s228 + $0x8] sm:$0x77]
      %v253 = vld [vmem:[%s228 + $0x10] sm:$0x77]
      %v254 = vld [vmem:[%s228 + $0x18] sm:$0x77]
      %v255 = vld [vmem:[%s228 + $0x20] sm:$0x77]
      %v256 = vld [vmem:[%s228 + $0x28] sm:$0x77]
      %v257 = vunpack.c.l.bf16 %v251
      %v258 = vunpack.c.h.bf16 %v251
      %v259 = vunpack.c.l.bf16 %v252
      %v260 = vunpack.c.h.bf16 %v252
      %v261 = vunpack.c.l.bf16 %v253
      %v262 = vunpack.c.h.bf16 %v253
      %v263 = vunpack.c.l.bf16 %v254
      %v264 = vunpack.c.h.bf16 %v254
      %v265 = vunpack.c.l.bf16 %v255
      %v266 = vunpack.c.h.bf16 %v255
      %v267 = vunpack.c.l.bf16 %v256
      %v268 = vunpack.c.h.bf16 %v256
      %v269 = vld [vmem:[%s234] sm:$0xff]
      %v270 = vld [vmem:[%s234 + $0x8] sm:$0x11]
      %v271 = vunpack.c.l.bf16 %v269
      %v272 = vunpack.c.h.bf16 %v269
      %v273 = vunpack.c.l.bf16 %v270
      %v274 = vunpack.c.h.bf16 %v270
      %v275 = vlaneseq
      %v276 = vshrl.u32 %v275, 7
      %v277 = vsub.s32 0, %v276
      %v278 = vrot.slane %v271, %v277
      %v279 = vlaneseq
      %v280 = vshrl.u32 %v279, 7
      %v281 = vsub.s32 0, %v280
      %v282 = vrot.slane %v272, %v281
      %v283 = vmul.f32 %v257, %v278
      %v284 = vmul.f32 %v258, %v282
      %v285 = vmul.f32 %v259, %v278
      %v286 = vmul.f32 %v260, %v282
      %v287 = vmul.f32 %v261, %v278
      %v288 = vmul.f32 %v262, %v282
      %v289 = vmul.f32 %v263, %v278
      %v290 = vmul.f32 %v264, %v282
      %v291 = vadd.f32 %v283, 0.0
      %v292 = vadd.f32 %v284, 0.0
      %v293 = vadd.f32 %v285, 0.0
      %v294 = vadd.f32 %v286, 0.0
      %v295 = vadd.f32 %v287, 0.0
      %v296 = vadd.f32 %v288, 0.0
      %v297 = vadd.f32 %v289, 0.0
      %v298 = vadd.f32 %v290, 0.0
      %v299 = vlaneseq
      %v300 = vshrl.u32 %v299, 7
      %v301 = vsub.s32 1, %v300
      %v302 = vrot.slane %v271, %v301
      %v303 = vlaneseq
      %v304 = vshrl.u32 %v303, 7
      %v305 = vsub.s32 1, %v304
      %v306 = vrot.slane %v272, %v305
      %v307 = vmul.f32 %v257, %v302
      %v308 = vmul.f32 %v258, %v306
      %v309 = vmul.f32 %v259, %v302
      %v310 = vmul.f32 %v260, %v306
      %v311 = vmul.f32 %v261, %v302
      %v312 = vmul.f32 %v262, %v306
      %v313 = vmul.f32 %v263, %v302
      %v314 = vmul.f32 %v264, %v306
      %v323 = vrot.slane %v307, 1
      %v324 = vrot.slane %v308, 1
      %v325 = vrot.slane %v309, 1
      %v326 = vrot.slane %v310, 1
      %v327 = vrot.slane %v311, 1
      %v328 = vrot.slane %v312, 1
      %v329 = vrot.slane %v313, 1
      %v330 = vrot.slane %v314, 1
      %v339 = vadd.f32 %v291, %v323
      %v340 = vadd.f32 %v292, %v324
      %v341 = vadd.f32 %v293, %v325
      %v342 = vadd.f32 %v294, %v326
      %v343 = vadd.f32 %v295, %v327
      %v344 = vadd.f32 %v296, %v328
      %v345 = vadd.f32 %v297, %v329
      %v346 = vadd.f32 %v298, %v330
      %v347 = vlaneseq
      %v348 = vshrl.u32 %v347, 7
      %v349 = vsub.s32 2, %v348
      %v350 = vrot.slane %v271, %v349
      %v351 = vlaneseq
      %v352 = vshrl.u32 %v351, 7
      %v353 = vsub.s32 2, %v352
      %v354 = vrot.slane %v272, %v353
      %v355 = vmul.f32 %v257, %v350
      %v356 = vmul.f32 %v258, %v354
      %v357 = vmul.f32 %v259, %v350
      %v358 = vmul.f32 %v260, %v354
      %v359 = vmul.f32 %v261, %v350
      %v360 = vmul.f32 %v262, %v354
      %v361 = vmul.f32 %v263, %v350
      %v362 = vmul.f32 %v264, %v354
      %v371 = vrot.slane %v355, 2
      %v372 = vrot.slane %v356, 2
      %v373 = vrot.slane %v357, 2
      %v374 = vrot.slane %v358, 2
      %v375 = vrot.slane %v359, 2
      %v376 = vrot.slane %v360, 2
      %v377 = vrot.slane %v361, 2
      %v378 = vrot.slane %v362, 2
      %v387 = vadd.f32 %v339, %v371
      %v388 = vadd.f32 %v340, %v372
      %v389 = vadd.f32 %v341, %v373
      %v390 = vadd.f32 %v342, %v374
      %v391 = vadd.f32 %v343, %v375
      %v392 = vadd.f32 %v344, %v376
      %v393 = vadd.f32 %v345, %v377
      %v394 = vadd.f32 %v346, %v378
      %v395 = vlaneseq
      %v396 = vshrl.u32 %v395, 7
      %v397 = vsub.s32 3, %v396
      %v398 = vrot.slane %v271, %v397
      %v399 = vlaneseq
      %v400 = vshrl.u32 %v399, 7
      %v401 = vsub.s32 3, %v400
      %v402 = vrot.slane %v272, %v401
      %v403 = vmul.f32 %v259, %v398
      %v404 = vmul.f32 %v260, %v402
      %v405 = vmul.f32 %v261, %v398
      %v406 = vmul.f32 %v262, %v402
      %v407 = vmul.f32 %v263, %v398
      %v408 = vmul.f32 %v264, %v402
      %v409 = vmul.f32 %v265, %v398
      %v410 = vmul.f32 %v266, %v402
      %v411 = vadd.f32 %v387, %v403
      %v412 = vadd.f32 %v388, %v404
      %v413 = vadd.f32 %v389, %v405
      %v414 = vadd.f32 %v390, %v406
      %v415 = vadd.f32 %v391, %v407
      %v416 = vadd.f32 %v392, %v408
      %v417 = vadd.f32 %v393, %v409
      %v418 = vadd.f32 %v394, %v410
      %v419 = vlaneseq
      %v420 = vshrl.u32 %v419, 7
      %v421 = vsub.s32 4, %v420
      %v422 = vrot.slane %v271, %v421
      %v423 = vlaneseq
      %v424 = vshrl.u32 %v423, 7
      %v425 = vsub.s32 4, %v424
      %v426 = vrot.slane %v272, %v425
      %v427 = vmul.f32 %v259, %v422
      %v428 = vmul.f32 %v260, %v426
      %v429 = vmul.f32 %v261, %v422
      %v430 = vmul.f32 %v262, %v426
      %v431 = vmul.f32 %v263, %v422
      %v432 = vmul.f32 %v264, %v426
      %v433 = vmul.f32 %v265, %v422
      %v434 = vmul.f32 %v266, %v426
      %v443 = vrot.slane %v427, 1
      %v444 = vrot.slane %v428, 1
      %v445 = vrot.slane %v429, 1
      %v446 = vrot.slane %v430, 1
      %v447 = vrot.slane %v431, 1
      %v448 = vrot.slane %v432, 1
      %v449 = vrot.slane %v433, 1
      %v450 = vrot.slane %v434, 1
      %v459 = vadd.f32 %v411, %v443
      %v460 = vadd.f32 %v412, %v444
      %v461 = vadd.f32 %v413, %v445
      %v462 = vadd.f32 %v414, %v446
      %v463 = vadd.f32 %v415, %v447
      %v464 = vadd.f32 %v416, %v448
      %v465 = vadd.f32 %v417, %v449
      %v466 = vadd.f32 %v418, %v450
      %v467 = vlaneseq
      %v468 = vshrl.u32 %v467, 7
      %v469 = vsub.s32 5, %v468
      %v470 = vrot.slane %v271, %v469
      %v471 = vlaneseq
      %v472 = vshrl.u32 %v471, 7
      %v473 = vsub.s32 5, %v472
      %v474 = vrot.slane %v272, %v473
      %v475 = vmul.f32 %v259, %v470
      %v476 = vmul.f32 %v260, %v474
      %v477 = vmul.f32 %v261, %v470
      %v478 = vmul.f32 %v262, %v474
      %v479 = vmul.f32 %v263, %v470
      %v480 = vmul.f32 %v264, %v474
      %v481 = vmul.f32 %v265, %v470
      %v482 = vmul.f32 %v266, %v474
      %v491 = vrot.slane %v475, 2
      %v492 = vrot.slane %v476, 2
      %v493 = vrot.slane %v477, 2
      %v494 = vrot.slane %v478, 2
      %v495 = vrot.slane %v479, 2
      %v496 = vrot.slane %v480, 2
      %v497 = vrot.slane %v481, 2
      %v498 = vrot.slane %v482, 2
      %v507 = vadd.f32 %v459, %v491
      %v508 = vadd.f32 %v460, %v492
      %v509 = vadd.f32 %v461, %v493
      %v510 = vadd.f32 %v462, %v494
      %v511 = vadd.f32 %v463, %v495
      %v512 = vadd.f32 %v464, %v496
      %v513 = vadd.f32 %v465, %v497
      %v514 = vadd.f32 %v466, %v498
      %v515 = vlaneseq
      %v516 = vshrl.u32 %v515, 7
      %v517 = vsub.s32 6, %v516
      %v518 = vrot.slane %v271, %v517
      %v519 = vlaneseq
      %v520 = vshrl.u32 %v519, 7
      %v521 = vsub.s32 6, %v520
      %v522 = vrot.slane %v272, %v521
      %v523 = vmul.f32 %v261, %v518
      %v524 = vmul.f32 %v262, %v522
      %v525 = vmul.f32 %v263, %v518
      %v526 = vmul.f32 %v264, %v522
      %v527 = vmul.f32 %v265, %v518
      %v528 = vmul.f32 %v266, %v522
      %v529 = vmul.f32 %v267, %v518
      %v530 = vmul.f32 %v268, %v522
      %v531 = vadd.f32 %v507, %v523
      %v532 = vadd.f32 %v508, %v524
      %v533 = vadd.f32 %v509, %v525
      %v534 = vadd.f32 %v510, %v526
      %v535 = vadd.f32 %v511, %v527
      %v536 = vadd.f32 %v512, %v528
      %v537 = vadd.f32 %v513, %v529
      %v538 = vadd.f32 %v514, %v530
      %v539 = vlaneseq
      %v540 = vshrl.u32 %v539, 7
      %v541 = vsub.s32 7, %v540
      %v542 = vrot.slane %v271, %v541
      %v543 = vlaneseq
      %v544 = vshrl.u32 %v543, 7
      %v545 = vsub.s32 7, %v544
      %v546 = vrot.slane %v272, %v545
      %v547 = vmul.f32 %v261, %v542
      %v548 = vmul.f32 %v262, %v546
      %v549 = vmul.f32 %v263, %v542
      %v550 = vmul.f32 %v264, %v546
      %v551 = vmul.f32 %v265, %v542
      %v552 = vmul.f32 %v266, %v546
      %v553 = vmul.f32 %v267, %v542
      %v554 = vmul.f32 %v268, %v546
      %v563 = vrot.slane %v547, 1
      %v564 = vrot.slane %v548, 1
      %v565 = vrot.slane %v549, 1
      %v566 = vrot.slane %v550, 1
      %v567 = vrot.slane %v551, 1
      %v568 = vrot.slane %v552, 1
      %v569 = vrot.slane %v553, 1
      %v570 = vrot.slane %v554, 1
      %v579 = vadd.f32 %v531, %v563
      %v580 = vadd.f32 %v532, %v564
      %v581 = vadd.f32 %v533, %v565
      %v582 = vadd.f32 %v534, %v566
      %v583 = vadd.f32 %v535, %v567
      %v584 = vadd.f32 %v536, %v568
      %v585 = vadd.f32 %v537, %v569
      %v586 = vadd.f32 %v538, %v570
      %v587 = vlaneseq
      %v588 = vshrl.u32 %v587, 7
      %v589 = vsub.s32 0, %v588
      %v590 = vrot.slane %v273, %v589
      %v591 = vlaneseq
      %v592 = vshrl.u32 %v591, 7
      %v593 = vsub.s32 0, %v592
      %v594 = vrot.slane %v274, %v593
      %v595 = vmul.f32 %v261, %v590
      %v596 = vmul.f32 %v262, %v594
      %v597 = vmul.f32 %v263, %v590
      %v598 = vmul.f32 %v264, %v594
      %v599 = vmul.f32 %v265, %v590
      %v600 = vmul.f32 %v266, %v594
      %v601 = vmul.f32 %v267, %v590
      %v602 = vmul.f32 %v268, %v594
      %v611 = vrot.slane %v595, 2
      %v612 = vrot.slane %v596, 2
      %v613 = vrot.slane %v597, 2
      %v614 = vrot.slane %v598, 2
      %v615 = vrot.slane %v599, 2
      %v616 = vrot.slane %v600, 2
      %v617 = vrot.slane %v601, 2
      %v618 = vrot.slane %v602, 2
      %v627 = vadd.f32 %v579, %v611
      %v628 = vadd.f32 %v580, %v612
      %v629 = vadd.f32 %v581, %v613
      %v630 = vadd.f32 %v582, %v614
      %v631 = vadd.f32 %v583, %v615
      %v632 = vadd.f32 %v584, %v616
      %v633 = vadd.f32 %v585, %v617
      %v634 = vadd.f32 %v586, %v618
      %v635 = vld [vmem:[%s239] sm:$0x3]
      %v637 = vlaneseq
      %v638 = vshrl.u32 %v637, 7
      %v639 = vsub.s32 0, %v638
      %v640 = vrot.slane %v635, %v639
      %v641 = vlaneseq
      %v642 = vshrl.u32 %v641, 7
      %v643 = vsub.s32 1, %v642
      %v644 = vrot.slane %v635, %v643
      %v647 = vadd.f32 %v627, %v640
      %v648 = vadd.f32 %v628, %v644
      %v649 = vadd.f32 %v629, %v640
      %v650 = vadd.f32 %v630, %v644
      %v651 = vadd.f32 %v631, %v640
      %v652 = vadd.f32 %v632, %v644
      %v653 = vadd.f32 %v633, %v640
      %v654 = vadd.f32 %v634, %v644
      %v655 = vxor.u32 %v647, 2147483648
      %v656 = vxor.u32 %v648, 2147483648
      %v657 = vxor.u32 %v649, 2147483648
      %v658 = vxor.u32 %v650, 2147483648
      %v659 = vxor.u32 %v651, 2147483648
      %v660 = vxor.u32 %v652, 2147483648
      %v661 = vxor.u32 %v653, 2147483648
      %v662 = vxor.u32 %v654, 2147483648
      %v663 = vmul.f32 %v655, 1.442695
      %v664 = vpow.pop %v663
      %v665 = vmul.f32 %v656, 1.442695
      %v666 = vpow.pop %v665
      %v667 = vmul.f32 %v657, 1.442695
      %v668 = vpow.pop %v667
      %v669 = vmul.f32 %v658, 1.442695
      %v670 = vpow.pop %v669
      %v671 = vmul.f32 %v659, 1.442695
      %v672 = vpow.pop %v671
      %v673 = vmul.f32 %v660, 1.442695
      %v674 = vpow.pop %v673
      %v675 = vmul.f32 %v661, 1.442695
      %v676 = vpow.pop %v675
      %v677 = vmul.f32 %v662, 1.442695
      %v678 = vpow.pop %v677
      %v679 = vadd.f32 %v664, 1.0
      %v680 = vadd.f32 %v666, 1.0
      %v681 = vadd.f32 %v668, 1.0
      %v682 = vadd.f32 %v670, 1.0
      %v683 = vadd.f32 %v672, 1.0
      %v684 = vadd.f32 %v674, 1.0
      %v685 = vadd.f32 %v676, 1.0
      %v686 = vadd.f32 %v678, 1.0
      %v687 = vrcp.pop %v679
      %v688 = vmul.f32 1.0, %v687
      %v689 = vrcp.pop %v680
      %v690 = vmul.f32 1.0, %v689
      %v691 = vrcp.pop %v681
      %v692 = vmul.f32 1.0, %v691
      %v693 = vrcp.pop %v682
      %v694 = vmul.f32 1.0, %v693
      %v695 = vrcp.pop %v683
      %v696 = vmul.f32 1.0, %v695
      %v697 = vrcp.pop %v684
      %v698 = vmul.f32 1.0, %v697
      %v699 = vrcp.pop %v685
      %v700 = vmul.f32 1.0, %v699
      %v701 = vrcp.pop %v686
      %v702 = vmul.f32 1.0, %v701
      %v703 = vmul.f32 %v647, %v688
      %v704 = vmul.f32 %v648, %v690
      %v705 = vmul.f32 %v649, %v692
      %v706 = vmul.f32 %v650, %v694
      %v707 = vmul.f32 %v651, %v696
      %v708 = vmul.f32 %v652, %v698
      %v709 = vmul.f32 %v653, %v700
      %v710 = vmul.f32 %v654, %v702
      %v711 = vpack.c.bf16 %v703, %v703
      %v712 = vpack.c.bf16 %v704, %v704
      %v713 = vpack.c.bf16 %v705, %v705
      %v714 = vpack.c.bf16 %v706, %v706
      %v715 = vpack.c.bf16 %v707, %v707
      %v716 = vpack.c.bf16 %v708, %v708
      %v717 = vpack.c.bf16 %v709, %v709
      %v718 = vpack.c.bf16 %v710, %v710
      %v727 = vcombine.low %v711, %v712
      %v729 = vunpack.c.l.s4 1983009808
      %v730 = vunpack.c.0.s8 %v729
      %v731 = vlaneseq
      %v732 = vshrl.u32 %v731, 7
      %v733 = vsub.s32 %v730, %v732
      %v734 = vrot.slane %v727, %v733
      %v735 = vcombine.low %v713, %v714
      %v737 = vunpack.c.l.s4 1983009808
      %v738 = vunpack.c.0.s8 %v737
      %v739 = vlaneseq
      %v740 = vshrl.u32 %v739, 7
      %v741 = vsub.s32 %v738, %v740
      %v742 = vrot.slane %v735, %v741
      %v743 = vcombine.low %v715, %v716
      %v745 = vunpack.c.l.s4 1983009808
      %v746 = vunpack.c.0.s8 %v745
      %v747 = vlaneseq
      %v748 = vshrl.u32 %v747, 7
      %v749 = vsub.s32 %v746, %v748
      %v750 = vrot.slane %v743, %v749
      %v751 = vcombine.low %v717, %v718
      %v753 = vunpack.c.l.s4 1983009808
      %v754 = vunpack.c.0.s8 %v753
      %v755 = vlaneseq
      %v756 = vshrl.u32 %v755, 7
      %v757 = vsub.s32 %v754, %v756
      %v758 = vrot.slane %v751, %v757
      %763 = vst [vmem:[%s249] sm:$0xf] %v734
      %764 = vst [vmem:[%s249 + $0x4] sm:$0xf] %v742
      %765 = vst [vmem:[%s249 + $0x8] sm:$0xf] %v750
      %766 = vst [vmem:[%s249 + $0xc] sm:$0xf] %v758
      %s767 = smul.u32 2, %s19
      %p768 = scmp.lt.s32.totalorder %s18, 1
      %s769 = scalar_select %p768, %s18, 1
      %p770 = scmp.lt.s32.totalorder %s767, 1
      %s771 = scalar_select %p770, %s767, 1
      %s772 = smul.addr %s769, 8
      %s773 = sadd.s32 %s771, %s772
      %s774 = smul.addr %s773, 2
      %s775 = scalar_lea.vmem %s3, %s774
      // Predicated region
      $region33: #{_lambda_.23} parent=31 // pred_check
        %p776 = pneg %p126
      $region34: #{_lambda_.23} parent=31 // pred_check_branch
        %778 = sbr.rel (%p776) target = $region36
      $region35: #{_lambda_.23} parent=31 // pred_region
        %s779 = smul.u32 2, %s19
      $region36: #{_lambda_.23} parent=31 // pred_fallthru
        _
    $region32: #{_lambda_.23} parent=5 // pred_fallthru
      _
    %p780 = scmp.le.s32.totalorder 2, %s9
    // Predicated region
    $region37: #{_lambda_.23} parent=5 // pred_check
      %p781 = pneg %p780
    $region38: #{_lambda_.23} parent=5 // pred_check_branch
      %783 = sbr.rel (%p781) target = $region40
    $region39: #{_lambda_.23} parent=5 // pred_region
      %s784 = ssub.s32 %s9, 2
      // Predicated region
      $region41: #{_lambda_.23} parent=39 // pred_check
        %p785 = pneg %p132
      $region42: #{_lambda_.23} parent=39 // pred_check_branch
        %787 = sbr.rel (%p785) target = $region44
      $region43: #{_lambda_.23} parent=39 // pred_region
        %s788 = smul.u32 2, %s21
        %p789 = scmp.lt.s32.totalorder %s20, 1
        %s790 = scalar_select %p789, %s20, 1
        %p791 = scmp.lt.s32.totalorder %s788, 1
        %s792 = scalar_select %p791, %s788, 1
        %s793 = smul.addr %s790, 8
        %s794 = sadd.s32 %s792, %s793
        %s795 = smul.addr %s794, 2
        %s796 = scalar_lea.vmem %s3, %s795
      $region44: #{_lambda_.23} parent=39 // pred_fallthru
        _
    $region40: #{_lambda_.23} parent=5 // pred_fallthru
      _
  $region6: #{_lambda_.23} parent=0 // loop_footer
    %s13 = sadd.s32 1, %s9
  $region7: #{_lambda_.23} parent=0 // loop_footer_branch
    %8 = sbr.rel target = $region3
  $region8: #{_lambda_.23} parent=0 // loop_exit
    _

// kernel: _lambda_.24
$region0: #{_lambda_.24}
  #allocation0 [shape = 'u32[]', space=smem, size = 0x4, offset = 0x4, fixed_abs, tag = 'smem constant byte address 0x4 - core index']
  #allocation1 [shape = 'u32[144,128]{1,0:T(1,128)}', space=vmem, size = 0x12000, scoped, tag = 'internal scratch']
  %s0 = inlined_call_operand.vmem [shape: bf16[2,16,256], index: 0, kind: input, shape index: {}]
  %s1 = inlined_call_operand.vmem [shape: bf16[256,128], index: 1, kind: input, shape index: {}]
  %s2 = inlined_call_operand.vmem [shape: f32[1,128], index: 2, kind: input, shape index: {}]
  %s3 = inlined_call_operand.vmem [shape: bf16[128,256], index: 3, kind: input, shape index: {}]
  %s4 = inlined_call_operand.vmem [shape: f32[1,256], index: 4, kind: input, shape index: {}]
  %s5 = inlined_call_operand.vmem [shape: bf16[2,1,256], index: 5, kind: output, shape index: {}]
  %s6 = sld [smem:[#allocation0]]
  $region53: #{_lambda_.24} parent=0
    _
  %s8 = ssub.s32 1, %s6
  %s9 = scalar_select 0, %s8, %s6
  loop: start=0, step=1, limit=4
  $region2: #{_lambda_.24} parent=0 // loop_pre_header
    _
  $region3: #{_lambda_.24} parent=0 // loop_header
    %s11 = sphi 0, %s15
    %p12 = scmp.ge.s32.totalorder %s11, 4
    %s21 = sphi 0, %s23
    %s24 = sphi 0, %s21
    %s25 = sphi 0, %s24
    %s41 = sphi 0, %s25
    %s45 = sphi 0, %s45
    %s47 = sphi 0, %s45
    %s48 = sphi 0, %s47
    %s62 = sphi 0, %s48
    %s66 = sphi 0, %s66
    %s68 = sphi 0, %s66
    %s69 = sphi 0, %s68
    %s83 = sphi 0, %s69
    %s87 = sphi 0, %s87
    %s89 = sphi 0, %s87
    %s90 = sphi 0, %s89
    %s104 = sphi 0, %s90
    %s108 = sphi 0, %s108
    %s110 = sphi 0, %s108
    %s111 = sphi 0, %s110
    %s125 = sphi 0, %s111
    %s131 = sphi 0, %s133
    %s134 = sphi 0, %s131
    %s135 = sphi 0, %s134
    %s151 = sphi 0, %s135
  $region4: #{_lambda_.24} parent=0 // loop_header_branch
    %14 = sbr.rel (%p12) target = $region8
  $region5: #{_lambda_.24} parent=0 // loop_body
    %s16 = ssub.s32 %s11, 1
    %s17 = ssub.s32 %s11, 2
    %s18 = sadd.s32 %s11, 1
    %s19 = ssub.s32 %s11, %s18
    %p20 = scmp.eq.s32.totalorder %s19, 0
    %s22 = sadd.s32 %s21, 1
    %s23 = scalar_select %p20, %s21, %s22
    %p26 = pneg %p20
    %p27 = scmp.eq.s32.totalorder %s11, 1
    %p28 = por %p26, %p27
    %p29 = scmp.ne.s32.totalorder %s21, %s24
    %p30 = scmp.eq.s32.totalorder %s11, 0
    %p31 = por %p29, %p30
    %p32 = scmp.ne.s32.totalorder %s21, %s24
    %p33 = scmp.eq.s32.totalorder %s16, 1
    %p34 = por %p32, %p33
    %p35 = scmp.ne.s32.totalorder %s24, %s25
    %p36 = scmp.eq.s32.totalorder %s16, 0
    %p37 = por %p35, %p36
    %p38 = scmp.ne.s32.totalorder %s24, %s25
    %p39 = scmp.eq.s32.totalorder %s17, 1
    %p40 = por %p38, %p39
    %p42 = scmp.ne.s32.totalorder %s25, %s41
    %p43 = scmp.eq.s32.totalorder %s17, 0
    %p44 = por %p42, %p43
    %s46 = sadd.s32 %s45, 1
    %p49 = scmp.eq.s32.totalorder %s11, 1
    %p50 = scmp.ne.s32.totalorder %s45, %s47
    %p51 = scmp.eq.s32.totalorder %s11, 0
    %p52 = por %p50, %p51
    %p53 = scmp.ne.s32.totalorder %s45, %s47
    %p54 = scmp.eq.s32.totalorder %s16, 1
    %p55 = por %p53, %p54
    %p56 = scmp.ne.s32.totalorder %s47, %s48
    %p57 = scmp.eq.s32.totalorder %s16, 0
    %p58 = por %p56, %p57
    %p59 = scmp.ne.s32.totalorder %s47, %s48
    %p60 = scmp.eq.s32.totalorder %s17, 1
    %p61 = por %p59, %p60
    %p63 = scmp.ne.s32.totalorder %s48, %s62
    %p64 = scmp.eq.s32.totalorder %s17, 0
    %p65 = por %p63, %p64
    %s67 = sadd.s32 %s66, 1
    %p70 = scmp.eq.s32.totalorder %s11, 1
    %p71 = scmp.ne.s32.totalorder %s66, %s68
    %p72 = scmp.eq.s32.totalorder %s11, 0
    %p73 = por %p71, %p72
    %p74 = scmp.ne.s32.totalorder %s66, %s68
    %p75 = scmp.eq.s32.totalorder %s16, 1
    %p76 = por %p74, %p75
    %p77 = scmp.ne.s32.totalorder %s68, %s69
    %p78 = scmp.eq.s32.totalorder %s16, 0
    %p79 = por %p77, %p78
    %p80 = scmp.ne.s32.totalorder %s68, %s69
    %p81 = scmp.eq.s32.totalorder %s17, 1
    %p82 = por %p80, %p81
    %p84 = scmp.ne.s32.totalorder %s69, %s83
    %p85 = scmp.eq.s32.totalorder %s17, 0
    %p86 = por %p84, %p85
    %s88 = sadd.s32 %s87, 1
    %p91 = scmp.eq.s32.totalorder %s11, 1
    %p92 = scmp.ne.s32.totalorder %s87, %s89
    %p93 = scmp.eq.s32.totalorder %s11, 0
    %p94 = por %p92, %p93
    %p95 = scmp.ne.s32.totalorder %s87, %s89
    %p96 = scmp.eq.s32.totalorder %s16, 1
    %p97 = por %p95, %p96
    %p98 = scmp.ne.s32.totalorder %s89, %s90
    %p99 = scmp.eq.s32.totalorder %s16, 0
    %p100 = por %p98, %p99
    %p101 = scmp.ne.s32.totalorder %s89, %s90
    %p102 = scmp.eq.s32.totalorder %s17, 1
    %p103 = por %p101, %p102
    %p105 = scmp.ne.s32.totalorder %s90, %s104
    %p106 = scmp.eq.s32.totalorder %s17, 0
    %p107 = por %p105, %p106
    %s109 = sadd.s32 %s108, 1
    %p112 = scmp.eq.s32.totalorder %s11, 1
    %p113 = scmp.ne.s32.totalorder %s108, %s110
    %p114 = scmp.eq.s32.totalorder %s11, 0
    %p115 = por %p113, %p114
    %p116 = scmp.ne.s32.totalorder %s108, %s110
    %p117 = scmp.eq.s32.totalorder %s16, 1
    %p118 = por %p116, %p117
    %p119 = scmp.ne.s32.totalorder %s110, %s111
    %p120 = scmp.eq.s32.totalorder %s16, 0
    %p121 = por %p119, %p120
    %p122 = scmp.ne.s32.totalorder %s110, %s111
    %p123 = scmp.eq.s32.totalorder %s17, 1
    %p124 = por %p122, %p123
    %p126 = scmp.ne.s32.totalorder %s111, %s125
    %p127 = scmp.eq.s32.totalorder %s17, 0
    %p128 = por %p126, %p127
    %s129 = ssub.s32 %s11, %s18
    %p130 = scmp.eq.s32.totalorder %s129, 0
    %s132 = sadd.s32 %s131, 1
    %s133 = scalar_select %p130, %s131, %s132
    %p136 = pneg %p130
    %p137 = scmp.eq.s32.totalorder %s11, 1
    %p138 = por %p136, %p137
    %p139 = scmp.ne.s32.totalorder %s131, %s134
    %p140 = scmp.eq.s32.totalorder %s11, 0
    %p141 = por %p139, %p140
    %p142 = scmp.ne.s32.totalorder %s131, %s134
    %p143 = scmp.eq.s32.totalorder %s16, 1
    %p144 = por %p142, %p143
    %p145 = scmp.ne.s32.totalorder %s134, %s135
    %p146 = scmp.eq.s32.totalorder %s16, 0
    %p147 = por %p145, %p146
    %p148 = scmp.ne.s32.totalorder %s134, %s135
    %p149 = scmp.eq.s32.totalorder %s17, 1
    %p150 = por %p148, %p149
    %p152 = scmp.ne.s32.totalorder %s135, %s151
    %p153 = scmp.eq.s32.totalorder %s17, 0
    %p154 = por %p152, %p153
    %p155 = scmp.le.s32.totalorder 1, %s11
    %p156 = scmp.lt.s32.totalorder %s11, 3
    %p157 = pnand %p155, %p156
    %p158 = pneg %p157
    // Predicated region
    $region9: #{_lambda_.24} parent=5 // pred_check
      _
    $region10: #{_lambda_.24} parent=5 // pred_check_branch
      %160 = sbr.rel (%p157) target = $region12
    $region11: #{_lambda_.24} parent=5 // pred_region
      %s161 = ssub.s32 %s11, 1
      // Predicated region
      $region13: #{_lambda_.24} parent=11 // pred_check
        %p162 = pneg %p58
      $region14: #{_lambda_.24} parent=11 // pred_check_branch
        %164 = sbr.rel (%p162) target = $region16
      $region15: #{_lambda_.24} parent=11 // pred_region
        _
      $region16: #{_lambda_.24} parent=11 // pred_fallthru
        _
      // Predicated region
      $region17: #{_lambda_.24} parent=11 // pred_check
        %p165 = pneg %p79
      $region18: #{_lambda_.24} parent=11 // pred_check_branch
        %167 = sbr.rel (%p165) target = $region20
      $region19: #{_lambda_.24} parent=11 // pred_region
        _
      $region20: #{_lambda_.24} parent=11 // pred_fallthru
        _
      // Predicated region
      $region21: #{_lambda_.24} parent=11 // pred_check
        %p168 = pneg %p100
      $region22: #{_lambda_.24} parent=11 // pred_check_branch
        %170 = sbr.rel (%p168) target = $region24
      $region23: #{_lambda_.24} parent=11 // pred_region
        _
      $region24: #{_lambda_.24} parent=11 // pred_fallthru
        _
      // Predicated region
      $region25: #{_lambda_.24} parent=11 // pred_check
        %p171 = pneg %p121
      $region26: #{_lambda_.24} parent=11 // pred_check_branch
        %173 = sbr.rel (%p171) target = $region28
      $region27: #{_lambda_.24} parent=11 // pred_region
        _
      $region28: #{_lambda_.24} parent=11 // pred_fallthru
        _
    $region12: #{_lambda_.24} parent=5 // pred_fallthru
      _
    %p174 = scmp.lt.s32.totalorder %s11, 2
    // Predicated region
    $region29: #{_lambda_.24} parent=5 // pred_check
      %p175 = pneg %p174
    $region30: #{_lambda_.24} parent=5 // pred_check_branch
      %177 = sbr.rel (%p175) target = $region32
    $region31: #{_lambda_.24} parent=5 // pred_region
      // Predicated region
      $region33: #{_lambda_.24} parent=31 // pred_check
        %p178 = pneg %p31
      $region34: #{_lambda_.24} parent=31 // pred_check_branch
        %180 = sbr.rel (%p178) target = $region36
      $region35: #{_lambda_.24} parent=31 // pred_region
        %p181 = scmp.lt.s32.totalorder %s11, 1
        %s182 = scalar_select %p181, %s11, 1
        %s183 = smul.addr %s182, 4
        %s184 = smul.addr %s183, 4
        %s185 = scalar_lea.vmem %s0, %s184
      $region36: #{_lambda_.24} parent=31 // pred_fallthru
        _
    $region32: #{_lambda_.24} parent=5 // pred_fallthru
      _
    %p186 = scmp.le.s32.totalorder 1, %s11
    %p187 = scmp.lt.s32.totalorder %s11, 3
    %p188 = pnand %p186, %p187
    %p189 = pneg %p188
    // Predicated region
    $region37: #{_lambda_.24} parent=5 // pred_check
      _
    $region38: #{_lambda_.24} parent=5 // pred_check_branch
      %191 = sbr.rel (%p188) target = $region40
    $region39: #{_lambda_.24} parent=5 // pred_region
      %s192 = ssub.s32 %s11, 1
      %p193 = scmp.lt.s32.totalorder %s16, 1
      %s194 = scalar_select %p193, %s16, 1
      %s195 = smul.addr %s194, 4
      %s196 = smul.addr %s195, 4
      %s197 = scalar_lea.vmem %s0, %s196
      %p198 = pneg %p37
      %p199 = pneg %p34
      %p200 = pneg %p58
      %p201 = pneg %p55
      %p202 = pneg %p79
      %p203 = pneg %p76
      %p204 = pneg %p100
      %p205 = pneg %p97
      %p206 = pneg %p121
      %p207 = pneg %p118
      %p208 = pneg %p147
      %p209 = pneg %p144
      %p210 = scmp.lt.s32.totalorder %s16, 1
      %s211 = scalar_select %p210, %s16, 1
      %s212 = smul.addr %s211, 2
      %s213 = scalar_lea.vmem %s5, %s212
      %p214 = scmp.lt.s32.totalorder %s16, 1
      %s215 = scalar_select %p214, %s16, 1
      %s216 = smul.addr %s215, 4
      %s217 = smul.addr %s216, 4
      %s218 = scalar_lea.vmem %s0, %s217
      %p219 = scmp.lt.s32.totalorder %s16, 1
      %s220 = scalar_select %p219, %s16, 1
      %s221 = smul.addr %s220, 2
      %s222 = scalar_lea.vmem %s5, %s221
      %v224 = vld [vmem:[%s218] sm:$0xff]
      %v225 = vld [vmem:[%s218 + $0x8] sm:$0xff]
      %v226 = vunpack.c.l.bf16 %v224
      %v227 = vunpack.c.h.bf16 %v224
      %v228 = vunpack.c.l.bf16 %v225
      %v229 = vunpack.c.h.bf16 %v225
      %v230 = vadd.f32 %v226, %v228
      %v231 = vrot.slane %v230, 4
      %v232 = vadd.f32 %v230, %v231
      %v233 = vrot.slane %v232, 2
      %v234 = vadd.f32 %v232, %v233
      %v235 = vrot.slane %v234, 1
      %v236 = vadd.f32 %v234, %v235
      %v237 = vadd.f32 %v227, %v229
      %v238 = vrot.slane %v237, 4
      %v239 = vadd.f32 %v237, %v238
      %v240 = vrot.slane %v239, 2
      %v241 = vadd.f32 %v239, %v240
      %v242 = vrot.slane %v241, 1
      %v243 = vadd.f32 %v241, %v242
      %v244 = vrcp.pop 16.0
      %v245 = vmul.f32 %v236, %v244
      %v246 = vmul.f32 %v243, %v244
      %v247 = vpack.c.bf16 %v245, %v245
      %v248 = vpack.c.bf16 %v246, %v246
      %v249 = vld [vmem:[%s1] sm:$0xf]
      %v250 = vld [vmem:[%s1 + $0x4] sm:$0xf]
      %v251 = vld [vmem:[%s1 + $0x8] sm:$0xf]
      %v252 = vld [vmem:[%s1 + $0xc] sm:$0xf]
      %v253 = vld [vmem:[%s1 + $0x10] sm:$0xf]
      %v254 = vld [vmem:[%s1 + $0x14] sm:$0xf]
      %v255 = vld [vmem:[%s1 + $0x18] sm:$0xf]
      %v256 = vld [vmem:[%s1 + $0x1c] sm:$0xf]
      %v257 = vld [vmem:[%s1 + $0x20] sm:$0xf]
      %v258 = vld [vmem:[%s1 + $0x24] sm:$0xf]
      %v259 = vld [vmem:[%s1 + $0x28] sm:$0xf]
      %v260 = vld [vmem:[%s1 + $0x2c] sm:$0xf]
      %v261 = vld [vmem:[%s1 + $0x30] sm:$0xf]
      %v262 = vld [vmem:[%s1 + $0x34] sm:$0xf]
      %v263 = vld [vmem:[%s1 + $0x38] sm:$0xf]
      %v264 = vld [vmem:[%s1 + $0x3c] sm:$0xf]
      %v265 = vld [vmem:[%s1 + $0x40] sm:$0xf]
      %v266 = vld [vmem:[%s1 + $0x44] sm:$0xf]
      %v267 = vld [vmem:[%s1 + $0x48] sm:$0xf]
      %v268 = vld [vmem:[%s1 + $0x4c] sm:$0xf]
      %v269 = vld [vmem:[%s1 + $0x50] sm:$0xf]
      %v270 = vld [vmem:[%s1 + $0x54] sm:$0xf]
      %v271 = vld [vmem:[%s1 + $0x58] sm:$0xf]
      %v272 = vld [vmem:[%s1 + $0x5c] sm:$0xf]
      %v273 = vld [vmem:[%s1 + $0x60] sm:$0xf]
      %v274 = vld [vmem:[%s1 + $0x64] sm:$0xf]
      %v275 = vld [vmem:[%s1 + $0x68] sm:$0xf]
      %v276 = vld [vmem:[%s1 + $0x6c] sm:$0xf]
      %v277 = vld [vmem:[%s1 + $0x70] sm:$0xf]
      %v278 = vld [vmem:[%s1 + $0x74] sm:$0xf]
      %v279 = vld [vmem:[%s1 + $0x78] sm:$0xf]
      %v280 = vld [vmem:[%s1 + $0x7c] sm:$0xf]
      %v281 = vld [vmem:[%s2] sm:$0x1]
      %v314 = vunpack.c.l.b16 %v249
      %v315 = vunpack.c.l.b16 %v250
      %v316 = vunpack.c.l.b16 %v251
      %v317 = vunpack.c.l.b16 %v252
      %v318 = vunpack.c.l.b16 %v253
      %v319 = vunpack.c.l.b16 %v254
      %v320 = vunpack.c.l.b16 %v255
      %v321 = vunpack.c.l.b16 %v256
      %v322 = vunpack.c.l.b16 %v257
      %v323 = vunpack.c.l.b16 %v258
      %v324 = vunpack.c.l.b16 %v259
      %v325 = vunpack.c.l.b16 %v260
      %v326 = vunpack.c.l.b16 %v261
      %v327 = vunpack.c.l.b16 %v262
      %v328 = vunpack.c.l.b16 %v263
      %v329 = vunpack.c.l.b16 %v264
      %v330 = vunpack.c.l.b16 %v265
      %v331 = vunpack.c.l.b16 %v266
      %v332 = vunpack.c.l.b16 %v267
      %v333 = vunpack.c.l.b16 %v268
      %v334 = vunpack.c.l.b16 %v269
      %v335 = vunpack.c.l.b16 %v270
      %v336 = vunpack.c.l.b16 %v271
      %v337 = vunpack.c.l.b16 %v272
      %v338 = vunpack.c.l.b16 %v273
      %v339 = vunpack.c.l.b16 %v274
      %v340 = vunpack.c.l.b16 %v275
      %v341 = vunpack.c.l.b16 %v276
      %v342 = vunpack.c.l.b16 %v277
      %v343 = vunpack.c.l.b16 %v278
      %v344 = vunpack.c.l.b16 %v279
      %v345 = vunpack.c.l.b16 %v280
      %v346 = vpack.c.b16 %v315, %v314
      %v347 = vpack.c.b16 %v317, %v316
      %v348 = vpack.c.b16 %v319, %v318
      %v349 = vpack.c.b16 %v321, %v320
      %v350 = vpack.c.b16 %v323, %v322
      %v351 = vpack.c.b16 %v325, %v324
      %v352 = vpack.c.b16 %v327, %v326
      %v353 = vpack.c.b16 %v329, %v328
      %v354 = vpack.c.b16 %v331, %v330
      %v355 = vpack.c.b16 %v333, %v332
      %v356 = vpack.c.b16 %v335, %v334
      %v357 = vpack.c.b16 %v337, %v336
      %v358 = vpack.c.b16 %v339, %v338
      %v359 = vpack.c.b16 %v341, %v340
      %v360 = vpack.c.b16 %v343, %v342
      %v361 = vpack.c.b16 %v345, %v344
      %378 = vmatprep.subr.bf16.mxu0 0
      %379 = vmatpush1.bf16.msra.mxu0 %v346
      %380 = vmatprep.subr.bf16.mxu0 0
      %381 = vmatpush1.bf16.msra.mxu0 %v347
      %382 = vmatprep.subr.bf16.mxu0 0
      %383 = vmatpush1.bf16.msra.mxu0 %v348
      %384 = vmatprep.subr.bf16.mxu0 0
      %385 = vmatpush1.bf16.msra.mxu0 %v349
      %386 = vmatprep.subr.bf16.mxu0 0
      %387 = vmatpush1.bf16.msra.mxu0 %v350
      %388 = vmatprep.subr.bf16.mxu0 0
      %389 = vmatpush1.bf16.msra.mxu0 %v351
      %390 = vmatprep.subr.bf16.mxu0 0
      %391 = vmatpush1.bf16.msra.mxu0 %v352
      %392 = vmatprep.subr.bf16.mxu0 0
      %393 = vmatpush1.bf16.msra.mxu0 %v353
      %394 = vmatprep.subr.bf16.mxu0 0
      %395 = vmatpush1.bf16.msra.mxu0 %v354
      %396 = vmatprep.subr.bf16.mxu0 0
      %397 = vmatpush1.bf16.msra.mxu0 %v355
      %398 = vmatprep.subr.bf16.mxu0 0
      %399 = vmatpush1.bf16.msra.mxu0 %v356
      %400 = vmatprep.subr.bf16.mxu0 0
      %401 = vmatpush1.bf16.msra.mxu0 %v357
      %402 = vmatprep.subr.bf16.mxu0 0
      %403 = vmatpush1.bf16.msra.mxu0 %v358
      %404 = vmatprep.subr.bf16.mxu0 0
      %405 = vmatpush1.bf16.msra.mxu0 %v359
      %406 = vmatprep.subr.bf16.mxu0 0
      %407 = vmatpush1.bf16.msra.mxu0 %v360
      %408 = vmatprep.subr.bf16.mxu0 0
      %409 = vmatpush1.bf16.msra.mxu0 %v361
      %410 = vmatprep.mubr.bf16.mxu0 %v248
      %411 = vmatmul.mubr.bf16.gmra.mrb[0].mxu0 %v247
      %v412 = vpop.f32.mrb[0].mxu0
      %v413 = vadd.f32 %v281, %v412
      %v414 = vpop.f32.mrb[0].mxu0
      %v415 = vpop.f32.mrb[0].mxu0
      %v416 = vpop.f32.mrb[0].mxu0
      %417 = vdwg.mxu0
      %v418 = vpack.c.bf16 %v413, %v413
      %v419 = vld [vmem:[%s3] sm:$0xff]
      %v420 = vld [vmem:[%s3 + $0x8] sm:$0xff]
      %v421 = vld [vmem:[%s3 + $0x10] sm:$0xff]
      %v422 = vld [vmem:[%s3 + $0x18] sm:$0xff]
      %v423 = vld [vmem:[%s3 + $0x20] sm:$0xff]
      %v424 = vld [vmem:[%s3 + $0x28] sm:$0xff]
      %v425 = vld [vmem:[%s3 + $0x30] sm:$0xff]
      %v426 = vld [vmem:[%s3 + $0x38] sm:$0xff]
      %v427 = vld [vmem:[%s3 + $0x40] sm:$0xff]
      %v428 = vld [vmem:[%s3 + $0x48] sm:$0xff]
      %v429 = vld [vmem:[%s3 + $0x50] sm:$0xff]
      %v430 = vld [vmem:[%s3 + $0x58] sm:$0xff]
      %v431 = vld [vmem:[%s3 + $0x60] sm:$0xff]
      %v432 = vld [vmem:[%s3 + $0x68] sm:$0xff]
      %v433 = vld [vmem:[%s3 + $0x70] sm:$0xff]
      %v434 = vld [vmem:[%s3 + $0x78] sm:$0xff]
      %v435 = vld [vmem:[%s4] sm:$0x3]
      %v452 = vunpack.c.l.b16 %v419
      %v453 = vunpack.c.h.b16 %v419
      %v454 = vunpack.c.l.b16 %v420
      %v455 = vunpack.c.h.b16 %v420
      %v456 = vunpack.c.l.b16 %v421
      %v457 = vunpack.c.h.b16 %v421
      %v458 = vunpack.c.l.b16 %v422
      %v459 = vunpack.c.h.b16 %v422
      %v460 = vunpack.c.l.b16 %v423
      %v461 = vunpack.c.h.b16 %v423
      %v462 = vunpack.c.l.b16 %v424
      %v463 = vunpack.c.h.b16 %v424
      %v464 = vunpack.c.l.b16 %v425
      %v465 = vunpack.c.h.b16 %v425
      %v466 = vunpack.c.l.b16 %v426
      %v467 = vunpack.c.h.b16 %v426
      %v468 = vunpack.c.l.b16 %v427
      %v469 = vunpack.c.h.b16 %v427
      %v470 = vunpack.c.l.b16 %v428
      %v471 = vunpack.c.h.b16 %v428
      %v472 = vunpack.c.l.b16 %v429
      %v473 = vunpack.c.h.b16 %v429
      %v474 = vunpack.c.l.b16 %v430
      %v475 = vunpack.c.h.b16 %v430
      %v476 = vunpack.c.l.b16 %v431
      %v477 = vunpack.c.h.b16 %v431
      %v478 = vunpack.c.l.b16 %v432
      %v479 = vunpack.c.h.b16 %v432
      %v480 = vunpack.c.l.b16 %v433
      %v481 = vunpack.c.h.b16 %v433
      %v482 = vunpack.c.l.b16 %v434
      %v483 = vunpack.c.h.b16 %v434
      %v484 = vpack.c.b16 %v454, %v452
      %v485 = vpack.c.b16 %v455, %v453
      %v486 = vpack.c.b16 %v458, %v456
      %v487 = vpack.c.b16 %v459, %v457
      %v488 = vpack.c.b16 %v462, %v460
      %v489 = vpack.c.b16 %v463, %v461
      %v490 = vpack.c.b16 %v466, %v464
      %v491 = vpack.c.b16 %v467, %v465
      %v492 = vpack.c.b16 %v470, %v468
      %v493 = vpack.c.b16 %v471, %v469
      %v494 = vpack.c.b16 %v474, %v472
      %v495 = vpack.c.b16 %v475, %v473
      %v496 = vpack.c.b16 %v478, %v476
      %v497 = vpack.c.b16 %v479, %v477
      %v498 = vpack.c.b16 %v482, %v480
      %v499 = vpack.c.b16 %v483, %v481
      %v517 = vlaneseq
      %v518 = vshrl.u32 %v517, 7
      %v519 = vsub.s32 0, %v518
      %v520 = vrot.slane %v435, %v519
      %v521 = vlaneseq
      %v522 = vshrl.u32 %v521, 7
      %v523 = vsub.s32 1, %v522
      %v524 = vrot.slane %v435, %v523
      %527 = vmatprep.subr.bf16.mxu0 %v485
      %528 = vmatpush1.bf16.msra.mxu0 %v484
      %529 = vmatprep.subr.bf16.mxu0 %v487
      %530 = vmatpush1.bf16.msra.mxu0 %v486
      %531 = vmatprep.subr.bf16.mxu0 %v489
      %532 = vmatpush1.bf16.msra.mxu0 %v488
      %533 = vmatprep.subr.bf16.mxu0 %v491
      %534 = vmatpush1.bf16.msra.mxu0 %v490
      %535 = vmatprep.subr.bf16.mxu0 %v493
      %536 = vmatpush1.bf16.msra.mxu0 %v492
      %537 = vmatprep.subr.bf16.mxu0 %v495
      %538 = vmatpush1.bf16.msra.mxu0 %v494
      %539 = vmatprep.subr.bf16.mxu0 %v497
      %540 = vmatpush1.bf16.msra.mxu0 %v496
      %541 = vmatprep.subr.bf16.mxu0 %v499
      %542 = vmatpush1.bf16.msra.mxu0 %v498
      %543 = vmatprep.subr.bf16.mxu0 0
      %544 = vmatpush1.bf16.msra.mxu0 0
      %545 = vmatprep.subr.bf16.mxu0 0
      %546 = vmatpush1.bf16.msra.mxu0 0
      %547 = vmatprep.subr.bf16.mxu0 0
      %548 = vmatpush1.bf16.msra.mxu0 0
      %549 = vmatprep.subr.bf16.mxu0 0
      %550 = vmatpush1.bf16.msra.mxu0 0
      %551 = vmatprep.subr.bf16.mxu0 0
      %552 = vmatpush1.bf16.msra.mxu0 0
      %553 = vmatprep.subr.bf16.mxu0 0
      %554 = vmatpush1.bf16.msra.mxu0 0
      %555 = vmatprep.subr.bf16.mxu0 0
      %556 = vmatpush1.bf16.msra.mxu0 0
      %557 = vmatprep.subr.bf16.mxu0 0
      %558 = vmatpush1.bf16.msra.mxu0 0
      %559 = vmatprep.mubr.bf16.mxu0 0
      %560 = vmatmul.mubr.bf16.gmra.mrb[0].mxu0 %v418
      %v561 = vpop.f32.mrb[0].mxu0
      %v562 = vadd.f32 %v520, %v561
      %v563 = vpop.f32.mrb[0].mxu0
      %v564 = vadd.f32 %v524, %v563
      %v565 = vpop.f32.mrb[0].mxu0
      %v566 = vpop.f32.mrb[0].mxu0
      %567 = vdwg.mxu0
      %v568 = vxor.u32 %v562, 2147483648
      %v569 = vxor.u32 %v564, 2147483648
      %v570 = vmul.f32 %v568, 1.442695
      %v571 = vpow.pop %v570
      %v572 = vmul.f32 %v569, 1.442695
      %v573 = vpow.pop %v572
      %v574 = vadd.f32 %v571, 1.0
      %v575 = vadd.f32 %v573, 1.0
      %v576 = vrcp.pop %v574
      %v577 = vmul.f32 1.0, %v576
      %v578 = vrcp.pop %v575
      %v579 = vmul.f32 1.0, %v578
      %v580 = vmul.f32 %v562, %v577
      %v581 = vmul.f32 %v564, %v579
      %v582 = vxor.u32 %v580, 2147483648
      %v583 = vxor.u32 %v581, 2147483648
      %v584 = vmul.f32 %v582, 1.442695
      %v585 = vpow.pop %v584
      %v586 = vmul.f32 %v583, 1.442695
      %v587 = vpow.pop %v586
      %v588 = vadd.f32 %v585, 1.0
      %v589 = vadd.f32 %v587, 1.0
      %v590 = vrcp.pop %v588
      %v591 = vmul.f32 1.0, %v590
      %v592 = vrcp.pop %v589
      %v593 = vmul.f32 1.0, %v592
      %v594 = vpack.c.bf16 %v591, %v591
      %v595 = vpack.c.bf16 %v593, %v593
      %v598 = vcombine.low %v594, %v595
      %v600 = vunpack.c.l.s4 1966171168
      %v601 = vunpack.c.0.s8 %v600
      %v602 = vlaneseq
      %v603 = vshrl.u32 %v602, 7
      %v604 = vsub.s32 %v601, %v603
      %v605 = vrot.slane %v598, %v604
      %v607 = vunpack.c.l.s4 1966171168
      %v608 = vunpack.c.0.s8 %v607
      %v609 = vlaneseq
      %v610 = vshrl.u32 %v609, 7
      %v611 = vsub.s32 %v608, %v610
      %v612 = vrot.slane %v605, %v611
      %vm614 = vcmask 1040384
      %vm615 = vsmask.f32 256
      %vm616 = vmand %vm614, %vm615
      %vm617 = vcmask 1041409
      %vm618 = vsmask.f32 1280
      %vm619 = vmand %vm617, %vm618
      %vm620 = vmor %vm619, %vm616
      %v621 = vld [vmem:[%s222] sm:$0x3]
      %v622 = vsel %vm620, %v612, %v621
      %623 = vst [vmem:[%s222] sm:$0x3] %v622
      %p624 = scmp.lt.s32.totalorder %s16, 1
      %s625 = scalar_select %p624, %s16, 1
      %s626 = smul.addr %s625, 2
      %s627 = scalar_lea.vmem %s5, %s626
      // Predicated region
      $region41: #{_lambda_.24} parent=39 // pred_check
        %p628 = pneg %p144
      $region42: #{_lambda_.24} parent=39 // pred_check_branch
        %630 = sbr.rel (%p628) target = $region44
      $region43: #{_lambda_.24} parent=39 // pred_region
        _
      $region44: #{_lambda_.24} parent=39 // pred_fallthru
        _
    $region40: #{_lambda_.24} parent=5 // pred_fallthru
      _
    %p631 = scmp.le.s32.totalorder 2, %s11
    // Predicated region
    $region45: #{_lambda_.24} parent=5 // pred_check
      %p632 = pneg %p631
    $region46: #{_lambda_.24} parent=5 // pred_check_branch
      %634 = sbr.rel (%p632) target = $region48
    $region47: #{_lambda_.24} parent=5 // pred_region
      %s635 = ssub.s32 %s11, 2
      // Predicated region
      $region49: #{_lambda_.24} parent=47 // pred_check
        %p636 = pneg %p150
      $region50: #{_lambda_.24} parent=47 // pred_check_branch
        %638 = sbr.rel (%p636) target = $region52
      $region51: #{_lambda_.24} parent=47 // pred_region
        %p639 = scmp.lt.s32.totalorder %s17, 1
        %s640 = scalar_select %p639, %s17, 1
        %s641 = smul.addr %s640, 2
        %s642 = scalar_lea.vmem %s5, %s641
      $region52: #{_lambda_.24} parent=47 // pred_fallthru
        _
    $region48: #{_lambda_.24} parent=5 // pred_fallthru
      _
  $region6: #{_lambda_.24} parent=0 // loop_footer
    %s15 = sadd.s32 1, %s11
  $region7: #{_lambda_.24} parent=0 // loop_footer_branch
    %10 = sbr.rel target = $region3
  $region8: #{_lambda_.24} parent=0 // loop_exit
    _

// kernel: _lambda_.25
$region0: #{_lambda_.25}
  #allocation0 [shape = 'u32[]', space=smem, size = 0x4, offset = 0x4, fixed_abs, tag = 'smem constant byte address 0x4 - core index']
  #allocation1 [shape = 'u32[144,128]{1,0:T(1,128)}', space=vmem, size = 0x12000, scoped, tag = 'internal scratch']
  #allocation2 [shape = 'f32[16,128]{1,0:T(8,128)}', space=vmem, size = 0x2000, scoped, tag = 'scratch operand']
  %s0 = inlined_call_operand.vmem [shape: bf16[2,16,256], index: 0, kind: input, shape index: {}]
  %s1 = inlined_call_operand.vmem [shape: bf16[2,1,256], index: 1, kind: input, shape index: {}]
  %s2 = inlined_call_operand.vmem [shape: bf16[256,128], index: 2, kind: input, shape index: {}]
  %s3 = inlined_call_operand.vmem [shape: f32[1,128], index: 3, kind: input, shape index: {}]
  %s4 = inlined_call_operand.vmem [shape: bf16[2,16,128], index: 4, kind: input, shape index: {}]
  %s5 = inlined_call_operand.vmem [shape: bf16[2,16,128], index: 5, kind: output, shape index: {}]
  %s6 = sld [smem:[#allocation0]]
  $region61: #{_lambda_.25} parent=0
    _
  %s8 = ssub.s32 1, %s6
  %s9 = scalar_select 0, %s8, %s6
  loop: start=0, step=1, limit=4
  $region2: #{_lambda_.25} parent=0 // loop_pre_header
    _
  $region3: #{_lambda_.25} parent=0 // loop_header
    %s11 = sphi 0, %s15
    %p12 = scmp.ge.s32.totalorder %s11, 4
    %s18 = sphi 0, %s44
    %s19 = sphi 0, %s40
    %s20 = sphi 0, %s36
    %s21 = sphi 0, %s32
    %s22 = sphi 0, %s18
    %s23 = sphi 0, %s19
    %s24 = sphi 0, %s20
    %s25 = sphi 0, %s21
    %s26 = sphi 0, %s22
    %s27 = sphi 0, %s23
    %s28 = sphi 0, %s24
    %s29 = sphi 0, %s25
    %s51 = sphi 0, %s53
    %s54 = sphi 0, %s51
    %s55 = sphi 0, %s54
    %s71 = sphi 0, %s55
    %s79 = sphi 0, %s81
    %s82 = sphi 0, %s79
    %s83 = sphi 0, %s82
    %s99 = sphi 0, %s83
    %s107 = sphi 0, %s109
    %s110 = sphi 0, %s107
    %s111 = sphi 0, %s110
    %s127 = sphi 0, %s111
    %s133 = sphi 0, %s135
    %s136 = sphi 0, %s133
    %s137 = sphi 0, %s136
    %s153 = sphi 0, %s137
    %s163 = sphi 0, %s165
    %s166 = sphi 0, %s163
    %s167 = sphi 0, %s166
    %s183 = sphi 0, %s167
    %s193 = sphi 0, %s195
    %s196 = sphi 0, %s193
    %s197 = sphi 0, %s196
    %s213 = sphi 0, %s197
  $region4: #{_lambda_.25} parent=0 // loop_header_branch
    %14 = sbr.rel (%p12) target = $region8
  $region5: #{_lambda_.25} parent=0 // loop_body
    %s16 = ssub.s32 %s11, 1
    %s17 = ssub.s32 %s11, 2
    %s30 = sadd.s32 1, %s21
    %p31 = scmp.ge.s32.totalorder %s30, 1
    %s32 = scalar_select %p31, 0, %s30
    %s33 = sadd.s32 1, %s20
    %s34 = scalar_select %p31, %s33, %s20
    %p35 = scmp.ge.s32.totalorder %s34, 1
    %s36 = scalar_select %p35, 0, %s34
    %s37 = sadd.s32 1, %s19
    %s38 = scalar_select %p35, %s37, %s19
    %p39 = scmp.ge.s32.totalorder %s38, 1
    %s40 = scalar_select %p39, 0, %s38
    %s41 = sadd.s32 1, %s18
    %s42 = scalar_select %p39, %s41, %s18
    %p43 = scmp.ge.s32.totalorder %s42, 2
    %s44 = scalar_select %p43, 0, %s42
    %s45 = ssub.s32 %s18, %s44
    %s46 = ssub.s32 %s19, %s40
    %s47 = sor.u32 %s45, %s46
    %s48 = ssub.s32 %s21, %s32
    %s49 = sor.u32 %s47, %s48
    %p50 = scmp.eq.s32.totalorder %s49, 0
    %s52 = sadd.s32 %s51, 1
    %s53 = scalar_select %p50, %s51, %s52
    %p56 = pneg %p50
    %p57 = scmp.eq.s32.totalorder %s11, 1
    %p58 = por %p56, %p57
    %p59 = scmp.ne.s32.totalorder %s51, %s54
    %p60 = scmp.eq.s32.totalorder %s11, 0
    %p61 = por %p59, %p60
    %p62 = scmp.ne.s32.totalorder %s51, %s54
    %p63 = scmp.eq.s32.totalorder %s16, 1
    %p64 = por %p62, %p63
    %p65 = scmp.ne.s32.totalorder %s54, %s55
    %p66 = scmp.eq.s32.totalorder %s16, 0
    %p67 = por %p65, %p66
    %p68 = scmp.ne.s32.totalorder %s54, %s55
    %p69 = scmp.eq.s32.totalorder %s17, 1
    %p70 = por %p68, %p69
    %p72 = scmp.ne.s32.totalorder %s55, %s71
    %p73 = scmp.eq.s32.totalorder %s17, 0
    %p74 = por %p72, %p73
    %s75 = ssub.s32 %s18, %s44
    %s76 = ssub.s32 %s21, %s32
    %s77 = sor.u32 %s75, %s76
    %p78 = scmp.eq.s32.totalorder %s77, 0
    %s80 = sadd.s32 %s79, 1
    %s81 = scalar_select %p78, %s79, %s80
    %p84 = pneg %p78
    %p85 = scmp.eq.s32.totalorder %s11, 1
    %p86 = por %p84, %p85
    %p87 = scmp.ne.s32.totalorder %s79, %s82
    %p88 = scmp.eq.s32.totalorder %s11, 0
    %p89 = por %p87, %p88
    %p90 = scmp.ne.s32.totalorder %s79, %s82
    %p91 = scmp.eq.s32.totalorder %s16, 1
    %p92 = por %p90, %p91
    %p93 = scmp.ne.s32.totalorder %s82, %s83
    %p94 = scmp.eq.s32.totalorder %s16, 0
    %p95 = por %p93, %p94
    %p96 = scmp.ne.s32.totalorder %s82, %s83
    %p97 = scmp.eq.s32.totalorder %s17, 1
    %p98 = por %p96, %p97
    %p100 = scmp.ne.s32.totalorder %s83, %s99
    %p101 = scmp.eq.s32.totalorder %s17, 0
    %p102 = por %p100, %p101
    %s103 = ssub.s32 %s21, %s32
    %s104 = ssub.s32 %s20, %s36
    %s105 = sor.u32 %s103, %s104
    %p106 = scmp.eq.s32.totalorder %s105, 0
    %s108 = sadd.s32 %s107, 1
    %s109 = scalar_select %p106, %s107, %s108
    %p112 = pneg %p106
    %p113 = scmp.eq.s32.totalorder %s11, 1
    %p114 = por %p112, %p113
    %p115 = scmp.ne.s32.totalorder %s107, %s110
    %p116 = scmp.eq.s32.totalorder %s11, 0
    %p117 = por %p115, %p116
    %p118 = scmp.ne.s32.totalorder %s107, %s110
    %p119 = scmp.eq.s32.totalorder %s16, 1
    %p120 = por %p118, %p119
    %p121 = scmp.ne.s32.totalorder %s110, %s111
    %p122 = scmp.eq.s32.totalorder %s16, 0
    %p123 = por %p121, %p122
    %p124 = scmp.ne.s32.totalorder %s110, %s111
    %p125 = scmp.eq.s32.totalorder %s17, 1
    %p126 = por %p124, %p125
    %p128 = scmp.ne.s32.totalorder %s111, %s127
    %p129 = scmp.eq.s32.totalorder %s17, 0
    %p130 = por %p128, %p129
    %s131 = ssub.s32 %s20, %s36
    %p132 = scmp.eq.s32.totalorder %s131, 0
    %s134 = sadd.s32 %s133, 1
    %s135 = scalar_select %p132, %s133, %s134
    %p138 = pneg %p132
    %p139 = scmp.eq.s32.totalorder %s11, 1
    %p140 = por %p138, %p139
    %p141 = scmp.ne.s32.totalorder %s133, %s136
    %p142 = scmp.eq.s32.totalorder %s11, 0
    %p143 = por %p141, %p142
    %p144 = scmp.ne.s32.totalorder %s133, %s136
    %p145 = scmp.eq.s32.totalorder %s16, 1
    %p146 = por %p144, %p145
    %p147 = scmp.ne.s32.totalorder %s136, %s137
    %p148 = scmp.eq.s32.totalorder %s16, 0
    %p149 = por %p147, %p148
    %p150 = scmp.ne.s32.totalorder %s136, %s137
    %p151 = scmp.eq.s32.totalorder %s17, 1
    %p152 = por %p150, %p151
    %p154 = scmp.ne.s32.totalorder %s137, %s153
    %p155 = scmp.eq.s32.totalorder %s17, 0
    %p156 = por %p154, %p155
    %s157 = ssub.s32 %s18, %s44
    %s158 = ssub.s32 %s19, %s40
    %s159 = sor.u32 %s157, %s158
    %s160 = ssub.s32 %s20, %s36
    %s161 = sor.u32 %s159, %s160
    %p162 = scmp.eq.s32.totalorder %s161, 0
    %s164 = sadd.s32 %s163, 1
    %s165 = scalar_select %p162, %s163, %s164
    %p168 = pneg %p162
    %p169 = scmp.eq.s32.totalorder %s11, 1
    %p170 = por %p168, %p169
    %p171 = scmp.ne.s32.totalorder %s163, %s166
    %p172 = scmp.eq.s32.totalorder %s11, 0
    %p173 = por %p171, %p172
    %p174 = scmp.ne.s32.totalorder %s163, %s166
    %p175 = scmp.eq.s32.totalorder %s16, 1
    %p176 = por %p174, %p175
    %p177 = scmp.ne.s32.totalorder %s166, %s167
    %p178 = scmp.eq.s32.totalorder %s16, 0
    %p179 = por %p177, %p178
    %p180 = scmp.ne.s32.totalorder %s166, %s167
    %p181 = scmp.eq.s32.totalorder %s17, 1
    %p182 = por %p180, %p181
    %p184 = scmp.ne.s32.totalorder %s167, %s183
    %p185 = scmp.eq.s32.totalorder %s17, 0
    %p186 = por %p184, %p185
    %s187 = ssub.s32 %s18, %s44
    %s188 = ssub.s32 %s19, %s40
    %s189 = sor.u32 %s187, %s188
    %s190 = ssub.s32 %s20, %s36
    %s191 = sor.u32 %s189, %s190
    %p192 = scmp.eq.s32.totalorder %s191, 0
    %s194 = sadd.s32 %s193, 1
    %s195 = scalar_select %p192, %s193, %s194
    %p198 = pneg %p192
    %p199 = scmp.eq.s32.totalorder %s11, 1
    %p200 = por %p198, %p199
    %p201 = scmp.ne.s32.totalorder %s193, %s196
    %p202 = scmp.eq.s32.totalorder %s11, 0
    %p203 = por %p201, %p202
    %p204 = scmp.ne.s32.totalorder %s193, %s196
    %p205 = scmp.eq.s32.totalorder %s16, 1
    %p206 = por %p204, %p205
    %p207 = scmp.ne.s32.totalorder %s196, %s197
    %p208 = scmp.eq.s32.totalorder %s16, 0
    %p209 = por %p207, %p208
    %p210 = scmp.ne.s32.totalorder %s196, %s197
    %p211 = scmp.eq.s32.totalorder %s17, 1
    %p212 = por %p210, %p211
    %p214 = scmp.ne.s32.totalorder %s197, %s213
    %p215 = scmp.eq.s32.totalorder %s17, 0
    %p216 = por %p214, %p215
    %p217 = scmp.le.s32.totalorder 1, %s11
    %p218 = scmp.lt.s32.totalorder %s11, 3
    %p219 = pnand %p217, %p218
    %p220 = pneg %p219
    // Predicated region
    $region9: #{_lambda_.25} parent=5 // pred_check
      _
    $region10: #{_lambda_.25} parent=5 // pred_check_branch
      %222 = sbr.rel (%p219) target = $region12
    $region11: #{_lambda_.25} parent=5 // pred_region
      %s223 = ssub.s32 %s11, 1
      // Predicated region
      $region13: #{_lambda_.25} parent=11 // pred_check
        %p224 = pneg %p123
      $region14: #{_lambda_.25} parent=11 // pred_check_branch
        %226 = sbr.rel (%p224) target = $region16
      $region15: #{_lambda_.25} parent=11 // pred_region
        %s227 = smul.u32 32, %s25
        %p228 = scmp.lt.s32.totalorder %s227, 31
        %s229 = scalar_select %p228, %s227, 31
        %p230 = scmp.lt.s32.totalorder %s24, 0
        %s231 = scalar_select %p230, %s24, 0
        %s232 = sadd.s32 %s231, %s229
        %s233 = smul.addr %s232, 4
        %s234 = scalar_lea.vmem %s2, %s233
        %s235 = smul.u32 32, %s25
      $region16: #{_lambda_.25} parent=11 // pred_fallthru
        _
      // Predicated region
      $region17: #{_lambda_.25} parent=11 // pred_check
        %p236 = pneg %p149
      $region18: #{_lambda_.25} parent=11 // pred_check_branch
        %238 = sbr.rel (%p236) target = $region20
      $region19: #{_lambda_.25} parent=11 // pred_region
        %p239 = scmp.lt.s32.totalorder %s24, 0
        %s240 = scalar_select %p239, %s24, 0
        %s241 = scalar_lea.vmem %s3, %s240
      $region20: #{_lambda_.25} parent=11 // pred_fallthru
        _
    $region12: #{_lambda_.25} parent=5 // pred_fallthru
      _
    %p242 = scmp.lt.s32.totalorder %s11, 2
    // Predicated region
    $region21: #{_lambda_.25} parent=5 // pred_check
      %p243 = pneg %p242
    $region22: #{_lambda_.25} parent=5 // pred_check_branch
      %245 = sbr.rel (%p243) target = $region24
    $region23: #{_lambda_.25} parent=5 // pred_region
      // Predicated region
      $region25: #{_lambda_.25} parent=23 // pred_check
        %p246 = pneg %p61
      $region26: #{_lambda_.25} parent=23 // pred_check_branch
        %248 = sbr.rel (%p246) target = $region28
      $region27: #{_lambda_.25} parent=23 // pred_region
        %s249 = smul.u32 2, %s19
        %s250 = smul.u32 2, %s21
        %p251 = scmp.lt.s32.totalorder %s18, 1
        %s252 = scalar_select %p251, %s18, 1
        %p253 = scmp.lt.s32.totalorder %s249, 1
        %s254 = scalar_select %p253, %s249, 1
        %p255 = scmp.lt.s32.totalorder %s250, 1
        %s256 = scalar_select %p255, %s250, 1
        %s257 = smul.addr %s254, 2
        %s258 = sadd.s32 %s256, %s257
        %s259 = smul.addr %s252, 4
        %s260 = sadd.s32 %s258, %s259
        %s261 = smul.addr %s260, 4
        %s262 = scalar_lea.vmem %s0, %s261
        %s263 = smul.u32 2, %s19
        %s264 = smul.u32 2, %s21
      $region28: #{_lambda_.25} parent=23 // pred_fallthru
        _
      // Predicated region
      $region29: #{_lambda_.25} parent=23 // pred_check
        %p265 = pneg %p89
      $region30: #{_lambda_.25} parent=23 // pred_check_branch
        %267 = sbr.rel (%p265) target = $region32
      $region31: #{_lambda_.25} parent=23 // pred_region
        %s268 = smul.u32 2, %s21
        %p269 = scmp.lt.s32.totalorder %s18, 1
        %s270 = scalar_select %p269, %s18, 1
        %p271 = scmp.lt.s32.totalorder %s268, 1
        %s272 = scalar_select %p271, %s268, 1
        %s273 = smul.addr %s270, 2
        %s274 = sadd.s32 %s272, %s273
        %s275 = scalar_lea.vmem %s1, %s274
        %s276 = smul.u32 2, %s21
      $region32: #{_lambda_.25} parent=23 // pred_fallthru
        _
      // Predicated region
      $region33: #{_lambda_.25} parent=23 // pred_check
        %p277 = pneg %p173
      $region34: #{_lambda_.25} parent=23 // pred_check_branch
        %279 = sbr.rel (%p277) target = $region36
      $region35: #{_lambda_.25} parent=23 // pred_region
        %s280 = smul.u32 2, %s19
        %p281 = scmp.lt.s32.totalorder %s18, 1
        %s282 = scalar_select %p281, %s18, 1
        %p283 = scmp.lt.s32.totalorder %s280, 1
        %s284 = scalar_select %p283, %s280, 1
        %p285 = scmp.lt.s32.totalorder %s20, 0
        %s286 = scalar_select %p285, %s20, 0
        %s287 = sadd.s32 %s286, %s284
        %s288 = smul.addr %s282, 2
        %s289 = sadd.s32 %s287, %s288
        %s290 = smul.addr %s289, 4
        %s291 = scalar_lea.vmem %s4, %s290
        %s292 = smul.u32 2, %s19
      $region36: #{_lambda_.25} parent=23 // pred_fallthru
        _
    $region24: #{_lambda_.25} parent=5 // pred_fallthru
      _
    %p293 = scmp.le.s32.totalorder 1, %s11
    %p294 = scmp.lt.s32.totalorder %s11, 3
    %p295 = pnand %p293, %p294
    %p296 = pneg %p295
    // Predicated region
    $region37: #{_lambda_.25} parent=5 // pred_check
      _
    $region38: #{_lambda_.25} parent=5 // pred_check_branch
      %298 = sbr.rel (%p295) target = $region40
    $region39: #{_lambda_.25} parent=5 // pred_region
      %s299 = ssub.s32 %s11, 1
      %s300 = smul.u32 2, %s23
      %s301 = smul.u32 2, %s25
      %p302 = scmp.lt.s32.totalorder %s22, 1
      %s303 = scalar_select %p302, %s22, 1
      %p304 = scmp.lt.s32.totalorder %s300, 1
      %s305 = scalar_select %p304, %s300, 1
      %p306 = scmp.lt.s32.totalorder %s301, 1
      %s307 = scalar_select %p306, %s301, 1
      %s308 = smul.addr %s305, 2
      %s309 = sadd.s32 %s307, %s308
      %s310 = smul.addr %s303, 4
      %s311 = sadd.s32 %s309, %s310
      %s312 = smul.addr %s311, 4
      %s313 = scalar_lea.vmem %s0, %s312
      %p314 = pneg %p67
      %p315 = pneg %p64
      %s316 = smul.u32 2, %s25
      %p317 = scmp.lt.s32.totalorder %s22, 1
      %s318 = scalar_select %p317, %s22, 1
      %p319 = scmp.lt.s32.totalorder %s316, 1
      %s320 = scalar_select %p319, %s316, 1
      %s321 = smul.addr %s318, 2
      %s322 = sadd.s32 %s320, %s321
      %s323 = scalar_lea.vmem %s1, %s322
      %p324 = pneg %p95
      %p325 = pneg %p92
      %s326 = smul.u32 32, %s25
      %p327 = scmp.lt.s32.totalorder %s326, 31
      %s328 = scalar_select %p327, %s326, 31
      %p329 = scmp.lt.s32.totalorder %s24, 0
      %s330 = scalar_select %p329, %s24, 0
      %s331 = sadd.s32 %s330, %s328
      %s332 = smul.addr %s331, 4
      %s333 = scalar_lea.vmem %s2, %s332
      %p334 = pneg %p123
      %p335 = pneg %p120
      %p336 = scmp.lt.s32.totalorder %s24, 0
      %s337 = scalar_select %p336, %s24, 0
      %s338 = scalar_lea.vmem %s3, %s337
      %p339 = pneg %p149
      %p340 = pneg %p146
      %s341 = smul.u32 2, %s23
      %p342 = scmp.lt.s32.totalorder %s22, 1
      %s343 = scalar_select %p342, %s22, 1
      %p344 = scmp.lt.s32.totalorder %s341, 1
      %s345 = scalar_select %p344, %s341, 1
      %p346 = scmp.lt.s32.totalorder %s24, 0
      %s347 = scalar_select %p346, %s24, 0
      %s348 = sadd.s32 %s347, %s345
      %s349 = smul.addr %s343, 2
      %s350 = sadd.s32 %s348, %s349
      %s351 = smul.addr %s350, 4
      %s352 = scalar_lea.vmem %s4, %s351
      %p353 = pneg %p179
      %p354 = pneg %p176
      %p355 = pneg %p209
      %p356 = pneg %p206
      %s357 = smul.u32 2, %s23
      %p358 = scmp.lt.s32.totalorder %s22, 1
      %s359 = scalar_select %p358, %s22, 1
      %p360 = scmp.lt.s32.totalorder %s357, 1
      %s361 = scalar_select %p360, %s357, 1
      %p362 = scmp.lt.s32.totalorder %s24, 0
      %s363 = scalar_select %p362, %s24, 0
      %s364 = sadd.s32 %s363, %s361
      %s365 = smul.addr %s359, 2
      %s366 = sadd.s32 %s364, %s365
      %s367 = smul.addr %s366, 4
      %s368 = scalar_lea.vmem %s5, %s367
      %s369 = smul.u32 2, %s23
      %s370 = smul.u32 2, %s25
      %p371 = scmp.lt.s32.totalorder %s22, 1
      %s372 = scalar_select %p371, %s22, 1
      %p373 = scmp.lt.s32.totalorder %s369, 1
      %s374 = scalar_select %p373, %s369, 1
      %p375 = scmp.lt.s32.totalorder %s370, 1
      %s376 = scalar_select %p375, %s370, 1
      %s377 = smul.addr %s374, 2
      %s378 = sadd.s32 %s376, %s377
      %s379 = smul.addr %s372, 4
      %s380 = sadd.s32 %s378, %s379
      %s381 = smul.addr %s380, 4
      %s382 = scalar_lea.vmem %s0, %s381
      %s383 = smul.u32 2, %s23
      %s384 = smul.u32 2, %s25
      %s385 = smul.u32 2, %s25
      %p386 = scmp.lt.s32.totalorder %s22, 1
      %s387 = scalar_select %p386, %s22, 1
      %p388 = scmp.lt.s32.totalorder %s385, 1
      %s389 = scalar_select %p388, %s385, 1
      %s390 = smul.addr %s387, 2
      %s391 = sadd.s32 %s389, %s390
      %s392 = scalar_lea.vmem %s1, %s391
      %s393 = smul.u32 2, %s25
      %s394 = smul.u32 32, %s25
      %p395 = scmp.lt.s32.totalorder %s394, 31
      %s396 = scalar_select %p395, %s394, 31
      %p397 = scmp.lt.s32.totalorder %s24, 0
      %s398 = scalar_select %p397, %s24, 0
      %s399 = sadd.s32 %s398, %s396
      %s400 = smul.addr %s399, 4
      %s401 = scalar_lea.vmem %s2, %s400
      %s402 = smul.u32 32, %s25
      %p403 = scmp.lt.s32.totalorder %s24, 0
      %s404 = scalar_select %p403, %s24, 0
      %s405 = scalar_lea.vmem %s3, %s404
      %s406 = smul.u32 2, %s23
      %p407 = scmp.lt.s32.totalorder %s22, 1
      %s408 = scalar_select %p407, %s22, 1
      %p409 = scmp.lt.s32.totalorder %s406, 1
      %s410 = scalar_select %p409, %s406, 1
      %p411 = scmp.lt.s32.totalorder %s24, 0
      %s412 = scalar_select %p411, %s24, 0
      %s413 = sadd.s32 %s412, %s410
      %s414 = smul.addr %s408, 2
      %s415 = sadd.s32 %s413, %s414
      %s416 = smul.addr %s415, 4
      %s417 = scalar_lea.vmem %s4, %s416
      %s418 = smul.u32 2, %s23
      %s419 = smul.u32 2, %s23
      %p420 = scmp.lt.s32.totalorder %s22, 1
      %s421 = scalar_select %p420, %s22, 1
      %p422 = scmp.lt.s32.totalorder %s419, 1
      %s423 = scalar_select %p422, %s419, 1
      %p424 = scmp.lt.s32.totalorder %s24, 0
      %s425 = scalar_select %p424, %s24, 0
      %s426 = sadd.s32 %s425, %s423
      %s427 = smul.addr %s421, 2
      %s428 = sadd.s32 %s426, %s427
      %s429 = smul.addr %s428, 4
      %s430 = scalar_lea.vmem %s5, %s429
      %s431 = smul.u32 2, %s23
      %p433 = scmp.eq.s32.totalorder %s25, 0
      // Predicated region
      $region41: #{_lambda_.25} parent=39 // pred_check
        %p434 = pneg %p433
      $region42: #{_lambda_.25} parent=39 // pred_check_branch
        %436 = sbr.rel (%p434) target = $region44
      $region43: #{_lambda_.25} parent=39 // pred_region
        %437 = vst [vmem:[#allocation2] sm:$0xff] 0.0
        %438 = vst [vmem:[#allocation2 + $0x8] sm:$0xff] 0.0
      $region44: #{_lambda_.25} parent=39 // pred_fallthru
        _
      %v439 = vld [vmem:[%s382] sm:$0xff]
      %v440 = vld [vmem:[%s382 + $0x8] sm:$0xff]
      %v441 = vunpack.c.l.bf16 %v439
      %v442 = vunpack.c.h.bf16 %v439
      %v443 = vunpack.c.l.bf16 %v440
      %v444 = vunpack.c.h.bf16 %v440
      %v445 = vld [vmem:[%s392] sm:$0x3]
      %v446 = vunpack.c.l.bf16 %v445
      %v448 = vlaneseq
      %v449 = vshrl.u32 %v448, 7
      %v450 = vsub.s32 0, %v449
      %v451 = vrot.slane %v446, %v450
      %v452 = vlaneseq
      %v453 = vshrl.u32 %v452, 7
      %v454 = vsub.s32 2, %v453
      %v455 = vrot.slane %v446, %v454
      %v458 = vlaneseq
      %v459 = vshrl.u32 %v458, 7
      %v460 = vsub.s32 0, %v459
      %v461 = vrot.slane %v451, %v460
      %v462 = vlaneseq
      %v463 = vshrl.u32 %v462, 7
      %v464 = vsub.s32 0, %v463
      %v465 = vrot.slane %v455, %v464
      %v466 = vmul.f32 %v441, %v461
      %v467 = vmul.f32 %v442, %v465
      %v468 = vmul.f32 %v443, %v461
      %v469 = vmul.f32 %v444, %v465
      %v470 = vld [vmem:[#allocation2] sm:$0xff]
      %v471 = vld [vmem:[#allocation2 + $0x8] sm:$0xff]
      %v472 = vpack.c.bf16 %v468, %v466
      %v473 = vpack.c.bf16 %v469, %v467
      %v474 = vld [vmem:[%s401] sm:$0xf]
      %v475 = vld [vmem:[%s401 + $0x4] sm:$0xf]
      %v476 = vld [vmem:[%s401 + $0x8] sm:$0xf]
      %v477 = vld [vmem:[%s401 + $0xc] sm:$0xf]
      %v478 = vld [vmem:[%s401 + $0x10] sm:$0xf]
      %v479 = vld [vmem:[%s401 + $0x14] sm:$0xf]
      %v480 = vld [vmem:[%s401 + $0x18] sm:$0xf]
      %v481 = vld [vmem:[%s401 + $0x1c] sm:$0xf]
      %v482 = vld [vmem:[%s401 + $0x20] sm:$0xf]
      %v483 = vld [vmem:[%s401 + $0x24] sm:$0xf]
      %v484 = vld [vmem:[%s401 + $0x28] sm:$0xf]
      %v485 = vld [vmem:[%s401 + $0x2c] sm:$0xf]
      %v486 = vld [vmem:[%s401 + $0x30] sm:$0xf]
      %v487 = vld [vmem:[%s401 + $0x34] sm:$0xf]
      %v488 = vld [vmem:[%s401 + $0x38] sm:$0xf]
      %v489 = vld [vmem:[%s401 + $0x3c] sm:$0xf]
      %v490 = vld [vmem:[%s401 + $0x40] sm:$0xf]
      %v491 = vld [vmem:[%s401 + $0x44] sm:$0xf]
      %v492 = vld [vmem:[%s401 + $0x48] sm:$0xf]
      %v493 = vld [vmem:[%s401 + $0x4c] sm:$0xf]
      %v494 = vld [vmem:[%s401 + $0x50] sm:$0xf]
      %v495 = vld [vmem:[%s401 + $0x54] sm:$0xf]
      %v496 = vld [vmem:[%s401 + $0x58] sm:$0xf]
      %v497 = vld [vmem:[%s401 + $0x5c] sm:$0xf]
      %v498 = vld [vmem:[%s401 + $0x60] sm:$0xf]
      %v499 = vld [vmem:[%s401 + $0x64] sm:$0xf]
      %v500 = vld [vmem:[%s401 + $0x68] sm:$0xf]
      %v501 = vld [vmem:[%s401 + $0x6c] sm:$0xf]
      %v502 = vld [vmem:[%s401 + $0x70] sm:$0xf]
      %v503 = vld [vmem:[%s401 + $0x74] sm:$0xf]
      %v504 = vld [vmem:[%s401 + $0x78] sm:$0xf]
      %v505 = vld [vmem:[%s401 + $0x7c] sm:$0xf]
      %v538 = vunpack.c.l.b16 %v474
      %v539 = vunpack.c.l.b16 %v475
      %v540 = vunpack.c.l.b16 %v476
      %v541 = vunpack.c.l.b16 %v477
      %v542 = vunpack.c.l.b16 %v478
      %v543 = vunpack.c.l.b16 %v479
      %v544 = vunpack.c.l.b16 %v480
      %v545 = vunpack.c.l.b16 %v481
      %v546 = vunpack.c.l.b16 %v482
      %v547 = vunpack.c.l.b16 %v483
      %v548 = vunpack.c.l.b16 %v484
      %v549 = vunpack.c.l.b16 %v485
      %v550 = vunpack.c.l.b16 %v486
      %v551 = vunpack.c.l.b16 %v487
      %v552 = vunpack.c.l.b16 %v488
      %v553 = vunpack.c.l.b16 %v489
      %v554 = vunpack.c.l.b16 %v490
      %v555 = vunpack.c.l.b16 %v491
      %v556 = vunpack.c.l.b16 %v492
      %v557 = vunpack.c.l.b16 %v493
      %v558 = vunpack.c.l.b16 %v494
      %v559 = vunpack.c.l.b16 %v495
      %v560 = vunpack.c.l.b16 %v496
      %v561 = vunpack.c.l.b16 %v497
      %v562 = vunpack.c.l.b16 %v498
      %v563 = vunpack.c.l.b16 %v499
      %v564 = vunpack.c.l.b16 %v500
      %v565 = vunpack.c.l.b16 %v501
      %v566 = vunpack.c.l.b16 %v502
      %v567 = vunpack.c.l.b16 %v503
      %v568 = vunpack.c.l.b16 %v504
      %v569 = vunpack.c.l.b16 %v505
      %v570 = vpack.c.b16 %v539, %v538
      %v571 = vpack.c.b16 %v541, %v540
      %v572 = vpack.c.b16 %v543, %v542
      %v573 = vpack.c.b16 %v545, %v544
      %v574 = vpack.c.b16 %v547, %v546
      %v575 = vpack.c.b16 %v549, %v548
      %v576 = vpack.c.b16 %v551, %v550
      %v577 = vpack.c.b16 %v553, %v552
      %v578 = vpack.c.b16 %v555, %v554
      %v579 = vpack.c.b16 %v557, %v556
      %v580 = vpack.c.b16 %v559, %v558
      %v581 = vpack.c.b16 %v561, %v560
      %v582 = vpack.c.b16 %v563, %v562
      %v583 = vpack.c.b16 %v565, %v564
      %v584 = vpack.c.b16 %v567, %v566
      %v585 = vpack.c.b16 %v569, %v568
      %602 = vmatprep.subr.bf16.mxu0 0
      %603 = vmatpush1.bf16.msra.mxu0 %v570
      %604 = vmatprep.subr.bf16.mxu0 0
      %605 = vmatpush1.bf16.msra.mxu0 %v571
      %606 = vmatprep.subr.bf16.mxu0 0
      %607 = vmatpush1.bf16.msra.mxu0 %v572
      %608 = vmatprep.subr.bf16.mxu0 0
      %609 = vmatpush1.bf16.msra.mxu0 %v573
      %610 = vmatprep.subr.bf16.mxu0 0
      %611 = vmatpush1.bf16.msra.mxu0 %v574
      %612 = vmatprep.subr.bf16.mxu0 0
      %613 = vmatpush1.bf16.msra.mxu0 %v575
      %614 = vmatprep.subr.bf16.mxu0 0
      %615 = vmatpush1.bf16.msra.mxu0 %v576
      %616 = vmatprep.subr.bf16.mxu0 0
      %617 = vmatpush1.bf16.msra.mxu0 %v577
      %618 = vmatprep.subr.bf16.mxu0 0
      %619 = vmatpush1.bf16.msra.mxu0 %v578
      %620 = vmatprep.subr.bf16.mxu0 0
      %621 = vmatpush1.bf16.msra.mxu0 %v579
      %622 = vmatprep.subr.bf16.mxu0 0
      %623 = vmatpush1.bf16.msra.mxu0 %v580
      %624 = vmatprep.subr.bf16.mxu0 0
      %625 = vmatpush1.bf16.msra.mxu0 %v581
      %626 = vmatprep.subr.bf16.mxu0 0
      %627 = vmatpush1.bf16.msra.mxu0 %v582
      %628 = vmatprep.subr.bf16.mxu0 0
      %629 = vmatpush1.bf16.msra.mxu0 %v583
      %630 = vmatprep.subr.bf16.mxu0 0
      %631 = vmatpush1.bf16.msra.mxu0 %v584
      %632 = vmatprep.subr.bf16.mxu0 0
      %633 = vmatpush1.bf16.msra.mxu0 %v585
      %634 = vmatprep.mubr.bf16.mxu0 %v473
      %635 = vmatmul.mubr.bf16.gmra.mrb[0].mxu0 %v472
      %v636 = vpop.f32.mrb[0].mxu0
      %v637 = vadd.f32 0.0, %v636
      %v638 = vpop.f32.mrb[0].mxu0
      %v639 = vpop.f32.mrb[0].mxu0
      %v640 = vadd.f32 0.0, %v639
      %v641 = vpop.f32.mrb[0].mxu0
      %642 = vdwg.mxu0
      %v643 = vadd.f32 %v470, %v637
      %v644 = vadd.f32 %v471, %v640
      %645 = vst [vmem:[#allocation2] sm:$0xff] %v643
      %646 = vst [vmem:[#allocation2 + $0x8] sm:$0xff] %v644
      // Predicated region
      $region45: #{_lambda_.25} parent=39 // pred_check
        %p647 = pneg %p433
      $region46: #{_lambda_.25} parent=39 // pred_check_branch
        %649 = sbr.rel (%p647) target = $region48
      $region47: #{_lambda_.25} parent=39 // pred_region
        %v650 = vld [vmem:[#allocation2] sm:$0xff]
        %v651 = vld [vmem:[#allocation2 + $0x8] sm:$0xff]
        %v652 = vld [vmem:[%s405] sm:$0x1]
        %v654 = vlaneseq
        %v655 = vshrl.u32 %v654, 7
        %v656 = vsub.s32 0, %v655
        %v657 = vrot.slane %v652, %v656
        %v659 = vadd.f32 %v650, %v657
        %v660 = vadd.f32 %v651, %v657
        %v661 = vld [vmem:[%s417] sm:$0xf]
        %v662 = vld [vmem:[%s417 + $0x4] sm:$0xf]
        %v663 = vunpack.c.l.bf16 %v661
        %v664 = vunpack.c.l.bf16 %v662
        %v665 = vadd.f32 %v659, %v663
        %v666 = vadd.f32 %v660, %v664
        %v667 = vpack.c.bf16 %v666, %v665
        %v669 = vunpack.c.l.b16 %v667
        %v670 = vunpack.c.h.b16 %v667
        %v671 = vpack.c.b16 %v669, %v669
        %v672 = vpack.c.b16 %v670, %v670
        %675 = vst [vmem:[%s430] sm:$0xf] %v671
        %676 = vst [vmem:[%s430 + $0x4] sm:$0xf] %v672
      $region48: #{_lambda_.25} parent=39 // pred_fallthru
        _
      %s677 = smul.u32 2, %s23
      %p678 = scmp.lt.s32.totalorder %s22, 1
      %s679 = scalar_select %p678, %s22, 1
      %p680 = scmp.lt.s32.totalorder %s677, 1
      %s681 = scalar_select %p680, %s677, 1
      %p682 = scmp.lt.s32.totalorder %s24, 0
      %s683 = scalar_select %p682, %s24, 0
      %s684 = sadd.s32 %s683, %s681
      %s685 = smul.addr %s679, 2
      %s686 = sadd.s32 %s684, %s685
      %s687 = smul.addr %s686, 4
      %s688 = scalar_lea.vmem %s5, %s687
      // Predicated region
      $region49: #{_lambda_.25} parent=39 // pred_check
        %p689 = pneg %p206
      $region50: #{_lambda_.25} parent=39 // pred_check_branch
        %691 = sbr.rel (%p689) target = $region52
      $region51: #{_lambda_.25} parent=39 // pred_region
        %s692 = smul.u32 2, %s23
      $region52: #{_lambda_.25} parent=39 // pred_fallthru
        _
    $region40: #{_lambda_.25} parent=5 // pred_fallthru
      _
    %p693 = scmp.le.s32.totalorder 2, %s11
    // Predicated region
    $region53: #{_lambda_.25} parent=5 // pred_check
      %p694 = pneg %p693
    $region54: #{_lambda_.25} parent=5 // pred_check_branch
      %696 = sbr.rel (%p694) target = $region56
    $region55: #{_lambda_.25} parent=5 // pred_region
      %s697 = ssub.s32 %s11, 2
      // Predicated region
      $region57: #{_lambda_.25} parent=55 // pred_check
        %p698 = pneg %p212
      $region58: #{_lambda_.25} parent=55 // pred_check_branch
        %700 = sbr.rel (%p698) target = $region60
      $region59: #{_lambda_.25} parent=55 // pred_region
        %s701 = smul.u32 2, %s27
        %p702 = scmp.lt.s32.totalorder %s26, 1
        %s703 = scalar_select %p702, %s26, 1
        %p704 = scmp.lt.s32.totalorder %s701, 1
        %s705 = scalar_select %p704, %s701, 1
        %p706 = scmp.lt.s32.totalorder %s28, 0
        %s707 = scalar_select %p706, %s28, 0
        %s708 = sadd.s32 %s707, %s705
        %s709 = smul.addr %s703, 2
        %s710 = sadd.s32 %s708, %s709
        %s711 = smul.addr %s710, 4
        %s712 = scalar_lea.vmem %s5, %s711
      $region60: #{_lambda_.25} parent=55 // pred_fallthru
        _
    $region56: #{_lambda_.25} parent=5 // pred_fallthru
      _
  $region6: #{_lambda_.25} parent=0 // loop_footer
    %s15 = sadd.s32 1, %s11
  $region7: #{_lambda_.25} parent=0 // loop_footer_branch
    %10 = sbr.rel target = $region3
  $region8: #{_lambda_.25} parent=0 // loop_exit
    _

// kernel: _lambda_.26
$region0: #{_lambda_.26}
  #allocation0 [shape = 'u32[]', space=smem, size = 0x4, offset = 0x4, fixed_abs, tag = 'smem constant byte address 0x4 - core index']
  #allocation1 [shape = 'u32[144,128]{1,0:T(1,128)}', space=vmem, size = 0x12000, scoped, tag = 'internal scratch']
  #allocation2 [shape = 'f32[32,256]{1,0:T(8,128)}', space=vmem, size = 0x8000, scoped, tag = 'scratch operand']
  %s0 = inlined_call_operand.vmem [shape: bf16[32,128], index: 0, kind: input, shape index: {}]
  %s1 = inlined_call_operand.vmem [shape: bf16[128,1280], index: 1, kind: input, shape index: {}]
  %s2 = inlined_call_operand.vmem [shape: f32[1,1280], index: 2, kind: input, shape index: {}]
  %s3 = inlined_call_operand.vmem [shape: bf16[32,1280], index: 3, kind: output, shape index: {}]
  %s4 = sld [smem:[#allocation0]]
  $region125: #{_lambda_.26} parent=0
    _
  %s6 = ssub.s32 1, %s4
  %s7 = scalar_select 0, %s6, %s4
  $region1: #{_lambda_.26} parent=0
    #allocation3 [shape = 'u8[131072]{0}', space=vmem, size = 0x20000, scoped, tag = 'input window, operand 1']
    #allocation4 [shape = 'u8[32768]{0}', space=vmem, size = 0x8000, scoped, tag = 'output window, operand 0']
    loop: start=0, step=1, limit=7
    $region2: #{_lambda_.26} parent=1 // loop_pre_header
      _
    $region3: #{_lambda_.26} parent=1 // loop_header
      %s9 = sphi 0, %s13
      %p10 = scmp.ge.s32.totalorder %s9, 7
      %s16 = sphi 0, %s35
      %s17 = sphi 0, %s31
      %s18 = sphi 0, %s27
      %s19 = sphi 0, %s16
      %s20 = sphi 0, %s17
      %s21 = sphi 0, %s18
      %s22 = sphi 0, %s19
      %s23 = sphi 0, %s20
      %s24 = sphi 0, %s21
      %s40 = sphi 0, %s42
      %s43 = sphi 0, %s40
      %s44 = sphi 0, %s43
      %s60 = sphi 0, %s44
      %s68 = sphi 0, %s70
      %s71 = sphi 0, %s68
      %s72 = sphi 0, %s71
      %s88 = sphi 0, %s72
      %s94 = sphi 0, %s96
      %s97 = sphi 0, %s94
      %s98 = sphi 0, %s97
      %s114 = sphi 0, %s98
      %s122 = sphi 0, %s124
      %s125 = sphi 0, %s122
      %s126 = sphi 0, %s125
      %s142 = sphi 0, %s126
    $region4: #{_lambda_.26} parent=1 // loop_header_branch
      %12 = sbr.rel (%p10) target = $region8
    $region5: #{_lambda_.26} parent=1 // loop_body
      %s14 = ssub.s32 %s9, 1
      %s15 = ssub.s32 %s9, 2
      %s25 = sadd.s32 1, %s18
      %p26 = scmp.ge.s32.totalorder %s25, 1
      %s27 = scalar_select %p26, 0, %s25
      %s28 = sadd.s32 1, %s17
      %s29 = scalar_select %p26, %s28, %s17
      %p30 = scmp.ge.s32.totalorder %s29, 5
      %s31 = scalar_select %p30, 0, %s29
      %s32 = sadd.s32 1, %s16
      %s33 = scalar_select %p30, %s32, %s16
      %p34 = scmp.ge.s32.totalorder %s33, 1
      %s35 = scalar_select %p34, 0, %s33
      %s36 = ssub.s32 %s16, %s35
      %s37 = ssub.s32 %s18, %s27
      %s38 = sor.u32 %s36, %s37
      %p39 = scmp.eq.s32.totalorder %s38, 0
      %s41 = sadd.s32 %s40, 1
      %s42 = scalar_select %p39, %s40, %s41
      %p45 = pneg %p39
      %p46 = scmp.eq.s32.totalorder %s9, 4
      %p47 = por %p45, %p46
      %p48 = scmp.ne.s32.totalorder %s40, %s43
      %p49 = scmp.eq.s32.totalorder %s9, 0
      %p50 = por %p48, %p49
      %p51 = scmp.ne.s32.totalorder %s40, %s43
      %p52 = scmp.eq.s32.totalorder %s14, 4
      %p53 = por %p51, %p52
      %p54 = scmp.ne.s32.totalorder %s43, %s44
      %p55 = scmp.eq.s32.totalorder %s14, 0
      %p56 = por %p54, %p55
      %p57 = scmp.ne.s32.totalorder %s43, %s44
      %p58 = scmp.eq.s32.totalorder %s15, 4
      %p59 = por %p57, %p58
      %p61 = scmp.ne.s32.totalorder %s44, %s60
      %p62 = scmp.eq.s32.totalorder %s15, 0
      %p63 = por %p61, %p62
      %s64 = ssub.s32 %s18, %s27
      %s65 = ssub.s32 %s17, %s31
      %s66 = sor.u32 %s64, %s65
      %p67 = scmp.eq.s32.totalorder %s66, 0
      %s69 = sadd.s32 %s68, 1
      %s70 = scalar_select %p67, %s68, %s69
      %p73 = pneg %p67
      %p74 = scmp.eq.s32.totalorder %s9, 4
      %p75 = por %p73, %p74
      %p76 = scmp.ne.s32.totalorder %s68, %s71
      %p77 = scmp.eq.s32.totalorder %s9, 0
      %p78 = por %p76, %p77
      %p79 = scmp.ne.s32.totalorder %s68, %s71
      %p80 = scmp.eq.s32.totalorder %s14, 4
      %p81 = por %p79, %p80
      %p82 = scmp.ne.s32.totalorder %s71, %s72
      %p83 = scmp.eq.s32.totalorder %s14, 0
      %p84 = por %p82, %p83
      %p85 = scmp.ne.s32.totalorder %s71, %s72
      %p86 = scmp.eq.s32.totalorder %s15, 4
      %p87 = por %p85, %p86
      %p89 = scmp.ne.s32.totalorder %s72, %s88
      %p90 = scmp.eq.s32.totalorder %s15, 0
      %p91 = por %p89, %p90
      %s92 = ssub.s32 %s17, %s31
      %p93 = scmp.eq.s32.totalorder %s92, 0
      %s95 = sadd.s32 %s94, 1
      %s96 = scalar_select %p93, %s94, %s95
      %p99 = pneg %p93
      %p100 = scmp.eq.s32.totalorder %s9, 4
      %p101 = por %p99, %p100
      %p102 = scmp.ne.s32.totalorder %s94, %s97
      %p103 = scmp.eq.s32.totalorder %s9, 0
      %p104 = por %p102, %p103
      %p105 = scmp.ne.s32.totalorder %s94, %s97
      %p106 = scmp.eq.s32.totalorder %s14, 4
      %p107 = por %p105, %p106
      %p108 = scmp.ne.s32.totalorder %s97, %s98
      %p109 = scmp.eq.s32.totalorder %s14, 0
      %p110 = por %p108, %p109
      %p111 = scmp.ne.s32.totalorder %s97, %s98
      %p112 = scmp.eq.s32.totalorder %s15, 4
      %p113 = por %p111, %p112
      %p115 = scmp.ne.s32.totalorder %s98, %s114
      %p116 = scmp.eq.s32.totalorder %s15, 0
      %p117 = por %p115, %p116
      %s118 = ssub.s32 %s16, %s35
      %s119 = ssub.s32 %s17, %s31
      %s120 = sor.u32 %s118, %s119
      %p121 = scmp.eq.s32.totalorder %s120, 0
      %s123 = sadd.s32 %s122, 1
      %s124 = scalar_select %p121, %s122, %s123
      %p127 = pneg %p121
      %p128 = scmp.eq.s32.totalorder %s9, 4
      %p129 = por %p127, %p128
      %p130 = scmp.ne.s32.totalorder %s122, %s125
      %p131 = scmp.eq.s32.totalorder %s9, 0
      %p132 = por %p130, %p131
      %p133 = scmp.ne.s32.totalorder %s122, %s125
      %p134 = scmp.eq.s32.totalorder %s14, 4
      %p135 = por %p133, %p134
      %p136 = scmp.ne.s32.totalorder %s125, %s126
      %p137 = scmp.eq.s32.totalorder %s14, 0
      %p138 = por %p136, %p137
      %p139 = scmp.ne.s32.totalorder %s125, %s126
      %p140 = scmp.eq.s32.totalorder %s15, 4
      %p141 = por %p139, %p140
      %p143 = scmp.ne.s32.totalorder %s126, %s142
      %p144 = scmp.eq.s32.totalorder %s15, 0
      %p145 = por %p143, %p144
      %p146 = scmp.le.s32.totalorder 1, %s9
      %p147 = scmp.lt.s32.totalorder %s9, 6
      %p148 = pnand %p146, %p147
      %p149 = pneg %p148
      // Predicated region
      $region9: #{_lambda_.26} parent=5 // pred_check
        _
      $region10: #{_lambda_.26} parent=5 // pred_check_branch
        %151 = sbr.rel (%p148) target = $region12
      $region11: #{_lambda_.26} parent=5 // pred_region
        %s152 = ssub.s32 %s9, 1
        // Predicated region
        $region13: #{_lambda_.26} parent=11 // pred_check
          %p153 = pneg %p56
        $region14: #{_lambda_.26} parent=11 // pred_check_branch
          %155 = sbr.rel (%p153) target = $region16
        $region15: #{_lambda_.26} parent=11 // pred_region
          %s156 = smul.u32 4, %s19
          %p157 = scmp.lt.s32.totalorder %s156, 3
          %s158 = scalar_select %p157, %s156, 3
          %p159 = scmp.lt.s32.totalorder %s21, 0
          %s160 = scalar_select %p159, %s21, 0
          %s161 = sadd.s32 %s160, %s158
          %s162 = smul.addr %s161, 4
          %s163 = scalar_lea.vmem %s0, %s162
          %s164 = smul.u32 4, %s19
        $region16: #{_lambda_.26} parent=11 // pred_fallthru
          _
      $region12: #{_lambda_.26} parent=5 // pred_fallthru
        _
      %p165 = scmp.lt.s32.totalorder %s9, 5
      // Predicated region
      $region17: #{_lambda_.26} parent=5 // pred_check
        %p166 = pneg %p165
      $region18: #{_lambda_.26} parent=5 // pred_check_branch
        %168 = sbr.rel (%p166) target = $region20
      $region19: #{_lambda_.26} parent=5 // pred_region
        // Predicated region
        $region21: #{_lambda_.26} parent=19 // pred_check
          %p169 = pneg %p78
        $region22: #{_lambda_.26} parent=19 // pred_check_branch
          %171 = sbr.rel (%p169) target = $region24
        $region23: #{_lambda_.26} parent=19 // pred_region
          %s172 = sand.u32 %s68, 1
          %s173 = sand.u32 %s68, 1
          %s174 = smul.addr %s173, 128
          %s175 = scalar_lea.vmem [#allocation3], %s174
          %s176 = smul.u32 16, %s18
          %s177 = smul.u32 2, %s17
          %s178 = smul.addr %s176, 10
          %s179 = sadd.s32 %s177, %s178
          %s180 = smul.addr %s179, 4
          %s181 = scalar_lea.vmem %s1, %s180
          // Predicated region
          $region25: #{_lambda_.26} parent=23 // pred_check
            _
          $region26: #{_lambda_.26} parent=23 // pred_check_branch
            %183 = sbr.rel (0) target = $region28
          $region27: #{_lambda_.26} parent=23 // pred_region
            // Predicated region
            $region29: #{_lambda_.26} parent=27 // pred_check
              _
            $region30: #{_lambda_.26} parent=27 // pred_check_branch
              %185 = sbr.rel (0) target = $region32
            $region31: #{_lambda_.26} parent=27 // pred_region
              // Predicated region
              $region44: #{_lambda_.26} parent=31 // pred_check
                _
              $region45: #{_lambda_.26} parent=31 // pred_check_branch
                %230 = sbr.rel (0) target = $region47
              $region46: #{_lambda_.26} parent=31 // pred_region
                loop: start=0, step=1, limit=1
                $region48: #{_lambda_.26} parent=46 // loop_pre_header
                  _
                $region49: #{_lambda_.26} parent=46 // loop_header
                  %s232 = sphi 0, %s236
                  %p233 = scmp.ge.s32.totalorder %s232, 1
                  %s237 = sphi %s181, %s181
                  %s238 = sphi %s175, %s175
                $region50: #{_lambda_.26} parent=46 // loop_header_branch
                  %235 = sbr.rel (%p233) target = $region54
                $region51: #{_lambda_.26} parent=46 // loop_body
                  %v239 = vld [vmem:[%s237] sm:$0xff]
                  %240 = vst [vmem:[%s238] sm:$0xff] %v239
                  %v241 = vld [vmem:[%s237 + $0x28] sm:$0xff]
                  %242 = vst [vmem:[%s238 + $0x8] sm:$0xff] %v241
                  %v243 = vld [vmem:[%s237 + $0x50] sm:$0xff]
                  %244 = vst [vmem:[%s238 + $0x10] sm:$0xff] %v243
                  %v245 = vld [vmem:[%s237 + $0x78] sm:$0xff]
                  %246 = vst [vmem:[%s238 + $0x18] sm:$0xff] %v245
                  %v247 = vld [vmem:[%s237 + $0xa0] sm:$0xff]
                  %248 = vst [vmem:[%s238 + $0x20] sm:$0xff] %v247
                  %v249 = vld [vmem:[%s237 + $0xc8] sm:$0xff]
                  %250 = vst [vmem:[%s238 + $0x28] sm:$0xff] %v249
                  %v251 = vld [vmem:[%s237 + $0xf0] sm:$0xff]
                  %252 = vst [vmem:[%s238 + $0x30] sm:$0xff] %v251
                  %v253 = vld [vmem:[%s237 + $0x118] sm:$0xff]
                  %254 = vst [vmem:[%s238 + $0x38] sm:$0xff] %v253
                  %v255 = vld [vmem:[%s237 + $0x140] sm:$0xff]
                  %256 = vst [vmem:[%s238 + $0x40] sm:$0xff] %v255
                  %v257 = vld [vmem:[%s237 + $0x168] sm:$0xff]
                  %258 = vst [vmem:[%s238 + $0x48] sm:$0xff] %v257
                  %v259 = vld [vmem:[%s237 + $0x190] sm:$0xff]
                  %260 = vst [vmem:[%s238 + $0x50] sm:$0xff] %v259
                  %v261 = vld [vmem:[%s237 + $0x1b8] sm:$0xff]
                  %262 = vst [vmem:[%s238 + $0x58] sm:$0xff] %v261
                  %v263 = vld [vmem:[%s237 + $0x1e0] sm:$0xff]
                  %264 = vst [vmem:[%s238 + $0x60] sm:$0xff] %v263
                  %v265 = vld [vmem:[%s237 + $0x208] sm:$0xff]
                  %266 = vst [vmem:[%s238 + $0x68] sm:$0xff] %v265
                  %v267 = vld [vmem:[%s237 + $0x230] sm:$0xff]
                  %268 = vst [vmem:[%s238 + $0x70] sm:$0xff] %v267
                  %v269 = vld [vmem:[%s237 + $0x258] sm:$0xff]
                  %270 = vst [vmem:[%s238 + $0x78] sm:$0xff] %v269
                $region52: #{_lambda_.26} parent=46 // loop_footer
                  %s236 = sadd.s32 1, %s232
                $region53: #{_lambda_.26} parent=46 // loop_footer_branch
                  %231 = sbr.rel target = $region49
                $region54: #{_lambda_.26} parent=46 // loop_exit
                  _
              $region47: #{_lambda_.26} parent=31 // pred_fallthru
                _
              // Predicated region
              $region55: #{_lambda_.26} parent=31 // pred_check
                _
              $region56: #{_lambda_.26} parent=31 // pred_check_branch
                %272 = sbr.rel target = $region58
              $region57: #{_lambda_.26} parent=31 // pred_region
                _
              $region58: #{_lambda_.26} parent=31 // pred_fallthru
                _
            $region32: #{_lambda_.26} parent=27 // pred_fallthru
              _
            // Predicated region
            $region33: #{_lambda_.26} parent=27 // pred_check
              _
            $region34: #{_lambda_.26} parent=27 // pred_check_branch
              %187 = sbr.rel target = $region36
            $region35: #{_lambda_.26} parent=27 // pred_region
              loop: start=0, step=1, limit=1
              $region37: #{_lambda_.26} parent=35 // loop_pre_header
                _
              $region38: #{_lambda_.26} parent=35 // loop_header
                %s190 = sphi 0, %s194
                %p191 = scmp.ge.s32.totalorder %s190, 1
                %s195 = sphi %s181, %s181
                %s196 = sphi %s175, %s175
              $region39: #{_lambda_.26} parent=35 // loop_header_branch
                %193 = sbr.rel (%p191) target = $region43
              $region40: #{_lambda_.26} parent=35 // loop_body
                %v197 = vld [vmem:[%s195] sm:$0xff]
                %198 = vst [vmem:[%s196] sm:$0xff] %v197
                %v199 = vld [vmem:[%s195 + $0x28] sm:$0xff]
                %200 = vst [vmem:[%s196 + $0x8] sm:$0xff] %v199
                %v201 = vld [vmem:[%s195 + $0x50] sm:$0xff]
                %202 = vst [vmem:[%s196 + $0x10] sm:$0xff] %v201
                %v203 = vld [vmem:[%s195 + $0x78] sm:$0xff]
                %204 = vst [vmem:[%s196 + $0x18] sm:$0xff] %v203
                %v205 = vld [vmem:[%s195 + $0xa0] sm:$0xff]
                %206 = vst [vmem:[%s196 + $0x20] sm:$0xff] %v205
                %v207 = vld [vmem:[%s195 + $0xc8] sm:$0xff]
                %208 = vst [vmem:[%s196 + $0x28] sm:$0xff] %v207
                %v209 = vld [vmem:[%s195 + $0xf0] sm:$0xff]
                %210 = vst [vmem:[%s196 + $0x30] sm:$0xff] %v209
                %v211 = vld [vmem:[%s195 + $0x118] sm:$0xff]
                %212 = vst [vmem:[%s196 + $0x38] sm:$0xff] %v211
                %v213 = vld [vmem:[%s195 + $0x140] sm:$0xff]
                %214 = vst [vmem:[%s196 + $0x40] sm:$0xff] %v213
                %v215 = vld [vmem:[%s195 + $0x168] sm:$0xff]
                %216 = vst [vmem:[%s196 + $0x48] sm:$0xff] %v215
                %v217 = vld [vmem:[%s195 + $0x190] sm:$0xff]
                %218 = vst [vmem:[%s196 + $0x50] sm:$0xff] %v217
                %v219 = vld [vmem:[%s195 + $0x1b8] sm:$0xff]
                %220 = vst [vmem:[%s196 + $0x58] sm:$0xff] %v219
                %v221 = vld [vmem:[%s195 + $0x1e0] sm:$0xff]
                %222 = vst [vmem:[%s196 + $0x60] sm:$0xff] %v221
                %v223 = vld [vmem:[%s195 + $0x208] sm:$0xff]
                %224 = vst [vmem:[%s196 + $0x68] sm:$0xff] %v223
                %v225 = vld [vmem:[%s195 + $0x230] sm:$0xff]
                %226 = vst [vmem:[%s196 + $0x70] sm:$0xff] %v225
                %v227 = vld [vmem:[%s195 + $0x258] sm:$0xff]
                %228 = vst [vmem:[%s196 + $0x78] sm:$0xff] %v227
              $region41: #{_lambda_.26} parent=35 // loop_footer
                %s194 = sadd.s32 1, %s190
              $region42: #{_lambda_.26} parent=35 // loop_footer_branch
                %189 = sbr.rel target = $region38
              $region43: #{_lambda_.26} parent=35 // loop_exit
                _
            $region36: #{_lambda_.26} parent=27 // pred_fallthru
              _
          $region28: #{_lambda_.26} parent=23 // pred_fallthru
            _
          %273 = vnop
        $region24: #{_lambda_.26} parent=19 // pred_fallthru
          _
        // Predicated region
        $region59: #{_lambda_.26} parent=19 // pred_check
          %p274 = pneg %p104
        $region60: #{_lambda_.26} parent=19 // pred_check_branch
          %276 = sbr.rel (%p274) target = $region62
        $region61: #{_lambda_.26} parent=19 // pred_region
          %s277 = smul.u32 2, %s17
          %p278 = scmp.lt.s32.totalorder %s277, 9
          %s279 = scalar_select %p278, %s277, 9
          %s280 = scalar_lea.vmem %s2, %s279
          %s281 = smul.u32 2, %s17
        $region62: #{_lambda_.26} parent=19 // pred_fallthru
          _
      $region20: #{_lambda_.26} parent=5 // pred_fallthru
        _
      %p282 = scmp.le.s32.totalorder 1, %s9
      %p283 = scmp.lt.s32.totalorder %s9, 6
      %p284 = pnand %p282, %p283
      %p285 = pneg %p284
      // Predicated region
      $region63: #{_lambda_.26} parent=5 // pred_check
        _
      $region64: #{_lambda_.26} parent=5 // pred_check_branch
        %287 = sbr.rel (%p284) target = $region66
      $region65: #{_lambda_.26} parent=5 // pred_region
        %s288 = ssub.s32 %s9, 1
        %s289 = sand.u32 %s71, 1
        %s290 = sand.u32 %s71, 1
        %s291 = smul.addr %s290, 128
        %s292 = scalar_lea.vmem [#allocation3], %s291
        // Predicated region
        $region67: #{_lambda_.26} parent=65 // pred_check
          %p293 = pneg %p84
        $region68: #{_lambda_.26} parent=65 // pred_check_branch
          %295 = sbr.rel (%p293) target = $region70
        $region69: #{_lambda_.26} parent=65 // pred_region
          _
        $region70: #{_lambda_.26} parent=65 // pred_fallthru
          _
        %s296 = smul.u32 4, %s19
        %p297 = scmp.lt.s32.totalorder %s296, 3
        %s298 = scalar_select %p297, %s296, 3
        %p299 = scmp.lt.s32.totalorder %s21, 0
        %s300 = scalar_select %p299, %s21, 0
        %s301 = sadd.s32 %s300, %s298
        %s302 = smul.addr %s301, 4
        %s303 = scalar_lea.vmem %s0, %s302
        %p304 = pneg %p56
        %p305 = pneg %p53
        %s306 = sand.u32 %s71, 1
        %s307 = sand.u32 %s71, 1
        %s308 = smul.addr %s307, 128
        %s309 = scalar_lea.vmem [#allocation3], %s308
        %p310 = pneg %p84
        %p311 = pneg %p81
        %s312 = smul.u32 2, %s20
        %p313 = scmp.lt.s32.totalorder %s312, 9
        %s314 = scalar_select %p313, %s312, 9
        %s315 = scalar_lea.vmem %s2, %s314
        %p316 = pneg %p110
        %p317 = pneg %p107
        %p318 = pneg %p138
        %p319 = pneg %p135
        %s320 = sand.u32 %s125, 1
        %s321 = sand.u32 %s125, 1
        %s322 = smul.addr %s321, 32
        %s323 = scalar_lea.vmem [#allocation4], %s322
        %s324 = smul.u32 4, %s19
        %p325 = scmp.lt.s32.totalorder %s324, 3
        %s326 = scalar_select %p325, %s324, 3
        %p327 = scmp.lt.s32.totalorder %s21, 0
        %s328 = scalar_select %p327, %s21, 0
        %s329 = sadd.s32 %s328, %s326
        %s330 = smul.addr %s329, 4
        %s331 = scalar_lea.vmem %s0, %s330
        %s332 = smul.u32 4, %s19
        %s333 = smul.u32 16, %s21
        %s334 = smul.u32 2, %s20
        %s335 = smul.u32 2, %s20
        %p336 = scmp.lt.s32.totalorder %s335, 9
        %s337 = scalar_select %p336, %s335, 9
        %s338 = scalar_lea.vmem %s2, %s337
        %s339 = smul.u32 2, %s20
        %s340 = smul.u32 4, %s19
        %s341 = smul.u32 2, %s20
        %p343 = scmp.eq.s32.totalorder %s21, 0
        // Predicated region
        $region71: #{_lambda_.26} parent=65 // pred_check
          %p344 = pneg %p343
        $region72: #{_lambda_.26} parent=65 // pred_check_branch
          %346 = sbr.rel (%p344) target = $region74
        $region73: #{_lambda_.26} parent=65 // pred_region
          %347 = vst [vmem:[#allocation2] sm:$0xff] 0.0
          %348 = vst [vmem:[#allocation2 + $0x8] sm:$0xff] 0.0
          %349 = vst [vmem:[#allocation2 + $0x10] sm:$0xff] 0.0
          %350 = vst [vmem:[#allocation2 + $0x18] sm:$0xff] 0.0
          %351 = vst [vmem:[#allocation2 + $0x20] sm:$0xff] 0.0
          %352 = vst [vmem:[#allocation2 + $0x28] sm:$0xff] 0.0
          %353 = vst [vmem:[#allocation2 + $0x30] sm:$0xff] 0.0
          %354 = vst [vmem:[#allocation2 + $0x38] sm:$0xff] 0.0
        $region74: #{_lambda_.26} parent=65 // pred_fallthru
          _
        %v355 = vld [vmem:[#allocation2] sm:$0xff]
        %v356 = vld [vmem:[#allocation2 + $0x8] sm:$0xff]
        %v357 = vld [vmem:[#allocation2 + $0x10] sm:$0xff]
        %v358 = vld [vmem:[#allocation2 + $0x18] sm:$0xff]
        %v359 = vld [vmem:[#allocation2 + $0x20] sm:$0xff]
        %v360 = vld [vmem:[#allocation2 + $0x28] sm:$0xff]
        %v361 = vld [vmem:[#allocation2 + $0x30] sm:$0xff]
        %v362 = vld [vmem:[#allocation2 + $0x38] sm:$0xff]
        %v363 = vld [vmem:[%s331] sm:$0xf]
        %v364 = vld [vmem:[%s331 + $0x4] sm:$0xf]
        %v365 = vld [vmem:[%s331 + $0x8] sm:$0xf]
        %v366 = vld [vmem:[%s331 + $0xc] sm:$0xf]
        %v367 = vld [vmem:[%s292] sm:$0xff]
        %v368 = vld [vmem:[%s292 + $0x8] sm:$0xff]
        %v369 = vld [vmem:[%s292 + $0x10] sm:$0xff]
        %v370 = vld [vmem:[%s292 + $0x18] sm:$0xff]
        %v371 = vld [vmem:[%s292 + $0x20] sm:$0xff]
        %v372 = vld [vmem:[%s292 + $0x28] sm:$0xff]
        %v373 = vld [vmem:[%s292 + $0x30] sm:$0xff]
        %v374 = vld [vmem:[%s292 + $0x38] sm:$0xff]
        %v375 = vld [vmem:[%s292 + $0x40] sm:$0xff]
        %v376 = vld [vmem:[%s292 + $0x48] sm:$0xff]
        %v377 = vld [vmem:[%s292 + $0x50] sm:$0xff]
        %v378 = vld [vmem:[%s292 + $0x58] sm:$0xff]
        %v379 = vld [vmem:[%s292 + $0x60] sm:$0xff]
        %v380 = vld [vmem:[%s292 + $0x68] sm:$0xff]
        %v381 = vld [vmem:[%s292 + $0x70] sm:$0xff]
        %v382 = vld [vmem:[%s292 + $0x78] sm:$0xff]
        %v387 = vunpack.c.l.b16 %v363
        %v388 = vunpack.c.l.b16 %v364
        %v389 = vunpack.c.l.b16 %v365
        %v390 = vunpack.c.l.b16 %v366
        %v391 = vpack.c.b16 %v388, %v387
        %v392 = vpack.c.b16 %v390, %v389
        %v411 = vunpack.c.l.b16 %v367
        %v412 = vunpack.c.h.b16 %v367
        %v413 = vunpack.c.l.b16 %v368
        %v414 = vunpack.c.h.b16 %v368
        %v415 = vunpack.c.l.b16 %v369
        %v416 = vunpack.c.h.b16 %v369
        %v417 = vunpack.c.l.b16 %v370
        %v418 = vunpack.c.h.b16 %v370
        %v419 = vunpack.c.l.b16 %v371
        %v420 = vunpack.c.h.b16 %v371
        %v421 = vunpack.c.l.b16 %v372
        %v422 = vunpack.c.h.b16 %v372
        %v423 = vunpack.c.l.b16 %v373
        %v424 = vunpack.c.h.b16 %v373
        %v425 = vunpack.c.l.b16 %v374
        %v426 = vunpack.c.h.b16 %v374
        %v427 = vunpack.c.l.b16 %v375
        %v428 = vunpack.c.h.b16 %v375
        %v429 = vunpack.c.l.b16 %v376
        %v430 = vunpack.c.h.b16 %v376
        %v431 = vunpack.c.l.b16 %v377
        %v432 = vunpack.c.h.b16 %v377
        %v433 = vunpack.c.l.b16 %v378
        %v434 = vunpack.c.h.b16 %v378
        %v435 = vunpack.c.l.b16 %v379
        %v436 = vunpack.c.h.b16 %v379
        %v437 = vunpack.c.l.b16 %v380
        %v438 = vunpack.c.h.b16 %v380
        %v439 = vunpack.c.l.b16 %v381
        %v440 = vunpack.c.h.b16 %v381
        %v441 = vunpack.c.l.b16 %v382
        %v442 = vunpack.c.h.b16 %v382
        %v443 = vpack.c.b16 %v413, %v411
        %v444 = vpack.c.b16 %v414, %v412
        %v445 = vpack.c.b16 %v417, %v415
        %v446 = vpack.c.b16 %v418, %v416
        %v447 = vpack.c.b16 %v421, %v419
        %v448 = vpack.c.b16 %v422, %v420
        %v449 = vpack.c.b16 %v425, %v423
        %v450 = vpack.c.b16 %v426, %v424
        %v451 = vpack.c.b16 %v429, %v427
        %v452 = vpack.c.b16 %v430, %v428
        %v453 = vpack.c.b16 %v433, %v431
        %v454 = vpack.c.b16 %v434, %v432
        %v455 = vpack.c.b16 %v437, %v435
        %v456 = vpack.c.b16 %v438, %v436
        %v457 = vpack.c.b16 %v441, %v439
        %v458 = vpack.c.b16 %v442, %v440
        %475 = vmatprep.subr.bf16.mxu0 %v444
        %476 = vmatpush1.bf16.msra.mxu0 %v443
        %477 = vmatprep.subr.bf16.mxu0 %v446
        %478 = vmatpush1.bf16.msra.mxu0 %v445
        %479 = vmatprep.subr.bf16.mxu0 %v448
        %480 = vmatpush1.bf16.msra.mxu0 %v447
        %481 = vmatprep.subr.bf16.mxu0 %v450
        %482 = vmatpush1.bf16.msra.mxu0 %v449
        %483 = vmatprep.subr.bf16.mxu0 %v452
        %484 = vmatpush1.bf16.msra.mxu0 %v451
        %485 = vmatprep.subr.bf16.mxu0 %v454
        %486 = vmatpush1.bf16.msra.mxu0 %v453
        %487 = vmatprep.subr.bf16.mxu0 %v456
        %488 = vmatpush1.bf16.msra.mxu0 %v455
        %489 = vmatprep.subr.bf16.mxu0 %v458
        %490 = vmatpush1.bf16.msra.mxu0 %v457
        %491 = vmatprep.subr.bf16.mxu0 0
        %492 = vmatpush1.bf16.msra.mxu0 0
        %493 = vmatprep.subr.bf16.mxu0 0
        %494 = vmatpush1.bf16.msra.mxu0 0
        %495 = vmatprep.subr.bf16.mxu0 0
        %496 = vmatpush1.bf16.msra.mxu0 0
        %497 = vmatprep.subr.bf16.mxu0 0
        %498 = vmatpush1.bf16.msra.mxu0 0
        %499 = vmatprep.subr.bf16.mxu0 0
        %500 = vmatpush1.bf16.msra.mxu0 0
        %501 = vmatprep.subr.bf16.mxu0 0
        %502 = vmatpush1.bf16.msra.mxu0 0
        %503 = vmatprep.subr.bf16.mxu0 0
        %504 = vmatpush1.bf16.msra.mxu0 0
        %505 = vmatprep.subr.bf16.mxu0 0
        %506 = vmatpush1.bf16.msra.mxu0 0
        %507 = vmatprep.mubr.bf16.mxu0 0
        %508 = vmatmul.mubr.bf16.gmra.mrb[0].mxu0 %v391
        %v509 = vpop.f32.mrb[0].mxu0
        %v510 = vadd.f32 0.0, %v509
        %v511 = vpop.f32.mrb[0].mxu0
        %v512 = vadd.f32 0.0, %v511
        %v513 = vpop.f32.mrb[0].mxu0
        %v514 = vadd.f32 0.0, %v513
        %v515 = vpop.f32.mrb[0].mxu0
        %v516 = vadd.f32 0.0, %v515
        %517 = vmatprep.mubr.bf16.mxu0 0
        %518 = vmatmul.mubr.bf16.gmra.mrb[0].mxu0 %v392
        %v519 = vpop.f32.mrb[0].mxu0
        %v520 = vadd.f32 0.0, %v519
        %v521 = vpop.f32.mrb[0].mxu0
        %v522 = vadd.f32 0.0, %v521
        %v523 = vpop.f32.mrb[0].mxu0
        %v524 = vadd.f32 0.0, %v523
        %v525 = vpop.f32.mrb[0].mxu0
        %v526 = vadd.f32 0.0, %v525
        %527 = vdwg.mxu0
        %v528 = vadd.f32 %v355, %v510
        %v529 = vadd.f32 %v356, %v512
        %v530 = vadd.f32 %v357, %v514
        %v531 = vadd.f32 %v358, %v516
        %v532 = vadd.f32 %v359, %v520
        %v533 = vadd.f32 %v360, %v522
        %v534 = vadd.f32 %v361, %v524
        %v535 = vadd.f32 %v362, %v526
        %536 = vst [vmem:[#allocation2] sm:$0xff] %v528
        %537 = vst [vmem:[#allocation2 + $0x8] sm:$0xff] %v529
        %538 = vst [vmem:[#allocation2 + $0x10] sm:$0xff] %v530
        %539 = vst [vmem:[#allocation2 + $0x18] sm:$0xff] %v531
        %540 = vst [vmem:[#allocation2 + $0x20] sm:$0xff] %v532
        %541 = vst [vmem:[#allocation2 + $0x28] sm:$0xff] %v533
        %542 = vst [vmem:[#allocation2 + $0x30] sm:$0xff] %v534
        %543 = vst [vmem:[#allocation2 + $0x38] sm:$0xff] %v535
        // Predicated region
        $region75: #{_lambda_.26} parent=65 // pred_check
          %p544 = pneg %p343
        $region76: #{_lambda_.26} parent=65 // pred_check_branch
          %546 = sbr.rel (%p544) target = $region78
        $region77: #{_lambda_.26} parent=65 // pred_region
          %v547 = vld [vmem:[#allocation2] sm:$0xff]
          %v548 = vld [vmem:[#allocation2 + $0x8] sm:$0xff]
          %v549 = vld [vmem:[#allocation2 + $0x10] sm:$0xff]
          %v550 = vld [vmem:[#allocation2 + $0x18] sm:$0xff]
          %v551 = vld [vmem:[#allocation2 + $0x20] sm:$0xff]
          %v552 = vld [vmem:[#allocation2 + $0x28] sm:$0xff]
          %v553 = vld [vmem:[#allocation2 + $0x30] sm:$0xff]
          %v554 = vld [vmem:[#allocation2 + $0x38] sm:$0xff]
          %v555 = vld [vmem:[%s338] sm:$0x3]
          %v557 = vlaneseq
          %v558 = vshrl.u32 %v557, 7
          %v559 = vsub.s32 0, %v558
          %v560 = vrot.slane %v555, %v559
          %v561 = vlaneseq
          %v562 = vshrl.u32 %v561, 7
          %v563 = vsub.s32 1, %v562
          %v564 = vrot.slane %v555, %v563
          %v567 = vadd.f32 %v547, %v560
          %v568 = vadd.f32 %v548, %v564
          %v569 = vadd.f32 %v549, %v560
          %v570 = vadd.f32 %v550, %v564
          %v571 = vadd.f32 %v551, %v560
          %v572 = vadd.f32 %v552, %v564
          %v573 = vadd.f32 %v553, %v560
          %v574 = vadd.f32 %v554, %v564
          %v575 = vxor.u32 %v567, 2147483648
          %v576 = vxor.u32 %v568, 2147483648
          %v577 = vxor.u32 %v569, 2147483648
          %v578 = vxor.u32 %v570, 2147483648
          %v579 = vxor.u32 %v571, 2147483648
          %v580 = vxor.u32 %v572, 2147483648
          %v581 = vxor.u32 %v573, 2147483648
          %v582 = vxor.u32 %v574, 2147483648
          %v583 = vmul.f32 %v575, 1.442695
          %v584 = vpow.pop %v583
          %v585 = vmul.f32 %v576, 1.442695
          %v586 = vpow.pop %v585
          %v587 = vmul.f32 %v577, 1.442695
          %v588 = vpow.pop %v587
          %v589 = vmul.f32 %v578, 1.442695
          %v590 = vpow.pop %v589
          %v591 = vmul.f32 %v579, 1.442695
          %v592 = vpow.pop %v591
          %v593 = vmul.f32 %v580, 1.442695
          %v594 = vpow.pop %v593
          %v595 = vmul.f32 %v581, 1.442695
          %v596 = vpow.pop %v595
          %v597 = vmul.f32 %v582, 1.442695
          %v598 = vpow.pop %v597
          %v599 = vadd.f32 %v584, 1.0
          %v600 = vadd.f32 %v586, 1.0
          %v601 = vadd.f32 %v588, 1.0
          %v602 = vadd.f32 %v590, 1.0
          %v603 = vadd.f32 %v592, 1.0
          %v604 = vadd.f32 %v594, 1.0
          %v605 = vadd.f32 %v596, 1.0
          %v606 = vadd.f32 %v598, 1.0
          %v607 = vrcp.pop %v599
          %v608 = vmul.f32 1.0, %v607
          %v609 = vrcp.pop %v600
          %v610 = vmul.f32 1.0, %v609
          %v611 = vrcp.pop %v601
          %v612 = vmul.f32 1.0, %v611
          %v613 = vrcp.pop %v602
          %v614 = vmul.f32 1.0, %v613
          %v615 = vrcp.pop %v603
          %v616 = vmul.f32 1.0, %v615
          %v617 = vrcp.pop %v604
          %v618 = vmul.f32 1.0, %v617
          %v619 = vrcp.pop %v605
          %v620 = vmul.f32 1.0, %v619
          %v621 = vrcp.pop %v606
          %v622 = vmul.f32 1.0, %v621
          %v623 = vmul.f32 %v567, %v608
          %v624 = vmul.f32 %v568, %v610
          %v625 = vmul.f32 %v569, %v612
          %v626 = vmul.f32 %v570, %v614
          %v627 = vmul.f32 %v571, %v616
          %v628 = vmul.f32 %v572, %v618
          %v629 = vmul.f32 %v573, %v620
          %v630 = vmul.f32 %v574, %v622
          %v631 = vpack.c.bf16 %v625, %v623
          %v632 = vpack.c.bf16 %v626, %v624
          %v633 = vpack.c.bf16 %v629, %v627
          %v634 = vpack.c.bf16 %v630, %v628
          %v639 = vunpack.c.l.b16 %v631
          %v640 = vunpack.c.l.b16 %v632
          %v641 = vunpack.c.h.b16 %v631
          %v642 = vunpack.c.h.b16 %v632
          %v643 = vunpack.c.l.b16 %v633
          %v644 = vunpack.c.l.b16 %v634
          %v645 = vunpack.c.h.b16 %v633
          %v646 = vunpack.c.h.b16 %v634
          %v647 = vpack.c.b16 %v640, %v639
          %v648 = vpack.c.b16 %v642, %v641
          %v649 = vpack.c.b16 %v644, %v643
          %v650 = vpack.c.b16 %v646, %v645
          %655 = vst [vmem:[%s323] sm:$0xff] %v647
          %656 = vst [vmem:[%s323 + $0x8] sm:$0xff] %v648
          %657 = vst [vmem:[%s323 + $0x10] sm:$0xff] %v649
          %658 = vst [vmem:[%s323 + $0x18] sm:$0xff] %v650
        $region78: #{_lambda_.26} parent=65 // pred_fallthru
          _
        %s659 = sand.u32 %s125, 1
        %s660 = sand.u32 %s125, 1
        %s661 = smul.addr %s660, 32
        %s662 = scalar_lea.vmem [#allocation4], %s661
        // Predicated region
        $region79: #{_lambda_.26} parent=65 // pred_check
          %p663 = pneg %p135
        $region80: #{_lambda_.26} parent=65 // pred_check_branch
          %665 = sbr.rel (%p663) target = $region82
        $region81: #{_lambda_.26} parent=65 // pred_region
          %s666 = smul.u32 4, %s19
          %s667 = smul.u32 2, %s20
          %s668 = smul.addr %s666, 10
          %s669 = sadd.s32 %s667, %s668
          %s670 = smul.addr %s669, 4
          %s671 = scalar_lea.vmem %s3, %s670
          // Predicated region
          $region83: #{_lambda_.26} parent=81 // pred_check
            _
          $region84: #{_lambda_.26} parent=81 // pred_check_branch
            %673 = sbr.rel (0) target = $region86
          $region85: #{_lambda_.26} parent=81 // pred_region
            // Predicated region
            $region87: #{_lambda_.26} parent=85 // pred_check
              _
            $region88: #{_lambda_.26} parent=85 // pred_check_branch
              %675 = sbr.rel (0) target = $region90
            $region89: #{_lambda_.26} parent=85 // pred_region
              // Predicated region
              $region102: #{_lambda_.26} parent=89 // pred_check
                _
              $region103: #{_lambda_.26} parent=89 // pred_check_branch
                %696 = sbr.rel (0) target = $region105
              $region104: #{_lambda_.26} parent=89 // pred_region
                loop: start=0, step=1, limit=1
                $region106: #{_lambda_.26} parent=104 // loop_pre_header
                  _
                $region107: #{_lambda_.26} parent=104 // loop_header
                  %s698 = sphi 0, %s702
                  %p699 = scmp.ge.s32.totalorder %s698, 1
                  %s703 = sphi %s662, %s662
                  %s704 = sphi %s671, %s671
                $region108: #{_lambda_.26} parent=104 // loop_header_branch
                  %701 = sbr.rel (%p699) target = $region112
                $region109: #{_lambda_.26} parent=104 // loop_body
                  %v705 = vld [vmem:[%s703] sm:$0xff]
                  %706 = vst [vmem:[%s704] sm:$0xff] %v705
                  %v707 = vld [vmem:[%s703 + $0x8] sm:$0xff]
                  %708 = vst [vmem:[%s704 + $0x28] sm:$0xff] %v707
                  %v709 = vld [vmem:[%s703 + $0x10] sm:$0xff]
                  %710 = vst [vmem:[%s704 + $0x50] sm:$0xff] %v709
                  %v711 = vld [vmem:[%s703 + $0x18] sm:$0xff]
                  %712 = vst [vmem:[%s704 + $0x78] sm:$0xff] %v711
                $region110: #{_lambda_.26} parent=104 // loop_footer
                  %s702 = sadd.s32 1, %s698
                $region111: #{_lambda_.26} parent=104 // loop_footer_branch
                  %697 = sbr.rel target = $region107
                $region112: #{_lambda_.26} parent=104 // loop_exit
                  _
              $region105: #{_lambda_.26} parent=89 // pred_fallthru
                _
              // Predicated region
              $region113: #{_lambda_.26} parent=89 // pred_check
                _
              $region114: #{_lambda_.26} parent=89 // pred_check_branch
                %714 = sbr.rel target = $region116
              $region115: #{_lambda_.26} parent=89 // pred_region
                _
              $region116: #{_lambda_.26} parent=89 // pred_fallthru
                _
            $region90: #{_lambda_.26} parent=85 // pred_fallthru
              _
            // Predicated region
            $region91: #{_lambda_.26} parent=85 // pred_check
              _
            $region92: #{_lambda_.26} parent=85 // pred_check_branch
              %677 = sbr.rel target = $region94
            $region93: #{_lambda_.26} parent=85 // pred_region
              loop: start=0, step=1, limit=1
              $region95: #{_lambda_.26} parent=93 // loop_pre_header
                _
              $region96: #{_lambda_.26} parent=93 // loop_header
                %s680 = sphi 0, %s684
                %p681 = scmp.ge.s32.totalorder %s680, 1
                %s685 = sphi %s662, %s662
                %s686 = sphi %s671, %s671
              $region97: #{_lambda_.26} parent=93 // loop_header_branch
                %683 = sbr.rel (%p681) target = $region101
              $region98: #{_lambda_.26} parent=93 // loop_body
                %v687 = vld [vmem:[%s685] sm:$0xff]
                %688 = vst [vmem:[%s686] sm:$0xff] %v687
                %v689 = vld [vmem:[%s685 + $0x8] sm:$0xff]
                %690 = vst [vmem:[%s686 + $0x28] sm:$0xff] %v689
                %v691 = vld [vmem:[%s685 + $0x10] sm:$0xff]
                %692 = vst [vmem:[%s686 + $0x50] sm:$0xff] %v691
                %v693 = vld [vmem:[%s685 + $0x18] sm:$0xff]
                %694 = vst [vmem:[%s686 + $0x78] sm:$0xff] %v693
              $region99: #{_lambda_.26} parent=93 // loop_footer
                %s684 = sadd.s32 1, %s680
              $region100: #{_lambda_.26} parent=93 // loop_footer_branch
                %679 = sbr.rel target = $region96
              $region101: #{_lambda_.26} parent=93 // loop_exit
                _
            $region94: #{_lambda_.26} parent=85 // pred_fallthru
              _
          $region86: #{_lambda_.26} parent=81 // pred_fallthru
            _
          %715 = vnop
        $region82: #{_lambda_.26} parent=65 // pred_fallthru
          _
      $region66: #{_lambda_.26} parent=5 // pred_fallthru
        _
      %p716 = scmp.le.s32.totalorder 2, %s9
      // Predicated region
      $region117: #{_lambda_.26} parent=5 // pred_check
        %p717 = pneg %p716
      $region118: #{_lambda_.26} parent=5 // pred_check_branch
        %719 = sbr.rel (%p717) target = $region120
      $region119: #{_lambda_.26} parent=5 // pred_region
        %s720 = ssub.s32 %s9, 2
        // Predicated region
        $region121: #{_lambda_.26} parent=119 // pred_check
          %p721 = pneg %p141
        $region122: #{_lambda_.26} parent=119 // pred_check_branch
          %723 = sbr.rel (%p721) target = $region124
        $region123: #{_lambda_.26} parent=119 // pred_region
          %s724 = sand.u32 %s126, 1
          %s725 = sand.u32 %s126, 1
          %s726 = smul.addr %s725, 32
          %s727 = scalar_lea.vmem [#allocation4], %s726
        $region124: #{_lambda_.26} parent=119 // pred_fallthru
          _
      $region120: #{_lambda_.26} parent=5 // pred_fallthru
        _
    $region6: #{_lambda_.26} parent=1 // loop_footer
      %s13 = sadd.s32 1, %s9
    $region7: #{_lambda_.26} parent=1 // loop_footer_branch
      %8 = sbr.rel target = $region3
    $region8: #{_lambda_.26} parent=1 // loop_exit
      _

// kernel: _lambda_.27
$region0: #{_lambda_.27}
  #allocation0 [shape = 'u32[]', space=smem, size = 0x4, offset = 0x4, fixed_abs, tag = 'smem constant byte address 0x4 - core index']
  #allocation1 [shape = 'u32[144,128]{1,0:T(1,128)}', space=vmem, size = 0x12000, scoped, tag = 'internal scratch']
  %s0 = inlined_call_operand.vmem [shape: bf16[2,16,1280], index: 0, kind: input, shape index: {}]
  %s1 = inlined_call_operand.vmem [shape: bf16[1280,128], index: 1, kind: input, shape index: {}]
  %s2 = inlined_call_operand.vmem [shape: f32[1,128], index: 2, kind: input, shape index: {}]
  %s3 = inlined_call_operand.hbm [shape: f32[2,1,128], index: 3, kind: output, shape index: {}]
  %s4 = sld [smem:[#allocation0]]
  $region45: #{_lambda_.27} parent=0
    _
  %s6 = ssub.s32 1, %s4
  %s7 = scalar_select 0, %s6, %s4
  $region1: #{_lambda_.27} parent=0
    #allocation2 [shape = 'u8[1024]{0}', space=vmem, size = 0x400, scoped, tag = 'output window, operand 0']
    #allocation3 [shape = 's32[2]{0}', space=sflag, size = 0x8, scoped, tag = 'scoped memory for _lambda_.27']
    %8 = vsyncpa [#allocation3], 0
    %s9 = scalar_lea.sflag [#allocation3], 1
    %10 = vsyncpa %s9, 0
    loop: start=0, step=1, limit=4
    $region2: #{_lambda_.27} parent=1 // loop_pre_header
      _
    $region3: #{_lambda_.27} parent=1 // loop_header
      %s12 = sphi 0, %s16
      %p13 = scmp.ge.s32.totalorder %s12, 4
      %s22 = sphi 0, %s24
      %s25 = sphi 0, %s22
      %s26 = sphi 0, %s25
      %s42 = sphi 0, %s26
      %s46 = sphi 0, %s46
      %s48 = sphi 0, %s46
      %s49 = sphi 0, %s48
      %s63 = sphi 0, %s49
      %s67 = sphi 0, %s67
      %s69 = sphi 0, %s67
      %s70 = sphi 0, %s69
      %s84 = sphi 0, %s70
      %s90 = sphi 0, %s92
      %s93 = sphi 0, %s90
      %s94 = sphi 0, %s93
      %s110 = sphi 0, %s94
    $region4: #{_lambda_.27} parent=1 // loop_header_branch
      %15 = sbr.rel (%p13) target = $region8
    $region5: #{_lambda_.27} parent=1 // loop_body
      %s17 = ssub.s32 %s12, 1
      %s18 = ssub.s32 %s12, 2
      %s19 = sadd.s32 %s12, 1
      %s20 = ssub.s32 %s12, %s19
      %p21 = scmp.eq.s32.totalorder %s20, 0
      %s23 = sadd.s32 %s22, 1
      %s24 = scalar_select %p21, %s22, %s23
      %p27 = pneg %p21
      %p28 = scmp.eq.s32.totalorder %s12, 1
      %p29 = por %p27, %p28
      %p30 = scmp.ne.s32.totalorder %s22, %s25
      %p31 = scmp.eq.s32.totalorder %s12, 0
      %p32 = por %p30, %p31
      %p33 = scmp.ne.s32.totalorder %s22, %s25
      %p34 = scmp.eq.s32.totalorder %s17, 1
      %p35 = por %p33, %p34
      %p36 = scmp.ne.s32.totalorder %s25, %s26
      %p37 = scmp.eq.s32.totalorder %s17, 0
      %p38 = por %p36, %p37
      %p39 = scmp.ne.s32.totalorder %s25, %s26
      %p40 = scmp.eq.s32.totalorder %s18, 1
      %p41 = por %p39, %p40
      %p43 = scmp.ne.s32.totalorder %s26, %s42
      %p44 = scmp.eq.s32.totalorder %s18, 0
      %p45 = por %p43, %p44
      %s47 = sadd.s32 %s46, 1
      %p50 = scmp.eq.s32.totalorder %s12, 1
      %p51 = scmp.ne.s32.totalorder %s46, %s48
      %p52 = scmp.eq.s32.totalorder %s12, 0
      %p53 = por %p51, %p52
      %p54 = scmp.ne.s32.totalorder %s46, %s48
      %p55 = scmp.eq.s32.totalorder %s17, 1
      %p56 = por %p54, %p55
      %p57 = scmp.ne.s32.totalorder %s48, %s49
      %p58 = scmp.eq.s32.totalorder %s17, 0
      %p59 = por %p57, %p58
      %p60 = scmp.ne.s32.totalorder %s48, %s49
      %p61 = scmp.eq.s32.totalorder %s18, 1
      %p62 = por %p60, %p61
      %p64 = scmp.ne.s32.totalorder %s49, %s63
      %p65 = scmp.eq.s32.totalorder %s18, 0
      %p66 = por %p64, %p65
      %s68 = sadd.s32 %s67, 1
      %p71 = scmp.eq.s32.totalorder %s12, 1
      %p72 = scmp.ne.s32.totalorder %s67, %s69
      %p73 = scmp.eq.s32.totalorder %s12, 0
      %p74 = por %p72, %p73
      %p75 = scmp.ne.s32.totalorder %s67, %s69
      %p76 = scmp.eq.s32.totalorder %s17, 1
      %p77 = por %p75, %p76
      %p78 = scmp.ne.s32.totalorder %s69, %s70
      %p79 = scmp.eq.s32.totalorder %s17, 0
      %p80 = por %p78, %p79
      %p81 = scmp.ne.s32.totalorder %s69, %s70
      %p82 = scmp.eq.s32.totalorder %s18, 1
      %p83 = por %p81, %p82
      %p85 = scmp.ne.s32.totalorder %s70, %s84
      %p86 = scmp.eq.s32.totalorder %s18, 0
      %p87 = por %p85, %p86
      %s88 = ssub.s32 %s12, %s19
      %p89 = scmp.eq.s32.totalorder %s88, 0
      %s91 = sadd.s32 %s90, 1
      %s92 = scalar_select %p89, %s90, %s91
      %p95 = pneg %p89
      %p96 = scmp.eq.s32.totalorder %s12, 1
      %p97 = por %p95, %p96
      %p98 = scmp.ne.s32.totalorder %s90, %s93
      %p99 = scmp.eq.s32.totalorder %s12, 0
      %p100 = por %p98, %p99
      %p101 = scmp.ne.s32.totalorder %s90, %s93
      %p102 = scmp.eq.s32.totalorder %s17, 1
      %p103 = por %p101, %p102
      %p104 = scmp.ne.s32.totalorder %s93, %s94
      %p105 = scmp.eq.s32.totalorder %s17, 0
      %p106 = por %p104, %p105
      %p107 = scmp.ne.s32.totalorder %s93, %s94
      %p108 = scmp.eq.s32.totalorder %s18, 1
      %p109 = por %p107, %p108
      %p111 = scmp.ne.s32.totalorder %s94, %s110
      %p112 = scmp.eq.s32.totalorder %s18, 0
      %p113 = por %p111, %p112
      %p114 = scmp.le.s32.totalorder 1, %s12
      %p115 = scmp.lt.s32.totalorder %s12, 3
      %p116 = pnand %p114, %p115
      %p117 = pneg %p116
      // Predicated region
      $region9: #{_lambda_.27} parent=5 // pred_check
        _
      $region10: #{_lambda_.27} parent=5 // pred_check_branch
        %119 = sbr.rel (%p116) target = $region12
      $region11: #{_lambda_.27} parent=5 // pred_region
        %s120 = ssub.s32 %s12, 1
        // Predicated region
        $region13: #{_lambda_.27} parent=11 // pred_check
          %p121 = pneg %p59
        $region14: #{_lambda_.27} parent=11 // pred_check_branch
          %123 = sbr.rel (%p121) target = $region16
        $region15: #{_lambda_.27} parent=11 // pred_region
          _
        $region16: #{_lambda_.27} parent=11 // pred_fallthru
          _
        // Predicated region
        $region17: #{_lambda_.27} parent=11 // pred_check
          %p124 = pneg %p80
        $region18: #{_lambda_.27} parent=11 // pred_check_branch
          %126 = sbr.rel (%p124) target = $region20
        $region19: #{_lambda_.27} parent=11 // pred_region
          _
        $region20: #{_lambda_.27} parent=11 // pred_fallthru
          _
      $region12: #{_lambda_.27} parent=5 // pred_fallthru
        _
      %p127 = scmp.lt.s32.totalorder %s12, 2
      // Predicated region
      $region21: #{_lambda_.27} parent=5 // pred_check
        %p128 = pneg %p127
      $region22: #{_lambda_.27} parent=5 // pred_check_branch
        %130 = sbr.rel (%p128) target = $region24
      $region23: #{_lambda_.27} parent=5 // pred_region
        // Predicated region
        $region25: #{_lambda_.27} parent=23 // pred_check
          %p131 = pneg %p32
        $region26: #{_lambda_.27} parent=23 // pred_check_branch
          %133 = sbr.rel (%p131) target = $region28
        $region27: #{_lambda_.27} parent=23 // pred_region
          %p134 = scmp.lt.s32.totalorder %s12, 1
          %s135 = scalar_select %p134, %s12, 1
          %s136 = smul.addr %s135, 20
          %s137 = smul.addr %s136, 4
          %s138 = scalar_lea.vmem %s0, %s137
        $region28: #{_lambda_.27} parent=23 // pred_fallthru
          _
      $region24: #{_lambda_.27} parent=5 // pred_fallthru
        _
      %p139 = scmp.le.s32.totalorder 1, %s12
      %p140 = scmp.lt.s32.totalorder %s12, 3
      %p141 = pnand %p139, %p140
      %p142 = pneg %p141
      // Predicated region
      $region29: #{_lambda_.27} parent=5 // pred_check
        _
      $region30: #{_lambda_.27} parent=5 // pred_check_branch
        %144 = sbr.rel (%p141) target = $region32
      $region31: #{_lambda_.27} parent=5 // pred_region
        %s145 = ssub.s32 %s12, 1
        %p146 = scmp.lt.s32.totalorder %s17, 1
        %s147 = scalar_select %p146, %s17, 1
        %s148 = smul.addr %s147, 20
        %s149 = smul.addr %s148, 4
        %s150 = scalar_lea.vmem %s0, %s149
        %p151 = pneg %p38
        %p152 = pneg %p35
        %p153 = pneg %p59
        %p154 = pneg %p56
        %p155 = pneg %p80
        %p156 = pneg %p77
        %p157 = pneg %p106
        %p158 = pneg %p103
        %s159 = sand.u32 %s93, 1
        %s160 = scalar_lea.sflag [#allocation3], %s159
        %s161 = sand.u32 %s93, 1
        %s162 = scalar_lea.vmem [#allocation2], %s161
        %p163 = scmp.lt.s32.totalorder %s17, 1
        %s164 = scalar_select %p163, %s17, 1
        %s165 = smul.addr %s164, 20
        %s166 = smul.addr %s165, 4
        %s167 = scalar_lea.vmem %s0, %s166
        %v169 = vld [vmem:[%s167] sm:$0xff]
        %v170 = vld [vmem:[%s167 + $0x8] sm:$0xff]
        %v171 = vld [vmem:[%s167 + $0x10] sm:$0xff]
        %v172 = vld [vmem:[%s167 + $0x18] sm:$0xff]
        %v173 = vld [vmem:[%s167 + $0x20] sm:$0xff]
        %v174 = vld [vmem:[%s167 + $0x28] sm:$0xff]
        %v175 = vld [vmem:[%s167 + $0x30] sm:$0xff]
        %v176 = vld [vmem:[%s167 + $0x38] sm:$0xff]
        %v177 = vld [vmem:[%s167 + $0x40] sm:$0xff]
        %v178 = vld [vmem:[%s167 + $0x48] sm:$0xff]
        %v179 = vunpack.c.l.bf16 %v169
        %v180 = vunpack.c.h.bf16 %v169
        %v181 = vunpack.c.l.bf16 %v170
        %v182 = vunpack.c.h.bf16 %v170
        %v183 = vunpack.c.l.bf16 %v171
        %v184 = vunpack.c.h.bf16 %v171
        %v185 = vunpack.c.l.bf16 %v172
        %v186 = vunpack.c.h.bf16 %v172
        %v187 = vunpack.c.l.bf16 %v173
        %v188 = vunpack.c.h.bf16 %v173
        %v189 = vunpack.c.l.bf16 %v174
        %v190 = vunpack.c.h.bf16 %v174
        %v191 = vunpack.c.l.bf16 %v175
        %v192 = vunpack.c.h.bf16 %v175
        %v193 = vunpack.c.l.bf16 %v176
        %v194 = vunpack.c.h.bf16 %v176
        %v195 = vunpack.c.l.bf16 %v177
        %v196 = vunpack.c.h.bf16 %v177
        %v197 = vunpack.c.l.bf16 %v178
        %v198 = vunpack.c.h.bf16 %v178
        %v199 = vadd.f32 %v179, %v189
        %v200 = vrot.slane %v199, 4
        %v201 = vadd.f32 %v199, %v200
        %v202 = vrot.slane %v201, 2
        %v203 = vadd.f32 %v201, %v202
        %v204 = vrot.slane %v203, 1
        %v205 = vadd.f32 %v203, %v204
        %v206 = vadd.f32 %v180, %v190
        %v207 = vrot.slane %v206, 4
        %v208 = vadd.f32 %v206, %v207
        %v209 = vrot.slane %v208, 2
        %v210 = vadd.f32 %v208, %v209
        %v211 = vrot.slane %v210, 1
        %v212 = vadd.f32 %v210, %v211
        %v213 = vadd.f32 %v181, %v191
        %v214 = vrot.slane %v213, 4
        %v215 = vadd.f32 %v213, %v214
        %v216 = vrot.slane %v215, 2
        %v217 = vadd.f32 %v215, %v216
        %v218 = vrot.slane %v217, 1
        %v219 = vadd.f32 %v217, %v218
        %v220 = vadd.f32 %v182, %v192
        %v221 = vrot.slane %v220, 4
        %v222 = vadd.f32 %v220, %v221
        %v223 = vrot.slane %v222, 2
        %v224 = vadd.f32 %v222, %v223
        %v225 = vrot.slane %v224, 1
        %v226 = vadd.f32 %v224, %v225
        %v227 = vadd.f32 %v183, %v193
        %v228 = vrot.slane %v227, 4
        %v229 = vadd.f32 %v227, %v228
        %v230 = vrot.slane %v229, 2
        %v231 = vadd.f32 %v229, %v230
        %v232 = vrot.slane %v231, 1
        %v233 = vadd.f32 %v231, %v232
        %v234 = vadd.f32 %v184, %v194
        %v235 = vrot.slane %v234, 4
        %v236 = vadd.f32 %v234, %v235
        %v237 = vrot.slane %v236, 2
        %v238 = vadd.f32 %v236, %v237
        %v239 = vrot.slane %v238, 1
        %v240 = vadd.f32 %v238, %v239
        %v241 = vadd.f32 %v185, %v195
        %v242 = vrot.slane %v241, 4
        %v243 = vadd.f32 %v241, %v242
        %v244 = vrot.slane %v243, 2
        %v245 = vadd.f32 %v243, %v244
        %v246 = vrot.slane %v245, 1
        %v247 = vadd.f32 %v245, %v246
        %v248 = vadd.f32 %v186, %v196
        %v249 = vrot.slane %v248, 4
        %v250 = vadd.f32 %v248, %v249
        %v251 = vrot.slane %v250, 2
        %v252 = vadd.f32 %v250, %v251
        %v253 = vrot.slane %v252, 1
        %v254 = vadd.f32 %v252, %v253
        %v255 = vadd.f32 %v187, %v197
        %v256 = vrot.slane %v255, 4
        %v257 = vadd.f32 %v255, %v256
        %v258 = vrot.slane %v257, 2
        %v259 = vadd.f32 %v257, %v258
        %v260 = vrot.slane %v259, 1
        %v261 = vadd.f32 %v259, %v260
        %v262 = vadd.f32 %v188, %v198
        %v263 = vrot.slane %v262, 4
        %v264 = vadd.f32 %v262, %v263
        %v265 = vrot.slane %v264, 2
        %v266 = vadd.f32 %v264, %v265
        %v267 = vrot.slane %v266, 1
        %v268 = vadd.f32 %v266, %v267
        %v269 = vrcp.pop 16.0
        %v270 = vmul.f32 %v205, %v269
        %v271 = vmul.f32 %v212, %v269
        %v272 = vmul.f32 %v219, %v269
        %v273 = vmul.f32 %v226, %v269
        %v274 = vmul.f32 %v233, %v269
        %v275 = vmul.f32 %v240, %v269
        %v276 = vmul.f32 %v247, %v269
        %v277 = vmul.f32 %v254, %v269
        %v278 = vmul.f32 %v261, %v269
        %v279 = vmul.f32 %v268, %v269
        %v280 = vpack.c.bf16 %v270, %v270
        %v281 = vpack.c.bf16 %v271, %v271
        %v282 = vpack.c.bf16 %v272, %v272
        %v283 = vpack.c.bf16 %v273, %v273
        %v284 = vpack.c.bf16 %v274, %v274
        %v285 = vpack.c.bf16 %v275, %v275
        %v286 = vpack.c.bf16 %v276, %v276
        %v287 = vpack.c.bf16 %v277, %v277
        %v288 = vpack.c.bf16 %v278, %v278
        %v289 = vpack.c.bf16 %v279, %v279
        %v290 = vld [vmem:[%s1] sm:$0xf]
        %v291 = vld [vmem:[%s1 + $0x4] sm:$0xf]
        %v292 = vld [vmem:[%s1 + $0x8] sm:$0xf]
        %v293 = vld [vmem:[%s1 + $0xc] sm:$0xf]
        %v294 = vld [vmem:[%s1 + $0x10] sm:$0xf]
        %v295 = vld [vmem:[%s1 + $0x14] sm:$0xf]
        %v296 = vld [vmem:[%s1 + $0x18] sm:$0xf]
        %v297 = vld [vmem:[%s1 + $0x1c] sm:$0xf]
        %v298 = vld [vmem:[%s1 + $0x20] sm:$0xf]
        %v299 = vld [vmem:[%s1 + $0x24] sm:$0xf]
        %v300 = vld [vmem:[%s1 + $0x28] sm:$0xf]
        %v301 = vld [vmem:[%s1 + $0x2c] sm:$0xf]
        %v302 = vld [vmem:[%s1 + $0x30] sm:$0xf]
        %v303 = vld [vmem:[%s1 + $0x34] sm:$0xf]
        %v304 = vld [vmem:[%s1 + $0x38] sm:$0xf]
        %v305 = vld [vmem:[%s1 + $0x3c] sm:$0xf]
        %v306 = vld [vmem:[%s1 + $0x40] sm:$0xf]
        %v307 = vld [vmem:[%s1 + $0x44] sm:$0xf]
        %v308 = vld [vmem:[%s1 + $0x48] sm:$0xf]
        %v309 = vld [vmem:[%s1 + $0x4c] sm:$0xf]
        %v310 = vld [vmem:[%s1 + $0x50] sm:$0xf]
        %v311 = vld [vmem:[%s1 + $0x54] sm:$0xf]
        %v312 = vld [vmem:[%s1 + $0x58] sm:$0xf]
        %v313 = vld [vmem:[%s1 + $0x5c] sm:$0xf]
        %v314 = vld [vmem:[%s1 + $0x60] sm:$0xf]
        %v315 = vld [vmem:[%s1 + $0x64] sm:$0xf]
        %v316 = vld [vmem:[%s1 + $0x68] sm:$0xf]
        %v317 = vld [vmem:[%s1 + $0x6c] sm:$0xf]
        %v318 = vld [vmem:[%s1 + $0x70] sm:$0xf]
        %v319 = vld [vmem:[%s1 + $0x74] sm:$0xf]
        %v320 = vld [vmem:[%s1 + $0x78] sm:$0xf]
        %v321 = vld [vmem:[%s1 + $0x7c] sm:$0xf]
        %v322 = vld [vmem:[%s1 + $0x80] sm:$0xf]
        %v323 = vld [vmem:[%s1 + $0x84] sm:$0xf]
        %v324 = vld [vmem:[%s1 + $0x88] sm:$0xf]
        %v325 = vld [vmem:[%s1 + $0x8c] sm:$0xf]
        %v326 = vld [vmem:[%s1 + $0x90] sm:$0xf]
        %v327 = vld [vmem:[%s1 + $0x94] sm:$0xf]
        %v328 = vld [vmem:[%s1 + $0x98] sm:$0xf]
        %v329 = vld [vmem:[%s1 + $0x9c] sm:$0xf]
        %v330 = vld [vmem:[%s1 + $0xa0] sm:$0xf]
        %v331 = vld [vmem:[%s1 + $0xa4] sm:$0xf]
        %v332 = vld [vmem:[%s1 + $0xa8] sm:$0xf]
        %v333 = vld [vmem:[%s1 + $0xac] sm:$0xf]
        %v334 = vld [vmem:[%s1 + $0xb0] sm:$0xf]
        %v335 = vld [vmem:[%s1 + $0xb4] sm:$0xf]
        %v336 = vld [vmem:[%s1 + $0xb8] sm:$0xf]
        %v337 = vld [vmem:[%s1 + $0xbc] sm:$0xf]
        %v338 = vld [vmem:[%s1 + $0xc0] sm:$0xf]
        %v339 = vld [vmem:[%s1 + $0xc4] sm:$0xf]
        %v340 = vld [vmem:[%s1 + $0xc8] sm:$0xf]
        %v341 = vld [vmem:[%s1 + $0xcc] sm:$0xf]
        %v342 = vld [vmem:[%s1 + $0xd0] sm:$0xf]
        %v343 = vld [vmem:[%s1 + $0xd4] sm:$0xf]
        %v344 = vld [vmem:[%s1 + $0xd8] sm:$0xf]
        %v345 = vld [vmem:[%s1 + $0xdc] sm:$0xf]
        %v346 = vld [vmem:[%s1 + $0xe0] sm:$0xf]
        %v347 = vld [vmem:[%s1 + $0xe4] sm:$0xf]
        %v348 = vld [vmem:[%s1 + $0xe8] sm:$0xf]
        %v349 = vld [vmem:[%s1 + $0xec] sm:$0xf]
        %v350 = vld [vmem:[%s1 + $0xf0] sm:$0xf]
        %v351 = vld [vmem:[%s1 + $0xf4] sm:$0xf]
        %v352 = vld [vmem:[%s1 + $0xf8] sm:$0xf]
        %v353 = vld [vmem:[%s1 + $0xfc] sm:$0xf]
        %v354 = vld [vmem:[%s1 + $0x100] sm:$0xf]
        %v355 = vld [vmem:[%s1 + $0x104] sm:$0xf]
        %v356 = vld [vmem:[%s1 + $0x108] sm:$0xf]
        %v357 = vld [vmem:[%s1 + $0x10c] sm:$0xf]
        %v358 = vld [vmem:[%s1 + $0x110] sm:$0xf]
        %v359 = vld [vmem:[%s1 + $0x114] sm:$0xf]
        %v360 = vld [vmem:[%s1 + $0x118] sm:$0xf]
        %v361 = vld [vmem:[%s1 + $0x11c] sm:$0xf]
        %v362 = vld [vmem:[%s1 + $0x120] sm:$0xf]
        %v363 = vld [vmem:[%s1 + $0x124] sm:$0xf]
        %v364 = vld [vmem:[%s1 + $0x128] sm:$0xf]
        %v365 = vld [vmem:[%s1 + $0x12c] sm:$0xf]
        %v366 = vld [vmem:[%s1 + $0x130] sm:$0xf]
        %v367 = vld [vmem:[%s1 + $0x134] sm:$0xf]
        %v368 = vld [vmem:[%s1 + $0x138] sm:$0xf]
        %v369 = vld [vmem:[%s1 + $0x13c] sm:$0xf]
        %v370 = vld [vmem:[%s1 + $0x140] sm:$0xf]
        %v371 = vld [vmem:[%s1 + $0x144] sm:$0xf]
        %v372 = vld [vmem:[%s1 + $0x148] sm:$0xf]
        %v373 = vld [vmem:[%s1 + $0x14c] sm:$0xf]
        %v374 = vld [vmem:[%s1 + $0x150] sm:$0xf]
        %v375 = vld [vmem:[%s1 + $0x154] sm:$0xf]
        %v376 = vld [vmem:[%s1 + $0x158] sm:$0xf]
        %v377 = vld [vmem:[%s1 + $0x15c] sm:$0xf]
        %v378 = vld [vmem:[%s1 + $0x160] sm:$0xf]
        %v379 = vld [vmem:[%s1 + $0x164] sm:$0xf]
        %v380 = vld [vmem:[%s1 + $0x168] sm:$0xf]
        %v381 = vld [vmem:[%s1 + $0x16c] sm:$0xf]
        %v382 = vld [vmem:[%s1 + $0x170] sm:$0xf]
        %v383 = vld [vmem:[%s1 + $0x174] sm:$0xf]
        %v384 = vld [vmem:[%s1 + $0x178] sm:$0xf]
        %v385 = vld [vmem:[%s1 + $0x17c] sm:$0xf]
        %v386 = vld [vmem:[%s1 + $0x180] sm:$0xf]
        %v387 = vld [vmem:[%s1 + $0x184] sm:$0xf]
        %v388 = vld [vmem:[%s1 + $0x188] sm:$0xf]
        %v389 = vld [vmem:[%s1 + $0x18c] sm:$0xf]
        %v390 = vld [vmem:[%s1 + $0x190] sm:$0xf]
        %v391 = vld [vmem:[%s1 + $0x194] sm:$0xf]
        %v392 = vld [vmem:[%s1 + $0x198] sm:$0xf]
        %v393 = vld [vmem:[%s1 + $0x19c] sm:$0xf]
        %v394 = vld [vmem:[%s1 + $0x1a0] sm:$0xf]
        %v395 = vld [vmem:[%s1 + $0x1a4] sm:$0xf]
        %v396 = vld [vmem:[%s1 + $0x1a8] sm:$0xf]
        %v397 = vld [vmem:[%s1 + $0x1ac] sm:$0xf]
        %v398 = vld [vmem:[%s1 + $0x1b0] sm:$0xf]
        %v399 = vld [vmem:[%s1 + $0x1b4] sm:$0xf]
        %v400 = vld [vmem:[%s1 + $0x1b8] sm:$0xf]
        %v401 = vld [vmem:[%s1 + $0x1bc] sm:$0xf]
        %v402 = vld [vmem:[%s1 + $0x1c0] sm:$0xf]
        %v403 = vld [vmem:[%s1 + $0x1c4] sm:$0xf]
        %v404 = vld [vmem:[%s1 + $0x1c8] sm:$0xf]
        %v405 = vld [vmem:[%s1 + $0x1cc] sm:$0xf]
        %v406 = vld [vmem:[%s1 + $0x1d0] sm:$0xf]
        %v407 = vld [vmem:[%s1 + $0x1d4] sm:$0xf]
        %v408 = vld [vmem:[%s1 + $0x1d8] sm:$0xf]
        %v409 = vld [vmem:[%s1 + $0x1dc] sm:$0xf]
        %v410 = vld [vmem:[%s1 + $0x1e0] sm:$0xf]
        %v411 = vld [vmem:[%s1 + $0x1e4] sm:$0xf]
        %v412 = vld [vmem:[%s1 + $0x1e8] sm:$0xf]
        %v413 = vld [vmem:[%s1 + $0x1ec] sm:$0xf]
        %v414 = vld [vmem:[%s1 + $0x1f0] sm:$0xf]
        %v415 = vld [vmem:[%s1 + $0x1f4] sm:$0xf]
        %v416 = vld [vmem:[%s1 + $0x1f8] sm:$0xf]
        %v417 = vld [vmem:[%s1 + $0x1fc] sm:$0xf]
        %v418 = vld [vmem:[%s1 + $0x200] sm:$0xf]
        %v419 = vld [vmem:[%s1 + $0x204] sm:$0xf]
        %v420 = vld [vmem:[%s1 + $0x208] sm:$0xf]
        %v421 = vld [vmem:[%s1 + $0x20c] sm:$0xf]
        %v422 = vld [vmem:[%s1 + $0x210] sm:$0xf]
        %v423 = vld [vmem:[%s1 + $0x214] sm:$0xf]
        %v424 = vld [vmem:[%s1 + $0x218] sm:$0xf]
        %v425 = vld [vmem:[%s1 + $0x21c] sm:$0xf]
        %v426 = vld [vmem:[%s1 + $0x220] sm:$0xf]
        %v427 = vld [vmem:[%s1 + $0x224] sm:$0xf]
        %v428 = vld [vmem:[%s1 + $0x228] sm:$0xf]
        %v429 = vld [vmem:[%s1 + $0x22c] sm:$0xf]
        %v430 = vld [vmem:[%s1 + $0x230] sm:$0xf]
        %v431 = vld [vmem:[%s1 + $0x234] sm:$0xf]
        %v432 = vld [vmem:[%s1 + $0x238] sm:$0xf]
        %v433 = vld [vmem:[%s1 + $0x23c] sm:$0xf]
        %v434 = vld [vmem:[%s1 + $0x240] sm:$0xf]
        %v435 = vld [vmem:[%s1 + $0x244] sm:$0xf]
        %v436 = vld [vmem:[%s1 + $0x248] sm:$0xf]
        %v437 = vld [vmem:[%s1 + $0x24c] sm:$0xf]
        %v438 = vld [vmem:[%s1 + $0x250] sm:$0xf]
        %v439 = vld [vmem:[%s1 + $0x254] sm:$0xf]
        %v440 = vld [vmem:[%s1 + $0x258] sm:$0xf]
        %v441 = vld [vmem:[%s1 + $0x25c] sm:$0xf]
        %v442 = vld [vmem:[%s1 + $0x260] sm:$0xf]
        %v443 = vld [vmem:[%s1 + $0x264] sm:$0xf]
        %v444 = vld [vmem:[%s1 + $0x268] sm:$0xf]
        %v445 = vld [vmem:[%s1 + $0x26c] sm:$0xf]
        %v446 = vld [vmem:[%s1 + $0x270] sm:$0xf]
        %v447 = vld [vmem:[%s1 + $0x274] sm:$0xf]
        %v448 = vld [vmem:[%s1 + $0x278] sm:$0xf]
        %v449 = vld [vmem:[%s1 + $0x27c] sm:$0xf]
        %v450 = vld [vmem:[%s2] sm:$0x1]
        %v611 = vunpack.c.l.b16 %v290
        %v612 = vunpack.c.l.b16 %v291
        %v613 = vunpack.c.l.b16 %v292
        %v614 = vunpack.c.l.b16 %v293
        %v615 = vunpack.c.l.b16 %v294
        %v616 = vunpack.c.l.b16 %v295
        %v617 = vunpack.c.l.b16 %v296
        %v618 = vunpack.c.l.b16 %v297
        %v619 = vunpack.c.l.b16 %v298
        %v620 = vunpack.c.l.b16 %v299
        %v621 = vunpack.c.l.b16 %v300
        %v622 = vunpack.c.l.b16 %v301
        %v623 = vunpack.c.l.b16 %v302
        %v624 = vunpack.c.l.b16 %v303
        %v625 = vunpack.c.l.b16 %v304
        %v626 = vunpack.c.l.b16 %v305
        %v627 = vunpack.c.l.b16 %v306
        %v628 = vunpack.c.l.b16 %v307
        %v629 = vunpack.c.l.b16 %v308
        %v630 = vunpack.c.l.b16 %v309
        %v631 = vunpack.c.l.b16 %v310
        %v632 = vunpack.c.l.b16 %v311
        %v633 = vunpack.c.l.b16 %v312
        %v634 = vunpack.c.l.b16 %v313
        %v635 = vunpack.c.l.b16 %v314
        %v636 = vunpack.c.l.b16 %v315
        %v637 = vunpack.c.l.b16 %v316
        %v638 = vunpack.c.l.b16 %v317
        %v639 = vunpack.c.l.b16 %v318
        %v640 = vunpack.c.l.b16 %v319
        %v641 = vunpack.c.l.b16 %v320
        %v642 = vunpack.c.l.b16 %v321
        %v643 = vunpack.c.l.b16 %v322
        %v644 = vunpack.c.l.b16 %v323
        %v645 = vunpack.c.l.b16 %v324
        %v646 = vunpack.c.l.b16 %v325
        %v647 = vunpack.c.l.b16 %v326
        %v648 = vunpack.c.l.b16 %v327
        %v649 = vunpack.c.l.b16 %v328
        %v650 = vunpack.c.l.b16 %v329
        %v651 = vunpack.c.l.b16 %v330
        %v652 = vunpack.c.l.b16 %v331
        %v653 = vunpack.c.l.b16 %v332
        %v654 = vunpack.c.l.b16 %v333
        %v655 = vunpack.c.l.b16 %v334
        %v656 = vunpack.c.l.b16 %v335
        %v657 = vunpack.c.l.b16 %v336
        %v658 = vunpack.c.l.b16 %v337
        %v659 = vunpack.c.l.b16 %v338
        %v660 = vunpack.c.l.b16 %v339
        %v661 = vunpack.c.l.b16 %v340
        %v662 = vunpack.c.l.b16 %v341
        %v663 = vunpack.c.l.b16 %v342
        %v664 = vunpack.c.l.b16 %v343
        %v665 = vunpack.c.l.b16 %v344
        %v666 = vunpack.c.l.b16 %v345
        %v667 = vunpack.c.l.b16 %v346
        %v668 = vunpack.c.l.b16 %v347
        %v669 = vunpack.c.l.b16 %v348
        %v670 = vunpack.c.l.b16 %v349
        %v671 = vunpack.c.l.b16 %v350
        %v672 = vunpack.c.l.b16 %v351
        %v673 = vunpack.c.l.b16 %v352
        %v674 = vunpack.c.l.b16 %v353
        %v675 = vunpack.c.l.b16 %v354
        %v676 = vunpack.c.l.b16 %v355
        %v677 = vunpack.c.l.b16 %v356
        %v678 = vunpack.c.l.b16 %v357
        %v679 = vunpack.c.l.b16 %v358
        %v680 = vunpack.c.l.b16 %v359
        %v681 = vunpack.c.l.b16 %v360
        %v682 = vunpack.c.l.b16 %v361
        %v683 = vunpack.c.l.b16 %v362
        %v684 = vunpack.c.l.b16 %v363
        %v685 = vunpack.c.l.b16 %v364
        %v686 = vunpack.c.l.b16 %v365
        %v687 = vunpack.c.l.b16 %v366
        %v688 = vunpack.c.l.b16 %v367
        %v689 = vunpack.c.l.b16 %v368
        %v690 = vunpack.c.l.b16 %v369
        %v691 = vunpack.c.l.b16 %v370
        %v692 = vunpack.c.l.b16 %v371
        %v693 = vunpack.c.l.b16 %v372
        %v694 = vunpack.c.l.b16 %v373
        %v695 = vunpack.c.l.b16 %v374
        %v696 = vunpack.c.l.b16 %v375
        %v697 = vunpack.c.l.b16 %v376
        %v698 = vunpack.c.l.b16 %v377
        %v699 = vunpack.c.l.b16 %v378
        %v700 = vunpack.c.l.b16 %v379
        %v701 = vunpack.c.l.b16 %v380
        %v702 = vunpack.c.l.b16 %v381
        %v703 = vunpack.c.l.b16 %v382
        %v704 = vunpack.c.l.b16 %v383
        %v705 = vunpack.c.l.b16 %v384
        %v706 = vunpack.c.l.b16 %v385
        %v707 = vunpack.c.l.b16 %v386
        %v708 = vunpack.c.l.b16 %v387
        %v709 = vunpack.c.l.b16 %v388
        %v710 = vunpack.c.l.b16 %v389
        %v711 = vunpack.c.l.b16 %v390
        %v712 = vunpack.c.l.b16 %v391
        %v713 = vunpack.c.l.b16 %v392
        %v714 = vunpack.c.l.b16 %v393
        %v715 = vunpack.c.l.b16 %v394
        %v716 = vunpack.c.l.b16 %v395
        %v717 = vunpack.c.l.b16 %v396
        %v718 = vunpack.c.l.b16 %v397
        %v719 = vunpack.c.l.b16 %v398
        %v720 = vunpack.c.l.b16 %v399
        %v721 = vunpack.c.l.b16 %v400
        %v722 = vunpack.c.l.b16 %v401
        %v723 = vunpack.c.l.b16 %v402
        %v724 = vunpack.c.l.b16 %v403
        %v725 = vunpack.c.l.b16 %v404
        %v726 = vunpack.c.l.b16 %v405
        %v727 = vunpack.c.l.b16 %v406
        %v728 = vunpack.c.l.b16 %v407
        %v729 = vunpack.c.l.b16 %v408
        %v730 = vunpack.c.l.b16 %v409
        %v731 = vunpack.c.l.b16 %v410
        %v732 = vunpack.c.l.b16 %v411
        %v733 = vunpack.c.l.b16 %v412
        %v734 = vunpack.c.l.b16 %v413
        %v735 = vunpack.c.l.b16 %v414
        %v736 = vunpack.c.l.b16 %v415
        %v737 = vunpack.c.l.b16 %v416
        %v738 = vunpack.c.l.b16 %v417
        %v739 = vunpack.c.l.b16 %v418
        %v740 = vunpack.c.l.b16 %v419
        %v741 = vunpack.c.l.b16 %v420
        %v742 = vunpack.c.l.b16 %v421
        %v743 = vunpack.c.l.b16 %v422
        %v744 = vunpack.c.l.b16 %v423
        %v745 = vunpack.c.l.b16 %v424
        %v746 = vunpack.c.l.b16 %v425
        %v747 = vunpack.c.l.b16 %v426
        %v748 = vunpack.c.l.b16 %v427
        %v749 = vunpack.c.l.b16 %v428
        %v750 = vunpack.c.l.b16 %v429
        %v751 = vunpack.c.l.b16 %v430
        %v752 = vunpack.c.l.b16 %v431
        %v753 = vunpack.c.l.b16 %v432
        %v754 = vunpack.c.l.b16 %v433
        %v755 = vunpack.c.l.b16 %v434
        %v756 = vunpack.c.l.b16 %v435
        %v757 = vunpack.c.l.b16 %v436
        %v758 = vunpack.c.l.b16 %v437
        %v759 = vunpack.c.l.b16 %v438
        %v760 = vunpack.c.l.b16 %v439
        %v761 = vunpack.c.l.b16 %v440
        %v762 = vunpack.c.l.b16 %v441
        %v763 = vunpack.c.l.b16 %v442
        %v764 = vunpack.c.l.b16 %v443
        %v765 = vunpack.c.l.b16 %v444
        %v766 = vunpack.c.l.b16 %v445
        %v767 = vunpack.c.l.b16 %v446
        %v768 = vunpack.c.l.b16 %v447
        %v769 = vunpack.c.l.b16 %v448
        %v770 = vunpack.c.l.b16 %v449
        %v771 = vpack.c.b16 %v612, %v611
        %v772 = vpack.c.b16 %v614, %v613
        %v773 = vpack.c.b16 %v616, %v615
        %v774 = vpack.c.b16 %v618, %v617
        %v775 = vpack.c.b16 %v620, %v619
        %v776 = vpack.c.b16 %v622, %v621
        %v777 = vpack.c.b16 %v624, %v623
        %v778 = vpack.c.b16 %v626, %v625
        %v779 = vpack.c.b16 %v628, %v627
        %v780 = vpack.c.b16 %v630, %v629
        %v781 = vpack.c.b16 %v632, %v631
        %v782 = vpack.c.b16 %v634, %v633
        %v783 = vpack.c.b16 %v636, %v635
        %v784 = vpack.c.b16 %v638, %v637
        %v785 = vpack.c.b16 %v640, %v639
        %v786 = vpack.c.b16 %v642, %v641
        %v787 = vpack.c.b16 %v644, %v643
        %v788 = vpack.c.b16 %v646, %v645
        %v789 = vpack.c.b16 %v648, %v647
        %v790 = vpack.c.b16 %v650, %v649
        %v791 = vpack.c.b16 %v652, %v651
        %v792 = vpack.c.b16 %v654, %v653
        %v793 = vpack.c.b16 %v656, %v655
        %v794 = vpack.c.b16 %v658, %v657
        %v795 = vpack.c.b16 %v660, %v659
        %v796 = vpack.c.b16 %v662, %v661
        %v797 = vpack.c.b16 %v664, %v663
        %v798 = vpack.c.b16 %v666, %v665
        %v799 = vpack.c.b16 %v668, %v667
        %v800 = vpack.c.b16 %v670, %v669
        %v801 = vpack.c.b16 %v672, %v671
        %v802 = vpack.c.b16 %v674, %v673
        %v803 = vpack.c.b16 %v676, %v675
        %v804 = vpack.c.b16 %v678, %v677
        %v805 = vpack.c.b16 %v680, %v679
        %v806 = vpack.c.b16 %v682, %v681
        %v807 = vpack.c.b16 %v684, %v683
        %v808 = vpack.c.b16 %v686, %v685
        %v809 = vpack.c.b16 %v688, %v687
        %v810 = vpack.c.b16 %v690, %v689
        %v811 = vpack.c.b16 %v692, %v691
        %v812 = vpack.c.b16 %v694, %v693
        %v813 = vpack.c.b16 %v696, %v695
        %v814 = vpack.c.b16 %v698, %v697
        %v815 = vpack.c.b16 %v700, %v699
        %v816 = vpack.c.b16 %v702, %v701
        %v817 = vpack.c.b16 %v704, %v703
        %v818 = vpack.c.b16 %v706, %v705
        %v819 = vpack.c.b16 %v708, %v707
        %v820 = vpack.c.b16 %v710, %v709
        %v821 = vpack.c.b16 %v712, %v711
        %v822 = vpack.c.b16 %v714, %v713
        %v823 = vpack.c.b16 %v716, %v715
        %v824 = vpack.c.b16 %v718, %v717
        %v825 = vpack.c.b16 %v720, %v719
        %v826 = vpack.c.b16 %v722, %v721
        %v827 = vpack.c.b16 %v724, %v723
        %v828 = vpack.c.b16 %v726, %v725
        %v829 = vpack.c.b16 %v728, %v727
        %v830 = vpack.c.b16 %v730, %v729
        %v831 = vpack.c.b16 %v732, %v731
        %v832 = vpack.c.b16 %v734, %v733
        %v833 = vpack.c.b16 %v736, %v735
        %v834 = vpack.c.b16 %v738, %v737
        %v835 = vpack.c.b16 %v740, %v739
        %v836 = vpack.c.b16 %v742, %v741
        %v837 = vpack.c.b16 %v744, %v743
        %v838 = vpack.c.b16 %v746, %v745
        %v839 = vpack.c.b16 %v748, %v747
        %v840 = vpack.c.b16 %v750, %v749
        %v841 = vpack.c.b16 %v752, %v751
        %v842 = vpack.c.b16 %v754, %v753
        %v843 = vpack.c.b16 %v756, %v755
        %v844 = vpack.c.b16 %v758, %v757
        %v845 = vpack.c.b16 %v760, %v759
        %v846 = vpack.c.b16 %v762, %v761
        %v847 = vpack.c.b16 %v764, %v763
        %v848 = vpack.c.b16 %v766, %v765
        %v849 = vpack.c.b16 %v768, %v767
        %v850 = vpack.c.b16 %v770, %v769
        %931 = vmatprep.subr.bf16.mxu0 0
        %932 = vmatpush1.bf16.msra.mxu0 %v771
        %933 = vmatprep.subr.bf16.mxu0 0
        %934 = vmatpush1.bf16.msra.mxu0 %v772
        %935 = vmatprep.subr.bf16.mxu0 0
        %936 = vmatpush1.bf16.msra.mxu0 %v773
        %937 = vmatprep.subr.bf16.mxu0 0
        %938 = vmatpush1.bf16.msra.mxu0 %v774
        %939 = vmatprep.subr.bf16.mxu0 0
        %940 = vmatpush1.bf16.msra.mxu0 %v775
        %941 = vmatprep.subr.bf16.mxu0 0
        %942 = vmatpush1.bf16.msra.mxu0 %v776
        %943 = vmatprep.subr.bf16.mxu0 0
        %944 = vmatpush1.bf16.msra.mxu0 %v777
        %945 = vmatprep.subr.bf16.mxu0 0
        %946 = vmatpush1.bf16.msra.mxu0 %v778
        %947 = vmatprep.subr.bf16.mxu0 0
        %948 = vmatpush1.bf16.msra.mxu0 %v779
        %949 = vmatprep.subr.bf16.mxu0 0
        %950 = vmatpush1.bf16.msra.mxu0 %v780
        %951 = vmatprep.subr.bf16.mxu0 0
        %952 = vmatpush1.bf16.msra.mxu0 %v781
        %953 = vmatprep.subr.bf16.mxu0 0
        %954 = vmatpush1.bf16.msra.mxu0 %v782
        %955 = vmatprep.subr.bf16.mxu0 0
        %956 = vmatpush1.bf16.msra.mxu0 %v783
        %957 = vmatprep.subr.bf16.mxu0 0
        %958 = vmatpush1.bf16.msra.mxu0 %v784
        %959 = vmatprep.subr.bf16.mxu0 0
        %960 = vmatpush1.bf16.msra.mxu0 %v785
        %961 = vmatprep.subr.bf16.mxu0 0
        %962 = vmatpush1.bf16.msra.mxu0 %v786
        %963 = vmatprep.mubr.bf16.mxu0 %v281
        %964 = vmatmul.mubr.bf16.gmra.mrb[0].mxu0 %v280
        %v965 = vpop.f32.mrb[0].mxu0
        %v966 = vadd.f32 %v450, %v965
        %v967 = vpop.f32.mrb[0].mxu0
        %v968 = vpop.f32.mrb[0].mxu0
        %v969 = vpop.f32.mrb[0].mxu0
        %970 = vdwg.mxu0
        %971 = vmatprep.subr.bf16.mxu0 0
        %972 = vmatpush1.bf16.msra.mxu0 %v787
        %973 = vmatprep.subr.bf16.mxu0 0
        %974 = vmatpush1.bf16.msra.mxu0 %v788
        %975 = vmatprep.subr.bf16.mxu0 0
        %976 = vmatpush1.bf16.msra.mxu0 %v789
        %977 = vmatprep.subr.bf16.mxu0 0
        %978 = vmatpush1.bf16.msra.mxu0 %v790
        %979 = vmatprep.subr.bf16.mxu0 0
        %980 = vmatpush1.bf16.msra.mxu0 %v791
        %981 = vmatprep.subr.bf16.mxu0 0
        %982 = vmatpush1.bf16.msra.mxu0 %v792
        %983 = vmatprep.subr.bf16.mxu0 0
        %984 = vmatpush1.bf16.msra.mxu0 %v793
        %985 = vmatprep.subr.bf16.mxu0 0
        %986 = vmatpush1.bf16.msra.mxu0 %v794
        %987 = vmatprep.subr.bf16.mxu0 0
        %988 = vmatpush1.bf16.msra.mxu0 %v795
        %989 = vmatprep.subr.bf16.mxu0 0
        %990 = vmatpush1.bf16.msra.mxu0 %v796
        %991 = vmatprep.subr.bf16.mxu0 0
        %992 = vmatpush1.bf16.msra.mxu0 %v797
        %993 = vmatprep.subr.bf16.mxu0 0
        %994 = vmatpush1.bf16.msra.mxu0 %v798
        %995 = vmatprep.subr.bf16.mxu0 0
        %996 = vmatpush1.bf16.msra.mxu0 %v799
        %997 = vmatprep.subr.bf16.mxu0 0
        %998 = vmatpush1.bf16.msra.mxu0 %v800
        %999 = vmatprep.subr.bf16.mxu0 0
        %1000 = vmatpush1.bf16.msra.mxu0 %v801
        %1001 = vmatprep.subr.bf16.mxu0 0
        %1002 = vmatpush1.bf16.msra.mxu0 %v802
        %1003 = vmatprep.mubr.bf16.mxu0 %v283
        %1004 = vmatmul.mubr.bf16.gmra.mrb[0].mxu0 %v282
        %v1005 = vpop.f32.mrb[0].mxu0
        %v1006 = vadd.f32 %v966, %v1005
        %v1007 = vpop.f32.mrb[0].mxu0
        %v1008 = vpop.f32.mrb[0].mxu0
        %v1009 = vpop.f32.mrb[0].mxu0
        %1010 = vdwg.mxu0
        %1011 = vmatprep.subr.bf16.mxu0 0
        %1012 = vmatpush1.bf16.msra.mxu0 %v803
        %1013 = vmatprep.subr.bf16.mxu0 0
        %1014 = vmatpush1.bf16.msra.mxu0 %v804
        %1015 = vmatprep.subr.bf16.mxu0 0
        %1016 = vmatpush1.bf16.msra.mxu0 %v805
        %1017 = vmatprep.subr.bf16.mxu0 0
        %1018 = vmatpush1.bf16.msra.mxu0 %v806
        %1019 = vmatprep.subr.bf16.mxu0 0
        %1020 = vmatpush1.bf16.msra.mxu0 %v807
        %1021 = vmatprep.subr.bf16.mxu0 0
        %1022 = vmatpush1.bf16.msra.mxu0 %v808
        %1023 = vmatprep.subr.bf16.mxu0 0
        %1024 = vmatpush1.bf16.msra.mxu0 %v809
        %1025 = vmatprep.subr.bf16.mxu0 0
        %1026 = vmatpush1.bf16.msra.mxu0 %v810
        %1027 = vmatprep.subr.bf16.mxu0 0
        %1028 = vmatpush1.bf16.msra.mxu0 %v811
        %1029 = vmatprep.subr.bf16.mxu0 0
        %1030 = vmatpush1.bf16.msra.mxu0 %v812
        %1031 = vmatprep.subr.bf16.mxu0 0
        %1032 = vmatpush1.bf16.msra.mxu0 %v813
        %1033 = vmatprep.subr.bf16.mxu0 0
        %1034 = vmatpush1.bf16.msra.mxu0 %v814
        %1035 = vmatprep.subr.bf16.mxu0 0
        %1036 = vmatpush1.bf16.msra.mxu0 %v815
        %1037 = vmatprep.subr.bf16.mxu0 0
        %1038 = vmatpush1.bf16.msra.mxu0 %v816
        %1039 = vmatprep.subr.bf16.mxu0 0
        %1040 = vmatpush1.bf16.msra.mxu0 %v817
        %1041 = vmatprep.subr.bf16.mxu0 0
        %1042 = vmatpush1.bf16.msra.mxu0 %v818
        %1043 = vmatprep.mubr.bf16.mxu0 %v285
        %1044 = vmatmul.mubr.bf16.gmra.mrb[0].mxu0 %v284
        %v1045 = vpop.f32.mrb[0].mxu0
        %v1046 = vadd.f32 %v1006, %v1045
        %v1047 = vpop.f32.mrb[0].mxu0
        %v1048 = vpop.f32.mrb[0].mxu0
        %v1049 = vpop.f32.mrb[0].mxu0
        %1050 = vdwg.mxu0
        %1051 = vmatprep.subr.bf16.mxu0 0
        %1052 = vmatpush1.bf16.msra.mxu0 %v819
        %1053 = vmatprep.subr.bf16.mxu0 0
        %1054 = vmatpush1.bf16.msra.mxu0 %v820
        %1055 = vmatprep.subr.bf16.mxu0 0
        %1056 = vmatpush1.bf16.msra.mxu0 %v821
        %1057 = vmatprep.subr.bf16.mxu0 0
        %1058 = vmatpush1.bf16.msra.mxu0 %v822
        %1059 = vmatprep.subr.bf16.mxu0 0
        %1060 = vmatpush1.bf16.msra.mxu0 %v823
        %1061 = vmatprep.subr.bf16.mxu0 0
        %1062 = vmatpush1.bf16.msra.mxu0 %v824
        %1063 = vmatprep.subr.bf16.mxu0 0
        %1064 = vmatpush1.bf16.msra.mxu0 %v825
        %1065 = vmatprep.subr.bf16.mxu0 0
        %1066 = vmatpush1.bf16.msra.mxu0 %v826
        %1067 = vmatprep.subr.bf16.mxu0 0
        %1068 = vmatpush1.bf16.msra.mxu0 %v827
        %1069 = vmatprep.subr.bf16.mxu0 0
        %1070 = vmatpush1.bf16.msra.mxu0 %v828
        %1071 = vmatprep.subr.bf16.mxu0 0
        %1072 = vmatpush1.bf16.msra.mxu0 %v829
        %1073 = vmatprep.subr.bf16.mxu0 0
        %1074 = vmatpush1.bf16.msra.mxu0 %v830
        %1075 = vmatprep.subr.bf16.mxu0 0
        %1076 = vmatpush1.bf16.msra.mxu0 %v831
        %1077 = vmatprep.subr.bf16.mxu0 0
        %1078 = vmatpush1.bf16.msra.mxu0 %v832
        %1079 = vmatprep.subr.bf16.mxu0 0
        %1080 = vmatpush1.bf16.msra.mxu0 %v833
        %1081 = vmatprep.subr.bf16.mxu0 0
        %1082 = vmatpush1.bf16.msra.mxu0 %v834
        %1083 = vmatprep.mubr.bf16.mxu0 %v287
        %1084 = vmatmul.mubr.bf16.gmra.mrb[0].mxu0 %v286
        %v1085 = vpop.f32.mrb[0].mxu0
        %v1086 = vadd.f32 %v1046, %v1085
        %v1087 = vpop.f32.mrb[0].mxu0
        %v1088 = vpop.f32.mrb[0].mxu0
        %v1089 = vpop.f32.mrb[0].mxu0
        %1090 = vdwg.mxu0
        %1091 = vmatprep.subr.bf16.mxu0 0
        %1092 = vmatpush1.bf16.msra.mxu0 %v835
        %1093 = vmatprep.subr.bf16.mxu0 0
        %1094 = vmatpush1.bf16.msra.mxu0 %v836
        %1095 = vmatprep.subr.bf16.mxu0 0
        %1096 = vmatpush1.bf16.msra.mxu0 %v837
        %1097 = vmatprep.subr.bf16.mxu0 0
        %1098 = vmatpush1.bf16.msra.mxu0 %v838
        %1099 = vmatprep.subr.bf16.mxu0 0
        %1100 = vmatpush1.bf16.msra.mxu0 %v839
        %1101 = vmatprep.subr.bf16.mxu0 0
        %1102 = vmatpush1.bf16.msra.mxu0 %v840
        %1103 = vmatprep.subr.bf16.mxu0 0
        %1104 = vmatpush1.bf16.msra.mxu0 %v841
        %1105 = vmatprep.subr.bf16.mxu0 0
        %1106 = vmatpush1.bf16.msra.mxu0 %v842
        %1107 = vmatprep.subr.bf16.mxu0 0
        %1108 = vmatpush1.bf16.msra.mxu0 %v843
        %1109 = vmatprep.subr.bf16.mxu0 0
        %1110 = vmatpush1.bf16.msra.mxu0 %v844
        %1111 = vmatprep.subr.bf16.mxu0 0
        %1112 = vmatpush1.bf16.msra.mxu0 %v845
        %1113 = vmatprep.subr.bf16.mxu0 0
        %1114 = vmatpush1.bf16.msra.mxu0 %v846
        %1115 = vmatprep.subr.bf16.mxu0 0
        %1116 = vmatpush1.bf16.msra.mxu0 %v847
        %1117 = vmatprep.subr.bf16.mxu0 0
        %1118 = vmatpush1.bf16.msra.mxu0 %v848
        %1119 = vmatprep.subr.bf16.mxu0 0
        %1120 = vmatpush1.bf16.msra.mxu0 %v849
        %1121 = vmatprep.subr.bf16.mxu0 0
        %1122 = vmatpush1.bf16.msra.mxu0 %v850
        %1123 = vmatprep.mubr.bf16.mxu0 %v289
        %1124 = vmatmul.mubr.bf16.gmra.mrb[0].mxu0 %v288
        %v1125 = vpop.f32.mrb[0].mxu0
        %v1126 = vadd.f32 %v1086, %v1125
        %v1127 = vpop.f32.mrb[0].mxu0
        %v1128 = vpop.f32.mrb[0].mxu0
        %v1129 = vpop.f32.mrb[0].mxu0
        %1130 = vdwg.mxu0
        %1131 = vst [vmem:[%s162] sm:$0x1] %v1126
        %s1132 = sand.u32 %s93, 1
        %s1133 = scalar_lea.sflag [#allocation3], %s1132
        %s1134 = sand.u32 %s93, 1
        %s1135 = scalar_lea.vmem [#allocation2], %s1134
        // Predicated region
        $region33: #{_lambda_.27} parent=31 // pred_check
          %p1136 = pneg %p103
        $region34: #{_lambda_.27} parent=31 // pred_check_branch
          %1138 = sbr.rel (%p1136) target = $region36
        $region35: #{_lambda_.27} parent=31 // pred_region
          %s1140 = ssub.s32 16, 16
          %1141 = vsyncadd %s1133, %s1140
          %s1142 = smul.addr %s17, 16
          %s1143 = scalar_lea.hbm %s3, %s1142
          %s1145 = sshll.u32 %s1135, 4
          %s1146 = int_to_ptr.vmem [resolvable:$true] %s1145
          %1148 = dma.vmem_to_hbm [thread:$0]  %s1146, 16, %s1143, %s1133
        $region36: #{_lambda_.27} parent=31 // pred_fallthru
          _
      $region32: #{_lambda_.27} parent=5 // pred_fallthru
        _
      %p1149 = scmp.le.s32.totalorder 2, %s12
      // Predicated region
      $region37: #{_lambda_.27} parent=5 // pred_check
        %p1150 = pneg %p1149
      $region38: #{_lambda_.27} parent=5 // pred_check_branch
        %1152 = sbr.rel (%p1150) target = $region40
      $region39: #{_lambda_.27} parent=5 // pred_region
        %s1153 = ssub.s32 %s12, 2
        // Predicated region
        $region41: #{_lambda_.27} parent=39 // pred_check
          %p1154 = pneg %p109
        $region42: #{_lambda_.27} parent=39 // pred_check_branch
          %1156 = sbr.rel (%p1154) target = $region44
        $region43: #{_lambda_.27} parent=39 // pred_region
          %s1157 = sand.u32 %s94, 1
          %s1158 = scalar_lea.sflag [#allocation3], %s1157
          %s1159 = sand.u32 %s94, 1
          %s1160 = scalar_lea.vmem [#allocation2], %s1159
          %1161 = dma.done %s1158, 16
        $region44: #{_lambda_.27} parent=39 // pred_fallthru
          _
      $region40: #{_lambda_.27} parent=5 // pred_fallthru
        _
    $region6: #{_lambda_.27} parent=1 // loop_footer
      %s16 = sadd.s32 1, %s12
    $region7: #{_lambda_.27} parent=1 // loop_footer_branch
      %11 = sbr.rel target = $region3
    $region8: #{_lambda_.27} parent=1 // loop_exit
      _
    %1162 = vsyncpa [#allocation3], 1
    %s1163 = scalar_lea.sflag [#allocation3], 1
    %1164 = vsyncpa %s1163, 1

</llo_original>
